<compile_context>
chip_gen: v6e
topology: v6e:2x2x1
jax: 0.10.0
libtpu: 0.0.40
codegen_flags: <defaults>
</compile_context>

<pallas_src>
import jax
import jax.numpy as jnp
from jax import lax
from jax.experimental import pallas as pl
from jax.experimental.pallas import tpu as pltpu


# ------------------------------ Pallas kernel -------------------------------

def basic_block_kernel(x_ref, w1_ref, b1_ref, w2_ref, b2_ref, o_ref,
                       xp_ref, h1p_ref):
    """Fused BasicBlock forward for one batch sample.

    x_ref  : (1, H, W, Cin)    f32   unpadded NHWC input block
    w1_ref : (9, Cin, Cout)    bf16  conv1 taps, BN1 folded in
    b1_ref : (1, Cout)         f32   conv1 bias,  BN1 folded in
    w2_ref : (9, Cout, Cout)   bf16  conv2 taps, BN2 folded in
    b2_ref : (1, Cout)         f32   conv2 bias,  BN2 folded in
    o_ref  : (1, H*W, Cout)    f32   output block (lane-dense when Cout>=128)
    xp_ref : (H+2, W+2, Cin)   f32   VMEM scratch: zero-padded input
    h1p_ref: (H+2, W+2, Cout)  f32   VMEM scratch: zero-padded conv1 activation
    """
    _, H, W, cin = x_ref.shape
    cout = w1_ref.shape[2]
    HW = H * W

    x = x_ref[0]                                          # (H, W, Cin) f32

    # ---- spatial zero-padding (padding=1) built in VMEM, never hits HBM ----
    xp_ref[...] = jnp.zeros_like(xp_ref)
    xp_ref[1:H + 1, 1:W + 1, :] = x

    # ---- conv1 (3x3, s1, p1) as 9 shifted GEMMs + folded BN1 + ReLU --------
    acc1 = jnp.zeros((HW, cout), jnp.float32)
    for t in range(9):
        ki, kj = divmod(t, 3)
        tap = xp_ref[ki:ki + H, kj:kj + W, :].reshape(HW, cin)
        acc1 += jnp.dot(tap.astype(jnp.bfloat16), w1_ref[t],
                        preferred_element_type=jnp.float32)
    h1 = jnp.maximum(acc1 + b1_ref[...], 0.0)             # (HW, Cout) f32

    # ---- padded intermediate stays resident in VMEM -------------------------
    h1p_ref[...] = jnp.zeros_like(h1p_ref)
    h1p_ref[1:H + 1, 1:W + 1, :] = h1.reshape(H, W, cout)

    # ---- conv2 (3x3, s1, p1) + folded BN2 + residual + ReLU -----------------
    acc2 = jnp.zeros((HW, cout), jnp.float32)
    for t in range(9):
        ki, kj = divmod(t, 3)
        tap = h1p_ref[ki:ki + H, kj:kj + W, :].reshape(HW, cout)
        acc2 += jnp.dot(tap.astype(jnp.bfloat16), w2_ref[t],
                        preferred_element_type=jnp.float32)

    res = x.reshape(HW, cin)                              # exact f32 residual
    o_ref[0] = jnp.maximum(acc2 + b2_ref[...] + res, 0.0)


# ------------------------------ Pallas wrapper -------------------------------

def basic_block_forward(x_nchw, params):
    """x_nchw: (B, C, H, W) float32 (PyTorch layout). Returns (B, C, H, W)."""
    x = jnp.transpose(x_nchw, (0, 2, 3, 1)).astype(jnp.float32)   # NCHW -> NHWC
    B, H, W, C = x.shape
    cout = params["w1"].shape[-1]
    if C != cout:
        raise ValueError("residual add requires in_channel == out_channel")

    # Grid over batch: "parallel" -> megacore sharding on multi-TC chips and
    # automatic double-buffering of the per-sample input/output blocks.
    # TODO(synk): for large H*W, add a second grid axis tiling H with a 2-row
    # halo so the per-step block stays within the 64 MiB v7x VMEM budget.
    out = pl.pallas_call(
        basic_block_kernel,
        out_shape=jax.ShapeDtypeStruct((B, H * W, cout), jnp.float32),
        grid=(B,),
        in_specs=[
            pl.BlockSpec((1, H, W, C), lambda b: (b, 0, 0, 0)),
            pl.BlockSpec((9, C, cout), lambda b: (0, 0, 0)),
            pl.BlockSpec((1, cout), lambda b: (0, 0)),
            pl.BlockSpec((9, cout, cout), lambda b: (0, 0, 0)),
            pl.BlockSpec((1, cout), lambda b: (0, 0)),
        ],
        out_specs=pl.BlockSpec((1, H * W, cout), lambda b: (b, 0, 0)),
        scratch_shapes=[
            pltpu.VMEM((H + 2, W + 2, C), jnp.float32),
            pltpu.VMEM((H + 2, W + 2, cout), jnp.float32),
        ],
        compiler_params=pltpu.CompilerParams(
            dimension_semantics=("parallel",),
        ),
    )(x, params["w1"], params["b1"], params["w2"], params["b2"])

    out = out.reshape(B, H, W, cout)
    return jnp.transpose(out, (0, 3, 1, 2))                       # NHWC -> NCHW


# --------------------------- Parameters (BN folded) --------------------------

def init_basic_block_params(key, in_channel, out_channel, ksize=3, eps=1e-5):
    k1, k2, k3, k4 = jax.random.split(key, 4)

    def kaiming(k, cout, cin):
        fan_out = cout * ksize * ksize
        std = (2.0 / fan_out) ** 0.5
        return jax.random.normal(k, (cout, cin, ksize, ksize), jnp.float32) * std

    w1_oihw = kaiming(k1, out_channel, in_channel)
    w2_oihw = kaiming(k2, out_channel, out_channel)
    bias1 = jax.random.normal(k3, (out_channel,), jnp.float32) * 0.01
    bias2 = jax.random.normal(k4, (out_channel,), jnp.float32) * 0.01

    # Inference-mode BN (gamma=1, beta=0, mean=0, var=1): y -> y / sqrt(1+eps).
    bn_scale = 1.0 / (1.0 + eps) ** 0.5

    def fold(w_oihw, bias):
        cout, cin, kh, kw = w_oihw.shape
        w_hwio = jnp.transpose(w_oihw, (2, 3, 1, 0)) * bn_scale
        w_taps = w_hwio.reshape(kh * kw, cin, cout).astype(jnp.bfloat16)  # MXU dtype
        # Reference uses the same (bf16-rounded) weight values in f32 so the
        # comparison only measures activation rounding / accumulation order.
        w_hwio_ref = w_taps.astype(jnp.float32).reshape(kh, kw, cin, cout)
        b = (bias * bn_scale).astype(jnp.float32)
        return w_hwio_ref, w_taps, b

    w1_hwio, w1_taps, b1 = fold(w1_oihw, bias1)
    w2_hwio, w2_taps, b2 = fold(w2_oihw, bias2)

    kernel_params = dict(w1=w1_taps, b1=b1.reshape(1, -1),
                         w2=w2_taps, b2=b2.reshape(1, -1))
    ref_params = dict(w1_hwio=w1_hwio, b1=b1, w2_hwio=w2_hwio, b2=b2)
    return kernel_params, ref_params


# ---------------------------- Pure-JAX reference -----------------------------

def reference_basic_block(x_nchw, rp):
    x = jnp.transpose(x_nchw, (0, 2, 3, 1)).astype(jnp.float32)
    dn = ("NHWC", "HWIO", "NHWC")
    y = lax.conv_general_dilated(x, rp["w1_hwio"], (1, 1), ((1, 1), (1, 1)),
                                 dimension_numbers=dn)
    y = jnp.maximum(y + rp["b1"], 0.0)
    z = lax.conv_general_dilated(y, rp["w2_hwio"], (1, 1), ((1, 1), (1, 1)),
                                 dimension_numbers=dn)
    z = jnp.maximum(z + rp["b2"] + x, 0.0)
    return jnp.transpose(z, (0, 3, 1, 2))


# ----------------------------------- main ------------------------------------

if __name__ == "__main__":
    key = jax.random.PRNGKey(0)
    kx, kp = jax.random.split(key)

    # BasicBlock(in_channel=128, out_channel=128), B=2, 16x16 spatial, NCHW.
    # C=128 keeps every GEMM operand and the output block lane-dense (128).
    B, C, H, W = 2, 128, 16, 16
    x = jax.random.normal(kx, (B, C, H, W), jnp.float32)

    kernel_params, ref_params = init_basic_block_params(kp, C, C)

    out = jax.block_until_ready(jax.jit(basic_block_forward)(x, kernel_params))
    ref = jax.block_until_ready(jax.jit(reference_basic_block)(x, ref_params))

    assert out.shape == (B, C, H, W)
    assert bool(jnp.all(jnp.isfinite(out)))
    # bf16 MXU activations in the kernel vs f32 reference -> loose tolerance.
    max_err = float(jnp.max(jnp.abs(out - ref)))
    assert bool(jnp.allclose(out, ref, atol=0.1, rtol=0.05)), max_err
    print("KERNEL_OK")
</pallas_src>

<mosaic_0001>
module attributes {stable_mosaic.version = 11 : i64} {
  func.func @basic_block_kernel(%arg0: i32, %arg1: memref<1x16x16x128xf32, #tpu.memory_space<vmem>>, %arg2: memref<9x128x128xbf16, #tpu.memory_space<vmem>>, %arg3: memref<1x128xf32, #tpu.memory_space<vmem>>, %arg4: memref<9x128x128xbf16, #tpu.memory_space<vmem>>, %arg5: memref<1x128xf32, #tpu.memory_space<vmem>>, %arg6: memref<1x256x128xf32, #tpu.memory_space<vmem>>, %arg7: memref<18x18x128xf32, #tpu.memory_space<vmem>>, %arg8: memref<18x18x128xf32, #tpu.memory_space<vmem>>) attributes {dimension_semantics = [#tpu.dimension_semantics<parallel>], iteration_bounds = array<i64: 2>, scalar_prefetch = 0 : i64, scratch_operands = 2 : i64, tpu.core_type = #tpu.core_type<tc>, window_params = [{transform_indices = @transform_0, window_bounds = array<i64: 1, 16, 16, 128>}, {pipeline_mode = #tpu.pipeline_mode<synchronous>, transform_indices = @transform_1, window_bounds = array<i64: 9, 128, 128>}, {pipeline_mode = #tpu.pipeline_mode<synchronous>, transform_indices = @transform_2, window_bounds = array<i64: 1, 128>}, {pipeline_mode = #tpu.pipeline_mode<synchronous>, transform_indices = @transform_3, window_bounds = array<i64: 9, 128, 128>}, {pipeline_mode = #tpu.pipeline_mode<synchronous>, transform_indices = @transform_4, window_bounds = array<i64: 1, 128>}, {transform_indices = @transform_5, window_bounds = array<i64: 1, 256, 128>}]} {
    %c0 = arith.constant 0 : index
    %c0_0 = arith.constant 0 : index
    %c0_1 = arith.constant 0 : index
    %c0_2 = arith.constant 0 : index
    %0 = vector.load %arg1[%c0, %c0_0, %c0_1, %c0_2] : memref<1x16x16x128xf32, #tpu.memory_space<vmem>>, vector<1x16x16x128xf32>
    %1 = vector.shape_cast %0 : vector<1x16x16x128xf32> to vector<16x16x128xf32>
    %cst = arith.constant 0.000000e+00 : f32
    %2 = vector.broadcast %cst : f32 to vector<18x18x128xf32>
    %c0_3 = arith.constant 0 : index
    %c0_4 = arith.constant 0 : index
    %c0_5 = arith.constant 0 : index
    %3 = vector.load %arg7[%c0_3, %c0_4, %c0_5] : memref<18x18x128xf32, #tpu.memory_space<vmem>>, vector<18x18x128xf32>
    tpu.vector_store %arg7[%c0_3, %c0_4, %c0_5], %2 {strides = array<i32>} : memref<18x18x128xf32, #tpu.memory_space<vmem>>, vector<18x18x128xf32>,
    %c1 = arith.constant 1 : index
    %c1_6 = arith.constant 1 : index
    %c0_7 = arith.constant 0 : index
    %4 = vector.load %arg7[%c1, %c1_6, %c0_7] : memref<18x18x128xf32, #tpu.memory_space<vmem>>, vector<16x16x128xf32>
    tpu.vector_store %arg7[%c1, %c1_6, %c0_7], %1 {strides = array<i32>} : memref<18x18x128xf32, #tpu.memory_space<vmem>>, vector<16x16x128xf32>,
    %cst_8 = arith.constant 0.000000e+00 : f32
    %5 = vector.broadcast %cst_8 : f32 to vector<256x128xf32>
    %c0_9 = arith.constant 0 : index
    %c0_10 = arith.constant 0 : index
    %c0_11 = arith.constant 0 : index
    %6 = vector.load %arg7[%c0_9, %c0_10, %c0_11] : memref<18x18x128xf32, #tpu.memory_space<vmem>>, vector<16x16x128xf32>
    %7 = vector.shape_cast %6 : vector<16x16x128xf32> to vector<256x128xf32>
    %8 = arith.truncf %7 : vector<256x128xf32> to vector<256x128xbf16>
    %c0_12 = arith.constant 0 : index
    %c0_13 = arith.constant 0 : index
    %c0_14 = arith.constant 0 : index
    %9 = vector.load %arg2[%c0_12, %c0_13, %c0_14] : memref<9x128x128xbf16, #tpu.memory_space<vmem>>, vector<1x128x128xbf16>
    %10 = vector.shape_cast %9 : vector<1x128x128xbf16> to vector<128x128xbf16>
    %cst_15 = arith.constant dense<0.000000e+00> : vector<256x128xf32>
    %11 = tpu.matmul %8, %10, %cst_15 {dimension_numbers = #tpu.dot_dimension_numbers<[1], [0], [0], [1], [0, 0, 1, 1], [], []>} : vector<256x128xbf16>, vector<128x128xbf16>, vector<256x128xf32> -> vector<256x128xf32>
    %12 = arith.addf %5, %11 : vector<256x128xf32>
    %c0_16 = arith.constant 0 : index
    %c1_17 = arith.constant 1 : index
    %c0_18 = arith.constant 0 : index
    %13 = vector.load %arg7[%c0_16, %c1_17, %c0_18] : memref<18x18x128xf32, #tpu.memory_space<vmem>>, vector<16x16x128xf32>
    %14 = vector.shape_cast %13 : vector<16x16x128xf32> to vector<256x128xf32>
    %15 = arith.truncf %14 : vector<256x128xf32> to vector<256x128xbf16>
    %c1_19 = arith.constant 1 : index
    %c0_20 = arith.constant 0 : index
    %c0_21 = arith.constant 0 : index
    %16 = vector.load %arg2[%c1_19, %c0_20, %c0_21] : memref<9x128x128xbf16, #tpu.memory_space<vmem>>, vector<1x128x128xbf16>
    %17 = vector.shape_cast %16 : vector<1x128x128xbf16> to vector<128x128xbf16>
    %cst_22 = arith.constant dense<0.000000e+00> : vector<256x128xf32>
    %18 = tpu.matmul %15, %17, %cst_22 {dimension_numbers = #tpu.dot_dimension_numbers<[1], [0], [0], [1], [0, 0, 1, 1], [], []>} : vector<256x128xbf16>, vector<128x128xbf16>, vector<256x128xf32> -> vector<256x128xf32>
    %19 = arith.addf %12, %18 : vector<256x128xf32>
    %c0_23 = arith.constant 0 : index
    %c2 = arith.constant 2 : index
    %c0_24 = arith.constant 0 : index
    %20 = vector.load %arg7[%c0_23, %c2, %c0_24] : memref<18x18x128xf32, #tpu.memory_space<vmem>>, vector<16x16x128xf32>
    %21 = vector.shape_cast %20 : vector<16x16x128xf32> to vector<256x128xf32>
    %22 = arith.truncf %21 : vector<256x128xf32> to vector<256x128xbf16>
    %c2_25 = arith.constant 2 : index
    %c0_26 = arith.constant 0 : index
    %c0_27 = arith.constant 0 : index
    %23 = vector.load %arg2[%c2_25, %c0_26, %c0_27] : memref<9x128x128xbf16, #tpu.memory_space<vmem>>, vector<1x128x128xbf16>
    %24 = vector.shape_cast %23 : vector<1x128x128xbf16> to vector<128x128xbf16>
    %cst_28 = arith.constant dense<0.000000e+00> : vector<256x128xf32>
    %25 = tpu.matmul %22, %24, %cst_28 {dimension_numbers = #tpu.dot_dimension_numbers<[1], [0], [0], [1], [0, 0, 1, 1], [], []>} : vector<256x128xbf16>, vector<128x128xbf16>, vector<256x128xf32> -> vector<256x128xf32>
    %26 = arith.addf %19, %25 : vector<256x128xf32>
    %c1_29 = arith.constant 1 : index
    %c0_30 = arith.constant 0 : index
    %c0_31 = arith.constant 0 : index
    %27 = vector.load %arg7[%c1_29, %c0_30, %c0_31] : memref<18x18x128xf32, #tpu.memory_space<vmem>>, vector<16x16x128xf32>
    %28 = vector.shape_cast %27 : vector<16x16x128xf32> to vector<256x128xf32>
    %29 = arith.truncf %28 : vector<256x128xf32> to vector<256x128xbf16>
    %c3 = arith.constant 3 : index
    %c0_32 = arith.constant 0 : index
    %c0_33 = arith.constant 0 : index
    %30 = vector.load %arg2[%c3, %c0_32, %c0_33] : memref<9x128x128xbf16, #tpu.memory_space<vmem>>, vector<1x128x128xbf16>
    %31 = vector.shape_cast %30 : vector<1x128x128xbf16> to vector<128x128xbf16>
    %cst_34 = arith.constant dense<0.000000e+00> : vector<256x128xf32>
    %32 = tpu.matmul %29, %31, %cst_34 {dimension_numbers = #tpu.dot_dimension_numbers<[1], [0], [0], [1], [0, 0, 1, 1], [], []>} : vector<256x128xbf16>, vector<128x128xbf16>, vector<256x128xf32> -> vector<256x128xf32>
    %33 = arith.addf %26, %32 : vector<256x128xf32>
    %c1_35 = arith.constant 1 : index
    %c1_36 = arith.constant 1 : index
    %c0_37 = arith.constant 0 : index
    %34 = vector.load %arg7[%c1_35, %c1_36, %c0_37] : memref<18x18x128xf32, #tpu.memory_space<vmem>>, vector<16x16x128xf32>
    %35 = vector.shape_cast %34 : vector<16x16x128xf32> to vector<256x128xf32>
    %36 = arith.truncf %35 : vector<256x128xf32> to vector<256x128xbf16>
    %c4 = arith.constant 4 : index
    %c0_38 = arith.constant 0 : index
    %c0_39 = arith.constant 0 : index
    %37 = vector.load %arg2[%c4, %c0_38, %c0_39] : memref<9x128x128xbf16, #tpu.memory_space<vmem>>, vector<1x128x128xbf16>
    %38 = vector.shape_cast %37 : vector<1x128x128xbf16> to vector<128x128xbf16>
    %cst_40 = arith.constant dense<0.000000e+00> : vector<256x128xf32>
    %39 = tpu.matmul %36, %38, %cst_40 {dimension_numbers = #tpu.dot_dimension_numbers<[1], [0], [0], [1], [0, 0, 1, 1], [], []>} : vector<256x128xbf16>, vector<128x128xbf16>, vector<256x128xf32> -> vector<256x128xf32>
    %40 = arith.addf %33, %39 : vector<256x128xf32>
    %c1_41 = arith.constant 1 : index
    %c2_42 = arith.constant 2 : index
    %c0_43 = arith.constant 0 : index
    %41 = vector.load %arg7[%c1_41, %c2_42, %c0_43] : memref<18x18x128xf32, #tpu.memory_space<vmem>>, vector<16x16x128xf32>
    %42 = vector.shape_cast %41 : vector<16x16x128xf32> to vector<256x128xf32>
    %43 = arith.truncf %42 : vector<256x128xf32> to vector<256x128xbf16>
    %c5 = arith.constant 5 : index
    %c0_44 = arith.constant 0 : index
    %c0_45 = arith.constant 0 : index
    %44 = vector.load %arg2[%c5, %c0_44, %c0_45] : memref<9x128x128xbf16, #tpu.memory_space<vmem>>, vector<1x128x128xbf16>
    %45 = vector.shape_cast %44 : vector<1x128x128xbf16> to vector<128x128xbf16>
    %cst_46 = arith.constant dense<0.000000e+00> : vector<256x128xf32>
    %46 = tpu.matmul %43, %45, %cst_46 {dimension_numbers = #tpu.dot_dimension_numbers<[1], [0], [0], [1], [0, 0, 1, 1], [], []>} : vector<256x128xbf16>, vector<128x128xbf16>, vector<256x128xf32> -> vector<256x128xf32>
    %47 = arith.addf %40, %46 : vector<256x128xf32>
    %c2_47 = arith.constant 2 : index
    %c0_48 = arith.constant 0 : index
    %c0_49 = arith.constant 0 : index
    %48 = vector.load %arg7[%c2_47, %c0_48, %c0_49] : memref<18x18x128xf32, #tpu.memory_space<vmem>>, vector<16x16x128xf32>
    %49 = vector.shape_cast %48 : vector<16x16x128xf32> to vector<256x128xf32>
    %50 = arith.truncf %49 : vector<256x128xf32> to vector<256x128xbf16>
    %c6 = arith.constant 6 : index
    %c0_50 = arith.constant 0 : index
    %c0_51 = arith.constant 0 : index
    %51 = vector.load %arg2[%c6, %c0_50, %c0_51] : memref<9x128x128xbf16, #tpu.memory_space<vmem>>, vector<1x128x128xbf16>
    %52 = vector.shape_cast %51 : vector<1x128x128xbf16> to vector<128x128xbf16>
    %cst_52 = arith.constant dense<0.000000e+00> : vector<256x128xf32>
    %53 = tpu.matmul %50, %52, %cst_52 {dimension_numbers = #tpu.dot_dimension_numbers<[1], [0], [0], [1], [0, 0, 1, 1], [], []>} : vector<256x128xbf16>, vector<128x128xbf16>, vector<256x128xf32> -> vector<256x128xf32>
    %54 = arith.addf %47, %53 : vector<256x128xf32>
    %c2_53 = arith.constant 2 : index
    %c1_54 = arith.constant 1 : index
    %c0_55 = arith.constant 0 : index
    %55 = vector.load %arg7[%c2_53, %c1_54, %c0_55] : memref<18x18x128xf32, #tpu.memory_space<vmem>>, vector<16x16x128xf32>
    %56 = vector.shape_cast %55 : vector<16x16x128xf32> to vector<256x128xf32>
    %57 = arith.truncf %56 : vector<256x128xf32> to vector<256x128xbf16>
    %c7 = arith.constant 7 : index
    %c0_56 = arith.constant 0 : index
    %c0_57 = arith.constant 0 : index
    %58 = vector.load %arg2[%c7, %c0_56, %c0_57] : memref<9x128x128xbf16, #tpu.memory_space<vmem>>, vector<1x128x128xbf16>
    %59 = vector.shape_cast %58 : vector<1x128x128xbf16> to vector<128x128xbf16>
    %cst_58 = arith.constant dense<0.000000e+00> : vector<256x128xf32>
    %60 = tpu.matmul %57, %59, %cst_58 {dimension_numbers = #tpu.dot_dimension_numbers<[1], [0], [0], [1], [0, 0, 1, 1], [], []>} : vector<256x128xbf16>, vector<128x128xbf16>, vector<256x128xf32> -> vector<256x128xf32>
    %61 = arith.addf %54, %60 : vector<256x128xf32>
    %c2_59 = arith.constant 2 : index
    %c2_60 = arith.constant 2 : index
    %c0_61 = arith.constant 0 : index
    %62 = vector.load %arg7[%c2_59, %c2_60, %c0_61] : memref<18x18x128xf32, #tpu.memory_space<vmem>>, vector<16x16x128xf32>
    %63 = vector.shape_cast %62 : vector<16x16x128xf32> to vector<256x128xf32>
    %64 = arith.truncf %63 : vector<256x128xf32> to vector<256x128xbf16>
    %c8 = arith.constant 8 : index
    %c0_62 = arith.constant 0 : index
    %c0_63 = arith.constant 0 : index
    %65 = vector.load %arg2[%c8, %c0_62, %c0_63] : memref<9x128x128xbf16, #tpu.memory_space<vmem>>, vector<1x128x128xbf16>
    %66 = vector.shape_cast %65 : vector<1x128x128xbf16> to vector<128x128xbf16>
    %cst_64 = arith.constant dense<0.000000e+00> : vector<256x128xf32>
    %67 = tpu.matmul %64, %66, %cst_64 {dimension_numbers = #tpu.dot_dimension_numbers<[1], [0], [0], [1], [0, 0, 1, 1], [], []>} : vector<256x128xbf16>, vector<128x128xbf16>, vector<256x128xf32> -> vector<256x128xf32>
    %68 = arith.addf %61, %67 : vector<256x128xf32>
    %c0_65 = arith.constant 0 : index
    %c0_66 = arith.constant 0 : index
    %69 = vector.load %arg3[%c0_65, %c0_66] : memref<1x128xf32, #tpu.memory_space<vmem>>, vector<1x128xf32>
    %70 = vector.broadcast %69 : vector<1x128xf32> to vector<256x128xf32>
    %71 = arith.addf %68, %70 : vector<256x128xf32>
    %cst_67 = arith.constant 0.000000e+00 : f32
    %72 = vector.broadcast %cst_67 : f32 to vector<256x128xf32>
    %73 = arith.maximumf %71, %72 : vector<256x128xf32>
    %cst_68 = arith.constant 0.000000e+00 : f32
    %74 = vector.broadcast %cst_68 : f32 to vector<18x18x128xf32>
    %c0_69 = arith.constant 0 : index
    %c0_70 = arith.constant 0 : index
    %c0_71 = arith.constant 0 : index
    %75 = vector.load %arg8[%c0_69, %c0_70, %c0_71] : memref<18x18x128xf32, #tpu.memory_space<vmem>>, vector<18x18x128xf32>
    tpu.vector_store %arg8[%c0_69, %c0_70, %c0_71], %74 {strides = array<i32>} : memref<18x18x128xf32, #tpu.memory_space<vmem>>, vector<18x18x128xf32>,
    %76 = vector.shape_cast %73 : vector<256x128xf32> to vector<16x16x128xf32>
    %c1_72 = arith.constant 1 : index
    %c1_73 = arith.constant 1 : index
    %c0_74 = arith.constant 0 : index
    %77 = vector.load %arg8[%c1_72, %c1_73, %c0_74] : memref<18x18x128xf32, #tpu.memory_space<vmem>>, vector<16x16x128xf32>
    tpu.vector_store %arg8[%c1_72, %c1_73, %c0_74], %76 {strides = array<i32>} : memref<18x18x128xf32, #tpu.memory_space<vmem>>, vector<16x16x128xf32>,
    %cst_75 = arith.constant 0.000000e+00 : f32
    %78 = vector.broadcast %cst_75 : f32 to vector<256x128xf32>
    %c0_76 = arith.constant 0 : index
    %c0_77 = arith.constant 0 : index
    %c0_78 = arith.constant 0 : index
    %79 = vector.load %arg8[%c0_76, %c0_77, %c0_78] : memref<18x18x128xf32, #tpu.memory_space<vmem>>, vector<16x16x128xf32>
    %80 = vector.shape_cast %79 : vector<16x16x128xf32> to vector<256x128xf32>
    %81 = arith.truncf %80 : vector<256x128xf32> to vector<256x128xbf16>
    %c0_79 = arith.constant 0 : index
    %c0_80 = arith.constant 0 : index
    %c0_81 = arith.constant 0 : index
    %82 = vector.load %arg4[%c0_79, %c0_80, %c0_81] : memref<9x128x128xbf16, #tpu.memory_space<vmem>>, vector<1x128x128xbf16>
    %83 = vector.shape_cast %82 : vector<1x128x128xbf16> to vector<128x128xbf16>
    %cst_82 = arith.constant dense<0.000000e+00> : vector<256x128xf32>
    %84 = tpu.matmul %81, %83, %cst_82 {dimension_numbers = #tpu.dot_dimension_numbers<[1], [0], [0], [1], [0, 0, 1, 1], [], []>} : vector<256x128xbf16>, vector<128x128xbf16>, vector<256x128xf32> -> vector<256x128xf32>
    %85 = arith.addf %78, %84 : vector<256x128xf32>
    %c0_83 = arith.constant 0 : index
    %c1_84 = arith.constant 1 : index
    %c0_85 = arith.constant 0 : index
    %86 = vector.load %arg8[%c0_83, %c1_84, %c0_85] : memref<18x18x128xf32, #tpu.memory_space<vmem>>, vector<16x16x128xf32>
    %87 = vector.shape_cast %86 : vector<16x16x128xf32> to vector<256x128xf32>
    %88 = arith.truncf %87 : vector<256x128xf32> to vector<256x128xbf16>
    %c1_86 = arith.constant 1 : index
    %c0_87 = arith.constant 0 : index
    %c0_88 = arith.constant 0 : index
    %89 = vector.load %arg4[%c1_86, %c0_87, %c0_88] : memref<9x128x128xbf16, #tpu.memory_space<vmem>>, vector<1x128x128xbf16>
    %90 = vector.shape_cast %89 : vector<1x128x128xbf16> to vector<128x128xbf16>
    %cst_89 = arith.constant dense<0.000000e+00> : vector<256x128xf32>
    %91 = tpu.matmul %88, %90, %cst_89 {dimension_numbers = #tpu.dot_dimension_numbers<[1], [0], [0], [1], [0, 0, 1, 1], [], []>} : vector<256x128xbf16>, vector<128x128xbf16>, vector<256x128xf32> -> vector<256x128xf32>
    %92 = arith.addf %85, %91 : vector<256x128xf32>
    %c0_90 = arith.constant 0 : index
    %c2_91 = arith.constant 2 : index
    %c0_92 = arith.constant 0 : index
    %93 = vector.load %arg8[%c0_90, %c2_91, %c0_92] : memref<18x18x128xf32, #tpu.memory_space<vmem>>, vector<16x16x128xf32>
    %94 = vector.shape_cast %93 : vector<16x16x128xf32> to vector<256x128xf32>
    %95 = arith.truncf %94 : vector<256x128xf32> to vector<256x128xbf16>
    %c2_93 = arith.constant 2 : index
    %c0_94 = arith.constant 0 : index
    %c0_95 = arith.constant 0 : index
    %96 = vector.load %arg4[%c2_93, %c0_94, %c0_95] : memref<9x128x128xbf16, #tpu.memory_space<vmem>>, vector<1x128x128xbf16>
    %97 = vector.shape_cast %96 : vector<1x128x128xbf16> to vector<128x128xbf16>
    %cst_96 = arith.constant dense<0.000000e+00> : vector<256x128xf32>
    %98 = tpu.matmul %95, %97, %cst_96 {dimension_numbers = #tpu.dot_dimension_numbers<[1], [0], [0], [1], [0, 0, 1, 1], [], []>} : vector<256x128xbf16>, vector<128x128xbf16>, vector<256x128xf32> -> vector<256x128xf32>
    %99 = arith.addf %92, %98 : vector<256x128xf32>
    %c1_97 = arith.constant 1 : index
    %c0_98 = arith.constant 0 : index
    %c0_99 = arith.constant 0 : index
    %100 = vector.load %arg8[%c1_97, %c0_98, %c0_99] : memref<18x18x128xf32, #tpu.memory_space<vmem>>, vector<16x16x128xf32>
    %101 = vector.shape_cast %100 : vector<16x16x128xf32> to vector<256x128xf32>
    %102 = arith.truncf %101 : vector<256x128xf32> to vector<256x128xbf16>
    %c3_100 = arith.constant 3 : index
    %c0_101 = arith.constant 0 : index
    %c0_102 = arith.constant 0 : index
    %103 = vector.load %arg4[%c3_100, %c0_101, %c0_102] : memref<9x128x128xbf16, #tpu.memory_space<vmem>>, vector<1x128x128xbf16>
    %104 = vector.shape_cast %103 : vector<1x128x128xbf16> to vector<128x128xbf16>
    %cst_103 = arith.constant dense<0.000000e+00> : vector<256x128xf32>
    %105 = tpu.matmul %102, %104, %cst_103 {dimension_numbers = #tpu.dot_dimension_numbers<[1], [0], [0], [1], [0, 0, 1, 1], [], []>} : vector<256x128xbf16>, vector<128x128xbf16>, vector<256x128xf32> -> vector<256x128xf32>
    %106 = arith.addf %99, %105 : vector<256x128xf32>
    %c1_104 = arith.constant 1 : index
    %c1_105 = arith.constant 1 : index
    %c0_106 = arith.constant 0 : index
    %107 = vector.load %arg8[%c1_104, %c1_105, %c0_106] : memref<18x18x128xf32, #tpu.memory_space<vmem>>, vector<16x16x128xf32>
    %108 = vector.shape_cast %107 : vector<16x16x128xf32> to vector<256x128xf32>
    %109 = arith.truncf %108 : vector<256x128xf32> to vector<256x128xbf16>
    %c4_107 = arith.constant 4 : index
    %c0_108 = arith.constant 0 : index
    %c0_109 = arith.constant 0 : index
    %110 = vector.load %arg4[%c4_107, %c0_108, %c0_109] : memref<9x128x128xbf16, #tpu.memory_space<vmem>>, vector<1x128x128xbf16>
    %111 = vector.shape_cast %110 : vector<1x128x128xbf16> to vector<128x128xbf16>
    %cst_110 = arith.constant dense<0.000000e+00> : vector<256x128xf32>
    %112 = tpu.matmul %109, %111, %cst_110 {dimension_numbers = #tpu.dot_dimension_numbers<[1], [0], [0], [1], [0, 0, 1, 1], [], []>} : vector<256x128xbf16>, vector<128x128xbf16>, vector<256x128xf32> -> vector<256x128xf32>
    %113 = arith.addf %106, %112 : vector<256x128xf32>
    %c1_111 = arith.constant 1 : index
    %c2_112 = arith.constant 2 : index
    %c0_113 = arith.constant 0 : index
    %114 = vector.load %arg8[%c1_111, %c2_112, %c0_113] : memref<18x18x128xf32, #tpu.memory_space<vmem>>, vector<16x16x128xf32>
    %115 = vector.shape_cast %114 : vector<16x16x128xf32> to vector<256x128xf32>
    %116 = arith.truncf %115 : vector<256x128xf32> to vector<256x128xbf16>
    %c5_114 = arith.constant 5 : index
    %c0_115 = arith.constant 0 : index
    %c0_116 = arith.constant 0 : index
    %117 = vector.load %arg4[%c5_114, %c0_115, %c0_116] : memref<9x128x128xbf16, #tpu.memory_space<vmem>>, vector<1x128x128xbf16>
    %118 = vector.shape_cast %117 : vector<1x128x128xbf16> to vector<128x128xbf16>
    %cst_117 = arith.constant dense<0.000000e+00> : vector<256x128xf32>
    %119 = tpu.matmul %116, %118, %cst_117 {dimension_numbers = #tpu.dot_dimension_numbers<[1], [0], [0], [1], [0, 0, 1, 1], [], []>} : vector<256x128xbf16>, vector<128x128xbf16>, vector<256x128xf32> -> vector<256x128xf32>
    %120 = arith.addf %113, %119 : vector<256x128xf32>
    %c2_118 = arith.constant 2 : index
    %c0_119 = arith.constant 0 : index
    %c0_120 = arith.constant 0 : index
    %121 = vector.load %arg8[%c2_118, %c0_119, %c0_120] : memref<18x18x128xf32, #tpu.memory_space<vmem>>, vector<16x16x128xf32>
    %122 = vector.shape_cast %121 : vector<16x16x128xf32> to vector<256x128xf32>
    %123 = arith.truncf %122 : vector<256x128xf32> to vector<256x128xbf16>
    %c6_121 = arith.constant 6 : index
    %c0_122 = arith.constant 0 : index
    %c0_123 = arith.constant 0 : index
    %124 = vector.load %arg4[%c6_121, %c0_122, %c0_123] : memref<9x128x128xbf16, #tpu.memory_space<vmem>>, vector<1x128x128xbf16>
    %125 = vector.shape_cast %124 : vector<1x128x128xbf16> to vector<128x128xbf16>
    %cst_124 = arith.constant dense<0.000000e+00> : vector<256x128xf32>
    %126 = tpu.matmul %123, %125, %cst_124 {dimension_numbers = #tpu.dot_dimension_numbers<[1], [0], [0], [1], [0, 0, 1, 1], [], []>} : vector<256x128xbf16>, vector<128x128xbf16>, vector<256x128xf32> -> vector<256x128xf32>
    %127 = arith.addf %120, %126 : vector<256x128xf32>
    %c2_125 = arith.constant 2 : index
    %c1_126 = arith.constant 1 : index
    %c0_127 = arith.constant 0 : index
    %128 = vector.load %arg8[%c2_125, %c1_126, %c0_127] : memref<18x18x128xf32, #tpu.memory_space<vmem>>, vector<16x16x128xf32>
    %129 = vector.shape_cast %128 : vector<16x16x128xf32> to vector<256x128xf32>
    %130 = arith.truncf %129 : vector<256x128xf32> to vector<256x128xbf16>
    %c7_128 = arith.constant 7 : index
    %c0_129 = arith.constant 0 : index
    %c0_130 = arith.constant 0 : index
    %131 = vector.load %arg4[%c7_128, %c0_129, %c0_130] : memref<9x128x128xbf16, #tpu.memory_space<vmem>>, vector<1x128x128xbf16>
    %132 = vector.shape_cast %131 : vector<1x128x128xbf16> to vector<128x128xbf16>
    %cst_131 = arith.constant dense<0.000000e+00> : vector<256x128xf32>
    %133 = tpu.matmul %130, %132, %cst_131 {dimension_numbers = #tpu.dot_dimension_numbers<[1], [0], [0], [1], [0, 0, 1, 1], [], []>} : vector<256x128xbf16>, vector<128x128xbf16>, vector<256x128xf32> -> vector<256x128xf32>
    %134 = arith.addf %127, %133 : vector<256x128xf32>
    %c2_132 = arith.constant 2 : index
    %c2_133 = arith.constant 2 : index
    %c0_134 = arith.constant 0 : index
    %135 = vector.load %arg8[%c2_132, %c2_133, %c0_134] : memref<18x18x128xf32, #tpu.memory_space<vmem>>, vector<16x16x128xf32>
    %136 = vector.shape_cast %135 : vector<16x16x128xf32> to vector<256x128xf32>
    %137 = arith.truncf %136 : vector<256x128xf32> to vector<256x128xbf16>
    %c8_135 = arith.constant 8 : index
    %c0_136 = arith.constant 0 : index
    %c0_137 = arith.constant 0 : index
    %138 = vector.load %arg4[%c8_135, %c0_136, %c0_137] : memref<9x128x128xbf16, #tpu.memory_space<vmem>>, vector<1x128x128xbf16>
    %139 = vector.shape_cast %138 : vector<1x128x128xbf16> to vector<128x128xbf16>
    %cst_138 = arith.constant dense<0.000000e+00> : vector<256x128xf32>
    %140 = tpu.matmul %137, %139, %cst_138 {dimension_numbers = #tpu.dot_dimension_numbers<[1], [0], [0], [1], [0, 0, 1, 1], [], []>} : vector<256x128xbf16>, vector<128x128xbf16>, vector<256x128xf32> -> vector<256x128xf32>
    %141 = arith.addf %134, %140 : vector<256x128xf32>
    %142 = vector.shape_cast %1 : vector<16x16x128xf32> to vector<256x128xf32>
    %c0_139 = arith.constant 0 : index
    %c0_140 = arith.constant 0 : index
    %143 = vector.load %arg5[%c0_139, %c0_140] : memref<1x128xf32, #tpu.memory_space<vmem>>, vector<1x128xf32>
    %144 = vector.broadcast %143 : vector<1x128xf32> to vector<256x128xf32>
    %145 = arith.addf %141, %144 : vector<256x128xf32>
    %146 = arith.addf %145, %142 : vector<256x128xf32>
    %cst_141 = arith.constant 0.000000e+00 : f32
    %147 = vector.broadcast %cst_141 : f32 to vector<256x128xf32>
    %148 = arith.maximumf %146, %147 : vector<256x128xf32>
    %c0_142 = arith.constant 0 : index
    %c0_143 = arith.constant 0 : index
    %c0_144 = arith.constant 0 : index
    %149 = vector.load %arg6[%c0_142, %c0_143, %c0_144] : memref<1x256x128xf32, #tpu.memory_space<vmem>>, vector<1x256x128xf32>
    %150 = vector.shape_cast %149 : vector<1x256x128xf32> to vector<256x128xf32>
    %151 = vector.shape_cast %148 : vector<256x128xf32> to vector<1x256x128xf32>
    tpu.vector_store %arg6[%c0_142, %c0_143, %c0_144], %151 {strides = array<i32>} : memref<1x256x128xf32, #tpu.memory_space<vmem>>, vector<1x256x128xf32>,
    return
  }
  func.func @transform_0(%arg0: i32) -> (i32, i32, i32, i32) {
    %c0_i32 = arith.constant 0 : i32
    %c0_i32_0 = arith.constant 0 : i32
    %c0_i32_1 = arith.constant 0 : i32
    %c0_i32_2 = arith.constant 0 : i32
    return %arg0, %c0_i32, %c0_i32_0, %c0_i32_1 : i32, i32, i32, i32
  }
  func.func @transform_1(%arg0: i32) -> (i32, i32, i32) {
    %c0_i32 = arith.constant 0 : i32
    %c0_i32_0 = arith.constant 0 : i32
    %c0_i32_1 = arith.constant 0 : i32
    %c0_i32_2 = arith.constant 0 : i32
    return %c0_i32, %c0_i32_0, %c0_i32_1 : i32, i32, i32
  }
  func.func @transform_2(%arg0: i32) -> (i32, i32) {
    %c0_i32 = arith.constant 0 : i32
    %c0_i32_0 = arith.constant 0 : i32
    %c0_i32_1 = arith.constant 0 : i32
    return %c0_i32, %c0_i32_0 : i32, i32
  }
  func.func @transform_3(%arg0: i32) -> (i32, i32, i32) {
    %c0_i32 = arith.constant 0 : i32
    %c0_i32_0 = arith.constant 0 : i32
    %c0_i32_1 = arith.constant 0 : i32
    %c0_i32_2 = arith.constant 0 : i32
    return %c0_i32, %c0_i32_0, %c0_i32_1 : i32, i32, i32
  }
  func.func @transform_4(%arg0: i32) -> (i32, i32) {
    %c0_i32 = arith.constant 0 : i32
    %c0_i32_0 = arith.constant 0 : i32
    %c0_i32_1 = arith.constant 0 : i32
    return %c0_i32, %c0_i32_0 : i32, i32
  }
  func.func @transform_5(%arg0: i32) -> (i32, i32, i32) {
    %c0_i32 = arith.constant 0 : i32
    %c0_i32_0 = arith.constant 0 : i32
    %c0_i32_1 = arith.constant 0 : i32
    return %arg0, %c0_i32, %c0_i32_0 : i32, i32, i32
  }
}

</mosaic_0001>

<llo_original>
// kernel: basic_block_forward.1
$region0: #{basic_block_forward.1}
  #allocation0 [shape = 'u32[]', space=smem, size = 0x4, offset = 0x4, fixed_abs, tag = 'smem constant byte address 0x4 - core index']
  #allocation1 [shape = 'u32[144,128]{1,0:T(1,128)}', space=vmem, size = 0x12000, scoped, tag = 'internal scratch']
  #allocation2 [shape = 'f32[18,18,128]{2,1,0:T(8,128)}', space=vmem, size = 0x36000, scoped, tag = 'scratch operand']
  #allocation3 [shape = 'f32[18,18,128]{2,1,0:T(8,128)}', space=vmem, size = 0x36000, scoped, tag = 'scratch operand']
  %s0 = inlined_call_operand.hbm [shape: f32[2,16,16,128], index: 0, kind: input, shape index: {}]
  %s1 = inlined_call_operand.hbm [shape: bf16[9,128,128], index: 1, kind: input, shape index: {}]
  %s2 = inlined_call_operand.vmem [shape: f32[1,128], index: 2, kind: input, shape index: {}]
  %s3 = inlined_call_operand.hbm [shape: bf16[9,128,128], index: 3, kind: input, shape index: {}]
  %s4 = inlined_call_operand.vmem [shape: f32[1,128], index: 4, kind: input, shape index: {}]
  %s5 = inlined_call_operand.hbm [shape: f32[2,256,128], index: 5, kind: output, shape index: {}]
  %s6 = sld [smem:[#allocation0]]
  $region65: #{basic_block_forward.1} parent=0
    _
  %s8 = ssub.s32 1, %s6
  %s9 = scalar_select 0, %s8, %s6
  $region1: #{basic_block_forward.1} parent=0
    #allocation4 [shape = 'u8[262144]{0}', space=vmem, size = 0x40000, scoped, tag = 'input window, operand 0']
    #allocation5 [shape = 's32[2]{0}', space=sflag, size = 0x8, scoped, tag = 'scoped memory for basic_block_forward.1']
    #allocation6 [shape = 's32[2]{0}', space=sflag, size = 0x8, scoped, tag = 'scoped memory for basic_block_forward.1']
    #allocation7 [shape = 'u8[294912]{0}', space=vmem, size = 0x48000, scoped, tag = 'input window, operand 1, single buffered']
    #allocation8 [shape = 's32[1]{0}', space=sflag, size = 0x4, scoped, tag = 'scoped memory for basic_block_forward.1']
    #allocation9 [shape = 'u8[294912]{0}', space=vmem, size = 0x48000, scoped, tag = 'input window, operand 3, single buffered']
    #allocation10 [shape = 'u8[262144]{0}', space=vmem, size = 0x40000, scoped, tag = 'output window, operand 0']
    %10 = vsyncpa [#allocation5], 0
    %s11 = scalar_lea.sflag [#allocation5], 1
    %12 = vsyncpa %s11, 0
    %13 = vsyncpa [#allocation8], 0
    %14 = vsyncpa [#allocation6], 0
    %s15 = scalar_lea.sflag [#allocation6], 1
    %16 = vsyncpa %s15, 0
    loop: start=0, step=1, limit=4
    $region2: #{basic_block_forward.1} parent=1 // loop_pre_header
      _
    $region3: #{basic_block_forward.1} parent=1 // loop_header
      %s18 = sphi 0, %s22
      %p19 = scmp.ge.s32.totalorder %s18, 4
      %s28 = sphi 0, %s30
      %s31 = sphi 0, %s28
      %s32 = sphi 0, %s31
      %s48 = sphi 0, %s32
      %s52 = sphi 0, %s52
      %s54 = sphi 0, %s52
      %s55 = sphi 0, %s54
      %s69 = sphi 0, %s55
      %s73 = sphi 0, %s73
      %s75 = sphi 0, %s73
      %s76 = sphi 0, %s75
      %s90 = sphi 0, %s76
      %s94 = sphi 0, %s94
      %s96 = sphi 0, %s94
      %s97 = sphi 0, %s96
      %s111 = sphi 0, %s97
      %s115 = sphi 0, %s115
      %s117 = sphi 0, %s115
      %s118 = sphi 0, %s117
      %s132 = sphi 0, %s118
      %s138 = sphi 0, %s140
      %s141 = sphi 0, %s138
      %s142 = sphi 0, %s141
      %s158 = sphi 0, %s142
    $region4: #{basic_block_forward.1} parent=1 // loop_header_branch
      %21 = sbr.rel (%p19) target = $region8
    $region5: #{basic_block_forward.1} parent=1 // loop_body
      %s23 = ssub.s32 %s18, 1
      %s24 = ssub.s32 %s18, 2
      %s25 = sadd.s32 %s18, 1
      %s26 = ssub.s32 %s18, %s25
      %p27 = scmp.eq.s32.totalorder %s26, 0
      %s29 = sadd.s32 %s28, 1
      %s30 = scalar_select %p27, %s28, %s29
      %p33 = pneg %p27
      %p34 = scmp.eq.s32.totalorder %s18, 1
      %p35 = por %p33, %p34
      %p36 = scmp.ne.s32.totalorder %s28, %s31
      %p37 = scmp.eq.s32.totalorder %s18, 0
      %p38 = por %p36, %p37
      %p39 = scmp.ne.s32.totalorder %s28, %s31
      %p40 = scmp.eq.s32.totalorder %s23, 1
      %p41 = por %p39, %p40
      %p42 = scmp.ne.s32.totalorder %s31, %s32
      %p43 = scmp.eq.s32.totalorder %s23, 0
      %p44 = por %p42, %p43
      %p45 = scmp.ne.s32.totalorder %s31, %s32
      %p46 = scmp.eq.s32.totalorder %s24, 1
      %p47 = por %p45, %p46
      %p49 = scmp.ne.s32.totalorder %s32, %s48
      %p50 = scmp.eq.s32.totalorder %s24, 0
      %p51 = por %p49, %p50
      %s53 = sadd.s32 %s52, 1
      %p56 = scmp.eq.s32.totalorder %s18, 1
      %p57 = scmp.ne.s32.totalorder %s52, %s54
      %p58 = scmp.eq.s32.totalorder %s18, 0
      %p59 = por %p57, %p58
      %p60 = scmp.ne.s32.totalorder %s52, %s54
      %p61 = scmp.eq.s32.totalorder %s23, 1
      %p62 = por %p60, %p61
      %p63 = scmp.ne.s32.totalorder %s54, %s55
      %p64 = scmp.eq.s32.totalorder %s23, 0
      %p65 = por %p63, %p64
      %p66 = scmp.ne.s32.totalorder %s54, %s55
      %p67 = scmp.eq.s32.totalorder %s24, 1
      %p68 = por %p66, %p67
      %p70 = scmp.ne.s32.totalorder %s55, %s69
      %p71 = scmp.eq.s32.totalorder %s24, 0
      %p72 = por %p70, %p71
      %s74 = sadd.s32 %s73, 1
      %p77 = scmp.eq.s32.totalorder %s18, 1
      %p78 = scmp.ne.s32.totalorder %s73, %s75
      %p79 = scmp.eq.s32.totalorder %s18, 0
      %p80 = por %p78, %p79
      %p81 = scmp.ne.s32.totalorder %s73, %s75
      %p82 = scmp.eq.s32.totalorder %s23, 1
      %p83 = por %p81, %p82
      %p84 = scmp.ne.s32.totalorder %s75, %s76
      %p85 = scmp.eq.s32.totalorder %s23, 0
      %p86 = por %p84, %p85
      %p87 = scmp.ne.s32.totalorder %s75, %s76
      %p88 = scmp.eq.s32.totalorder %s24, 1
      %p89 = por %p87, %p88
      %p91 = scmp.ne.s32.totalorder %s76, %s90
      %p92 = scmp.eq.s32.totalorder %s24, 0
      %p93 = por %p91, %p92
      %s95 = sadd.s32 %s94, 1
      %p98 = scmp.eq.s32.totalorder %s18, 1
      %p99 = scmp.ne.s32.totalorder %s94, %s96
      %p100 = scmp.eq.s32.totalorder %s18, 0
      %p101 = por %p99, %p100
      %p102 = scmp.ne.s32.totalorder %s94, %s96
      %p103 = scmp.eq.s32.totalorder %s23, 1
      %p104 = por %p102, %p103
      %p105 = scmp.ne.s32.totalorder %s96, %s97
      %p106 = scmp.eq.s32.totalorder %s23, 0
      %p107 = por %p105, %p106
      %p108 = scmp.ne.s32.totalorder %s96, %s97
      %p109 = scmp.eq.s32.totalorder %s24, 1
      %p110 = por %p108, %p109
      %p112 = scmp.ne.s32.totalorder %s97, %s111
      %p113 = scmp.eq.s32.totalorder %s24, 0
      %p114 = por %p112, %p113
      %s116 = sadd.s32 %s115, 1
      %p119 = scmp.eq.s32.totalorder %s18, 1
      %p120 = scmp.ne.s32.totalorder %s115, %s117
      %p121 = scmp.eq.s32.totalorder %s18, 0
      %p122 = por %p120, %p121
      %p123 = scmp.ne.s32.totalorder %s115, %s117
      %p124 = scmp.eq.s32.totalorder %s23, 1
      %p125 = por %p123, %p124
      %p126 = scmp.ne.s32.totalorder %s117, %s118
      %p127 = scmp.eq.s32.totalorder %s23, 0
      %p128 = por %p126, %p127
      %p129 = scmp.ne.s32.totalorder %s117, %s118
      %p130 = scmp.eq.s32.totalorder %s24, 1
      %p131 = por %p129, %p130
      %p133 = scmp.ne.s32.totalorder %s118, %s132
      %p134 = scmp.eq.s32.totalorder %s24, 0
      %p135 = por %p133, %p134
      %s136 = ssub.s32 %s18, %s25
      %p137 = scmp.eq.s32.totalorder %s136, 0
      %s139 = sadd.s32 %s138, 1
      %s140 = scalar_select %p137, %s138, %s139
      %p143 = pneg %p137
      %p144 = scmp.eq.s32.totalorder %s18, 1
      %p145 = por %p143, %p144
      %p146 = scmp.ne.s32.totalorder %s138, %s141
      %p147 = scmp.eq.s32.totalorder %s18, 0
      %p148 = por %p146, %p147
      %p149 = scmp.ne.s32.totalorder %s138, %s141
      %p150 = scmp.eq.s32.totalorder %s23, 1
      %p151 = por %p149, %p150
      %p152 = scmp.ne.s32.totalorder %s141, %s142
      %p153 = scmp.eq.s32.totalorder %s23, 0
      %p154 = por %p152, %p153
      %p155 = scmp.ne.s32.totalorder %s141, %s142
      %p156 = scmp.eq.s32.totalorder %s24, 1
      %p157 = por %p155, %p156
      %p159 = scmp.ne.s32.totalorder %s142, %s158
      %p160 = scmp.eq.s32.totalorder %s24, 0
      %p161 = por %p159, %p160
      %p162 = scmp.le.s32.totalorder 1, %s18
      %p163 = scmp.lt.s32.totalorder %s18, 3
      %p164 = pnand %p162, %p163
      %p165 = pneg %p164
      // Predicated region
      $region9: #{basic_block_forward.1} parent=5 // pred_check
        _
      $region10: #{basic_block_forward.1} parent=5 // pred_check_branch
        %167 = sbr.rel (%p164) target = $region12
      $region11: #{basic_block_forward.1} parent=5 // pred_region
        %s168 = ssub.s32 %s18, 1
        // Predicated region
        $region13: #{basic_block_forward.1} parent=11 // pred_check
          %p169 = pneg %p65
        $region14: #{basic_block_forward.1} parent=11 // pred_check_branch
          %171 = sbr.rel (%p169) target = $region16
        $region15: #{basic_block_forward.1} parent=11 // pred_region
          %s173 = ssub.s32 9216, 9216
          %174 = vsyncadd [#allocation8], %s173
          %s175 = sshll.u32 [#allocation7], 4
          %s176 = int_to_ptr.vmem [resolvable:$true] %s175
          %181 = dma.hbm_to_vmem [thread:$0]  %s1, 9216, %s176, [#allocation8], 64, 64, 4
        $region16: #{basic_block_forward.1} parent=11 // pred_fallthru
          _
        // Predicated region
        $region17: #{basic_block_forward.1} parent=11 // pred_check
          %p182 = pneg %p86
        $region18: #{basic_block_forward.1} parent=11 // pred_check_branch
          %184 = sbr.rel (%p182) target = $region20
        $region19: #{basic_block_forward.1} parent=11 // pred_region
          _
        $region20: #{basic_block_forward.1} parent=11 // pred_fallthru
          _
        // Predicated region
        $region21: #{basic_block_forward.1} parent=11 // pred_check
          %p185 = pneg %p107
        $region22: #{basic_block_forward.1} parent=11 // pred_check_branch
          %187 = sbr.rel (%p185) target = $region24
        $region23: #{basic_block_forward.1} parent=11 // pred_region
          %s189 = ssub.s32 9216, 9216
          %190 = vsyncadd [#allocation8], %s189
          %s191 = sshll.u32 [#allocation9], 4
          %s192 = int_to_ptr.vmem [resolvable:$true] %s191
          %197 = dma.hbm_to_vmem [thread:$0]  %s3, 9216, %s192, [#allocation8], 64, 64, 4
        $region24: #{basic_block_forward.1} parent=11 // pred_fallthru
          _
        // Predicated region
        $region25: #{basic_block_forward.1} parent=11 // pred_check
          %p198 = pneg %p128
        $region26: #{basic_block_forward.1} parent=11 // pred_check_branch
          %200 = sbr.rel (%p198) target = $region28
        $region27: #{basic_block_forward.1} parent=11 // pred_region
          _
        $region28: #{basic_block_forward.1} parent=11 // pred_fallthru
          _
      $region12: #{basic_block_forward.1} parent=5 // pred_fallthru
        _
      %p201 = scmp.lt.s32.totalorder %s18, 2
      // Predicated region
      $region29: #{basic_block_forward.1} parent=5 // pred_check
        %p202 = pneg %p201
      $region30: #{basic_block_forward.1} parent=5 // pred_check_branch
        %204 = sbr.rel (%p202) target = $region32
      $region31: #{basic_block_forward.1} parent=5 // pred_region
        // Predicated region
        $region33: #{basic_block_forward.1} parent=31 // pred_check
          %p205 = pneg %p38
        $region34: #{basic_block_forward.1} parent=31 // pred_check_branch
          %207 = sbr.rel (%p205) target = $region36
        $region35: #{basic_block_forward.1} parent=31 // pred_region
          %s208 = sand.u32 %s28, 1
          %s209 = scalar_lea.sflag [#allocation5], %s208
          %s210 = sand.u32 %s28, 1
          %s211 = smul.addr %s210, 256
          %s212 = scalar_lea.vmem [#allocation4], %s211
          %s214 = ssub.s32 4096, 4096
          %215 = vsyncadd %s209, %s214
          %s216 = smul.addr %s18, 32
          %s217 = smul.addr %s216, 128
          %s218 = scalar_lea.hbm %s0, %s217
          %s219 = sshll.u32 %s212, 4
          %s220 = int_to_ptr.vmem [resolvable:$true] %s219
          %225 = dma.hbm_to_vmem [thread:$0]  %s218, 4096, %s220, %s209, 128, 128, 8
        $region36: #{basic_block_forward.1} parent=31 // pred_fallthru
          _
      $region32: #{basic_block_forward.1} parent=5 // pred_fallthru
        _
      %p226 = scmp.le.s32.totalorder 1, %s18
      %p227 = scmp.lt.s32.totalorder %s18, 3
      %p228 = pnand %p226, %p227
      %p229 = pneg %p228
      // Predicated region
      $region37: #{basic_block_forward.1} parent=5 // pred_check
        _
      $region38: #{basic_block_forward.1} parent=5 // pred_check_branch
        %231 = sbr.rel (%p228) target = $region40
      $region39: #{basic_block_forward.1} parent=5 // pred_region
        %s232 = ssub.s32 %s18, 1
        %s233 = sand.u32 %s31, 1
        %s234 = scalar_lea.sflag [#allocation5], %s233
        %s235 = sand.u32 %s31, 1
        %s236 = smul.addr %s235, 256
        %s237 = scalar_lea.vmem [#allocation4], %s236
        // Predicated region
        $region41: #{basic_block_forward.1} parent=39 // pred_check
          %p238 = pneg %p44
        $region42: #{basic_block_forward.1} parent=39 // pred_check_branch
          %240 = sbr.rel (%p238) target = $region44
        $region43: #{basic_block_forward.1} parent=39 // pred_region
          %241 = dma.done %s234, 4096
        $region44: #{basic_block_forward.1} parent=39 // pred_fallthru
          _
        // Predicated region
        $region45: #{basic_block_forward.1} parent=39 // pred_check
          %p242 = pneg %p65
        $region46: #{basic_block_forward.1} parent=39 // pred_check_branch
          %244 = sbr.rel (%p242) target = $region48
        $region47: #{basic_block_forward.1} parent=39 // pred_region
          %245 = dma.done [#allocation8], 9216
        $region48: #{basic_block_forward.1} parent=39 // pred_fallthru
          _
        // Predicated region
        $region49: #{basic_block_forward.1} parent=39 // pred_check
          %p246 = pneg %p107
        $region50: #{basic_block_forward.1} parent=39 // pred_check_branch
          %248 = sbr.rel (%p246) target = $region52
        $region51: #{basic_block_forward.1} parent=39 // pred_region
          %249 = dma.done [#allocation8], 9216
        $region52: #{basic_block_forward.1} parent=39 // pred_fallthru
          _
        %s250 = sand.u32 %s31, 1
        %s251 = scalar_lea.sflag [#allocation5], %s250
        %s252 = sand.u32 %s31, 1
        %s253 = smul.addr %s252, 256
        %s254 = scalar_lea.vmem [#allocation4], %s253
        %p255 = pneg %p44
        %p256 = pneg %p41
        %p257 = pneg %p65
        %p258 = pneg %p62
        %p259 = pneg %p86
        %p260 = pneg %p83
        %p261 = pneg %p107
        %p262 = pneg %p104
        %p263 = pneg %p128
        %p264 = pneg %p125
        %p265 = pneg %p154
        %p266 = pneg %p151
        %s267 = sand.u32 %s141, 1
        %s268 = scalar_lea.sflag [#allocation6], %s267
        %s269 = sand.u32 %s141, 1
        %s270 = smul.addr %s269, 256
        %s271 = scalar_lea.vmem [#allocation10], %s270
        %v273 = vld [vmem:[%s237] sm:$0xff]
        %v274 = vld [vmem:[%s237 + $0x8] sm:$0xff]
        %v275 = vld [vmem:[%s237 + $0x10] sm:$0xff]
        %v276 = vld [vmem:[%s237 + $0x18] sm:$0xff]
        %v277 = vld [vmem:[%s237 + $0x20] sm:$0xff]
        %v278 = vld [vmem:[%s237 + $0x28] sm:$0xff]
        %v279 = vld [vmem:[%s237 + $0x30] sm:$0xff]
        %v280 = vld [vmem:[%s237 + $0x38] sm:$0xff]
        %v281 = vld [vmem:[%s237 + $0x40] sm:$0xff]
        %v282 = vld [vmem:[%s237 + $0x48] sm:$0xff]
        %v283 = vld [vmem:[%s237 + $0x50] sm:$0xff]
        %v284 = vld [vmem:[%s237 + $0x58] sm:$0xff]
        %v285 = vld [vmem:[%s237 + $0x60] sm:$0xff]
        %v286 = vld [vmem:[%s237 + $0x68] sm:$0xff]
        %v287 = vld [vmem:[%s237 + $0x70] sm:$0xff]
        %v288 = vld [vmem:[%s237 + $0x78] sm:$0xff]
        %v289 = vld [vmem:[%s237 + $0x80] sm:$0xff]
        %v290 = vld [vmem:[%s237 + $0x88] sm:$0xff]
        %v291 = vld [vmem:[%s237 + $0x90] sm:$0xff]
        %v292 = vld [vmem:[%s237 + $0x98] sm:$0xff]
        %v293 = vld [vmem:[%s237 + $0xa0] sm:$0xff]
        %v294 = vld [vmem:[%s237 + $0xa8] sm:$0xff]
        %v295 = vld [vmem:[%s237 + $0xb0] sm:$0xff]
        %v296 = vld [vmem:[%s237 + $0xb8] sm:$0xff]
        %v297 = vld [vmem:[%s237 + $0xc0] sm:$0xff]
        %v298 = vld [vmem:[%s237 + $0xc8] sm:$0xff]
        %v299 = vld [vmem:[%s237 + $0xd0] sm:$0xff]
        %v300 = vld [vmem:[%s237 + $0xd8] sm:$0xff]
        %v301 = vld [vmem:[%s237 + $0xe0] sm:$0xff]
        %v302 = vld [vmem:[%s237 + $0xe8] sm:$0xff]
        %v303 = vld [vmem:[%s237 + $0xf0] sm:$0xff]
        %v304 = vld [vmem:[%s237 + $0xf8] sm:$0xff]
        %305 = vst [vmem:[#allocation2] sm:$0xff] 0.0
        %306 = vst [vmem:[#allocation2 + $0x8] sm:$0xff] 0.0
        %307 = vst [vmem:[#allocation2 + $0x10] sm:$0x3] 0.0
        %308 = vst [vmem:[#allocation2 + $0x18] sm:$0xff] 0.0
        %309 = vst [vmem:[#allocation2 + $0x20] sm:$0xff] 0.0
        %310 = vst [vmem:[#allocation2 + $0x28] sm:$0x3] 0.0
        %311 = vst [vmem:[#allocation2 + $0x30] sm:$0xff] 0.0
        %312 = vst [vmem:[#allocation2 + $0x38] sm:$0xff] 0.0
        %313 = vst [vmem:[#allocation2 + $0x40] sm:$0x3] 0.0
        %314 = vst [vmem:[#allocation2 + $0x48] sm:$0xff] 0.0
        %315 = vst [vmem:[#allocation2 + $0x50] sm:$0xff] 0.0
        %316 = vst [vmem:[#allocation2 + $0x58] sm:$0x3] 0.0
        %317 = vst [vmem:[#allocation2 + $0x60] sm:$0xff] 0.0
        %318 = vst [vmem:[#allocation2 + $0x68] sm:$0xff] 0.0
        %319 = vst [vmem:[#allocation2 + $0x70] sm:$0x3] 0.0
        %320 = vst [vmem:[#allocation2 + $0x78] sm:$0xff] 0.0
        %321 = vst [vmem:[#allocation2 + $0x80] sm:$0xff] 0.0
        %322 = vst [vmem:[#allocation2 + $0x88] sm:$0x3] 0.0
        %323 = vst [vmem:[#allocation2 + $0x90] sm:$0xff] 0.0
        %324 = vst [vmem:[#allocation2 + $0x98] sm:$0xff] 0.0
        %325 = vst [vmem:[#allocation2 + $0xa0] sm:$0x3] 0.0
        %326 = vst [vmem:[#allocation2 + $0xa8] sm:$0xff] 0.0
        %327 = vst [vmem:[#allocation2 + $0xb0] sm:$0xff] 0.0
        %328 = vst [vmem:[#allocation2 + $0xb8] sm:$0x3] 0.0
        %329 = vst [vmem:[#allocation2 + $0xc0] sm:$0xff] 0.0
        %330 = vst [vmem:[#allocation2 + $0xc8] sm:$0xff] 0.0
        %331 = vst [vmem:[#allocation2 + $0xd0] sm:$0x3] 0.0
        %332 = vst [vmem:[#allocation2 + $0xd8] sm:$0xff] 0.0
        %333 = vst [vmem:[#allocation2 + $0xe0] sm:$0xff] 0.0
        %334 = vst [vmem:[#allocation2 + $0xe8] sm:$0x3] 0.0
        %335 = vst [vmem:[#allocation2 + $0xf0] sm:$0xff] 0.0
        %336 = vst [vmem:[#allocation2 + $0xf8] sm:$0xff] 0.0
        %337 = vst [vmem:[#allocation2 + $0x100] sm:$0x3] 0.0
        %338 = vst [vmem:[#allocation2 + $0x108] sm:$0xff] 0.0
        %339 = vst [vmem:[#allocation2 + $0x110] sm:$0xff] 0.0
        %340 = vst [vmem:[#allocation2 + $0x118] sm:$0x3] 0.0
        %341 = vst [vmem:[#allocation2 + $0x120] sm:$0xff] 0.0
        %342 = vst [vmem:[#allocation2 + $0x128] sm:$0xff] 0.0
        %343 = vst [vmem:[#allocation2 + $0x130] sm:$0x3] 0.0
        %344 = vst [vmem:[#allocation2 + $0x138] sm:$0xff] 0.0
        %345 = vst [vmem:[#allocation2 + $0x140] sm:$0xff] 0.0
        %346 = vst [vmem:[#allocation2 + $0x148] sm:$0x3] 0.0
        %347 = vst [vmem:[#allocation2 + $0x150] sm:$0xff] 0.0
        %348 = vst [vmem:[#allocation2 + $0x158] sm:$0xff] 0.0
        %349 = vst [vmem:[#allocation2 + $0x160] sm:$0x3] 0.0
        %350 = vst [vmem:[#allocation2 + $0x168] sm:$0xff] 0.0
        %351 = vst [vmem:[#allocation2 + $0x170] sm:$0xff] 0.0
        %352 = vst [vmem:[#allocation2 + $0x178] sm:$0x3] 0.0
        %353 = vst [vmem:[#allocation2 + $0x180] sm:$0xff] 0.0
        %354 = vst [vmem:[#allocation2 + $0x188] sm:$0xff] 0.0
        %355 = vst [vmem:[#allocation2 + $0x190] sm:$0x3] 0.0
        %356 = vst [vmem:[#allocation2 + $0x198] sm:$0xff] 0.0
        %357 = vst [vmem:[#allocation2 + $0x1a0] sm:$0xff] 0.0
        %358 = vst [vmem:[#allocation2 + $0x1a8] sm:$0x3] 0.0
        %s359 = scalar_lea.vmem [#allocation2], 24
        %360 = vst [vmem:[%s359 + $0x1] sm:$0xff] %v273
        %361 = vst [vmem:[%s359 + $0x9] sm:$0xff] %v274
        %362 = vst [vmem:[%s359 + $0x19] sm:$0xff] %v275
        %363 = vst [vmem:[%s359 + $0x21] sm:$0xff] %v276
        %364 = vst [vmem:[%s359 + $0x31] sm:$0xff] %v277
        %365 = vst [vmem:[%s359 + $0x39] sm:$0xff] %v278
        %366 = vst [vmem:[%s359 + $0x49] sm:$0xff] %v279
        %367 = vst [vmem:[%s359 + $0x51] sm:$0xff] %v280
        %368 = vst [vmem:[%s359 + $0x61] sm:$0xff] %v281
        %369 = vst [vmem:[%s359 + $0x69] sm:$0xff] %v282
        %370 = vst [vmem:[%s359 + $0x79] sm:$0xff] %v283
        %371 = vst [vmem:[%s359 + $0x81] sm:$0xff] %v284
        %372 = vst [vmem:[%s359 + $0x91] sm:$0xff] %v285
        %373 = vst [vmem:[%s359 + $0x99] sm:$0xff] %v286
        %374 = vst [vmem:[%s359 + $0xa9] sm:$0xff] %v287
        %375 = vst [vmem:[%s359 + $0xb1] sm:$0xff] %v288
        %376 = vst [vmem:[%s359 + $0xc1] sm:$0xff] %v289
        %377 = vst [vmem:[%s359 + $0xc9] sm:$0xff] %v290
        %378 = vst [vmem:[%s359 + $0xd9] sm:$0xff] %v291
        %379 = vst [vmem:[%s359 + $0xe1] sm:$0xff] %v292
        %380 = vst [vmem:[%s359 + $0xf1] sm:$0xff] %v293
        %381 = vst [vmem:[%s359 + $0xf9] sm:$0xff] %v294
        %382 = vst [vmem:[%s359 + $0x109] sm:$0xff] %v295
        %383 = vst [vmem:[%s359 + $0x111] sm:$0xff] %v296
        %384 = vst [vmem:[%s359 + $0x121] sm:$0xff] %v297
        %385 = vst [vmem:[%s359 + $0x129] sm:$0xff] %v298
        %386 = vst [vmem:[%s359 + $0x139] sm:$0xff] %v299
        %387 = vst [vmem:[%s359 + $0x141] sm:$0xff] %v300
        %388 = vst [vmem:[%s359 + $0x151] sm:$0xff] %v301
        %389 = vst [vmem:[%s359 + $0x159] sm:$0xff] %v302
        %390 = vst [vmem:[%s359 + $0x169] sm:$0xff] %v303
        %391 = vst [vmem:[%s359 + $0x171] sm:$0xff] %v304
        %v392 = vld [vmem:[#allocation2] sm:$0xff]
        %v393 = vld [vmem:[#allocation2 + $0x8] sm:$0xff]
        %v394 = vld [vmem:[#allocation2 + $0x18] sm:$0xff]
        %v395 = vld [vmem:[#allocation2 + $0x20] sm:$0xff]
        %v396 = vld [vmem:[#allocation2 + $0x30] sm:$0xff]
        %v397 = vld [vmem:[#allocation2 + $0x38] sm:$0xff]
        %v398 = vld [vmem:[#allocation2 + $0x48] sm:$0xff]
        %v399 = vld [vmem:[#allocation2 + $0x50] sm:$0xff]
        %v400 = vld [vmem:[#allocation2 + $0x60] sm:$0xff]
        %v401 = vld [vmem:[#allocation2 + $0x68] sm:$0xff]
        %v402 = vld [vmem:[#allocation2 + $0x78] sm:$0xff]
        %v403 = vld [vmem:[#allocation2 + $0x80] sm:$0xff]
        %v404 = vld [vmem:[#allocation2 + $0x90] sm:$0xff]
        %v405 = vld [vmem:[#allocation2 + $0x98] sm:$0xff]
        %v406 = vld [vmem:[#allocation2 + $0xa8] sm:$0xff]
        %v407 = vld [vmem:[#allocation2 + $0xb0] sm:$0xff]
        %v408 = vld [vmem:[#allocation2 + $0xc0] sm:$0xff]
        %v409 = vld [vmem:[#allocation2 + $0xc8] sm:$0xff]
        %v410 = vld [vmem:[#allocation2 + $0xd8] sm:$0xff]
        %v411 = vld [vmem:[#allocation2 + $0xe0] sm:$0xff]
        %v412 = vld [vmem:[#allocation2 + $0xf0] sm:$0xff]
        %v413 = vld [vmem:[#allocation2 + $0xf8] sm:$0xff]
        %v414 = vld [vmem:[#allocation2 + $0x108] sm:$0xff]
        %v415 = vld [vmem:[#allocation2 + $0x110] sm:$0xff]
        %v416 = vld [vmem:[#allocation2 + $0x120] sm:$0xff]
        %v417 = vld [vmem:[#allocation2 + $0x128] sm:$0xff]
        %v418 = vld [vmem:[#allocation2 + $0x138] sm:$0xff]
        %v419 = vld [vmem:[#allocation2 + $0x140] sm:$0xff]
        %v420 = vld [vmem:[#allocation2 + $0x150] sm:$0xff]
        %v421 = vld [vmem:[#allocation2 + $0x158] sm:$0xff]
        %v422 = vld [vmem:[#allocation2 + $0x168] sm:$0xff]
        %v423 = vld [vmem:[#allocation2 + $0x170] sm:$0xff]
        %v424 = vpack.c.bf16 %v393, %v392
        %v425 = vpack.c.bf16 %v395, %v394
        %v426 = vpack.c.bf16 %v397, %v396
        %v427 = vpack.c.bf16 %v399, %v398
        %v428 = vpack.c.bf16 %v401, %v400
        %v429 = vpack.c.bf16 %v403, %v402
        %v430 = vpack.c.bf16 %v405, %v404
        %v431 = vpack.c.bf16 %v407, %v406
        %v432 = vpack.c.bf16 %v409, %v408
        %v433 = vpack.c.bf16 %v411, %v410
        %v434 = vpack.c.bf16 %v413, %v412
        %v435 = vpack.c.bf16 %v415, %v414
        %v436 = vpack.c.bf16 %v417, %v416
        %v437 = vpack.c.bf16 %v419, %v418
        %v438 = vpack.c.bf16 %v421, %v420
        %v439 = vpack.c.bf16 %v423, %v422
        %v440 = vld [vmem:[#allocation7] sm:$0xf]
        %v441 = vld [vmem:[#allocation7 + $0x4] sm:$0xf]
        %v442 = vld [vmem:[#allocation7 + $0x8] sm:$0xf]
        %v443 = vld [vmem:[#allocation7 + $0xc] sm:$0xf]
        %v444 = vld [vmem:[#allocation7 + $0x10] sm:$0xf]
        %v445 = vld [vmem:[#allocation7 + $0x14] sm:$0xf]
        %v446 = vld [vmem:[#allocation7 + $0x18] sm:$0xf]
        %v447 = vld [vmem:[#allocation7 + $0x1c] sm:$0xf]
        %v448 = vld [vmem:[#allocation7 + $0x20] sm:$0xf]
        %v449 = vld [vmem:[#allocation7 + $0x24] sm:$0xf]
        %v450 = vld [vmem:[#allocation7 + $0x28] sm:$0xf]
        %v451 = vld [vmem:[#allocation7 + $0x2c] sm:$0xf]
        %v452 = vld [vmem:[#allocation7 + $0x30] sm:$0xf]
        %v453 = vld [vmem:[#allocation7 + $0x34] sm:$0xf]
        %v454 = vld [vmem:[#allocation7 + $0x38] sm:$0xf]
        %v455 = vld [vmem:[#allocation7 + $0x3c] sm:$0xf]
        %v456 = vld [vmem:[#allocation2 + $0x1] sm:$0xff]
        %v457 = vld [vmem:[#allocation2 + $0x9] sm:$0xff]
        %v458 = vld [vmem:[#allocation2 + $0x19] sm:$0xff]
        %v459 = vld [vmem:[#allocation2 + $0x21] sm:$0xff]
        %v460 = vld [vmem:[#allocation2 + $0x31] sm:$0xff]
        %v461 = vld [vmem:[#allocation2 + $0x39] sm:$0xff]
        %v462 = vld [vmem:[#allocation2 + $0x49] sm:$0xff]
        %v463 = vld [vmem:[#allocation2 + $0x51] sm:$0xff]
        %v464 = vld [vmem:[#allocation2 + $0x61] sm:$0xff]
        %v465 = vld [vmem:[#allocation2 + $0x69] sm:$0xff]
        %v466 = vld [vmem:[#allocation2 + $0x79] sm:$0xff]
        %v467 = vld [vmem:[#allocation2 + $0x81] sm:$0xff]
        %v468 = vld [vmem:[#allocation2 + $0x91] sm:$0xff]
        %v469 = vld [vmem:[#allocation2 + $0x99] sm:$0xff]
        %v470 = vld [vmem:[#allocation2 + $0xa9] sm:$0xff]
        %v471 = vld [vmem:[#allocation2 + $0xb1] sm:$0xff]
        %v472 = vld [vmem:[#allocation2 + $0xc1] sm:$0xff]
        %v473 = vld [vmem:[#allocation2 + $0xc9] sm:$0xff]
        %v474 = vld [vmem:[#allocation2 + $0xd9] sm:$0xff]
        %v475 = vld [vmem:[#allocation2 + $0xe1] sm:$0xff]
        %v476 = vld [vmem:[#allocation2 + $0xf1] sm:$0xff]
        %v477 = vld [vmem:[#allocation2 + $0xf9] sm:$0xff]
        %v478 = vld [vmem:[#allocation2 + $0x109] sm:$0xff]
        %v479 = vld [vmem:[#allocation2 + $0x111] sm:$0xff]
        %v480 = vld [vmem:[#allocation2 + $0x121] sm:$0xff]
        %v481 = vld [vmem:[#allocation2 + $0x129] sm:$0xff]
        %v482 = vld [vmem:[#allocation2 + $0x139] sm:$0xff]
        %v483 = vld [vmem:[#allocation2 + $0x141] sm:$0xff]
        %v484 = vld [vmem:[#allocation2 + $0x151] sm:$0xff]
        %v485 = vld [vmem:[#allocation2 + $0x159] sm:$0xff]
        %v486 = vld [vmem:[#allocation2 + $0x169] sm:$0xff]
        %v487 = vld [vmem:[#allocation2 + $0x171] sm:$0xff]
        %v488 = vpack.c.bf16 %v457, %v456
        %v489 = vpack.c.bf16 %v459, %v458
        %v490 = vpack.c.bf16 %v461, %v460
        %v491 = vpack.c.bf16 %v463, %v462
        %v492 = vpack.c.bf16 %v465, %v464
        %v493 = vpack.c.bf16 %v467, %v466
        %v494 = vpack.c.bf16 %v469, %v468
        %v495 = vpack.c.bf16 %v471, %v470
        %v496 = vpack.c.bf16 %v473, %v472
        %v497 = vpack.c.bf16 %v475, %v474
        %v498 = vpack.c.bf16 %v477, %v476
        %v499 = vpack.c.bf16 %v479, %v478
        %v500 = vpack.c.bf16 %v481, %v480
        %v501 = vpack.c.bf16 %v483, %v482
        %v502 = vpack.c.bf16 %v485, %v484
        %v503 = vpack.c.bf16 %v487, %v486
        %s504 = scalar_lea.vmem [#allocation7], 64
        %v505 = vld [vmem:[%s504] sm:$0xf]
        %v506 = vld [vmem:[%s504 + $0x4] sm:$0xf]
        %v507 = vld [vmem:[%s504 + $0x8] sm:$0xf]
        %v508 = vld [vmem:[%s504 + $0xc] sm:$0xf]
        %v509 = vld [vmem:[%s504 + $0x10] sm:$0xf]
        %v510 = vld [vmem:[%s504 + $0x14] sm:$0xf]
        %v511 = vld [vmem:[%s504 + $0x18] sm:$0xf]
        %v512 = vld [vmem:[%s504 + $0x1c] sm:$0xf]
        %v513 = vld [vmem:[%s504 + $0x20] sm:$0xf]
        %v514 = vld [vmem:[%s504 + $0x24] sm:$0xf]
        %v515 = vld [vmem:[%s504 + $0x28] sm:$0xf]
        %v516 = vld [vmem:[%s504 + $0x2c] sm:$0xf]
        %v517 = vld [vmem:[%s504 + $0x30] sm:$0xf]
        %v518 = vld [vmem:[%s504 + $0x34] sm:$0xf]
        %v519 = vld [vmem:[%s504 + $0x38] sm:$0xf]
        %v520 = vld [vmem:[%s504 + $0x3c] sm:$0xf]
        %v537 = vunpack.c.l.b16 %v505
        %v538 = vunpack.c.l.b16 %v506
        %v539 = vunpack.c.l.b16 %v507
        %v540 = vunpack.c.l.b16 %v508
        %v541 = vunpack.c.l.b16 %v509
        %v542 = vunpack.c.l.b16 %v510
        %v543 = vunpack.c.l.b16 %v511
        %v544 = vunpack.c.l.b16 %v512
        %v545 = vunpack.c.l.b16 %v513
        %v546 = vunpack.c.l.b16 %v514
        %v547 = vunpack.c.l.b16 %v515
        %v548 = vunpack.c.l.b16 %v516
        %v549 = vunpack.c.l.b16 %v517
        %v550 = vunpack.c.l.b16 %v518
        %v551 = vunpack.c.l.b16 %v519
        %v552 = vunpack.c.l.b16 %v520
        %v553 = vpack.c.b16 %v538, %v537
        %v554 = vpack.c.b16 %v540, %v539
        %v555 = vpack.c.b16 %v542, %v541
        %v556 = vpack.c.b16 %v544, %v543
        %v557 = vpack.c.b16 %v546, %v545
        %v558 = vpack.c.b16 %v548, %v547
        %v559 = vpack.c.b16 %v550, %v549
        %v560 = vpack.c.b16 %v552, %v551
        %569 = vmatprep.subr.bf16.mxu0 0
        %570 = vmatpush1.bf16.msra.mxu0 %v560
        %571 = vmatprep.subr.bf16.mxu0 0
        %572 = vmatpush1.bf16.msra.mxu0 %v559
        %573 = vmatprep.subr.bf16.mxu0 0
        %574 = vmatpush1.bf16.msra.mxu0 %v558
        %575 = vmatprep.subr.bf16.mxu0 0
        %576 = vmatpush1.bf16.msra.mxu0 %v557
        %577 = vmatprep.subr.bf16.mxu0 0
        %578 = vmatpush1.bf16.msra.mxu0 %v556
        %579 = vmatprep.subr.bf16.mxu0 0
        %580 = vmatpush1.bf16.msra.mxu0 %v555
        %581 = vmatprep.subr.bf16.mxu0 0
        %582 = vmatpush1.bf16.msra.mxu0 %v554
        %583 = vmatprep.subr.bf16.mxu0 0
        %584 = vmatpush1.bf16.msra.mxu0 %v553
        %585 = vmatprep.subr.bf16.mxu0 0
        %586 = vmatpush2.bf16.msra.mxu0 0
        %587 = vmatprep.subr.bf16.mxu0 0
        %588 = vmatpush2.bf16.msra.mxu0 0
        %589 = vmatprep.subr.bf16.mxu0 0
        %590 = vmatpush2.bf16.msra.mxu0 0
        %591 = vmatprep.subr.bf16.mxu0 0
        %592 = vmatpush2.bf16.msra.mxu0 0
        %593 = vmatprep.subr.bf16.mxu0 0
        %594 = vmatpush2.bf16.msra.mxu0 0
        %595 = vmatprep.subr.bf16.mxu0 0
        %596 = vmatpush2.bf16.msra.mxu0 0
        %597 = vmatprep.subr.bf16.mxu0 0
        %598 = vmatpush2.bf16.msra.mxu0 0
        %599 = vmatprep.subr.bf16.mxu0 0
        %600 = vmatpush2.bf16.msra.mxu0 0
        %601 = vmatprep.mubr.bf16.mxu0 0
        %602 = vmatmul.mubr.bf16.gmra.mxu0 %v488
        %v603 = vpop.f32.mrf.mxu0
        %v604 = vadd.f32 0.0, %v603
        %v605 = vpop.f32.mrf.mxu0
        %v606 = vpop.f32.mrf.mxu0
        %v607 = vadd.f32 0.0, %v606
        %v608 = vpop.f32.mrf.mxu0
        %609 = vmatprep.mubr.bf16.mxu0 0
        %610 = vmatmul.mubr.bf16.gmra.mxu0 %v489
        %v611 = vpop.f32.mrf.mxu0
        %v612 = vadd.f32 0.0, %v611
        %v613 = vpop.f32.mrf.mxu0
        %v614 = vpop.f32.mrf.mxu0
        %v615 = vadd.f32 0.0, %v614
        %v616 = vpop.f32.mrf.mxu0
        %617 = vmatprep.mubr.bf16.mxu0 0
        %618 = vmatmul.mubr.bf16.gmra.mxu0 %v490
        %v619 = vpop.f32.mrf.mxu0
        %v620 = vadd.f32 0.0, %v619
        %v621 = vpop.f32.mrf.mxu0
        %v622 = vpop.f32.mrf.mxu0
        %v623 = vadd.f32 0.0, %v622
        %v624 = vpop.f32.mrf.mxu0
        %625 = vmatprep.mubr.bf16.mxu0 0
        %626 = vmatmul.mubr.bf16.gmra.mxu0 %v491
        %v627 = vpop.f32.mrf.mxu0
        %v628 = vadd.f32 0.0, %v627
        %v629 = vpop.f32.mrf.mxu0
        %v630 = vpop.f32.mrf.mxu0
        %v631 = vadd.f32 0.0, %v630
        %v632 = vpop.f32.mrf.mxu0
        %633 = vmatprep.mubr.bf16.mxu0 0
        %634 = vmatmul.mubr.bf16.gmra.mxu0 %v492
        %v635 = vpop.f32.mrf.mxu0
        %v636 = vadd.f32 0.0, %v635
        %v637 = vpop.f32.mrf.mxu0
        %v638 = vpop.f32.mrf.mxu0
        %v639 = vadd.f32 0.0, %v638
        %v640 = vpop.f32.mrf.mxu0
        %641 = vmatprep.mubr.bf16.mxu0 0
        %642 = vmatmul.mubr.bf16.gmra.mxu0 %v493
        %v643 = vpop.f32.mrf.mxu0
        %v644 = vadd.f32 0.0, %v643
        %v645 = vpop.f32.mrf.mxu0
        %v646 = vpop.f32.mrf.mxu0
        %v647 = vadd.f32 0.0, %v646
        %v648 = vpop.f32.mrf.mxu0
        %649 = vmatprep.mubr.bf16.mxu0 0
        %650 = vmatmul.mubr.bf16.gmra.mxu0 %v494
        %v651 = vpop.f32.mrf.mxu0
        %v652 = vadd.f32 0.0, %v651
        %v653 = vpop.f32.mrf.mxu0
        %v654 = vpop.f32.mrf.mxu0
        %v655 = vadd.f32 0.0, %v654
        %v656 = vpop.f32.mrf.mxu0
        %657 = vmatprep.mubr.bf16.mxu0 0
        %658 = vmatmul.mubr.bf16.gmra.mxu0 %v495
        %v659 = vpop.f32.mrf.mxu0
        %v660 = vadd.f32 0.0, %v659
        %v661 = vpop.f32.mrf.mxu0
        %v662 = vpop.f32.mrf.mxu0
        %v663 = vadd.f32 0.0, %v662
        %v664 = vpop.f32.mrf.mxu0
        %665 = vmatprep.mubr.bf16.mxu0 0
        %666 = vmatmul.mubr.bf16.gmra.mxu0 %v496
        %v667 = vpop.f32.mrf.mxu0
        %v668 = vadd.f32 0.0, %v667
        %v669 = vpop.f32.mrf.mxu0
        %v670 = vpop.f32.mrf.mxu0
        %v671 = vadd.f32 0.0, %v670
        %v672 = vpop.f32.mrf.mxu0
        %673 = vmatprep.mubr.bf16.mxu0 0
        %674 = vmatmul.mubr.bf16.gmra.mxu0 %v497
        %v675 = vpop.f32.mrf.mxu0
        %v676 = vadd.f32 0.0, %v675
        %v677 = vpop.f32.mrf.mxu0
        %v678 = vpop.f32.mrf.mxu0
        %v679 = vadd.f32 0.0, %v678
        %v680 = vpop.f32.mrf.mxu0
        %681 = vmatprep.mubr.bf16.mxu0 0
        %682 = vmatmul.mubr.bf16.gmra.mxu0 %v498
        %v683 = vpop.f32.mrf.mxu0
        %v684 = vadd.f32 0.0, %v683
        %v685 = vpop.f32.mrf.mxu0
        %v686 = vpop.f32.mrf.mxu0
        %v687 = vadd.f32 0.0, %v686
        %v688 = vpop.f32.mrf.mxu0
        %689 = vmatprep.mubr.bf16.mxu0 0
        %690 = vmatmul.mubr.bf16.gmra.mxu0 %v499
        %v691 = vpop.f32.mrf.mxu0
        %v692 = vadd.f32 0.0, %v691
        %v693 = vpop.f32.mrf.mxu0
        %v694 = vpop.f32.mrf.mxu0
        %v695 = vadd.f32 0.0, %v694
        %v696 = vpop.f32.mrf.mxu0
        %697 = vmatprep.mubr.bf16.mxu0 0
        %698 = vmatmul.mubr.bf16.gmra.mxu0 %v500
        %v699 = vpop.f32.mrf.mxu0
        %v700 = vadd.f32 0.0, %v699
        %v701 = vpop.f32.mrf.mxu0
        %v702 = vpop.f32.mrf.mxu0
        %v703 = vadd.f32 0.0, %v702
        %v704 = vpop.f32.mrf.mxu0
        %705 = vmatprep.mubr.bf16.mxu0 0
        %706 = vmatmul.mubr.bf16.gmra.mxu0 %v501
        %v707 = vpop.f32.mrf.mxu0
        %v708 = vadd.f32 0.0, %v707
        %v709 = vpop.f32.mrf.mxu0
        %v710 = vpop.f32.mrf.mxu0
        %v711 = vadd.f32 0.0, %v710
        %v712 = vpop.f32.mrf.mxu0
        %713 = vmatprep.mubr.bf16.mxu0 0
        %714 = vmatmul.mubr.bf16.gmra.mxu0 %v502
        %v715 = vpop.f32.mrf.mxu0
        %v716 = vadd.f32 0.0, %v715
        %v717 = vpop.f32.mrf.mxu0
        %v718 = vpop.f32.mrf.mxu0
        %v719 = vadd.f32 0.0, %v718
        %v720 = vpop.f32.mrf.mxu0
        %721 = vmatprep.mubr.bf16.mxu0 0
        %722 = vmatmul.mubr.bf16.gmra.mxu0 %v503
        %v723 = vpop.f32.mrf.mxu0
        %v724 = vadd.f32 0.0, %v723
        %v725 = vpop.f32.mrf.mxu0
        %v726 = vpop.f32.mrf.mxu0
        %v727 = vadd.f32 0.0, %v726
        %v728 = vpop.f32.mrf.mxu0
        %729 = vdwg.mxu0
        %v746 = vunpack.c.l.b16 %v440
        %v747 = vunpack.c.l.b16 %v441
        %v748 = vunpack.c.l.b16 %v442
        %v749 = vunpack.c.l.b16 %v443
        %v750 = vunpack.c.l.b16 %v444
        %v751 = vunpack.c.l.b16 %v445
        %v752 = vunpack.c.l.b16 %v446
        %v753 = vunpack.c.l.b16 %v447
        %v754 = vunpack.c.l.b16 %v448
        %v755 = vunpack.c.l.b16 %v449
        %v756 = vunpack.c.l.b16 %v450
        %v757 = vunpack.c.l.b16 %v451
        %v758 = vunpack.c.l.b16 %v452
        %v759 = vunpack.c.l.b16 %v453
        %v760 = vunpack.c.l.b16 %v454
        %v761 = vunpack.c.l.b16 %v455
        %v762 = vpack.c.b16 %v747, %v746
        %v763 = vpack.c.b16 %v749, %v748
        %v764 = vpack.c.b16 %v751, %v750
        %v765 = vpack.c.b16 %v753, %v752
        %v766 = vpack.c.b16 %v755, %v754
        %v767 = vpack.c.b16 %v757, %v756
        %v768 = vpack.c.b16 %v759, %v758
        %v769 = vpack.c.b16 %v761, %v760
        %778 = vmatprep.subr.bf16.mxu0 0
        %779 = vmatpush1.bf16.msra.mxu0 %v769
        %780 = vmatprep.subr.bf16.mxu0 0
        %781 = vmatpush1.bf16.msra.mxu0 %v768
        %782 = vmatprep.subr.bf16.mxu0 0
        %783 = vmatpush1.bf16.msra.mxu0 %v767
        %784 = vmatprep.subr.bf16.mxu0 0
        %785 = vmatpush1.bf16.msra.mxu0 %v766
        %786 = vmatprep.subr.bf16.mxu0 0
        %787 = vmatpush1.bf16.msra.mxu0 %v765
        %788 = vmatprep.subr.bf16.mxu0 0
        %789 = vmatpush1.bf16.msra.mxu0 %v764
        %790 = vmatprep.subr.bf16.mxu0 0
        %791 = vmatpush1.bf16.msra.mxu0 %v763
        %792 = vmatprep.subr.bf16.mxu0 0
        %793 = vmatpush1.bf16.msra.mxu0 %v762
        %794 = vmatprep.subr.bf16.mxu0 0
        %795 = vmatpush2.bf16.msra.mxu0 0
        %796 = vmatprep.subr.bf16.mxu0 0
        %797 = vmatpush2.bf16.msra.mxu0 0
        %798 = vmatprep.subr.bf16.mxu0 0
        %799 = vmatpush2.bf16.msra.mxu0 0
        %800 = vmatprep.subr.bf16.mxu0 0
        %801 = vmatpush2.bf16.msra.mxu0 0
        %802 = vmatprep.subr.bf16.mxu0 0
        %803 = vmatpush2.bf16.msra.mxu0 0
        %804 = vmatprep.subr.bf16.mxu0 0
        %805 = vmatpush2.bf16.msra.mxu0 0
        %806 = vmatprep.subr.bf16.mxu0 0
        %807 = vmatpush2.bf16.msra.mxu0 0
        %808 = vmatprep.subr.bf16.mxu0 0
        %809 = vmatpush2.bf16.msra.mxu0 0
        %810 = vmatprep.mubr.bf16.mxu0 0
        %811 = vmatmul.mubr.bf16.gmra.mxu0 %v424
        %v812 = vpop.f32.mrf.mxu0
        %v813 = vadd.f32 %v604, %v812
        %v814 = vpop.f32.mrf.mxu0
        %v815 = vpop.f32.mrf.mxu0
        %v816 = vadd.f32 %v607, %v815
        %v817 = vpop.f32.mrf.mxu0
        %818 = vmatprep.mubr.bf16.mxu0 0
        %819 = vmatmul.mubr.bf16.gmra.mxu0 %v425
        %v820 = vpop.f32.mrf.mxu0
        %v821 = vadd.f32 %v612, %v820
        %v822 = vpop.f32.mrf.mxu0
        %v823 = vpop.f32.mrf.mxu0
        %v824 = vadd.f32 %v615, %v823
        %v825 = vpop.f32.mrf.mxu0
        %826 = vmatprep.mubr.bf16.mxu0 0
        %827 = vmatmul.mubr.bf16.gmra.mxu0 %v426
        %v828 = vpop.f32.mrf.mxu0
        %v829 = vadd.f32 %v620, %v828
        %v830 = vpop.f32.mrf.mxu0
        %v831 = vpop.f32.mrf.mxu0
        %v832 = vadd.f32 %v623, %v831
        %v833 = vpop.f32.mrf.mxu0
        %834 = vmatprep.mubr.bf16.mxu0 0
        %835 = vmatmul.mubr.bf16.gmra.mxu0 %v427
        %v836 = vpop.f32.mrf.mxu0
        %v837 = vadd.f32 %v628, %v836
        %v838 = vpop.f32.mrf.mxu0
        %v839 = vpop.f32.mrf.mxu0
        %v840 = vadd.f32 %v631, %v839
        %v841 = vpop.f32.mrf.mxu0
        %842 = vmatprep.mubr.bf16.mxu0 0
        %843 = vmatmul.mubr.bf16.gmra.mxu0 %v428
        %v844 = vpop.f32.mrf.mxu0
        %v845 = vadd.f32 %v636, %v844
        %v846 = vpop.f32.mrf.mxu0
        %v847 = vpop.f32.mrf.mxu0
        %v848 = vadd.f32 %v639, %v847
        %v849 = vpop.f32.mrf.mxu0
        %850 = vmatprep.mubr.bf16.mxu0 0
        %851 = vmatmul.mubr.bf16.gmra.mxu0 %v429
        %v852 = vpop.f32.mrf.mxu0
        %v853 = vadd.f32 %v644, %v852
        %v854 = vpop.f32.mrf.mxu0
        %v855 = vpop.f32.mrf.mxu0
        %v856 = vadd.f32 %v647, %v855
        %v857 = vpop.f32.mrf.mxu0
        %858 = vmatprep.mubr.bf16.mxu0 0
        %859 = vmatmul.mubr.bf16.gmra.mxu0 %v430
        %v860 = vpop.f32.mrf.mxu0
        %v861 = vadd.f32 %v652, %v860
        %v862 = vpop.f32.mrf.mxu0
        %v863 = vpop.f32.mrf.mxu0
        %v864 = vadd.f32 %v655, %v863
        %v865 = vpop.f32.mrf.mxu0
        %866 = vmatprep.mubr.bf16.mxu0 0
        %867 = vmatmul.mubr.bf16.gmra.mxu0 %v431
        %v868 = vpop.f32.mrf.mxu0
        %v869 = vadd.f32 %v660, %v868
        %v870 = vpop.f32.mrf.mxu0
        %v871 = vpop.f32.mrf.mxu0
        %v872 = vadd.f32 %v663, %v871
        %v873 = vpop.f32.mrf.mxu0
        %874 = vmatprep.mubr.bf16.mxu0 0
        %875 = vmatmul.mubr.bf16.gmra.mxu0 %v432
        %v876 = vpop.f32.mrf.mxu0
        %v877 = vadd.f32 %v668, %v876
        %v878 = vpop.f32.mrf.mxu0
        %v879 = vpop.f32.mrf.mxu0
        %v880 = vadd.f32 %v671, %v879
        %v881 = vpop.f32.mrf.mxu0
        %882 = vmatprep.mubr.bf16.mxu0 0
        %883 = vmatmul.mubr.bf16.gmra.mxu0 %v433
        %v884 = vpop.f32.mrf.mxu0
        %v885 = vadd.f32 %v676, %v884
        %v886 = vpop.f32.mrf.mxu0
        %v887 = vpop.f32.mrf.mxu0
        %v888 = vadd.f32 %v679, %v887
        %v889 = vpop.f32.mrf.mxu0
        %890 = vmatprep.mubr.bf16.mxu0 0
        %891 = vmatmul.mubr.bf16.gmra.mxu0 %v434
        %v892 = vpop.f32.mrf.mxu0
        %v893 = vadd.f32 %v684, %v892
        %v894 = vpop.f32.mrf.mxu0
        %v895 = vpop.f32.mrf.mxu0
        %v896 = vadd.f32 %v687, %v895
        %v897 = vpop.f32.mrf.mxu0
        %898 = vmatprep.mubr.bf16.mxu0 0
        %899 = vmatmul.mubr.bf16.gmra.mxu0 %v435
        %v900 = vpop.f32.mrf.mxu0
        %v901 = vadd.f32 %v692, %v900
        %v902 = vpop.f32.mrf.mxu0
        %v903 = vpop.f32.mrf.mxu0
        %v904 = vadd.f32 %v695, %v903
        %v905 = vpop.f32.mrf.mxu0
        %906 = vmatprep.mubr.bf16.mxu0 0
        %907 = vmatmul.mubr.bf16.gmra.mxu0 %v436
        %v908 = vpop.f32.mrf.mxu0
        %v909 = vadd.f32 %v700, %v908
        %v910 = vpop.f32.mrf.mxu0
        %v911 = vpop.f32.mrf.mxu0
        %v912 = vadd.f32 %v703, %v911
        %v913 = vpop.f32.mrf.mxu0
        %914 = vmatprep.mubr.bf16.mxu0 0
        %915 = vmatmul.mubr.bf16.gmra.mxu0 %v437
        %v916 = vpop.f32.mrf.mxu0
        %v917 = vadd.f32 %v708, %v916
        %v918 = vpop.f32.mrf.mxu0
        %v919 = vpop.f32.mrf.mxu0
        %v920 = vadd.f32 %v711, %v919
        %v921 = vpop.f32.mrf.mxu0
        %922 = vmatprep.mubr.bf16.mxu0 0
        %923 = vmatmul.mubr.bf16.gmra.mxu0 %v438
        %v924 = vpop.f32.mrf.mxu0
        %v925 = vadd.f32 %v716, %v924
        %v926 = vpop.f32.mrf.mxu0
        %v927 = vpop.f32.mrf.mxu0
        %v928 = vadd.f32 %v719, %v927
        %v929 = vpop.f32.mrf.mxu0
        %930 = vmatprep.mubr.bf16.mxu0 0
        %931 = vmatmul.mubr.bf16.gmra.mxu0 %v439
        %v932 = vpop.f32.mrf.mxu0
        %v933 = vadd.f32 %v724, %v932
        %v934 = vpop.f32.mrf.mxu0
        %v935 = vpop.f32.mrf.mxu0
        %v936 = vadd.f32 %v727, %v935
        %v937 = vpop.f32.mrf.mxu0
        %938 = vdwg.mxu0
        %v939 = vld [vmem:[#allocation2 + $0x2] sm:$0xff]
        %v940 = vld [vmem:[#allocation2 + $0xa] sm:$0xff]
        %v941 = vld [vmem:[#allocation2 + $0x1a] sm:$0xff]
        %v942 = vld [vmem:[#allocation2 + $0x22] sm:$0xff]
        %v943 = vld [vmem:[#allocation2 + $0x32] sm:$0xff]
        %v944 = vld [vmem:[#allocation2 + $0x3a] sm:$0xff]
        %v945 = vld [vmem:[#allocation2 + $0x4a] sm:$0xff]
        %v946 = vld [vmem:[#allocation2 + $0x52] sm:$0xff]
        %v947 = vld [vmem:[#allocation2 + $0x62] sm:$0xff]
        %v948 = vld [vmem:[#allocation2 + $0x6a] sm:$0xff]
        %v949 = vld [vmem:[#allocation2 + $0x7a] sm:$0xff]
        %v950 = vld [vmem:[#allocation2 + $0x82] sm:$0xff]
        %v951 = vld [vmem:[#allocation2 + $0x92] sm:$0xff]
        %v952 = vld [vmem:[#allocation2 + $0x9a] sm:$0xff]
        %v953 = vld [vmem:[#allocation2 + $0xaa] sm:$0xff]
        %v954 = vld [vmem:[#allocation2 + $0xb2] sm:$0xff]
        %v955 = vld [vmem:[#allocation2 + $0xc2] sm:$0xff]
        %v956 = vld [vmem:[#allocation2 + $0xca] sm:$0xff]
        %v957 = vld [vmem:[#allocation2 + $0xda] sm:$0xff]
        %v958 = vld [vmem:[#allocation2 + $0xe2] sm:$0xff]
        %v959 = vld [vmem:[#allocation2 + $0xf2] sm:$0xff]
        %v960 = vld [vmem:[#allocation2 + $0xfa] sm:$0xff]
        %v961 = vld [vmem:[#allocation2 + $0x10a] sm:$0xff]
        %v962 = vld [vmem:[#allocation2 + $0x112] sm:$0xff]
        %v963 = vld [vmem:[#allocation2 + $0x122] sm:$0xff]
        %v964 = vld [vmem:[#allocation2 + $0x12a] sm:$0xff]
        %v965 = vld [vmem:[#allocation2 + $0x13a] sm:$0xff]
        %v966 = vld [vmem:[#allocation2 + $0x142] sm:$0xff]
        %v967 = vld [vmem:[#allocation2 + $0x152] sm:$0xff]
        %v968 = vld [vmem:[#allocation2 + $0x15a] sm:$0xff]
        %v969 = vld [vmem:[#allocation2 + $0x16a] sm:$0xff]
        %v970 = vld [vmem:[#allocation2 + $0x172] sm:$0xff]
        %v971 = vpack.c.bf16 %v940, %v939
        %v972 = vpack.c.bf16 %v942, %v941
        %v973 = vpack.c.bf16 %v944, %v943
        %v974 = vpack.c.bf16 %v946, %v945
        %v975 = vpack.c.bf16 %v948, %v947
        %v976 = vpack.c.bf16 %v950, %v949
        %v977 = vpack.c.bf16 %v952, %v951
        %v978 = vpack.c.bf16 %v954, %v953
        %v979 = vpack.c.bf16 %v956, %v955
        %v980 = vpack.c.bf16 %v958, %v957
        %v981 = vpack.c.bf16 %v960, %v959
        %v982 = vpack.c.bf16 %v962, %v961
        %v983 = vpack.c.bf16 %v964, %v963
        %v984 = vpack.c.bf16 %v966, %v965
        %v985 = vpack.c.bf16 %v968, %v967
        %v986 = vpack.c.bf16 %v970, %v969
        %s987 = scalar_lea.vmem [#allocation7], 128
        %v988 = vld [vmem:[%s987] sm:$0xf]
        %v989 = vld [vmem:[%s987 + $0x4] sm:$0xf]
        %v990 = vld [vmem:[%s987 + $0x8] sm:$0xf]
        %v991 = vld [vmem:[%s987 + $0xc] sm:$0xf]
        %v992 = vld [vmem:[%s987 + $0x10] sm:$0xf]
        %v993 = vld [vmem:[%s987 + $0x14] sm:$0xf]
        %v994 = vld [vmem:[%s987 + $0x18] sm:$0xf]
        %v995 = vld [vmem:[%s987 + $0x1c] sm:$0xf]
        %v996 = vld [vmem:[%s987 + $0x20] sm:$0xf]
        %v997 = vld [vmem:[%s987 + $0x24] sm:$0xf]
        %v998 = vld [vmem:[%s987 + $0x28] sm:$0xf]
        %v999 = vld [vmem:[%s987 + $0x2c] sm:$0xf]
        %v1000 = vld [vmem:[%s987 + $0x30] sm:$0xf]
        %v1001 = vld [vmem:[%s987 + $0x34] sm:$0xf]
        %v1002 = vld [vmem:[%s987 + $0x38] sm:$0xf]
        %v1003 = vld [vmem:[%s987 + $0x3c] sm:$0xf]
        %v1020 = vunpack.c.l.b16 %v988
        %v1021 = vunpack.c.l.b16 %v989
        %v1022 = vunpack.c.l.b16 %v990
        %v1023 = vunpack.c.l.b16 %v991
        %v1024 = vunpack.c.l.b16 %v992
        %v1025 = vunpack.c.l.b16 %v993
        %v1026 = vunpack.c.l.b16 %v994
        %v1027 = vunpack.c.l.b16 %v995
        %v1028 = vunpack.c.l.b16 %v996
        %v1029 = vunpack.c.l.b16 %v997
        %v1030 = vunpack.c.l.b16 %v998
        %v1031 = vunpack.c.l.b16 %v999
        %v1032 = vunpack.c.l.b16 %v1000
        %v1033 = vunpack.c.l.b16 %v1001
        %v1034 = vunpack.c.l.b16 %v1002
        %v1035 = vunpack.c.l.b16 %v1003
        %v1036 = vpack.c.b16 %v1021, %v1020
        %v1037 = vpack.c.b16 %v1023, %v1022
        %v1038 = vpack.c.b16 %v1025, %v1024
        %v1039 = vpack.c.b16 %v1027, %v1026
        %v1040 = vpack.c.b16 %v1029, %v1028
        %v1041 = vpack.c.b16 %v1031, %v1030
        %v1042 = vpack.c.b16 %v1033, %v1032
        %v1043 = vpack.c.b16 %v1035, %v1034
        %1052 = vmatprep.subr.bf16.mxu0 0
        %1053 = vmatpush1.bf16.msra.mxu0 %v1043
        %1054 = vmatprep.subr.bf16.mxu0 0
        %1055 = vmatpush1.bf16.msra.mxu0 %v1042
        %1056 = vmatprep.subr.bf16.mxu0 0
        %1057 = vmatpush1.bf16.msra.mxu0 %v1041
        %1058 = vmatprep.subr.bf16.mxu0 0
        %1059 = vmatpush1.bf16.msra.mxu0 %v1040
        %1060 = vmatprep.subr.bf16.mxu0 0
        %1061 = vmatpush1.bf16.msra.mxu0 %v1039
        %1062 = vmatprep.subr.bf16.mxu0 0
        %1063 = vmatpush1.bf16.msra.mxu0 %v1038
        %1064 = vmatprep.subr.bf16.mxu0 0
        %1065 = vmatpush1.bf16.msra.mxu0 %v1037
        %1066 = vmatprep.subr.bf16.mxu0 0
        %1067 = vmatpush1.bf16.msra.mxu0 %v1036
        %1068 = vmatprep.subr.bf16.mxu0 0
        %1069 = vmatpush2.bf16.msra.mxu0 0
        %1070 = vmatprep.subr.bf16.mxu0 0
        %1071 = vmatpush2.bf16.msra.mxu0 0
        %1072 = vmatprep.subr.bf16.mxu0 0
        %1073 = vmatpush2.bf16.msra.mxu0 0
        %1074 = vmatprep.subr.bf16.mxu0 0
        %1075 = vmatpush2.bf16.msra.mxu0 0
        %1076 = vmatprep.subr.bf16.mxu0 0
        %1077 = vmatpush2.bf16.msra.mxu0 0
        %1078 = vmatprep.subr.bf16.mxu0 0
        %1079 = vmatpush2.bf16.msra.mxu0 0
        %1080 = vmatprep.subr.bf16.mxu0 0
        %1081 = vmatpush2.bf16.msra.mxu0 0
        %1082 = vmatprep.subr.bf16.mxu0 0
        %1083 = vmatpush2.bf16.msra.mxu0 0
        %1084 = vmatprep.mubr.bf16.mxu0 0
        %1085 = vmatmul.mubr.bf16.gmra.mxu0 %v971
        %v1086 = vpop.f32.mrf.mxu0
        %v1087 = vadd.f32 0.0, %v1086
        %v1088 = vpop.f32.mrf.mxu0
        %v1089 = vpop.f32.mrf.mxu0
        %v1090 = vadd.f32 0.0, %v1089
        %v1091 = vpop.f32.mrf.mxu0
        %1092 = vmatprep.mubr.bf16.mxu0 0
        %1093 = vmatmul.mubr.bf16.gmra.mxu0 %v972
        %v1094 = vpop.f32.mrf.mxu0
        %v1095 = vadd.f32 0.0, %v1094
        %v1096 = vpop.f32.mrf.mxu0
        %v1097 = vpop.f32.mrf.mxu0
        %v1098 = vadd.f32 0.0, %v1097
        %v1099 = vpop.f32.mrf.mxu0
        %1100 = vmatprep.mubr.bf16.mxu0 0
        %1101 = vmatmul.mubr.bf16.gmra.mxu0 %v973
        %v1102 = vpop.f32.mrf.mxu0
        %v1103 = vadd.f32 0.0, %v1102
        %v1104 = vpop.f32.mrf.mxu0
        %v1105 = vpop.f32.mrf.mxu0
        %v1106 = vadd.f32 0.0, %v1105
        %v1107 = vpop.f32.mrf.mxu0
        %1108 = vmatprep.mubr.bf16.mxu0 0
        %1109 = vmatmul.mubr.bf16.gmra.mxu0 %v974
        %v1110 = vpop.f32.mrf.mxu0
        %v1111 = vadd.f32 0.0, %v1110
        %v1112 = vpop.f32.mrf.mxu0
        %v1113 = vpop.f32.mrf.mxu0
        %v1114 = vadd.f32 0.0, %v1113
        %v1115 = vpop.f32.mrf.mxu0
        %1116 = vmatprep.mubr.bf16.mxu0 0
        %1117 = vmatmul.mubr.bf16.gmra.mxu0 %v975
        %v1118 = vpop.f32.mrf.mxu0
        %v1119 = vadd.f32 0.0, %v1118
        %v1120 = vpop.f32.mrf.mxu0
        %v1121 = vpop.f32.mrf.mxu0
        %v1122 = vadd.f32 0.0, %v1121
        %v1123 = vpop.f32.mrf.mxu0
        %1124 = vmatprep.mubr.bf16.mxu0 0
        %1125 = vmatmul.mubr.bf16.gmra.mxu0 %v976
        %v1126 = vpop.f32.mrf.mxu0
        %v1127 = vadd.f32 0.0, %v1126
        %v1128 = vpop.f32.mrf.mxu0
        %v1129 = vpop.f32.mrf.mxu0
        %v1130 = vadd.f32 0.0, %v1129
        %v1131 = vpop.f32.mrf.mxu0
        %1132 = vmatprep.mubr.bf16.mxu0 0
        %1133 = vmatmul.mubr.bf16.gmra.mxu0 %v977
        %v1134 = vpop.f32.mrf.mxu0
        %v1135 = vadd.f32 0.0, %v1134
        %v1136 = vpop.f32.mrf.mxu0
        %v1137 = vpop.f32.mrf.mxu0
        %v1138 = vadd.f32 0.0, %v1137
        %v1139 = vpop.f32.mrf.mxu0
        %1140 = vmatprep.mubr.bf16.mxu0 0
        %1141 = vmatmul.mubr.bf16.gmra.mxu0 %v978
        %v1142 = vpop.f32.mrf.mxu0
        %v1143 = vadd.f32 0.0, %v1142
        %v1144 = vpop.f32.mrf.mxu0
        %v1145 = vpop.f32.mrf.mxu0
        %v1146 = vadd.f32 0.0, %v1145
        %v1147 = vpop.f32.mrf.mxu0
        %1148 = vmatprep.mubr.bf16.mxu0 0
        %1149 = vmatmul.mubr.bf16.gmra.mxu0 %v979
        %v1150 = vpop.f32.mrf.mxu0
        %v1151 = vadd.f32 0.0, %v1150
        %v1152 = vpop.f32.mrf.mxu0
        %v1153 = vpop.f32.mrf.mxu0
        %v1154 = vadd.f32 0.0, %v1153
        %v1155 = vpop.f32.mrf.mxu0
        %1156 = vmatprep.mubr.bf16.mxu0 0
        %1157 = vmatmul.mubr.bf16.gmra.mxu0 %v980
        %v1158 = vpop.f32.mrf.mxu0
        %v1159 = vadd.f32 0.0, %v1158
        %v1160 = vpop.f32.mrf.mxu0
        %v1161 = vpop.f32.mrf.mxu0
        %v1162 = vadd.f32 0.0, %v1161
        %v1163 = vpop.f32.mrf.mxu0
        %1164 = vmatprep.mubr.bf16.mxu0 0
        %1165 = vmatmul.mubr.bf16.gmra.mxu0 %v981
        %v1166 = vpop.f32.mrf.mxu0
        %v1167 = vadd.f32 0.0, %v1166
        %v1168 = vpop.f32.mrf.mxu0
        %v1169 = vpop.f32.mrf.mxu0
        %v1170 = vadd.f32 0.0, %v1169
        %v1171 = vpop.f32.mrf.mxu0
        %1172 = vmatprep.mubr.bf16.mxu0 0
        %1173 = vmatmul.mubr.bf16.gmra.mxu0 %v982
        %v1174 = vpop.f32.mrf.mxu0
        %v1175 = vadd.f32 0.0, %v1174
        %v1176 = vpop.f32.mrf.mxu0
        %v1177 = vpop.f32.mrf.mxu0
        %v1178 = vadd.f32 0.0, %v1177
        %v1179 = vpop.f32.mrf.mxu0
        %1180 = vmatprep.mubr.bf16.mxu0 0
        %1181 = vmatmul.mubr.bf16.gmra.mxu0 %v983
        %v1182 = vpop.f32.mrf.mxu0
        %v1183 = vadd.f32 0.0, %v1182
        %v1184 = vpop.f32.mrf.mxu0
        %v1185 = vpop.f32.mrf.mxu0
        %v1186 = vadd.f32 0.0, %v1185
        %v1187 = vpop.f32.mrf.mxu0
        %1188 = vmatprep.mubr.bf16.mxu0 0
        %1189 = vmatmul.mubr.bf16.gmra.mxu0 %v984
        %v1190 = vpop.f32.mrf.mxu0
        %v1191 = vadd.f32 0.0, %v1190
        %v1192 = vpop.f32.mrf.mxu0
        %v1193 = vpop.f32.mrf.mxu0
        %v1194 = vadd.f32 0.0, %v1193
        %v1195 = vpop.f32.mrf.mxu0
        %1196 = vmatprep.mubr.bf16.mxu0 0
        %1197 = vmatmul.mubr.bf16.gmra.mxu0 %v985
        %v1198 = vpop.f32.mrf.mxu0
        %v1199 = vadd.f32 0.0, %v1198
        %v1200 = vpop.f32.mrf.mxu0
        %v1201 = vpop.f32.mrf.mxu0
        %v1202 = vadd.f32 0.0, %v1201
        %v1203 = vpop.f32.mrf.mxu0
        %1204 = vmatprep.mubr.bf16.mxu0 0
        %1205 = vmatmul.mubr.bf16.gmra.mxu0 %v986
        %v1206 = vpop.f32.mrf.mxu0
        %v1207 = vadd.f32 0.0, %v1206
        %v1208 = vpop.f32.mrf.mxu0
        %v1209 = vpop.f32.mrf.mxu0
        %v1210 = vadd.f32 0.0, %v1209
        %v1211 = vpop.f32.mrf.mxu0
        %1212 = vdwg.mxu0
        %v1213 = vadd.f32 %v813, %v1087
        %v1214 = vadd.f32 %v816, %v1090
        %v1215 = vadd.f32 %v821, %v1095
        %v1216 = vadd.f32 %v824, %v1098
        %v1217 = vadd.f32 %v829, %v1103
        %v1218 = vadd.f32 %v832, %v1106
        %v1219 = vadd.f32 %v837, %v1111
        %v1220 = vadd.f32 %v840, %v1114
        %v1221 = vadd.f32 %v845, %v1119
        %v1222 = vadd.f32 %v848, %v1122
        %v1223 = vadd.f32 %v853, %v1127
        %v1224 = vadd.f32 %v856, %v1130
        %v1225 = vadd.f32 %v861, %v1135
        %v1226 = vadd.f32 %v864, %v1138
        %v1227 = vadd.f32 %v869, %v1143
        %v1228 = vadd.f32 %v872, %v1146
        %v1229 = vadd.f32 %v877, %v1151
        %v1230 = vadd.f32 %v880, %v1154
        %v1231 = vadd.f32 %v885, %v1159
        %v1232 = vadd.f32 %v888, %v1162
        %v1233 = vadd.f32 %v893, %v1167
        %v1234 = vadd.f32 %v896, %v1170
        %v1235 = vadd.f32 %v901, %v1175
        %v1236 = vadd.f32 %v904, %v1178
        %v1237 = vadd.f32 %v909, %v1183
        %v1238 = vadd.f32 %v912, %v1186
        %v1239 = vadd.f32 %v917, %v1191
        %v1240 = vadd.f32 %v920, %v1194
        %v1241 = vadd.f32 %v925, %v1199
        %v1242 = vadd.f32 %v928, %v1202
        %v1243 = vadd.f32 %v933, %v1207
        %v1244 = vadd.f32 %v936, %v1210
        %v1245 = vld [vmem:[%s359] sm:$0xff]
        %v1246 = vld [vmem:[%s359 + $0x8] sm:$0xff]
        %v1247 = vld [vmem:[%s359 + $0x18] sm:$0xff]
        %v1248 = vld [vmem:[%s359 + $0x20] sm:$0xff]
        %v1249 = vld [vmem:[%s359 + $0x30] sm:$0xff]
        %v1250 = vld [vmem:[%s359 + $0x38] sm:$0xff]
        %v1251 = vld [vmem:[%s359 + $0x48] sm:$0xff]
        %v1252 = vld [vmem:[%s359 + $0x50] sm:$0xff]
        %v1253 = vld [vmem:[%s359 + $0x60] sm:$0xff]
        %v1254 = vld [vmem:[%s359 + $0x68] sm:$0xff]
        %v1255 = vld [vmem:[%s359 + $0x78] sm:$0xff]
        %v1256 = vld [vmem:[%s359 + $0x80] sm:$0xff]
        %v1257 = vld [vmem:[%s359 + $0x90] sm:$0xff]
        %v1258 = vld [vmem:[%s359 + $0x98] sm:$0xff]
        %v1259 = vld [vmem:[%s359 + $0xa8] sm:$0xff]
        %v1260 = vld [vmem:[%s359 + $0xb0] sm:$0xff]
        %v1261 = vld [vmem:[%s359 + $0xc0] sm:$0xff]
        %v1262 = vld [vmem:[%s359 + $0xc8] sm:$0xff]
        %v1263 = vld [vmem:[%s359 + $0xd8] sm:$0xff]
        %v1264 = vld [vmem:[%s359 + $0xe0] sm:$0xff]
        %v1265 = vld [vmem:[%s359 + $0xf0] sm:$0xff]
        %v1266 = vld [vmem:[%s359 + $0xf8] sm:$0xff]
        %v1267 = vld [vmem:[%s359 + $0x108] sm:$0xff]
        %v1268 = vld [vmem:[%s359 + $0x110] sm:$0xff]
        %v1269 = vld [vmem:[%s359 + $0x120] sm:$0xff]
        %v1270 = vld [vmem:[%s359 + $0x128] sm:$0xff]
        %v1271 = vld [vmem:[%s359 + $0x138] sm:$0xff]
        %v1272 = vld [vmem:[%s359 + $0x140] sm:$0xff]
        %v1273 = vld [vmem:[%s359 + $0x150] sm:$0xff]
        %v1274 = vld [vmem:[%s359 + $0x158] sm:$0xff]
        %v1275 = vld [vmem:[%s359 + $0x168] sm:$0xff]
        %v1276 = vld [vmem:[%s359 + $0x170] sm:$0xff]
        %v1277 = vpack.c.bf16 %v1246, %v1245
        %v1278 = vpack.c.bf16 %v1248, %v1247
        %v1279 = vpack.c.bf16 %v1250, %v1249
        %v1280 = vpack.c.bf16 %v1252, %v1251
        %v1281 = vpack.c.bf16 %v1254, %v1253
        %v1282 = vpack.c.bf16 %v1256, %v1255
        %v1283 = vpack.c.bf16 %v1258, %v1257
        %v1284 = vpack.c.bf16 %v1260, %v1259
        %v1285 = vpack.c.bf16 %v1262, %v1261
        %v1286 = vpack.c.bf16 %v1264, %v1263
        %v1287 = vpack.c.bf16 %v1266, %v1265
        %v1288 = vpack.c.bf16 %v1268, %v1267
        %v1289 = vpack.c.bf16 %v1270, %v1269
        %v1290 = vpack.c.bf16 %v1272, %v1271
        %v1291 = vpack.c.bf16 %v1274, %v1273
        %v1292 = vpack.c.bf16 %v1276, %v1275
        %s1293 = scalar_lea.vmem [#allocation7], 192
        %v1294 = vld [vmem:[%s1293] sm:$0xf]
        %v1295 = vld [vmem:[%s1293 + $0x4] sm:$0xf]
        %v1296 = vld [vmem:[%s1293 + $0x8] sm:$0xf]
        %v1297 = vld [vmem:[%s1293 + $0xc] sm:$0xf]
        %v1298 = vld [vmem:[%s1293 + $0x10] sm:$0xf]
        %v1299 = vld [vmem:[%s1293 + $0x14] sm:$0xf]
        %v1300 = vld [vmem:[%s1293 + $0x18] sm:$0xf]
        %v1301 = vld [vmem:[%s1293 + $0x1c] sm:$0xf]
        %v1302 = vld [vmem:[%s1293 + $0x20] sm:$0xf]
        %v1303 = vld [vmem:[%s1293 + $0x24] sm:$0xf]
        %v1304 = vld [vmem:[%s1293 + $0x28] sm:$0xf]
        %v1305 = vld [vmem:[%s1293 + $0x2c] sm:$0xf]
        %v1306 = vld [vmem:[%s1293 + $0x30] sm:$0xf]
        %v1307 = vld [vmem:[%s1293 + $0x34] sm:$0xf]
        %v1308 = vld [vmem:[%s1293 + $0x38] sm:$0xf]
        %v1309 = vld [vmem:[%s1293 + $0x3c] sm:$0xf]
        %v1326 = vunpack.c.l.b16 %v1294
        %v1327 = vunpack.c.l.b16 %v1295
        %v1328 = vunpack.c.l.b16 %v1296
        %v1329 = vunpack.c.l.b16 %v1297
        %v1330 = vunpack.c.l.b16 %v1298
        %v1331 = vunpack.c.l.b16 %v1299
        %v1332 = vunpack.c.l.b16 %v1300
        %v1333 = vunpack.c.l.b16 %v1301
        %v1334 = vunpack.c.l.b16 %v1302
        %v1335 = vunpack.c.l.b16 %v1303
        %v1336 = vunpack.c.l.b16 %v1304
        %v1337 = vunpack.c.l.b16 %v1305
        %v1338 = vunpack.c.l.b16 %v1306
        %v1339 = vunpack.c.l.b16 %v1307
        %v1340 = vunpack.c.l.b16 %v1308
        %v1341 = vunpack.c.l.b16 %v1309
        %v1342 = vpack.c.b16 %v1327, %v1326
        %v1343 = vpack.c.b16 %v1329, %v1328
        %v1344 = vpack.c.b16 %v1331, %v1330
        %v1345 = vpack.c.b16 %v1333, %v1332
        %v1346 = vpack.c.b16 %v1335, %v1334
        %v1347 = vpack.c.b16 %v1337, %v1336
        %v1348 = vpack.c.b16 %v1339, %v1338
        %v1349 = vpack.c.b16 %v1341, %v1340
        %1358 = vmatprep.subr.bf16.mxu0 0
        %1359 = vmatpush1.bf16.msra.mxu0 %v1349
        %1360 = vmatprep.subr.bf16.mxu0 0
        %1361 = vmatpush1.bf16.msra.mxu0 %v1348
        %1362 = vmatprep.subr.bf16.mxu0 0
        %1363 = vmatpush1.bf16.msra.mxu0 %v1347
        %1364 = vmatprep.subr.bf16.mxu0 0
        %1365 = vmatpush1.bf16.msra.mxu0 %v1346
        %1366 = vmatprep.subr.bf16.mxu0 0
        %1367 = vmatpush1.bf16.msra.mxu0 %v1345
        %1368 = vmatprep.subr.bf16.mxu0 0
        %1369 = vmatpush1.bf16.msra.mxu0 %v1344
        %1370 = vmatprep.subr.bf16.mxu0 0
        %1371 = vmatpush1.bf16.msra.mxu0 %v1343
        %1372 = vmatprep.subr.bf16.mxu0 0
        %1373 = vmatpush1.bf16.msra.mxu0 %v1342
        %1374 = vmatprep.subr.bf16.mxu0 0
        %1375 = vmatpush2.bf16.msra.mxu0 0
        %1376 = vmatprep.subr.bf16.mxu0 0
        %1377 = vmatpush2.bf16.msra.mxu0 0
        %1378 = vmatprep.subr.bf16.mxu0 0
        %1379 = vmatpush2.bf16.msra.mxu0 0
        %1380 = vmatprep.subr.bf16.mxu0 0
        %1381 = vmatpush2.bf16.msra.mxu0 0
        %1382 = vmatprep.subr.bf16.mxu0 0
        %1383 = vmatpush2.bf16.msra.mxu0 0
        %1384 = vmatprep.subr.bf16.mxu0 0
        %1385 = vmatpush2.bf16.msra.mxu0 0
        %1386 = vmatprep.subr.bf16.mxu0 0
        %1387 = vmatpush2.bf16.msra.mxu0 0
        %1388 = vmatprep.subr.bf16.mxu0 0
        %1389 = vmatpush2.bf16.msra.mxu0 0
        %1390 = vmatprep.mubr.bf16.mxu0 0
        %1391 = vmatmul.mubr.bf16.gmra.mxu0 %v1277
        %v1392 = vpop.f32.mrf.mxu0
        %v1393 = vadd.f32 0.0, %v1392
        %v1394 = vpop.f32.mrf.mxu0
        %v1395 = vpop.f32.mrf.mxu0
        %v1396 = vadd.f32 0.0, %v1395
        %v1397 = vpop.f32.mrf.mxu0
        %1398 = vmatprep.mubr.bf16.mxu0 0
        %1399 = vmatmul.mubr.bf16.gmra.mxu0 %v1278
        %v1400 = vpop.f32.mrf.mxu0
        %v1401 = vadd.f32 0.0, %v1400
        %v1402 = vpop.f32.mrf.mxu0
        %v1403 = vpop.f32.mrf.mxu0
        %v1404 = vadd.f32 0.0, %v1403
        %v1405 = vpop.f32.mrf.mxu0
        %1406 = vmatprep.mubr.bf16.mxu0 0
        %1407 = vmatmul.mubr.bf16.gmra.mxu0 %v1279
        %v1408 = vpop.f32.mrf.mxu0
        %v1409 = vadd.f32 0.0, %v1408
        %v1410 = vpop.f32.mrf.mxu0
        %v1411 = vpop.f32.mrf.mxu0
        %v1412 = vadd.f32 0.0, %v1411
        %v1413 = vpop.f32.mrf.mxu0
        %1414 = vmatprep.mubr.bf16.mxu0 0
        %1415 = vmatmul.mubr.bf16.gmra.mxu0 %v1280
        %v1416 = vpop.f32.mrf.mxu0
        %v1417 = vadd.f32 0.0, %v1416
        %v1418 = vpop.f32.mrf.mxu0
        %v1419 = vpop.f32.mrf.mxu0
        %v1420 = vadd.f32 0.0, %v1419
        %v1421 = vpop.f32.mrf.mxu0
        %1422 = vmatprep.mubr.bf16.mxu0 0
        %1423 = vmatmul.mubr.bf16.gmra.mxu0 %v1281
        %v1424 = vpop.f32.mrf.mxu0
        %v1425 = vadd.f32 0.0, %v1424
        %v1426 = vpop.f32.mrf.mxu0
        %v1427 = vpop.f32.mrf.mxu0
        %v1428 = vadd.f32 0.0, %v1427
        %v1429 = vpop.f32.mrf.mxu0
        %1430 = vmatprep.mubr.bf16.mxu0 0
        %1431 = vmatmul.mubr.bf16.gmra.mxu0 %v1282
        %v1432 = vpop.f32.mrf.mxu0
        %v1433 = vadd.f32 0.0, %v1432
        %v1434 = vpop.f32.mrf.mxu0
        %v1435 = vpop.f32.mrf.mxu0
        %v1436 = vadd.f32 0.0, %v1435
        %v1437 = vpop.f32.mrf.mxu0
        %1438 = vmatprep.mubr.bf16.mxu0 0
        %1439 = vmatmul.mubr.bf16.gmra.mxu0 %v1283
        %v1440 = vpop.f32.mrf.mxu0
        %v1441 = vadd.f32 0.0, %v1440
        %v1442 = vpop.f32.mrf.mxu0
        %v1443 = vpop.f32.mrf.mxu0
        %v1444 = vadd.f32 0.0, %v1443
        %v1445 = vpop.f32.mrf.mxu0
        %1446 = vmatprep.mubr.bf16.mxu0 0
        %1447 = vmatmul.mubr.bf16.gmra.mxu0 %v1284
        %v1448 = vpop.f32.mrf.mxu0
        %v1449 = vadd.f32 0.0, %v1448
        %v1450 = vpop.f32.mrf.mxu0
        %v1451 = vpop.f32.mrf.mxu0
        %v1452 = vadd.f32 0.0, %v1451
        %v1453 = vpop.f32.mrf.mxu0
        %1454 = vmatprep.mubr.bf16.mxu0 0
        %1455 = vmatmul.mubr.bf16.gmra.mxu0 %v1285
        %v1456 = vpop.f32.mrf.mxu0
        %v1457 = vadd.f32 0.0, %v1456
        %v1458 = vpop.f32.mrf.mxu0
        %v1459 = vpop.f32.mrf.mxu0
        %v1460 = vadd.f32 0.0, %v1459
        %v1461 = vpop.f32.mrf.mxu0
        %1462 = vmatprep.mubr.bf16.mxu0 0
        %1463 = vmatmul.mubr.bf16.gmra.mxu0 %v1286
        %v1464 = vpop.f32.mrf.mxu0
        %v1465 = vadd.f32 0.0, %v1464
        %v1466 = vpop.f32.mrf.mxu0
        %v1467 = vpop.f32.mrf.mxu0
        %v1468 = vadd.f32 0.0, %v1467
        %v1469 = vpop.f32.mrf.mxu0
        %1470 = vmatprep.mubr.bf16.mxu0 0
        %1471 = vmatmul.mubr.bf16.gmra.mxu0 %v1287
        %v1472 = vpop.f32.mrf.mxu0
        %v1473 = vadd.f32 0.0, %v1472
        %v1474 = vpop.f32.mrf.mxu0
        %v1475 = vpop.f32.mrf.mxu0
        %v1476 = vadd.f32 0.0, %v1475
        %v1477 = vpop.f32.mrf.mxu0
        %1478 = vmatprep.mubr.bf16.mxu0 0
        %1479 = vmatmul.mubr.bf16.gmra.mxu0 %v1288
        %v1480 = vpop.f32.mrf.mxu0
        %v1481 = vadd.f32 0.0, %v1480
        %v1482 = vpop.f32.mrf.mxu0
        %v1483 = vpop.f32.mrf.mxu0
        %v1484 = vadd.f32 0.0, %v1483
        %v1485 = vpop.f32.mrf.mxu0
        %1486 = vmatprep.mubr.bf16.mxu0 0
        %1487 = vmatmul.mubr.bf16.gmra.mxu0 %v1289
        %v1488 = vpop.f32.mrf.mxu0
        %v1489 = vadd.f32 0.0, %v1488
        %v1490 = vpop.f32.mrf.mxu0
        %v1491 = vpop.f32.mrf.mxu0
        %v1492 = vadd.f32 0.0, %v1491
        %v1493 = vpop.f32.mrf.mxu0
        %1494 = vmatprep.mubr.bf16.mxu0 0
        %1495 = vmatmul.mubr.bf16.gmra.mxu0 %v1290
        %v1496 = vpop.f32.mrf.mxu0
        %v1497 = vadd.f32 0.0, %v1496
        %v1498 = vpop.f32.mrf.mxu0
        %v1499 = vpop.f32.mrf.mxu0
        %v1500 = vadd.f32 0.0, %v1499
        %v1501 = vpop.f32.mrf.mxu0
        %1502 = vmatprep.mubr.bf16.mxu0 0
        %1503 = vmatmul.mubr.bf16.gmra.mxu0 %v1291
        %v1504 = vpop.f32.mrf.mxu0
        %v1505 = vadd.f32 0.0, %v1504
        %v1506 = vpop.f32.mrf.mxu0
        %v1507 = vpop.f32.mrf.mxu0
        %v1508 = vadd.f32 0.0, %v1507
        %v1509 = vpop.f32.mrf.mxu0
        %1510 = vmatprep.mubr.bf16.mxu0 0
        %1511 = vmatmul.mubr.bf16.gmra.mxu0 %v1292
        %v1512 = vpop.f32.mrf.mxu0
        %v1513 = vadd.f32 0.0, %v1512
        %v1514 = vpop.f32.mrf.mxu0
        %v1515 = vpop.f32.mrf.mxu0
        %v1516 = vadd.f32 0.0, %v1515
        %v1517 = vpop.f32.mrf.mxu0
        %1518 = vdwg.mxu0
        %v1519 = vadd.f32 %v1213, %v1393
        %v1520 = vadd.f32 %v1214, %v1396
        %v1521 = vadd.f32 %v1215, %v1401
        %v1522 = vadd.f32 %v1216, %v1404
        %v1523 = vadd.f32 %v1217, %v1409
        %v1524 = vadd.f32 %v1218, %v1412
        %v1525 = vadd.f32 %v1219, %v1417
        %v1526 = vadd.f32 %v1220, %v1420
        %v1527 = vadd.f32 %v1221, %v1425
        %v1528 = vadd.f32 %v1222, %v1428
        %v1529 = vadd.f32 %v1223, %v1433
        %v1530 = vadd.f32 %v1224, %v1436
        %v1531 = vadd.f32 %v1225, %v1441
        %v1532 = vadd.f32 %v1226, %v1444
        %v1533 = vadd.f32 %v1227, %v1449
        %v1534 = vadd.f32 %v1228, %v1452
        %v1535 = vadd.f32 %v1229, %v1457
        %v1536 = vadd.f32 %v1230, %v1460
        %v1537 = vadd.f32 %v1231, %v1465
        %v1538 = vadd.f32 %v1232, %v1468
        %v1539 = vadd.f32 %v1233, %v1473
        %v1540 = vadd.f32 %v1234, %v1476
        %v1541 = vadd.f32 %v1235, %v1481
        %v1542 = vadd.f32 %v1236, %v1484
        %v1543 = vadd.f32 %v1237, %v1489
        %v1544 = vadd.f32 %v1238, %v1492
        %v1545 = vadd.f32 %v1239, %v1497
        %v1546 = vadd.f32 %v1240, %v1500
        %v1547 = vadd.f32 %v1241, %v1505
        %v1548 = vadd.f32 %v1242, %v1508
        %v1549 = vadd.f32 %v1243, %v1513
        %v1550 = vadd.f32 %v1244, %v1516
        %v1551 = vld [vmem:[%s359 + $0x1] sm:$0xff]
        %v1552 = vld [vmem:[%s359 + $0x9] sm:$0xff]
        %v1553 = vld [vmem:[%s359 + $0x19] sm:$0xff]
        %v1554 = vld [vmem:[%s359 + $0x21] sm:$0xff]
        %v1555 = vld [vmem:[%s359 + $0x31] sm:$0xff]
        %v1556 = vld [vmem:[%s359 + $0x39] sm:$0xff]
        %v1557 = vld [vmem:[%s359 + $0x49] sm:$0xff]
        %v1558 = vld [vmem:[%s359 + $0x51] sm:$0xff]
        %v1559 = vld [vmem:[%s359 + $0x61] sm:$0xff]
        %v1560 = vld [vmem:[%s359 + $0x69] sm:$0xff]
        %v1561 = vld [vmem:[%s359 + $0x79] sm:$0xff]
        %v1562 = vld [vmem:[%s359 + $0x81] sm:$0xff]
        %v1563 = vld [vmem:[%s359 + $0x91] sm:$0xff]
        %v1564 = vld [vmem:[%s359 + $0x99] sm:$0xff]
        %v1565 = vld [vmem:[%s359 + $0xa9] sm:$0xff]
        %v1566 = vld [vmem:[%s359 + $0xb1] sm:$0xff]
        %v1567 = vld [vmem:[%s359 + $0xc1] sm:$0xff]
        %v1568 = vld [vmem:[%s359 + $0xc9] sm:$0xff]
        %v1569 = vld [vmem:[%s359 + $0xd9] sm:$0xff]
        %v1570 = vld [vmem:[%s359 + $0xe1] sm:$0xff]
        %v1571 = vld [vmem:[%s359 + $0xf1] sm:$0xff]
        %v1572 = vld [vmem:[%s359 + $0xf9] sm:$0xff]
        %v1573 = vld [vmem:[%s359 + $0x109] sm:$0xff]
        %v1574 = vld [vmem:[%s359 + $0x111] sm:$0xff]
        %v1575 = vld [vmem:[%s359 + $0x121] sm:$0xff]
        %v1576 = vld [vmem:[%s359 + $0x129] sm:$0xff]
        %v1577 = vld [vmem:[%s359 + $0x139] sm:$0xff]
        %v1578 = vld [vmem:[%s359 + $0x141] sm:$0xff]
        %v1579 = vld [vmem:[%s359 + $0x151] sm:$0xff]
        %v1580 = vld [vmem:[%s359 + $0x159] sm:$0xff]
        %v1581 = vld [vmem:[%s359 + $0x169] sm:$0xff]
        %v1582 = vld [vmem:[%s359 + $0x171] sm:$0xff]
        %v1583 = vpack.c.bf16 %v1552, %v1551
        %v1584 = vpack.c.bf16 %v1554, %v1553
        %v1585 = vpack.c.bf16 %v1556, %v1555
        %v1586 = vpack.c.bf16 %v1558, %v1557
        %v1587 = vpack.c.bf16 %v1560, %v1559
        %v1588 = vpack.c.bf16 %v1562, %v1561
        %v1589 = vpack.c.bf16 %v1564, %v1563
        %v1590 = vpack.c.bf16 %v1566, %v1565
        %v1591 = vpack.c.bf16 %v1568, %v1567
        %v1592 = vpack.c.bf16 %v1570, %v1569
        %v1593 = vpack.c.bf16 %v1572, %v1571
        %v1594 = vpack.c.bf16 %v1574, %v1573
        %v1595 = vpack.c.bf16 %v1576, %v1575
        %v1596 = vpack.c.bf16 %v1578, %v1577
        %v1597 = vpack.c.bf16 %v1580, %v1579
        %v1598 = vpack.c.bf16 %v1582, %v1581
        %s1599 = scalar_lea.vmem [#allocation7], 256
        %v1600 = vld [vmem:[%s1599] sm:$0xf]
        %v1601 = vld [vmem:[%s1599 + $0x4] sm:$0xf]
        %v1602 = vld [vmem:[%s1599 + $0x8] sm:$0xf]
        %v1603 = vld [vmem:[%s1599 + $0xc] sm:$0xf]
        %v1604 = vld [vmem:[%s1599 + $0x10] sm:$0xf]
        %v1605 = vld [vmem:[%s1599 + $0x14] sm:$0xf]
        %v1606 = vld [vmem:[%s1599 + $0x18] sm:$0xf]
        %v1607 = vld [vmem:[%s1599 + $0x1c] sm:$0xf]
        %v1608 = vld [vmem:[%s1599 + $0x20] sm:$0xf]
        %v1609 = vld [vmem:[%s1599 + $0x24] sm:$0xf]
        %v1610 = vld [vmem:[%s1599 + $0x28] sm:$0xf]
        %v1611 = vld [vmem:[%s1599 + $0x2c] sm:$0xf]
        %v1612 = vld [vmem:[%s1599 + $0x30] sm:$0xf]
        %v1613 = vld [vmem:[%s1599 + $0x34] sm:$0xf]
        %v1614 = vld [vmem:[%s1599 + $0x38] sm:$0xf]
        %v1615 = vld [vmem:[%s1599 + $0x3c] sm:$0xf]
        %v1632 = vunpack.c.l.b16 %v1600
        %v1633 = vunpack.c.l.b16 %v1601
        %v1634 = vunpack.c.l.b16 %v1602
        %v1635 = vunpack.c.l.b16 %v1603
        %v1636 = vunpack.c.l.b16 %v1604
        %v1637 = vunpack.c.l.b16 %v1605
        %v1638 = vunpack.c.l.b16 %v1606
        %v1639 = vunpack.c.l.b16 %v1607
        %v1640 = vunpack.c.l.b16 %v1608
        %v1641 = vunpack.c.l.b16 %v1609
        %v1642 = vunpack.c.l.b16 %v1610
        %v1643 = vunpack.c.l.b16 %v1611
        %v1644 = vunpack.c.l.b16 %v1612
        %v1645 = vunpack.c.l.b16 %v1613
        %v1646 = vunpack.c.l.b16 %v1614
        %v1647 = vunpack.c.l.b16 %v1615
        %v1648 = vpack.c.b16 %v1633, %v1632
        %v1649 = vpack.c.b16 %v1635, %v1634
        %v1650 = vpack.c.b16 %v1637, %v1636
        %v1651 = vpack.c.b16 %v1639, %v1638
        %v1652 = vpack.c.b16 %v1641, %v1640
        %v1653 = vpack.c.b16 %v1643, %v1642
        %v1654 = vpack.c.b16 %v1645, %v1644
        %v1655 = vpack.c.b16 %v1647, %v1646
        %1664 = vmatprep.subr.bf16.mxu0 0
        %1665 = vmatpush1.bf16.msra.mxu0 %v1655
        %1666 = vmatprep.subr.bf16.mxu0 0
        %1667 = vmatpush1.bf16.msra.mxu0 %v1654
        %1668 = vmatprep.subr.bf16.mxu0 0
        %1669 = vmatpush1.bf16.msra.mxu0 %v1653
        %1670 = vmatprep.subr.bf16.mxu0 0
        %1671 = vmatpush1.bf16.msra.mxu0 %v1652
        %1672 = vmatprep.subr.bf16.mxu0 0
        %1673 = vmatpush1.bf16.msra.mxu0 %v1651
        %1674 = vmatprep.subr.bf16.mxu0 0
        %1675 = vmatpush1.bf16.msra.mxu0 %v1650
        %1676 = vmatprep.subr.bf16.mxu0 0
        %1677 = vmatpush1.bf16.msra.mxu0 %v1649
        %1678 = vmatprep.subr.bf16.mxu0 0
        %1679 = vmatpush1.bf16.msra.mxu0 %v1648
        %1680 = vmatprep.subr.bf16.mxu0 0
        %1681 = vmatpush2.bf16.msra.mxu0 0
        %1682 = vmatprep.subr.bf16.mxu0 0
        %1683 = vmatpush2.bf16.msra.mxu0 0
        %1684 = vmatprep.subr.bf16.mxu0 0
        %1685 = vmatpush2.bf16.msra.mxu0 0
        %1686 = vmatprep.subr.bf16.mxu0 0
        %1687 = vmatpush2.bf16.msra.mxu0 0
        %1688 = vmatprep.subr.bf16.mxu0 0
        %1689 = vmatpush2.bf16.msra.mxu0 0
        %1690 = vmatprep.subr.bf16.mxu0 0
        %1691 = vmatpush2.bf16.msra.mxu0 0
        %1692 = vmatprep.subr.bf16.mxu0 0
        %1693 = vmatpush2.bf16.msra.mxu0 0
        %1694 = vmatprep.subr.bf16.mxu0 0
        %1695 = vmatpush2.bf16.msra.mxu0 0
        %1696 = vmatprep.mubr.bf16.mxu0 0
        %1697 = vmatmul.mubr.bf16.gmra.mxu0 %v1583
        %v1698 = vpop.f32.mrf.mxu0
        %v1699 = vadd.f32 0.0, %v1698
        %v1700 = vpop.f32.mrf.mxu0
        %v1701 = vpop.f32.mrf.mxu0
        %v1702 = vadd.f32 0.0, %v1701
        %v1703 = vpop.f32.mrf.mxu0
        %1704 = vmatprep.mubr.bf16.mxu0 0
        %1705 = vmatmul.mubr.bf16.gmra.mxu0 %v1584
        %v1706 = vpop.f32.mrf.mxu0
        %v1707 = vadd.f32 0.0, %v1706
        %v1708 = vpop.f32.mrf.mxu0
        %v1709 = vpop.f32.mrf.mxu0
        %v1710 = vadd.f32 0.0, %v1709
        %v1711 = vpop.f32.mrf.mxu0
        %1712 = vmatprep.mubr.bf16.mxu0 0
        %1713 = vmatmul.mubr.bf16.gmra.mxu0 %v1585
        %v1714 = vpop.f32.mrf.mxu0
        %v1715 = vadd.f32 0.0, %v1714
        %v1716 = vpop.f32.mrf.mxu0
        %v1717 = vpop.f32.mrf.mxu0
        %v1718 = vadd.f32 0.0, %v1717
        %v1719 = vpop.f32.mrf.mxu0
        %1720 = vmatprep.mubr.bf16.mxu0 0
        %1721 = vmatmul.mubr.bf16.gmra.mxu0 %v1586
        %v1722 = vpop.f32.mrf.mxu0
        %v1723 = vadd.f32 0.0, %v1722
        %v1724 = vpop.f32.mrf.mxu0
        %v1725 = vpop.f32.mrf.mxu0
        %v1726 = vadd.f32 0.0, %v1725
        %v1727 = vpop.f32.mrf.mxu0
        %1728 = vmatprep.mubr.bf16.mxu0 0
        %1729 = vmatmul.mubr.bf16.gmra.mxu0 %v1587
        %v1730 = vpop.f32.mrf.mxu0
        %v1731 = vadd.f32 0.0, %v1730
        %v1732 = vpop.f32.mrf.mxu0
        %v1733 = vpop.f32.mrf.mxu0
        %v1734 = vadd.f32 0.0, %v1733
        %v1735 = vpop.f32.mrf.mxu0
        %1736 = vmatprep.mubr.bf16.mxu0 0
        %1737 = vmatmul.mubr.bf16.gmra.mxu0 %v1588
        %v1738 = vpop.f32.mrf.mxu0
        %v1739 = vadd.f32 0.0, %v1738
        %v1740 = vpop.f32.mrf.mxu0
        %v1741 = vpop.f32.mrf.mxu0
        %v1742 = vadd.f32 0.0, %v1741
        %v1743 = vpop.f32.mrf.mxu0
        %1744 = vmatprep.mubr.bf16.mxu0 0
        %1745 = vmatmul.mubr.bf16.gmra.mxu0 %v1589
        %v1746 = vpop.f32.mrf.mxu0
        %v1747 = vadd.f32 0.0, %v1746
        %v1748 = vpop.f32.mrf.mxu0
        %v1749 = vpop.f32.mrf.mxu0
        %v1750 = vadd.f32 0.0, %v1749
        %v1751 = vpop.f32.mrf.mxu0
        %1752 = vmatprep.mubr.bf16.mxu0 0
        %1753 = vmatmul.mubr.bf16.gmra.mxu0 %v1590
        %v1754 = vpop.f32.mrf.mxu0
        %v1755 = vadd.f32 0.0, %v1754
        %v1756 = vpop.f32.mrf.mxu0
        %v1757 = vpop.f32.mrf.mxu0
        %v1758 = vadd.f32 0.0, %v1757
        %v1759 = vpop.f32.mrf.mxu0
        %1760 = vmatprep.mubr.bf16.mxu0 0
        %1761 = vmatmul.mubr.bf16.gmra.mxu0 %v1591
        %v1762 = vpop.f32.mrf.mxu0
        %v1763 = vadd.f32 0.0, %v1762
        %v1764 = vpop.f32.mrf.mxu0
        %v1765 = vpop.f32.mrf.mxu0
        %v1766 = vadd.f32 0.0, %v1765
        %v1767 = vpop.f32.mrf.mxu0
        %1768 = vmatprep.mubr.bf16.mxu0 0
        %1769 = vmatmul.mubr.bf16.gmra.mxu0 %v1592
        %v1770 = vpop.f32.mrf.mxu0
        %v1771 = vadd.f32 0.0, %v1770
        %v1772 = vpop.f32.mrf.mxu0
        %v1773 = vpop.f32.mrf.mxu0
        %v1774 = vadd.f32 0.0, %v1773
        %v1775 = vpop.f32.mrf.mxu0
        %1776 = vmatprep.mubr.bf16.mxu0 0
        %1777 = vmatmul.mubr.bf16.gmra.mxu0 %v1593
        %v1778 = vpop.f32.mrf.mxu0
        %v1779 = vadd.f32 0.0, %v1778
        %v1780 = vpop.f32.mrf.mxu0
        %v1781 = vpop.f32.mrf.mxu0
        %v1782 = vadd.f32 0.0, %v1781
        %v1783 = vpop.f32.mrf.mxu0
        %1784 = vmatprep.mubr.bf16.mxu0 0
        %1785 = vmatmul.mubr.bf16.gmra.mxu0 %v1594
        %v1786 = vpop.f32.mrf.mxu0
        %v1787 = vadd.f32 0.0, %v1786
        %v1788 = vpop.f32.mrf.mxu0
        %v1789 = vpop.f32.mrf.mxu0
        %v1790 = vadd.f32 0.0, %v1789
        %v1791 = vpop.f32.mrf.mxu0
        %1792 = vmatprep.mubr.bf16.mxu0 0
        %1793 = vmatmul.mubr.bf16.gmra.mxu0 %v1595
        %v1794 = vpop.f32.mrf.mxu0
        %v1795 = vadd.f32 0.0, %v1794
        %v1796 = vpop.f32.mrf.mxu0
        %v1797 = vpop.f32.mrf.mxu0
        %v1798 = vadd.f32 0.0, %v1797
        %v1799 = vpop.f32.mrf.mxu0
        %1800 = vmatprep.mubr.bf16.mxu0 0
        %1801 = vmatmul.mubr.bf16.gmra.mxu0 %v1596
        %v1802 = vpop.f32.mrf.mxu0
        %v1803 = vadd.f32 0.0, %v1802
        %v1804 = vpop.f32.mrf.mxu0
        %v1805 = vpop.f32.mrf.mxu0
        %v1806 = vadd.f32 0.0, %v1805
        %v1807 = vpop.f32.mrf.mxu0
        %1808 = vmatprep.mubr.bf16.mxu0 0
        %1809 = vmatmul.mubr.bf16.gmra.mxu0 %v1597
        %v1810 = vpop.f32.mrf.mxu0
        %v1811 = vadd.f32 0.0, %v1810
        %v1812 = vpop.f32.mrf.mxu0
        %v1813 = vpop.f32.mrf.mxu0
        %v1814 = vadd.f32 0.0, %v1813
        %v1815 = vpop.f32.mrf.mxu0
        %1816 = vmatprep.mubr.bf16.mxu0 0
        %1817 = vmatmul.mubr.bf16.gmra.mxu0 %v1598
        %v1818 = vpop.f32.mrf.mxu0
        %v1819 = vadd.f32 0.0, %v1818
        %v1820 = vpop.f32.mrf.mxu0
        %v1821 = vpop.f32.mrf.mxu0
        %v1822 = vadd.f32 0.0, %v1821
        %v1823 = vpop.f32.mrf.mxu0
        %1824 = vdwg.mxu0
        %v1825 = vadd.f32 %v1519, %v1699
        %v1826 = vadd.f32 %v1520, %v1702
        %v1827 = vadd.f32 %v1521, %v1707
        %v1828 = vadd.f32 %v1522, %v1710
        %v1829 = vadd.f32 %v1523, %v1715
        %v1830 = vadd.f32 %v1524, %v1718
        %v1831 = vadd.f32 %v1525, %v1723
        %v1832 = vadd.f32 %v1526, %v1726
        %v1833 = vadd.f32 %v1527, %v1731
        %v1834 = vadd.f32 %v1528, %v1734
        %v1835 = vadd.f32 %v1529, %v1739
        %v1836 = vadd.f32 %v1530, %v1742
        %v1837 = vadd.f32 %v1531, %v1747
        %v1838 = vadd.f32 %v1532, %v1750
        %v1839 = vadd.f32 %v1533, %v1755
        %v1840 = vadd.f32 %v1534, %v1758
        %v1841 = vadd.f32 %v1535, %v1763
        %v1842 = vadd.f32 %v1536, %v1766
        %v1843 = vadd.f32 %v1537, %v1771
        %v1844 = vadd.f32 %v1538, %v1774
        %v1845 = vadd.f32 %v1539, %v1779
        %v1846 = vadd.f32 %v1540, %v1782
        %v1847 = vadd.f32 %v1541, %v1787
        %v1848 = vadd.f32 %v1542, %v1790
        %v1849 = vadd.f32 %v1543, %v1795
        %v1850 = vadd.f32 %v1544, %v1798
        %v1851 = vadd.f32 %v1545, %v1803
        %v1852 = vadd.f32 %v1546, %v1806
        %v1853 = vadd.f32 %v1547, %v1811
        %v1854 = vadd.f32 %v1548, %v1814
        %v1855 = vadd.f32 %v1549, %v1819
        %v1856 = vadd.f32 %v1550, %v1822
        %v1857 = vld [vmem:[%s359 + $0x2] sm:$0xff]
        %v1858 = vld [vmem:[%s359 + $0xa] sm:$0xff]
        %v1859 = vld [vmem:[%s359 + $0x1a] sm:$0xff]
        %v1860 = vld [vmem:[%s359 + $0x22] sm:$0xff]
        %v1861 = vld [vmem:[%s359 + $0x32] sm:$0xff]
        %v1862 = vld [vmem:[%s359 + $0x3a] sm:$0xff]
        %v1863 = vld [vmem:[%s359 + $0x4a] sm:$0xff]
        %v1864 = vld [vmem:[%s359 + $0x52] sm:$0xff]
        %v1865 = vld [vmem:[%s359 + $0x62] sm:$0xff]
        %v1866 = vld [vmem:[%s359 + $0x6a] sm:$0xff]
        %v1867 = vld [vmem:[%s359 + $0x7a] sm:$0xff]
        %v1868 = vld [vmem:[%s359 + $0x82] sm:$0xff]
        %v1869 = vld [vmem:[%s359 + $0x92] sm:$0xff]
        %v1870 = vld [vmem:[%s359 + $0x9a] sm:$0xff]
        %v1871 = vld [vmem:[%s359 + $0xaa] sm:$0xff]
        %v1872 = vld [vmem:[%s359 + $0xb2] sm:$0xff]
        %v1873 = vld [vmem:[%s359 + $0xc2] sm:$0xff]
        %v1874 = vld [vmem:[%s359 + $0xca] sm:$0xff]
        %v1875 = vld [vmem:[%s359 + $0xda] sm:$0xff]
        %v1876 = vld [vmem:[%s359 + $0xe2] sm:$0xff]
        %v1877 = vld [vmem:[%s359 + $0xf2] sm:$0xff]
        %v1878 = vld [vmem:[%s359 + $0xfa] sm:$0xff]
        %v1879 = vld [vmem:[%s359 + $0x10a] sm:$0xff]
        %v1880 = vld [vmem:[%s359 + $0x112] sm:$0xff]
        %v1881 = vld [vmem:[%s359 + $0x122] sm:$0xff]
        %v1882 = vld [vmem:[%s359 + $0x12a] sm:$0xff]
        %v1883 = vld [vmem:[%s359 + $0x13a] sm:$0xff]
        %v1884 = vld [vmem:[%s359 + $0x142] sm:$0xff]
        %v1885 = vld [vmem:[%s359 + $0x152] sm:$0xff]
        %v1886 = vld [vmem:[%s359 + $0x15a] sm:$0xff]
        %v1887 = vld [vmem:[%s359 + $0x16a] sm:$0xff]
        %v1888 = vld [vmem:[%s359 + $0x172] sm:$0xff]
        %v1889 = vpack.c.bf16 %v1858, %v1857
        %v1890 = vpack.c.bf16 %v1860, %v1859
        %v1891 = vpack.c.bf16 %v1862, %v1861
        %v1892 = vpack.c.bf16 %v1864, %v1863
        %v1893 = vpack.c.bf16 %v1866, %v1865
        %v1894 = vpack.c.bf16 %v1868, %v1867
        %v1895 = vpack.c.bf16 %v1870, %v1869
        %v1896 = vpack.c.bf16 %v1872, %v1871
        %v1897 = vpack.c.bf16 %v1874, %v1873
        %v1898 = vpack.c.bf16 %v1876, %v1875
        %v1899 = vpack.c.bf16 %v1878, %v1877
        %v1900 = vpack.c.bf16 %v1880, %v1879
        %v1901 = vpack.c.bf16 %v1882, %v1881
        %v1902 = vpack.c.bf16 %v1884, %v1883
        %v1903 = vpack.c.bf16 %v1886, %v1885
        %v1904 = vpack.c.bf16 %v1888, %v1887
        %s1905 = scalar_lea.vmem [#allocation7], 320
        %v1906 = vld [vmem:[%s1905] sm:$0xf]
        %v1907 = vld [vmem:[%s1905 + $0x4] sm:$0xf]
        %v1908 = vld [vmem:[%s1905 + $0x8] sm:$0xf]
        %v1909 = vld [vmem:[%s1905 + $0xc] sm:$0xf]
        %v1910 = vld [vmem:[%s1905 + $0x10] sm:$0xf]
        %v1911 = vld [vmem:[%s1905 + $0x14] sm:$0xf]
        %v1912 = vld [vmem:[%s1905 + $0x18] sm:$0xf]
        %v1913 = vld [vmem:[%s1905 + $0x1c] sm:$0xf]
        %v1914 = vld [vmem:[%s1905 + $0x20] sm:$0xf]
        %v1915 = vld [vmem:[%s1905 + $0x24] sm:$0xf]
        %v1916 = vld [vmem:[%s1905 + $0x28] sm:$0xf]
        %v1917 = vld [vmem:[%s1905 + $0x2c] sm:$0xf]
        %v1918 = vld [vmem:[%s1905 + $0x30] sm:$0xf]
        %v1919 = vld [vmem:[%s1905 + $0x34] sm:$0xf]
        %v1920 = vld [vmem:[%s1905 + $0x38] sm:$0xf]
        %v1921 = vld [vmem:[%s1905 + $0x3c] sm:$0xf]
        %v1938 = vunpack.c.l.b16 %v1906
        %v1939 = vunpack.c.l.b16 %v1907
        %v1940 = vunpack.c.l.b16 %v1908
        %v1941 = vunpack.c.l.b16 %v1909
        %v1942 = vunpack.c.l.b16 %v1910
        %v1943 = vunpack.c.l.b16 %v1911
        %v1944 = vunpack.c.l.b16 %v1912
        %v1945 = vunpack.c.l.b16 %v1913
        %v1946 = vunpack.c.l.b16 %v1914
        %v1947 = vunpack.c.l.b16 %v1915
        %v1948 = vunpack.c.l.b16 %v1916
        %v1949 = vunpack.c.l.b16 %v1917
        %v1950 = vunpack.c.l.b16 %v1918
        %v1951 = vunpack.c.l.b16 %v1919
        %v1952 = vunpack.c.l.b16 %v1920
        %v1953 = vunpack.c.l.b16 %v1921
        %v1954 = vpack.c.b16 %v1939, %v1938
        %v1955 = vpack.c.b16 %v1941, %v1940
        %v1956 = vpack.c.b16 %v1943, %v1942
        %v1957 = vpack.c.b16 %v1945, %v1944
        %v1958 = vpack.c.b16 %v1947, %v1946
        %v1959 = vpack.c.b16 %v1949, %v1948
        %v1960 = vpack.c.b16 %v1951, %v1950
        %v1961 = vpack.c.b16 %v1953, %v1952
        %1970 = vmatprep.subr.bf16.mxu0 0
        %1971 = vmatpush1.bf16.msra.mxu0 %v1961
        %1972 = vmatprep.subr.bf16.mxu0 0
        %1973 = vmatpush1.bf16.msra.mxu0 %v1960
        %1974 = vmatprep.subr.bf16.mxu0 0
        %1975 = vmatpush1.bf16.msra.mxu0 %v1959
        %1976 = vmatprep.subr.bf16.mxu0 0
        %1977 = vmatpush1.bf16.msra.mxu0 %v1958
        %1978 = vmatprep.subr.bf16.mxu0 0
        %1979 = vmatpush1.bf16.msra.mxu0 %v1957
        %1980 = vmatprep.subr.bf16.mxu0 0
        %1981 = vmatpush1.bf16.msra.mxu0 %v1956
        %1982 = vmatprep.subr.bf16.mxu0 0
        %1983 = vmatpush1.bf16.msra.mxu0 %v1955
        %1984 = vmatprep.subr.bf16.mxu0 0
        %1985 = vmatpush1.bf16.msra.mxu0 %v1954
        %1986 = vmatprep.subr.bf16.mxu0 0
        %1987 = vmatpush2.bf16.msra.mxu0 0
        %1988 = vmatprep.subr.bf16.mxu0 0
        %1989 = vmatpush2.bf16.msra.mxu0 0
        %1990 = vmatprep.subr.bf16.mxu0 0
        %1991 = vmatpush2.bf16.msra.mxu0 0
        %1992 = vmatprep.subr.bf16.mxu0 0
        %1993 = vmatpush2.bf16.msra.mxu0 0
        %1994 = vmatprep.subr.bf16.mxu0 0
        %1995 = vmatpush2.bf16.msra.mxu0 0
        %1996 = vmatprep.subr.bf16.mxu0 0
        %1997 = vmatpush2.bf16.msra.mxu0 0
        %1998 = vmatprep.subr.bf16.mxu0 0
        %1999 = vmatpush2.bf16.msra.mxu0 0
        %2000 = vmatprep.subr.bf16.mxu0 0
        %2001 = vmatpush2.bf16.msra.mxu0 0
        %2002 = vmatprep.mubr.bf16.mxu0 0
        %2003 = vmatmul.mubr.bf16.gmra.mxu0 %v1889
        %v2004 = vpop.f32.mrf.mxu0
        %v2005 = vadd.f32 0.0, %v2004
        %v2006 = vpop.f32.mrf.mxu0
        %v2007 = vpop.f32.mrf.mxu0
        %v2008 = vadd.f32 0.0, %v2007
        %v2009 = vpop.f32.mrf.mxu0
        %2010 = vmatprep.mubr.bf16.mxu0 0
        %2011 = vmatmul.mubr.bf16.gmra.mxu0 %v1890
        %v2012 = vpop.f32.mrf.mxu0
        %v2013 = vadd.f32 0.0, %v2012
        %v2014 = vpop.f32.mrf.mxu0
        %v2015 = vpop.f32.mrf.mxu0
        %v2016 = vadd.f32 0.0, %v2015
        %v2017 = vpop.f32.mrf.mxu0
        %2018 = vmatprep.mubr.bf16.mxu0 0
        %2019 = vmatmul.mubr.bf16.gmra.mxu0 %v1891
        %v2020 = vpop.f32.mrf.mxu0
        %v2021 = vadd.f32 0.0, %v2020
        %v2022 = vpop.f32.mrf.mxu0
        %v2023 = vpop.f32.mrf.mxu0
        %v2024 = vadd.f32 0.0, %v2023
        %v2025 = vpop.f32.mrf.mxu0
        %2026 = vmatprep.mubr.bf16.mxu0 0
        %2027 = vmatmul.mubr.bf16.gmra.mxu0 %v1892
        %v2028 = vpop.f32.mrf.mxu0
        %v2029 = vadd.f32 0.0, %v2028
        %v2030 = vpop.f32.mrf.mxu0
        %v2031 = vpop.f32.mrf.mxu0
        %v2032 = vadd.f32 0.0, %v2031
        %v2033 = vpop.f32.mrf.mxu0
        %2034 = vmatprep.mubr.bf16.mxu0 0
        %2035 = vmatmul.mubr.bf16.gmra.mxu0 %v1893
        %v2036 = vpop.f32.mrf.mxu0
        %v2037 = vadd.f32 0.0, %v2036
        %v2038 = vpop.f32.mrf.mxu0
        %v2039 = vpop.f32.mrf.mxu0
        %v2040 = vadd.f32 0.0, %v2039
        %v2041 = vpop.f32.mrf.mxu0
        %2042 = vmatprep.mubr.bf16.mxu0 0
        %2043 = vmatmul.mubr.bf16.gmra.mxu0 %v1894
        %v2044 = vpop.f32.mrf.mxu0
        %v2045 = vadd.f32 0.0, %v2044
        %v2046 = vpop.f32.mrf.mxu0
        %v2047 = vpop.f32.mrf.mxu0
        %v2048 = vadd.f32 0.0, %v2047
        %v2049 = vpop.f32.mrf.mxu0
        %2050 = vmatprep.mubr.bf16.mxu0 0
        %2051 = vmatmul.mubr.bf16.gmra.mxu0 %v1895
        %v2052 = vpop.f32.mrf.mxu0
        %v2053 = vadd.f32 0.0, %v2052
        %v2054 = vpop.f32.mrf.mxu0
        %v2055 = vpop.f32.mrf.mxu0
        %v2056 = vadd.f32 0.0, %v2055
        %v2057 = vpop.f32.mrf.mxu0
        %2058 = vmatprep.mubr.bf16.mxu0 0
        %2059 = vmatmul.mubr.bf16.gmra.mxu0 %v1896
        %v2060 = vpop.f32.mrf.mxu0
        %v2061 = vadd.f32 0.0, %v2060
        %v2062 = vpop.f32.mrf.mxu0
        %v2063 = vpop.f32.mrf.mxu0
        %v2064 = vadd.f32 0.0, %v2063
        %v2065 = vpop.f32.mrf.mxu0
        %2066 = vmatprep.mubr.bf16.mxu0 0
        %2067 = vmatmul.mubr.bf16.gmra.mxu0 %v1897
        %v2068 = vpop.f32.mrf.mxu0
        %v2069 = vadd.f32 0.0, %v2068
        %v2070 = vpop.f32.mrf.mxu0
        %v2071 = vpop.f32.mrf.mxu0
        %v2072 = vadd.f32 0.0, %v2071
        %v2073 = vpop.f32.mrf.mxu0
        %2074 = vmatprep.mubr.bf16.mxu0 0
        %2075 = vmatmul.mubr.bf16.gmra.mxu0 %v1898
        %v2076 = vpop.f32.mrf.mxu0
        %v2077 = vadd.f32 0.0, %v2076
        %v2078 = vpop.f32.mrf.mxu0
        %v2079 = vpop.f32.mrf.mxu0
        %v2080 = vadd.f32 0.0, %v2079
        %v2081 = vpop.f32.mrf.mxu0
        %2082 = vmatprep.mubr.bf16.mxu0 0
        %2083 = vmatmul.mubr.bf16.gmra.mxu0 %v1899
        %v2084 = vpop.f32.mrf.mxu0
        %v2085 = vadd.f32 0.0, %v2084
        %v2086 = vpop.f32.mrf.mxu0
        %v2087 = vpop.f32.mrf.mxu0
        %v2088 = vadd.f32 0.0, %v2087
        %v2089 = vpop.f32.mrf.mxu0
        %2090 = vmatprep.mubr.bf16.mxu0 0
        %2091 = vmatmul.mubr.bf16.gmra.mxu0 %v1900
        %v2092 = vpop.f32.mrf.mxu0
        %v2093 = vadd.f32 0.0, %v2092
        %v2094 = vpop.f32.mrf.mxu0
        %v2095 = vpop.f32.mrf.mxu0
        %v2096 = vadd.f32 0.0, %v2095
        %v2097 = vpop.f32.mrf.mxu0
        %2098 = vmatprep.mubr.bf16.mxu0 0
        %2099 = vmatmul.mubr.bf16.gmra.mxu0 %v1901
        %v2100 = vpop.f32.mrf.mxu0
        %v2101 = vadd.f32 0.0, %v2100
        %v2102 = vpop.f32.mrf.mxu0
        %v2103 = vpop.f32.mrf.mxu0
        %v2104 = vadd.f32 0.0, %v2103
        %v2105 = vpop.f32.mrf.mxu0
        %2106 = vmatprep.mubr.bf16.mxu0 0
        %2107 = vmatmul.mubr.bf16.gmra.mxu0 %v1902
        %v2108 = vpop.f32.mrf.mxu0
        %v2109 = vadd.f32 0.0, %v2108
        %v2110 = vpop.f32.mrf.mxu0
        %v2111 = vpop.f32.mrf.mxu0
        %v2112 = vadd.f32 0.0, %v2111
        %v2113 = vpop.f32.mrf.mxu0
        %2114 = vmatprep.mubr.bf16.mxu0 0
        %2115 = vmatmul.mubr.bf16.gmra.mxu0 %v1903
        %v2116 = vpop.f32.mrf.mxu0
        %v2117 = vadd.f32 0.0, %v2116
        %v2118 = vpop.f32.mrf.mxu0
        %v2119 = vpop.f32.mrf.mxu0
        %v2120 = vadd.f32 0.0, %v2119
        %v2121 = vpop.f32.mrf.mxu0
        %2122 = vmatprep.mubr.bf16.mxu0 0
        %2123 = vmatmul.mubr.bf16.gmra.mxu0 %v1904
        %v2124 = vpop.f32.mrf.mxu0
        %v2125 = vadd.f32 0.0, %v2124
        %v2126 = vpop.f32.mrf.mxu0
        %v2127 = vpop.f32.mrf.mxu0
        %v2128 = vadd.f32 0.0, %v2127
        %v2129 = vpop.f32.mrf.mxu0
        %2130 = vdwg.mxu0
        %v2131 = vadd.f32 %v1825, %v2005
        %v2132 = vadd.f32 %v1826, %v2008
        %v2133 = vadd.f32 %v1827, %v2013
        %v2134 = vadd.f32 %v1828, %v2016
        %v2135 = vadd.f32 %v1829, %v2021
        %v2136 = vadd.f32 %v1830, %v2024
        %v2137 = vadd.f32 %v1831, %v2029
        %v2138 = vadd.f32 %v1832, %v2032
        %v2139 = vadd.f32 %v1833, %v2037
        %v2140 = vadd.f32 %v1834, %v2040
        %v2141 = vadd.f32 %v1835, %v2045
        %v2142 = vadd.f32 %v1836, %v2048
        %v2143 = vadd.f32 %v1837, %v2053
        %v2144 = vadd.f32 %v1838, %v2056
        %v2145 = vadd.f32 %v1839, %v2061
        %v2146 = vadd.f32 %v1840, %v2064
        %v2147 = vadd.f32 %v1841, %v2069
        %v2148 = vadd.f32 %v1842, %v2072
        %v2149 = vadd.f32 %v1843, %v2077
        %v2150 = vadd.f32 %v1844, %v2080
        %v2151 = vadd.f32 %v1845, %v2085
        %v2152 = vadd.f32 %v1846, %v2088
        %v2153 = vadd.f32 %v1847, %v2093
        %v2154 = vadd.f32 %v1848, %v2096
        %v2155 = vadd.f32 %v1849, %v2101
        %v2156 = vadd.f32 %v1850, %v2104
        %v2157 = vadd.f32 %v1851, %v2109
        %v2158 = vadd.f32 %v1852, %v2112
        %v2159 = vadd.f32 %v1853, %v2117
        %v2160 = vadd.f32 %v1854, %v2120
        %v2161 = vadd.f32 %v1855, %v2125
        %v2162 = vadd.f32 %v1856, %v2128
        %s2163 = scalar_lea.vmem [#allocation2], 48
        %v2164 = vld [vmem:[%s2163] sm:$0xff]
        %v2165 = vld [vmem:[%s2163 + $0x8] sm:$0xff]
        %v2166 = vld [vmem:[%s2163 + $0x18] sm:$0xff]
        %v2167 = vld [vmem:[%s2163 + $0x20] sm:$0xff]
        %v2168 = vld [vmem:[%s2163 + $0x30] sm:$0xff]
        %v2169 = vld [vmem:[%s2163 + $0x38] sm:$0xff]
        %v2170 = vld [vmem:[%s2163 + $0x48] sm:$0xff]
        %v2171 = vld [vmem:[%s2163 + $0x50] sm:$0xff]
        %v2172 = vld [vmem:[%s2163 + $0x60] sm:$0xff]
        %v2173 = vld [vmem:[%s2163 + $0x68] sm:$0xff]
        %v2174 = vld [vmem:[%s2163 + $0x78] sm:$0xff]
        %v2175 = vld [vmem:[%s2163 + $0x80] sm:$0xff]
        %v2176 = vld [vmem:[%s2163 + $0x90] sm:$0xff]
        %v2177 = vld [vmem:[%s2163 + $0x98] sm:$0xff]
        %v2178 = vld [vmem:[%s2163 + $0xa8] sm:$0xff]
        %v2179 = vld [vmem:[%s2163 + $0xb0] sm:$0xff]
        %v2180 = vld [vmem:[%s2163 + $0xc0] sm:$0xff]
        %v2181 = vld [vmem:[%s2163 + $0xc8] sm:$0xff]
        %v2182 = vld [vmem:[%s2163 + $0xd8] sm:$0xff]
        %v2183 = vld [vmem:[%s2163 + $0xe0] sm:$0xff]
        %v2184 = vld [vmem:[%s2163 + $0xf0] sm:$0xff]
        %v2185 = vld [vmem:[%s2163 + $0xf8] sm:$0xff]
        %v2186 = vld [vmem:[%s2163 + $0x108] sm:$0xff]
        %v2187 = vld [vmem:[%s2163 + $0x110] sm:$0xff]
        %v2188 = vld [vmem:[%s2163 + $0x120] sm:$0xff]
        %v2189 = vld [vmem:[%s2163 + $0x128] sm:$0xff]
        %v2190 = vld [vmem:[%s2163 + $0x138] sm:$0xff]
        %v2191 = vld [vmem:[%s2163 + $0x140] sm:$0xff]
        %v2192 = vld [vmem:[%s2163 + $0x150] sm:$0xff]
        %v2193 = vld [vmem:[%s2163 + $0x158] sm:$0xff]
        %v2194 = vld [vmem:[%s2163 + $0x168] sm:$0xff]
        %v2195 = vld [vmem:[%s2163 + $0x170] sm:$0xff]
        %v2196 = vpack.c.bf16 %v2165, %v2164
        %v2197 = vpack.c.bf16 %v2167, %v2166
        %v2198 = vpack.c.bf16 %v2169, %v2168
        %v2199 = vpack.c.bf16 %v2171, %v2170
        %v2200 = vpack.c.bf16 %v2173, %v2172
        %v2201 = vpack.c.bf16 %v2175, %v2174
        %v2202 = vpack.c.bf16 %v2177, %v2176
        %v2203 = vpack.c.bf16 %v2179, %v2178
        %v2204 = vpack.c.bf16 %v2181, %v2180
        %v2205 = vpack.c.bf16 %v2183, %v2182
        %v2206 = vpack.c.bf16 %v2185, %v2184
        %v2207 = vpack.c.bf16 %v2187, %v2186
        %v2208 = vpack.c.bf16 %v2189, %v2188
        %v2209 = vpack.c.bf16 %v2191, %v2190
        %v2210 = vpack.c.bf16 %v2193, %v2192
        %v2211 = vpack.c.bf16 %v2195, %v2194
        %s2212 = scalar_lea.vmem [#allocation7], 384
        %v2213 = vld [vmem:[%s2212] sm:$0xf]
        %v2214 = vld [vmem:[%s2212 + $0x4] sm:$0xf]
        %v2215 = vld [vmem:[%s2212 + $0x8] sm:$0xf]
        %v2216 = vld [vmem:[%s2212 + $0xc] sm:$0xf]
        %v2217 = vld [vmem:[%s2212 + $0x10] sm:$0xf]
        %v2218 = vld [vmem:[%s2212 + $0x14] sm:$0xf]
        %v2219 = vld [vmem:[%s2212 + $0x18] sm:$0xf]
        %v2220 = vld [vmem:[%s2212 + $0x1c] sm:$0xf]
        %v2221 = vld [vmem:[%s2212 + $0x20] sm:$0xf]
        %v2222 = vld [vmem:[%s2212 + $0x24] sm:$0xf]
        %v2223 = vld [vmem:[%s2212 + $0x28] sm:$0xf]
        %v2224 = vld [vmem:[%s2212 + $0x2c] sm:$0xf]
        %v2225 = vld [vmem:[%s2212 + $0x30] sm:$0xf]
        %v2226 = vld [vmem:[%s2212 + $0x34] sm:$0xf]
        %v2227 = vld [vmem:[%s2212 + $0x38] sm:$0xf]
        %v2228 = vld [vmem:[%s2212 + $0x3c] sm:$0xf]
        %v2245 = vunpack.c.l.b16 %v2213
        %v2246 = vunpack.c.l.b16 %v2214
        %v2247 = vunpack.c.l.b16 %v2215
        %v2248 = vunpack.c.l.b16 %v2216
        %v2249 = vunpack.c.l.b16 %v2217
        %v2250 = vunpack.c.l.b16 %v2218
        %v2251 = vunpack.c.l.b16 %v2219
        %v2252 = vunpack.c.l.b16 %v2220
        %v2253 = vunpack.c.l.b16 %v2221
        %v2254 = vunpack.c.l.b16 %v2222
        %v2255 = vunpack.c.l.b16 %v2223
        %v2256 = vunpack.c.l.b16 %v2224
        %v2257 = vunpack.c.l.b16 %v2225
        %v2258 = vunpack.c.l.b16 %v2226
        %v2259 = vunpack.c.l.b16 %v2227
        %v2260 = vunpack.c.l.b16 %v2228
        %v2261 = vpack.c.b16 %v2246, %v2245
        %v2262 = vpack.c.b16 %v2248, %v2247
        %v2263 = vpack.c.b16 %v2250, %v2249
        %v2264 = vpack.c.b16 %v2252, %v2251
        %v2265 = vpack.c.b16 %v2254, %v2253
        %v2266 = vpack.c.b16 %v2256, %v2255
        %v2267 = vpack.c.b16 %v2258, %v2257
        %v2268 = vpack.c.b16 %v2260, %v2259
        %2277 = vmatprep.subr.bf16.mxu0 0
        %2278 = vmatpush1.bf16.msra.mxu0 %v2268
        %2279 = vmatprep.subr.bf16.mxu0 0
        %2280 = vmatpush1.bf16.msra.mxu0 %v2267
        %2281 = vmatprep.subr.bf16.mxu0 0
        %2282 = vmatpush1.bf16.msra.mxu0 %v2266
        %2283 = vmatprep.subr.bf16.mxu0 0
        %2284 = vmatpush1.bf16.msra.mxu0 %v2265
        %2285 = vmatprep.subr.bf16.mxu0 0
        %2286 = vmatpush1.bf16.msra.mxu0 %v2264
        %2287 = vmatprep.subr.bf16.mxu0 0
        %2288 = vmatpush1.bf16.msra.mxu0 %v2263
        %2289 = vmatprep.subr.bf16.mxu0 0
        %2290 = vmatpush1.bf16.msra.mxu0 %v2262
        %2291 = vmatprep.subr.bf16.mxu0 0
        %2292 = vmatpush1.bf16.msra.mxu0 %v2261
        %2293 = vmatprep.subr.bf16.mxu0 0
        %2294 = vmatpush2.bf16.msra.mxu0 0
        %2295 = vmatprep.subr.bf16.mxu0 0
        %2296 = vmatpush2.bf16.msra.mxu0 0
        %2297 = vmatprep.subr.bf16.mxu0 0
        %2298 = vmatpush2.bf16.msra.mxu0 0
        %2299 = vmatprep.subr.bf16.mxu0 0
        %2300 = vmatpush2.bf16.msra.mxu0 0
        %2301 = vmatprep.subr.bf16.mxu0 0
        %2302 = vmatpush2.bf16.msra.mxu0 0
        %2303 = vmatprep.subr.bf16.mxu0 0
        %2304 = vmatpush2.bf16.msra.mxu0 0
        %2305 = vmatprep.subr.bf16.mxu0 0
        %2306 = vmatpush2.bf16.msra.mxu0 0
        %2307 = vmatprep.subr.bf16.mxu0 0
        %2308 = vmatpush2.bf16.msra.mxu0 0
        %2309 = vmatprep.mubr.bf16.mxu0 0
        %2310 = vmatmul.mubr.bf16.gmra.mxu0 %v2196
        %v2311 = vpop.f32.mrf.mxu0
        %v2312 = vadd.f32 0.0, %v2311
        %v2313 = vpop.f32.mrf.mxu0
        %v2314 = vpop.f32.mrf.mxu0
        %v2315 = vadd.f32 0.0, %v2314
        %v2316 = vpop.f32.mrf.mxu0
        %2317 = vmatprep.mubr.bf16.mxu0 0
        %2318 = vmatmul.mubr.bf16.gmra.mxu0 %v2197
        %v2319 = vpop.f32.mrf.mxu0
        %v2320 = vadd.f32 0.0, %v2319
        %v2321 = vpop.f32.mrf.mxu0
        %v2322 = vpop.f32.mrf.mxu0
        %v2323 = vadd.f32 0.0, %v2322
        %v2324 = vpop.f32.mrf.mxu0
        %2325 = vmatprep.mubr.bf16.mxu0 0
        %2326 = vmatmul.mubr.bf16.gmra.mxu0 %v2198
        %v2327 = vpop.f32.mrf.mxu0
        %v2328 = vadd.f32 0.0, %v2327
        %v2329 = vpop.f32.mrf.mxu0
        %v2330 = vpop.f32.mrf.mxu0
        %v2331 = vadd.f32 0.0, %v2330
        %v2332 = vpop.f32.mrf.mxu0
        %2333 = vmatprep.mubr.bf16.mxu0 0
        %2334 = vmatmul.mubr.bf16.gmra.mxu0 %v2199
        %v2335 = vpop.f32.mrf.mxu0
        %v2336 = vadd.f32 0.0, %v2335
        %v2337 = vpop.f32.mrf.mxu0
        %v2338 = vpop.f32.mrf.mxu0
        %v2339 = vadd.f32 0.0, %v2338
        %v2340 = vpop.f32.mrf.mxu0
        %2341 = vmatprep.mubr.bf16.mxu0 0
        %2342 = vmatmul.mubr.bf16.gmra.mxu0 %v2200
        %v2343 = vpop.f32.mrf.mxu0
        %v2344 = vadd.f32 0.0, %v2343
        %v2345 = vpop.f32.mrf.mxu0
        %v2346 = vpop.f32.mrf.mxu0
        %v2347 = vadd.f32 0.0, %v2346
        %v2348 = vpop.f32.mrf.mxu0
        %2349 = vmatprep.mubr.bf16.mxu0 0
        %2350 = vmatmul.mubr.bf16.gmra.mxu0 %v2201
        %v2351 = vpop.f32.mrf.mxu0
        %v2352 = vadd.f32 0.0, %v2351
        %v2353 = vpop.f32.mrf.mxu0
        %v2354 = vpop.f32.mrf.mxu0
        %v2355 = vadd.f32 0.0, %v2354
        %v2356 = vpop.f32.mrf.mxu0
        %2357 = vmatprep.mubr.bf16.mxu0 0
        %2358 = vmatmul.mubr.bf16.gmra.mxu0 %v2202
        %v2359 = vpop.f32.mrf.mxu0
        %v2360 = vadd.f32 0.0, %v2359
        %v2361 = vpop.f32.mrf.mxu0
        %v2362 = vpop.f32.mrf.mxu0
        %v2363 = vadd.f32 0.0, %v2362
        %v2364 = vpop.f32.mrf.mxu0
        %2365 = vmatprep.mubr.bf16.mxu0 0
        %2366 = vmatmul.mubr.bf16.gmra.mxu0 %v2203
        %v2367 = vpop.f32.mrf.mxu0
        %v2368 = vadd.f32 0.0, %v2367
        %v2369 = vpop.f32.mrf.mxu0
        %v2370 = vpop.f32.mrf.mxu0
        %v2371 = vadd.f32 0.0, %v2370
        %v2372 = vpop.f32.mrf.mxu0
        %2373 = vmatprep.mubr.bf16.mxu0 0
        %2374 = vmatmul.mubr.bf16.gmra.mxu0 %v2204
        %v2375 = vpop.f32.mrf.mxu0
        %v2376 = vadd.f32 0.0, %v2375
        %v2377 = vpop.f32.mrf.mxu0
        %v2378 = vpop.f32.mrf.mxu0
        %v2379 = vadd.f32 0.0, %v2378
        %v2380 = vpop.f32.mrf.mxu0
        %2381 = vmatprep.mubr.bf16.mxu0 0
        %2382 = vmatmul.mubr.bf16.gmra.mxu0 %v2205
        %v2383 = vpop.f32.mrf.mxu0
        %v2384 = vadd.f32 0.0, %v2383
        %v2385 = vpop.f32.mrf.mxu0
        %v2386 = vpop.f32.mrf.mxu0
        %v2387 = vadd.f32 0.0, %v2386
        %v2388 = vpop.f32.mrf.mxu0
        %2389 = vmatprep.mubr.bf16.mxu0 0
        %2390 = vmatmul.mubr.bf16.gmra.mxu0 %v2206
        %v2391 = vpop.f32.mrf.mxu0
        %v2392 = vadd.f32 0.0, %v2391
        %v2393 = vpop.f32.mrf.mxu0
        %v2394 = vpop.f32.mrf.mxu0
        %v2395 = vadd.f32 0.0, %v2394
        %v2396 = vpop.f32.mrf.mxu0
        %2397 = vmatprep.mubr.bf16.mxu0 0
        %2398 = vmatmul.mubr.bf16.gmra.mxu0 %v2207
        %v2399 = vpop.f32.mrf.mxu0
        %v2400 = vadd.f32 0.0, %v2399
        %v2401 = vpop.f32.mrf.mxu0
        %v2402 = vpop.f32.mrf.mxu0
        %v2403 = vadd.f32 0.0, %v2402
        %v2404 = vpop.f32.mrf.mxu0
        %2405 = vmatprep.mubr.bf16.mxu0 0
        %2406 = vmatmul.mubr.bf16.gmra.mxu0 %v2208
        %v2407 = vpop.f32.mrf.mxu0
        %v2408 = vadd.f32 0.0, %v2407
        %v2409 = vpop.f32.mrf.mxu0
        %v2410 = vpop.f32.mrf.mxu0
        %v2411 = vadd.f32 0.0, %v2410
        %v2412 = vpop.f32.mrf.mxu0
        %2413 = vmatprep.mubr.bf16.mxu0 0
        %2414 = vmatmul.mubr.bf16.gmra.mxu0 %v2209
        %v2415 = vpop.f32.mrf.mxu0
        %v2416 = vadd.f32 0.0, %v2415
        %v2417 = vpop.f32.mrf.mxu0
        %v2418 = vpop.f32.mrf.mxu0
        %v2419 = vadd.f32 0.0, %v2418
        %v2420 = vpop.f32.mrf.mxu0
        %2421 = vmatprep.mubr.bf16.mxu0 0
        %2422 = vmatmul.mubr.bf16.gmra.mxu0 %v2210
        %v2423 = vpop.f32.mrf.mxu0
        %v2424 = vadd.f32 0.0, %v2423
        %v2425 = vpop.f32.mrf.mxu0
        %v2426 = vpop.f32.mrf.mxu0
        %v2427 = vadd.f32 0.0, %v2426
        %v2428 = vpop.f32.mrf.mxu0
        %2429 = vmatprep.mubr.bf16.mxu0 0
        %2430 = vmatmul.mubr.bf16.gmra.mxu0 %v2211
        %v2431 = vpop.f32.mrf.mxu0
        %v2432 = vadd.f32 0.0, %v2431
        %v2433 = vpop.f32.mrf.mxu0
        %v2434 = vpop.f32.mrf.mxu0
        %v2435 = vadd.f32 0.0, %v2434
        %v2436 = vpop.f32.mrf.mxu0
        %2437 = vdwg.mxu0
        %v2438 = vadd.f32 %v2131, %v2312
        %v2439 = vadd.f32 %v2132, %v2315
        %v2440 = vadd.f32 %v2133, %v2320
        %v2441 = vadd.f32 %v2134, %v2323
        %v2442 = vadd.f32 %v2135, %v2328
        %v2443 = vadd.f32 %v2136, %v2331
        %v2444 = vadd.f32 %v2137, %v2336
        %v2445 = vadd.f32 %v2138, %v2339
        %v2446 = vadd.f32 %v2139, %v2344
        %v2447 = vadd.f32 %v2140, %v2347
        %v2448 = vadd.f32 %v2141, %v2352
        %v2449 = vadd.f32 %v2142, %v2355
        %v2450 = vadd.f32 %v2143, %v2360
        %v2451 = vadd.f32 %v2144, %v2363
        %v2452 = vadd.f32 %v2145, %v2368
        %v2453 = vadd.f32 %v2146, %v2371
        %v2454 = vadd.f32 %v2147, %v2376
        %v2455 = vadd.f32 %v2148, %v2379
        %v2456 = vadd.f32 %v2149, %v2384
        %v2457 = vadd.f32 %v2150, %v2387
        %v2458 = vadd.f32 %v2151, %v2392
        %v2459 = vadd.f32 %v2152, %v2395
        %v2460 = vadd.f32 %v2153, %v2400
        %v2461 = vadd.f32 %v2154, %v2403
        %v2462 = vadd.f32 %v2155, %v2408
        %v2463 = vadd.f32 %v2156, %v2411
        %v2464 = vadd.f32 %v2157, %v2416
        %v2465 = vadd.f32 %v2158, %v2419
        %v2466 = vadd.f32 %v2159, %v2424
        %v2467 = vadd.f32 %v2160, %v2427
        %v2468 = vadd.f32 %v2161, %v2432
        %v2469 = vadd.f32 %v2162, %v2435
        %v2470 = vld [vmem:[%s2163 + $0x1] sm:$0xff]
        %v2471 = vld [vmem:[%s2163 + $0x9] sm:$0xff]
        %v2472 = vld [vmem:[%s2163 + $0x19] sm:$0xff]
        %v2473 = vld [vmem:[%s2163 + $0x21] sm:$0xff]
        %v2474 = vld [vmem:[%s2163 + $0x31] sm:$0xff]
        %v2475 = vld [vmem:[%s2163 + $0x39] sm:$0xff]
        %v2476 = vld [vmem:[%s2163 + $0x49] sm:$0xff]
        %v2477 = vld [vmem:[%s2163 + $0x51] sm:$0xff]
        %v2478 = vld [vmem:[%s2163 + $0x61] sm:$0xff]
        %v2479 = vld [vmem:[%s2163 + $0x69] sm:$0xff]
        %v2480 = vld [vmem:[%s2163 + $0x79] sm:$0xff]
        %v2481 = vld [vmem:[%s2163 + $0x81] sm:$0xff]
        %v2482 = vld [vmem:[%s2163 + $0x91] sm:$0xff]
        %v2483 = vld [vmem:[%s2163 + $0x99] sm:$0xff]
        %v2484 = vld [vmem:[%s2163 + $0xa9] sm:$0xff]
        %v2485 = vld [vmem:[%s2163 + $0xb1] sm:$0xff]
        %v2486 = vld [vmem:[%s2163 + $0xc1] sm:$0xff]
        %v2487 = vld [vmem:[%s2163 + $0xc9] sm:$0xff]
        %v2488 = vld [vmem:[%s2163 + $0xd9] sm:$0xff]
        %v2489 = vld [vmem:[%s2163 + $0xe1] sm:$0xff]
        %v2490 = vld [vmem:[%s2163 + $0xf1] sm:$0xff]
        %v2491 = vld [vmem:[%s2163 + $0xf9] sm:$0xff]
        %v2492 = vld [vmem:[%s2163 + $0x109] sm:$0xff]
        %v2493 = vld [vmem:[%s2163 + $0x111] sm:$0xff]
        %v2494 = vld [vmem:[%s2163 + $0x121] sm:$0xff]
        %v2495 = vld [vmem:[%s2163 + $0x129] sm:$0xff]
        %v2496 = vld [vmem:[%s2163 + $0x139] sm:$0xff]
        %v2497 = vld [vmem:[%s2163 + $0x141] sm:$0xff]
        %v2498 = vld [vmem:[%s2163 + $0x151] sm:$0xff]
        %v2499 = vld [vmem:[%s2163 + $0x159] sm:$0xff]
        %v2500 = vld [vmem:[%s2163 + $0x169] sm:$0xff]
        %v2501 = vld [vmem:[%s2163 + $0x171] sm:$0xff]
        %v2502 = vpack.c.bf16 %v2471, %v2470
        %v2503 = vpack.c.bf16 %v2473, %v2472
        %v2504 = vpack.c.bf16 %v2475, %v2474
        %v2505 = vpack.c.bf16 %v2477, %v2476
        %v2506 = vpack.c.bf16 %v2479, %v2478
        %v2507 = vpack.c.bf16 %v2481, %v2480
        %v2508 = vpack.c.bf16 %v2483, %v2482
        %v2509 = vpack.c.bf16 %v2485, %v2484
        %v2510 = vpack.c.bf16 %v2487, %v2486
        %v2511 = vpack.c.bf16 %v2489, %v2488
        %v2512 = vpack.c.bf16 %v2491, %v2490
        %v2513 = vpack.c.bf16 %v2493, %v2492
        %v2514 = vpack.c.bf16 %v2495, %v2494
        %v2515 = vpack.c.bf16 %v2497, %v2496
        %v2516 = vpack.c.bf16 %v2499, %v2498
        %v2517 = vpack.c.bf16 %v2501, %v2500
        %s2518 = scalar_lea.vmem [#allocation7], 448
        %v2519 = vld [vmem:[%s2518] sm:$0xf]
        %v2520 = vld [vmem:[%s2518 + $0x4] sm:$0xf]
        %v2521 = vld [vmem:[%s2518 + $0x8] sm:$0xf]
        %v2522 = vld [vmem:[%s2518 + $0xc] sm:$0xf]
        %v2523 = vld [vmem:[%s2518 + $0x10] sm:$0xf]
        %v2524 = vld [vmem:[%s2518 + $0x14] sm:$0xf]
        %v2525 = vld [vmem:[%s2518 + $0x18] sm:$0xf]
        %v2526 = vld [vmem:[%s2518 + $0x1c] sm:$0xf]
        %v2527 = vld [vmem:[%s2518 + $0x20] sm:$0xf]
        %v2528 = vld [vmem:[%s2518 + $0x24] sm:$0xf]
        %v2529 = vld [vmem:[%s2518 + $0x28] sm:$0xf]
        %v2530 = vld [vmem:[%s2518 + $0x2c] sm:$0xf]
        %v2531 = vld [vmem:[%s2518 + $0x30] sm:$0xf]
        %v2532 = vld [vmem:[%s2518 + $0x34] sm:$0xf]
        %v2533 = vld [vmem:[%s2518 + $0x38] sm:$0xf]
        %v2534 = vld [vmem:[%s2518 + $0x3c] sm:$0xf]
        %v2551 = vunpack.c.l.b16 %v2519
        %v2552 = vunpack.c.l.b16 %v2520
        %v2553 = vunpack.c.l.b16 %v2521
        %v2554 = vunpack.c.l.b16 %v2522
        %v2555 = vunpack.c.l.b16 %v2523
        %v2556 = vunpack.c.l.b16 %v2524
        %v2557 = vunpack.c.l.b16 %v2525
        %v2558 = vunpack.c.l.b16 %v2526
        %v2559 = vunpack.c.l.b16 %v2527
        %v2560 = vunpack.c.l.b16 %v2528
        %v2561 = vunpack.c.l.b16 %v2529
        %v2562 = vunpack.c.l.b16 %v2530
        %v2563 = vunpack.c.l.b16 %v2531
        %v2564 = vunpack.c.l.b16 %v2532
        %v2565 = vunpack.c.l.b16 %v2533
        %v2566 = vunpack.c.l.b16 %v2534
        %v2567 = vpack.c.b16 %v2552, %v2551
        %v2568 = vpack.c.b16 %v2554, %v2553
        %v2569 = vpack.c.b16 %v2556, %v2555
        %v2570 = vpack.c.b16 %v2558, %v2557
        %v2571 = vpack.c.b16 %v2560, %v2559
        %v2572 = vpack.c.b16 %v2562, %v2561
        %v2573 = vpack.c.b16 %v2564, %v2563
        %v2574 = vpack.c.b16 %v2566, %v2565
        %2583 = vmatprep.subr.bf16.mxu0 0
        %2584 = vmatpush1.bf16.msra.mxu0 %v2574
        %2585 = vmatprep.subr.bf16.mxu0 0
        %2586 = vmatpush1.bf16.msra.mxu0 %v2573
        %2587 = vmatprep.subr.bf16.mxu0 0
        %2588 = vmatpush1.bf16.msra.mxu0 %v2572
        %2589 = vmatprep.subr.bf16.mxu0 0
        %2590 = vmatpush1.bf16.msra.mxu0 %v2571
        %2591 = vmatprep.subr.bf16.mxu0 0
        %2592 = vmatpush1.bf16.msra.mxu0 %v2570
        %2593 = vmatprep.subr.bf16.mxu0 0
        %2594 = vmatpush1.bf16.msra.mxu0 %v2569
        %2595 = vmatprep.subr.bf16.mxu0 0
        %2596 = vmatpush1.bf16.msra.mxu0 %v2568
        %2597 = vmatprep.subr.bf16.mxu0 0
        %2598 = vmatpush1.bf16.msra.mxu0 %v2567
        %2599 = vmatprep.subr.bf16.mxu0 0
        %2600 = vmatpush2.bf16.msra.mxu0 0
        %2601 = vmatprep.subr.bf16.mxu0 0
        %2602 = vmatpush2.bf16.msra.mxu0 0
        %2603 = vmatprep.subr.bf16.mxu0 0
        %2604 = vmatpush2.bf16.msra.mxu0 0
        %2605 = vmatprep.subr.bf16.mxu0 0
        %2606 = vmatpush2.bf16.msra.mxu0 0
        %2607 = vmatprep.subr.bf16.mxu0 0
        %2608 = vmatpush2.bf16.msra.mxu0 0
        %2609 = vmatprep.subr.bf16.mxu0 0
        %2610 = vmatpush2.bf16.msra.mxu0 0
        %2611 = vmatprep.subr.bf16.mxu0 0
        %2612 = vmatpush2.bf16.msra.mxu0 0
        %2613 = vmatprep.subr.bf16.mxu0 0
        %2614 = vmatpush2.bf16.msra.mxu0 0
        %2615 = vmatprep.mubr.bf16.mxu0 0
        %2616 = vmatmul.mubr.bf16.gmra.mxu0 %v2502
        %v2617 = vpop.f32.mrf.mxu0
        %v2618 = vadd.f32 0.0, %v2617
        %v2619 = vpop.f32.mrf.mxu0
        %v2620 = vpop.f32.mrf.mxu0
        %v2621 = vadd.f32 0.0, %v2620
        %v2622 = vpop.f32.mrf.mxu0
        %2623 = vmatprep.mubr.bf16.mxu0 0
        %2624 = vmatmul.mubr.bf16.gmra.mxu0 %v2503
        %v2625 = vpop.f32.mrf.mxu0
        %v2626 = vadd.f32 0.0, %v2625
        %v2627 = vpop.f32.mrf.mxu0
        %v2628 = vpop.f32.mrf.mxu0
        %v2629 = vadd.f32 0.0, %v2628
        %v2630 = vpop.f32.mrf.mxu0
        %2631 = vmatprep.mubr.bf16.mxu0 0
        %2632 = vmatmul.mubr.bf16.gmra.mxu0 %v2504
        %v2633 = vpop.f32.mrf.mxu0
        %v2634 = vadd.f32 0.0, %v2633
        %v2635 = vpop.f32.mrf.mxu0
        %v2636 = vpop.f32.mrf.mxu0
        %v2637 = vadd.f32 0.0, %v2636
        %v2638 = vpop.f32.mrf.mxu0
        %2639 = vmatprep.mubr.bf16.mxu0 0
        %2640 = vmatmul.mubr.bf16.gmra.mxu0 %v2505
        %v2641 = vpop.f32.mrf.mxu0
        %v2642 = vadd.f32 0.0, %v2641
        %v2643 = vpop.f32.mrf.mxu0
        %v2644 = vpop.f32.mrf.mxu0
        %v2645 = vadd.f32 0.0, %v2644
        %v2646 = vpop.f32.mrf.mxu0
        %2647 = vmatprep.mubr.bf16.mxu0 0
        %2648 = vmatmul.mubr.bf16.gmra.mxu0 %v2506
        %v2649 = vpop.f32.mrf.mxu0
        %v2650 = vadd.f32 0.0, %v2649
        %v2651 = vpop.f32.mrf.mxu0
        %v2652 = vpop.f32.mrf.mxu0
        %v2653 = vadd.f32 0.0, %v2652
        %v2654 = vpop.f32.mrf.mxu0
        %2655 = vmatprep.mubr.bf16.mxu0 0
        %2656 = vmatmul.mubr.bf16.gmra.mxu0 %v2507
        %v2657 = vpop.f32.mrf.mxu0
        %v2658 = vadd.f32 0.0, %v2657
        %v2659 = vpop.f32.mrf.mxu0
        %v2660 = vpop.f32.mrf.mxu0
        %v2661 = vadd.f32 0.0, %v2660
        %v2662 = vpop.f32.mrf.mxu0
        %2663 = vmatprep.mubr.bf16.mxu0 0
        %2664 = vmatmul.mubr.bf16.gmra.mxu0 %v2508
        %v2665 = vpop.f32.mrf.mxu0
        %v2666 = vadd.f32 0.0, %v2665
        %v2667 = vpop.f32.mrf.mxu0
        %v2668 = vpop.f32.mrf.mxu0
        %v2669 = vadd.f32 0.0, %v2668
        %v2670 = vpop.f32.mrf.mxu0
        %2671 = vmatprep.mubr.bf16.mxu0 0
        %2672 = vmatmul.mubr.bf16.gmra.mxu0 %v2509
        %v2673 = vpop.f32.mrf.mxu0
        %v2674 = vadd.f32 0.0, %v2673
        %v2675 = vpop.f32.mrf.mxu0
        %v2676 = vpop.f32.mrf.mxu0
        %v2677 = vadd.f32 0.0, %v2676
        %v2678 = vpop.f32.mrf.mxu0
        %2679 = vmatprep.mubr.bf16.mxu0 0
        %2680 = vmatmul.mubr.bf16.gmra.mxu0 %v2510
        %v2681 = vpop.f32.mrf.mxu0
        %v2682 = vadd.f32 0.0, %v2681
        %v2683 = vpop.f32.mrf.mxu0
        %v2684 = vpop.f32.mrf.mxu0
        %v2685 = vadd.f32 0.0, %v2684
        %v2686 = vpop.f32.mrf.mxu0
        %2687 = vmatprep.mubr.bf16.mxu0 0
        %2688 = vmatmul.mubr.bf16.gmra.mxu0 %v2511
        %v2689 = vpop.f32.mrf.mxu0
        %v2690 = vadd.f32 0.0, %v2689
        %v2691 = vpop.f32.mrf.mxu0
        %v2692 = vpop.f32.mrf.mxu0
        %v2693 = vadd.f32 0.0, %v2692
        %v2694 = vpop.f32.mrf.mxu0
        %2695 = vmatprep.mubr.bf16.mxu0 0
        %2696 = vmatmul.mubr.bf16.gmra.mxu0 %v2512
        %v2697 = vpop.f32.mrf.mxu0
        %v2698 = vadd.f32 0.0, %v2697
        %v2699 = vpop.f32.mrf.mxu0
        %v2700 = vpop.f32.mrf.mxu0
        %v2701 = vadd.f32 0.0, %v2700
        %v2702 = vpop.f32.mrf.mxu0
        %2703 = vmatprep.mubr.bf16.mxu0 0
        %2704 = vmatmul.mubr.bf16.gmra.mxu0 %v2513
        %v2705 = vpop.f32.mrf.mxu0
        %v2706 = vadd.f32 0.0, %v2705
        %v2707 = vpop.f32.mrf.mxu0
        %v2708 = vpop.f32.mrf.mxu0
        %v2709 = vadd.f32 0.0, %v2708
        %v2710 = vpop.f32.mrf.mxu0
        %2711 = vmatprep.mubr.bf16.mxu0 0
        %2712 = vmatmul.mubr.bf16.gmra.mxu0 %v2514
        %v2713 = vpop.f32.mrf.mxu0
        %v2714 = vadd.f32 0.0, %v2713
        %v2715 = vpop.f32.mrf.mxu0
        %v2716 = vpop.f32.mrf.mxu0
        %v2717 = vadd.f32 0.0, %v2716
        %v2718 = vpop.f32.mrf.mxu0
        %2719 = vmatprep.mubr.bf16.mxu0 0
        %2720 = vmatmul.mubr.bf16.gmra.mxu0 %v2515
        %v2721 = vpop.f32.mrf.mxu0
        %v2722 = vadd.f32 0.0, %v2721
        %v2723 = vpop.f32.mrf.mxu0
        %v2724 = vpop.f32.mrf.mxu0
        %v2725 = vadd.f32 0.0, %v2724
        %v2726 = vpop.f32.mrf.mxu0
        %2727 = vmatprep.mubr.bf16.mxu0 0
        %2728 = vmatmul.mubr.bf16.gmra.mxu0 %v2516
        %v2729 = vpop.f32.mrf.mxu0
        %v2730 = vadd.f32 0.0, %v2729
        %v2731 = vpop.f32.mrf.mxu0
        %v2732 = vpop.f32.mrf.mxu0
        %v2733 = vadd.f32 0.0, %v2732
        %v2734 = vpop.f32.mrf.mxu0
        %2735 = vmatprep.mubr.bf16.mxu0 0
        %2736 = vmatmul.mubr.bf16.gmra.mxu0 %v2517
        %v2737 = vpop.f32.mrf.mxu0
        %v2738 = vadd.f32 0.0, %v2737
        %v2739 = vpop.f32.mrf.mxu0
        %v2740 = vpop.f32.mrf.mxu0
        %v2741 = vadd.f32 0.0, %v2740
        %v2742 = vpop.f32.mrf.mxu0
        %2743 = vdwg.mxu0
        %v2744 = vadd.f32 %v2438, %v2618
        %v2745 = vadd.f32 %v2439, %v2621
        %v2746 = vadd.f32 %v2440, %v2626
        %v2747 = vadd.f32 %v2441, %v2629
        %v2748 = vadd.f32 %v2442, %v2634
        %v2749 = vadd.f32 %v2443, %v2637
        %v2750 = vadd.f32 %v2444, %v2642
        %v2751 = vadd.f32 %v2445, %v2645
        %v2752 = vadd.f32 %v2446, %v2650
        %v2753 = vadd.f32 %v2447, %v2653
        %v2754 = vadd.f32 %v2448, %v2658
        %v2755 = vadd.f32 %v2449, %v2661
        %v2756 = vadd.f32 %v2450, %v2666
        %v2757 = vadd.f32 %v2451, %v2669
        %v2758 = vadd.f32 %v2452, %v2674
        %v2759 = vadd.f32 %v2453, %v2677
        %v2760 = vadd.f32 %v2454, %v2682
        %v2761 = vadd.f32 %v2455, %v2685
        %v2762 = vadd.f32 %v2456, %v2690
        %v2763 = vadd.f32 %v2457, %v2693
        %v2764 = vadd.f32 %v2458, %v2698
        %v2765 = vadd.f32 %v2459, %v2701
        %v2766 = vadd.f32 %v2460, %v2706
        %v2767 = vadd.f32 %v2461, %v2709
        %v2768 = vadd.f32 %v2462, %v2714
        %v2769 = vadd.f32 %v2463, %v2717
        %v2770 = vadd.f32 %v2464, %v2722
        %v2771 = vadd.f32 %v2465, %v2725
        %v2772 = vadd.f32 %v2466, %v2730
        %v2773 = vadd.f32 %v2467, %v2733
        %v2774 = vadd.f32 %v2468, %v2738
        %v2775 = vadd.f32 %v2469, %v2741
        %v2776 = vld [vmem:[%s2163 + $0x2] sm:$0xff]
        %v2777 = vld [vmem:[%s2163 + $0xa] sm:$0xff]
        %v2778 = vld [vmem:[%s2163 + $0x1a] sm:$0xff]
        %v2779 = vld [vmem:[%s2163 + $0x22] sm:$0xff]
        %v2780 = vld [vmem:[%s2163 + $0x32] sm:$0xff]
        %v2781 = vld [vmem:[%s2163 + $0x3a] sm:$0xff]
        %v2782 = vld [vmem:[%s2163 + $0x4a] sm:$0xff]
        %v2783 = vld [vmem:[%s2163 + $0x52] sm:$0xff]
        %v2784 = vld [vmem:[%s2163 + $0x62] sm:$0xff]
        %v2785 = vld [vmem:[%s2163 + $0x6a] sm:$0xff]
        %v2786 = vld [vmem:[%s2163 + $0x7a] sm:$0xff]
        %v2787 = vld [vmem:[%s2163 + $0x82] sm:$0xff]
        %v2788 = vld [vmem:[%s2163 + $0x92] sm:$0xff]
        %v2789 = vld [vmem:[%s2163 + $0x9a] sm:$0xff]
        %v2790 = vld [vmem:[%s2163 + $0xaa] sm:$0xff]
        %v2791 = vld [vmem:[%s2163 + $0xb2] sm:$0xff]
        %v2792 = vld [vmem:[%s2163 + $0xc2] sm:$0xff]
        %v2793 = vld [vmem:[%s2163 + $0xca] sm:$0xff]
        %v2794 = vld [vmem:[%s2163 + $0xda] sm:$0xff]
        %v2795 = vld [vmem:[%s2163 + $0xe2] sm:$0xff]
        %v2796 = vld [vmem:[%s2163 + $0xf2] sm:$0xff]
        %v2797 = vld [vmem:[%s2163 + $0xfa] sm:$0xff]
        %v2798 = vld [vmem:[%s2163 + $0x10a] sm:$0xff]
        %v2799 = vld [vmem:[%s2163 + $0x112] sm:$0xff]
        %v2800 = vld [vmem:[%s2163 + $0x122] sm:$0xff]
        %v2801 = vld [vmem:[%s2163 + $0x12a] sm:$0xff]
        %v2802 = vld [vmem:[%s2163 + $0x13a] sm:$0xff]
        %v2803 = vld [vmem:[%s2163 + $0x142] sm:$0xff]
        %v2804 = vld [vmem:[%s2163 + $0x152] sm:$0xff]
        %v2805 = vld [vmem:[%s2163 + $0x15a] sm:$0xff]
        %v2806 = vld [vmem:[%s2163 + $0x16a] sm:$0xff]
        %v2807 = vld [vmem:[%s2163 + $0x172] sm:$0xff]
        %v2808 = vpack.c.bf16 %v2777, %v2776
        %v2809 = vpack.c.bf16 %v2779, %v2778
        %v2810 = vpack.c.bf16 %v2781, %v2780
        %v2811 = vpack.c.bf16 %v2783, %v2782
        %v2812 = vpack.c.bf16 %v2785, %v2784
        %v2813 = vpack.c.bf16 %v2787, %v2786
        %v2814 = vpack.c.bf16 %v2789, %v2788
        %v2815 = vpack.c.bf16 %v2791, %v2790
        %v2816 = vpack.c.bf16 %v2793, %v2792
        %v2817 = vpack.c.bf16 %v2795, %v2794
        %v2818 = vpack.c.bf16 %v2797, %v2796
        %v2819 = vpack.c.bf16 %v2799, %v2798
        %v2820 = vpack.c.bf16 %v2801, %v2800
        %v2821 = vpack.c.bf16 %v2803, %v2802
        %v2822 = vpack.c.bf16 %v2805, %v2804
        %v2823 = vpack.c.bf16 %v2807, %v2806
        %s2824 = scalar_lea.vmem [#allocation7], 512
        %v2825 = vld [vmem:[%s2824] sm:$0xf]
        %v2826 = vld [vmem:[%s2824 + $0x4] sm:$0xf]
        %v2827 = vld [vmem:[%s2824 + $0x8] sm:$0xf]
        %v2828 = vld [vmem:[%s2824 + $0xc] sm:$0xf]
        %v2829 = vld [vmem:[%s2824 + $0x10] sm:$0xf]
        %v2830 = vld [vmem:[%s2824 + $0x14] sm:$0xf]
        %v2831 = vld [vmem:[%s2824 + $0x18] sm:$0xf]
        %v2832 = vld [vmem:[%s2824 + $0x1c] sm:$0xf]
        %v2833 = vld [vmem:[%s2824 + $0x20] sm:$0xf]
        %v2834 = vld [vmem:[%s2824 + $0x24] sm:$0xf]
        %v2835 = vld [vmem:[%s2824 + $0x28] sm:$0xf]
        %v2836 = vld [vmem:[%s2824 + $0x2c] sm:$0xf]
        %v2837 = vld [vmem:[%s2824 + $0x30] sm:$0xf]
        %v2838 = vld [vmem:[%s2824 + $0x34] sm:$0xf]
        %v2839 = vld [vmem:[%s2824 + $0x38] sm:$0xf]
        %v2840 = vld [vmem:[%s2824 + $0x3c] sm:$0xf]
        %v2857 = vunpack.c.l.b16 %v2825
        %v2858 = vunpack.c.l.b16 %v2826
        %v2859 = vunpack.c.l.b16 %v2827
        %v2860 = vunpack.c.l.b16 %v2828
        %v2861 = vunpack.c.l.b16 %v2829
        %v2862 = vunpack.c.l.b16 %v2830
        %v2863 = vunpack.c.l.b16 %v2831
        %v2864 = vunpack.c.l.b16 %v2832
        %v2865 = vunpack.c.l.b16 %v2833
        %v2866 = vunpack.c.l.b16 %v2834
        %v2867 = vunpack.c.l.b16 %v2835
        %v2868 = vunpack.c.l.b16 %v2836
        %v2869 = vunpack.c.l.b16 %v2837
        %v2870 = vunpack.c.l.b16 %v2838
        %v2871 = vunpack.c.l.b16 %v2839
        %v2872 = vunpack.c.l.b16 %v2840
        %v2873 = vpack.c.b16 %v2858, %v2857
        %v2874 = vpack.c.b16 %v2860, %v2859
        %v2875 = vpack.c.b16 %v2862, %v2861
        %v2876 = vpack.c.b16 %v2864, %v2863
        %v2877 = vpack.c.b16 %v2866, %v2865
        %v2878 = vpack.c.b16 %v2868, %v2867
        %v2879 = vpack.c.b16 %v2870, %v2869
        %v2880 = vpack.c.b16 %v2872, %v2871
        %2889 = vmatprep.subr.bf16.mxu0 0
        %2890 = vmatpush1.bf16.msra.mxu0 %v2880
        %2891 = vmatprep.subr.bf16.mxu0 0
        %2892 = vmatpush1.bf16.msra.mxu0 %v2879
        %2893 = vmatprep.subr.bf16.mxu0 0
        %2894 = vmatpush1.bf16.msra.mxu0 %v2878
        %2895 = vmatprep.subr.bf16.mxu0 0
        %2896 = vmatpush1.bf16.msra.mxu0 %v2877
        %2897 = vmatprep.subr.bf16.mxu0 0
        %2898 = vmatpush1.bf16.msra.mxu0 %v2876
        %2899 = vmatprep.subr.bf16.mxu0 0
        %2900 = vmatpush1.bf16.msra.mxu0 %v2875
        %2901 = vmatprep.subr.bf16.mxu0 0
        %2902 = vmatpush1.bf16.msra.mxu0 %v2874
        %2903 = vmatprep.subr.bf16.mxu0 0
        %2904 = vmatpush1.bf16.msra.mxu0 %v2873
        %2905 = vmatprep.subr.bf16.mxu0 0
        %2906 = vmatpush2.bf16.msra.mxu0 0
        %2907 = vmatprep.subr.bf16.mxu0 0
        %2908 = vmatpush2.bf16.msra.mxu0 0
        %2909 = vmatprep.subr.bf16.mxu0 0
        %2910 = vmatpush2.bf16.msra.mxu0 0
        %2911 = vmatprep.subr.bf16.mxu0 0
        %2912 = vmatpush2.bf16.msra.mxu0 0
        %2913 = vmatprep.subr.bf16.mxu0 0
        %2914 = vmatpush2.bf16.msra.mxu0 0
        %2915 = vmatprep.subr.bf16.mxu0 0
        %2916 = vmatpush2.bf16.msra.mxu0 0
        %2917 = vmatprep.subr.bf16.mxu0 0
        %2918 = vmatpush2.bf16.msra.mxu0 0
        %2919 = vmatprep.subr.bf16.mxu0 0
        %2920 = vmatpush2.bf16.msra.mxu0 0
        %2921 = vmatprep.mubr.bf16.mxu0 0
        %2922 = vmatmul.mubr.bf16.gmra.mxu0 %v2808
        %v2923 = vpop.f32.mrf.mxu0
        %v2924 = vadd.f32 0.0, %v2923
        %v2925 = vpop.f32.mrf.mxu0
        %v2926 = vpop.f32.mrf.mxu0
        %v2927 = vadd.f32 0.0, %v2926
        %v2928 = vpop.f32.mrf.mxu0
        %2929 = vmatprep.mubr.bf16.mxu0 0
        %2930 = vmatmul.mubr.bf16.gmra.mxu0 %v2809
        %v2931 = vpop.f32.mrf.mxu0
        %v2932 = vadd.f32 0.0, %v2931
        %v2933 = vpop.f32.mrf.mxu0
        %v2934 = vpop.f32.mrf.mxu0
        %v2935 = vadd.f32 0.0, %v2934
        %v2936 = vpop.f32.mrf.mxu0
        %2937 = vmatprep.mubr.bf16.mxu0 0
        %2938 = vmatmul.mubr.bf16.gmra.mxu0 %v2810
        %v2939 = vpop.f32.mrf.mxu0
        %v2940 = vadd.f32 0.0, %v2939
        %v2941 = vpop.f32.mrf.mxu0
        %v2942 = vpop.f32.mrf.mxu0
        %v2943 = vadd.f32 0.0, %v2942
        %v2944 = vpop.f32.mrf.mxu0
        %2945 = vmatprep.mubr.bf16.mxu0 0
        %2946 = vmatmul.mubr.bf16.gmra.mxu0 %v2811
        %v2947 = vpop.f32.mrf.mxu0
        %v2948 = vadd.f32 0.0, %v2947
        %v2949 = vpop.f32.mrf.mxu0
        %v2950 = vpop.f32.mrf.mxu0
        %v2951 = vadd.f32 0.0, %v2950
        %v2952 = vpop.f32.mrf.mxu0
        %2953 = vmatprep.mubr.bf16.mxu0 0
        %2954 = vmatmul.mubr.bf16.gmra.mxu0 %v2812
        %v2955 = vpop.f32.mrf.mxu0
        %v2956 = vadd.f32 0.0, %v2955
        %v2957 = vpop.f32.mrf.mxu0
        %v2958 = vpop.f32.mrf.mxu0
        %v2959 = vadd.f32 0.0, %v2958
        %v2960 = vpop.f32.mrf.mxu0
        %2961 = vmatprep.mubr.bf16.mxu0 0
        %2962 = vmatmul.mubr.bf16.gmra.mxu0 %v2813
        %v2963 = vpop.f32.mrf.mxu0
        %v2964 = vadd.f32 0.0, %v2963
        %v2965 = vpop.f32.mrf.mxu0
        %v2966 = vpop.f32.mrf.mxu0
        %v2967 = vadd.f32 0.0, %v2966
        %v2968 = vpop.f32.mrf.mxu0
        %2969 = vmatprep.mubr.bf16.mxu0 0
        %2970 = vmatmul.mubr.bf16.gmra.mxu0 %v2814
        %v2971 = vpop.f32.mrf.mxu0
        %v2972 = vadd.f32 0.0, %v2971
        %v2973 = vpop.f32.mrf.mxu0
        %v2974 = vpop.f32.mrf.mxu0
        %v2975 = vadd.f32 0.0, %v2974
        %v2976 = vpop.f32.mrf.mxu0
        %2977 = vmatprep.mubr.bf16.mxu0 0
        %2978 = vmatmul.mubr.bf16.gmra.mxu0 %v2815
        %v2979 = vpop.f32.mrf.mxu0
        %v2980 = vadd.f32 0.0, %v2979
        %v2981 = vpop.f32.mrf.mxu0
        %v2982 = vpop.f32.mrf.mxu0
        %v2983 = vadd.f32 0.0, %v2982
        %v2984 = vpop.f32.mrf.mxu0
        %2985 = vmatprep.mubr.bf16.mxu0 0
        %2986 = vmatmul.mubr.bf16.gmra.mxu0 %v2816
        %v2987 = vpop.f32.mrf.mxu0
        %v2988 = vadd.f32 0.0, %v2987
        %v2989 = vpop.f32.mrf.mxu0
        %v2990 = vpop.f32.mrf.mxu0
        %v2991 = vadd.f32 0.0, %v2990
        %v2992 = vpop.f32.mrf.mxu0
        %2993 = vmatprep.mubr.bf16.mxu0 0
        %2994 = vmatmul.mubr.bf16.gmra.mxu0 %v2817
        %v2995 = vpop.f32.mrf.mxu0
        %v2996 = vadd.f32 0.0, %v2995
        %v2997 = vpop.f32.mrf.mxu0
        %v2998 = vpop.f32.mrf.mxu0
        %v2999 = vadd.f32 0.0, %v2998
        %v3000 = vpop.f32.mrf.mxu0
        %3001 = vmatprep.mubr.bf16.mxu0 0
        %3002 = vmatmul.mubr.bf16.gmra.mxu0 %v2818
        %v3003 = vpop.f32.mrf.mxu0
        %v3004 = vadd.f32 0.0, %v3003
        %v3005 = vpop.f32.mrf.mxu0
        %v3006 = vpop.f32.mrf.mxu0
        %v3007 = vadd.f32 0.0, %v3006
        %v3008 = vpop.f32.mrf.mxu0
        %3009 = vmatprep.mubr.bf16.mxu0 0
        %3010 = vmatmul.mubr.bf16.gmra.mxu0 %v2819
        %v3011 = vpop.f32.mrf.mxu0
        %v3012 = vadd.f32 0.0, %v3011
        %v3013 = vpop.f32.mrf.mxu0
        %v3014 = vpop.f32.mrf.mxu0
        %v3015 = vadd.f32 0.0, %v3014
        %v3016 = vpop.f32.mrf.mxu0
        %3017 = vmatprep.mubr.bf16.mxu0 0
        %3018 = vmatmul.mubr.bf16.gmra.mxu0 %v2820
        %v3019 = vpop.f32.mrf.mxu0
        %v3020 = vadd.f32 0.0, %v3019
        %v3021 = vpop.f32.mrf.mxu0
        %v3022 = vpop.f32.mrf.mxu0
        %v3023 = vadd.f32 0.0, %v3022
        %v3024 = vpop.f32.mrf.mxu0
        %3025 = vmatprep.mubr.bf16.mxu0 0
        %3026 = vmatmul.mubr.bf16.gmra.mxu0 %v2821
        %v3027 = vpop.f32.mrf.mxu0
        %v3028 = vadd.f32 0.0, %v3027
        %v3029 = vpop.f32.mrf.mxu0
        %v3030 = vpop.f32.mrf.mxu0
        %v3031 = vadd.f32 0.0, %v3030
        %v3032 = vpop.f32.mrf.mxu0
        %3033 = vmatprep.mubr.bf16.mxu0 0
        %3034 = vmatmul.mubr.bf16.gmra.mxu0 %v2822
        %v3035 = vpop.f32.mrf.mxu0
        %v3036 = vadd.f32 0.0, %v3035
        %v3037 = vpop.f32.mrf.mxu0
        %v3038 = vpop.f32.mrf.mxu0
        %v3039 = vadd.f32 0.0, %v3038
        %v3040 = vpop.f32.mrf.mxu0
        %3041 = vmatprep.mubr.bf16.mxu0 0
        %3042 = vmatmul.mubr.bf16.gmra.mxu0 %v2823
        %v3043 = vpop.f32.mrf.mxu0
        %v3044 = vadd.f32 0.0, %v3043
        %v3045 = vpop.f32.mrf.mxu0
        %v3046 = vpop.f32.mrf.mxu0
        %v3047 = vadd.f32 0.0, %v3046
        %v3048 = vpop.f32.mrf.mxu0
        %3049 = vdwg.mxu0
        %v3050 = vadd.f32 %v2744, %v2924
        %v3051 = vadd.f32 %v2745, %v2927
        %v3052 = vadd.f32 %v2746, %v2932
        %v3053 = vadd.f32 %v2747, %v2935
        %v3054 = vadd.f32 %v2748, %v2940
        %v3055 = vadd.f32 %v2749, %v2943
        %v3056 = vadd.f32 %v2750, %v2948
        %v3057 = vadd.f32 %v2751, %v2951
        %v3058 = vadd.f32 %v2752, %v2956
        %v3059 = vadd.f32 %v2753, %v2959
        %v3060 = vadd.f32 %v2754, %v2964
        %v3061 = vadd.f32 %v2755, %v2967
        %v3062 = vadd.f32 %v2756, %v2972
        %v3063 = vadd.f32 %v2757, %v2975
        %v3064 = vadd.f32 %v2758, %v2980
        %v3065 = vadd.f32 %v2759, %v2983
        %v3066 = vadd.f32 %v2760, %v2988
        %v3067 = vadd.f32 %v2761, %v2991
        %v3068 = vadd.f32 %v2762, %v2996
        %v3069 = vadd.f32 %v2763, %v2999
        %v3070 = vadd.f32 %v2764, %v3004
        %v3071 = vadd.f32 %v2765, %v3007
        %v3072 = vadd.f32 %v2766, %v3012
        %v3073 = vadd.f32 %v2767, %v3015
        %v3074 = vadd.f32 %v2768, %v3020
        %v3075 = vadd.f32 %v2769, %v3023
        %v3076 = vadd.f32 %v2770, %v3028
        %v3077 = vadd.f32 %v2771, %v3031
        %v3078 = vadd.f32 %v2772, %v3036
        %v3079 = vadd.f32 %v2773, %v3039
        %v3080 = vadd.f32 %v2774, %v3044
        %v3081 = vadd.f32 %v2775, %v3047
        %v3082 = vld [vmem:[%s2] sm:$0x1]
        %v3084 = vlaneseq
        %v3085 = vshrl.u32 %v3084, 7
        %v3086 = vsub.s32 0, %v3085
        %v3087 = vrot.slane %v3082, %v3086
        %v3089 = vadd.f32 %v3050, %v3087
        %v3090 = vadd.f32 %v3051, %v3087
        %v3091 = vadd.f32 %v3052, %v3087
        %v3092 = vadd.f32 %v3053, %v3087
        %v3093 = vadd.f32 %v3054, %v3087
        %v3094 = vadd.f32 %v3055, %v3087
        %v3095 = vadd.f32 %v3056, %v3087
        %v3096 = vadd.f32 %v3057, %v3087
        %v3097 = vadd.f32 %v3058, %v3087
        %v3098 = vadd.f32 %v3059, %v3087
        %v3099 = vadd.f32 %v3060, %v3087
        %v3100 = vadd.f32 %v3061, %v3087
        %v3101 = vadd.f32 %v3062, %v3087
        %v3102 = vadd.f32 %v3063, %v3087
        %v3103 = vadd.f32 %v3064, %v3087
        %v3104 = vadd.f32 %v3065, %v3087
        %v3105 = vadd.f32 %v3066, %v3087
        %v3106 = vadd.f32 %v3067, %v3087
        %v3107 = vadd.f32 %v3068, %v3087
        %v3108 = vadd.f32 %v3069, %v3087
        %v3109 = vadd.f32 %v3070, %v3087
        %v3110 = vadd.f32 %v3071, %v3087
        %v3111 = vadd.f32 %v3072, %v3087
        %v3112 = vadd.f32 %v3073, %v3087
        %v3113 = vadd.f32 %v3074, %v3087
        %v3114 = vadd.f32 %v3075, %v3087
        %v3115 = vadd.f32 %v3076, %v3087
        %v3116 = vadd.f32 %v3077, %v3087
        %v3117 = vadd.f32 %v3078, %v3087
        %v3118 = vadd.f32 %v3079, %v3087
        %v3119 = vadd.f32 %v3080, %v3087
        %v3120 = vadd.f32 %v3081, %v3087
        %v3121 = vmax.f32 %v3089, 0.0
        %v3122 = vmax.f32 %v3090, 0.0
        %v3123 = vmax.f32 %v3091, 0.0
        %v3124 = vmax.f32 %v3092, 0.0
        %v3125 = vmax.f32 %v3093, 0.0
        %v3126 = vmax.f32 %v3094, 0.0
        %v3127 = vmax.f32 %v3095, 0.0
        %v3128 = vmax.f32 %v3096, 0.0
        %v3129 = vmax.f32 %v3097, 0.0
        %v3130 = vmax.f32 %v3098, 0.0
        %v3131 = vmax.f32 %v3099, 0.0
        %v3132 = vmax.f32 %v3100, 0.0
        %v3133 = vmax.f32 %v3101, 0.0
        %v3134 = vmax.f32 %v3102, 0.0
        %v3135 = vmax.f32 %v3103, 0.0
        %v3136 = vmax.f32 %v3104, 0.0
        %v3137 = vmax.f32 %v3105, 0.0
        %v3138 = vmax.f32 %v3106, 0.0
        %v3139 = vmax.f32 %v3107, 0.0
        %v3140 = vmax.f32 %v3108, 0.0
        %v3141 = vmax.f32 %v3109, 0.0
        %v3142 = vmax.f32 %v3110, 0.0
        %v3143 = vmax.f32 %v3111, 0.0
        %v3144 = vmax.f32 %v3112, 0.0
        %v3145 = vmax.f32 %v3113, 0.0
        %v3146 = vmax.f32 %v3114, 0.0
        %v3147 = vmax.f32 %v3115, 0.0
        %v3148 = vmax.f32 %v3116, 0.0
        %v3149 = vmax.f32 %v3117, 0.0
        %v3150 = vmax.f32 %v3118, 0.0
        %v3151 = vmax.f32 %v3119, 0.0
        %v3152 = vmax.f32 %v3120, 0.0
        %3153 = vst [vmem:[#allocation3] sm:$0xff] 0.0
        %3154 = vst [vmem:[#allocation3 + $0x8] sm:$0xff] 0.0
        %3155 = vst [vmem:[#allocation3 + $0x10] sm:$0x3] 0.0
        %3156 = vst [vmem:[#allocation3 + $0x18] sm:$0xff] 0.0
        %3157 = vst [vmem:[#allocation3 + $0x20] sm:$0xff] 0.0
        %3158 = vst [vmem:[#allocation3 + $0x28] sm:$0x3] 0.0
        %3159 = vst [vmem:[#allocation3 + $0x30] sm:$0xff] 0.0
        %3160 = vst [vmem:[#allocation3 + $0x38] sm:$0xff] 0.0
        %3161 = vst [vmem:[#allocation3 + $0x40] sm:$0x3] 0.0
        %3162 = vst [vmem:[#allocation3 + $0x48] sm:$0xff] 0.0
        %3163 = vst [vmem:[#allocation3 + $0x50] sm:$0xff] 0.0
        %3164 = vst [vmem:[#allocation3 + $0x58] sm:$0x3] 0.0
        %3165 = vst [vmem:[#allocation3 + $0x60] sm:$0xff] 0.0
        %3166 = vst [vmem:[#allocation3 + $0x68] sm:$0xff] 0.0
        %3167 = vst [vmem:[#allocation3 + $0x70] sm:$0x3] 0.0
        %3168 = vst [vmem:[#allocation3 + $0x78] sm:$0xff] 0.0
        %3169 = vst [vmem:[#allocation3 + $0x80] sm:$0xff] 0.0
        %3170 = vst [vmem:[#allocation3 + $0x88] sm:$0x3] 0.0
        %3171 = vst [vmem:[#allocation3 + $0x90] sm:$0xff] 0.0
        %3172 = vst [vmem:[#allocation3 + $0x98] sm:$0xff] 0.0
        %3173 = vst [vmem:[#allocation3 + $0xa0] sm:$0x3] 0.0
        %3174 = vst [vmem:[#allocation3 + $0xa8] sm:$0xff] 0.0
        %3175 = vst [vmem:[#allocation3 + $0xb0] sm:$0xff] 0.0
        %3176 = vst [vmem:[#allocation3 + $0xb8] sm:$0x3] 0.0
        %3177 = vst [vmem:[#allocation3 + $0xc0] sm:$0xff] 0.0
        %3178 = vst [vmem:[#allocation3 + $0xc8] sm:$0xff] 0.0
        %3179 = vst [vmem:[#allocation3 + $0xd0] sm:$0x3] 0.0
        %3180 = vst [vmem:[#allocation3 + $0xd8] sm:$0xff] 0.0
        %3181 = vst [vmem:[#allocation3 + $0xe0] sm:$0xff] 0.0
        %3182 = vst [vmem:[#allocation3 + $0xe8] sm:$0x3] 0.0
        %3183 = vst [vmem:[#allocation3 + $0xf0] sm:$0xff] 0.0
        %3184 = vst [vmem:[#allocation3 + $0xf8] sm:$0xff] 0.0
        %3185 = vst [vmem:[#allocation3 + $0x100] sm:$0x3] 0.0
        %3186 = vst [vmem:[#allocation3 + $0x108] sm:$0xff] 0.0
        %3187 = vst [vmem:[#allocation3 + $0x110] sm:$0xff] 0.0
        %3188 = vst [vmem:[#allocation3 + $0x118] sm:$0x3] 0.0
        %3189 = vst [vmem:[#allocation3 + $0x120] sm:$0xff] 0.0
        %3190 = vst [vmem:[#allocation3 + $0x128] sm:$0xff] 0.0
        %3191 = vst [vmem:[#allocation3 + $0x130] sm:$0x3] 0.0
        %3192 = vst [vmem:[#allocation3 + $0x138] sm:$0xff] 0.0
        %3193 = vst [vmem:[#allocation3 + $0x140] sm:$0xff] 0.0
        %3194 = vst [vmem:[#allocation3 + $0x148] sm:$0x3] 0.0
        %3195 = vst [vmem:[#allocation3 + $0x150] sm:$0xff] 0.0
        %3196 = vst [vmem:[#allocation3 + $0x158] sm:$0xff] 0.0
        %3197 = vst [vmem:[#allocation3 + $0x160] sm:$0x3] 0.0
        %3198 = vst [vmem:[#allocation3 + $0x168] sm:$0xff] 0.0
        %3199 = vst [vmem:[#allocation3 + $0x170] sm:$0xff] 0.0
        %3200 = vst [vmem:[#allocation3 + $0x178] sm:$0x3] 0.0
        %3201 = vst [vmem:[#allocation3 + $0x180] sm:$0xff] 0.0
        %3202 = vst [vmem:[#allocation3 + $0x188] sm:$0xff] 0.0
        %3203 = vst [vmem:[#allocation3 + $0x190] sm:$0x3] 0.0
        %3204 = vst [vmem:[#allocation3 + $0x198] sm:$0xff] 0.0
        %3205 = vst [vmem:[#allocation3 + $0x1a0] sm:$0xff] 0.0
        %3206 = vst [vmem:[#allocation3 + $0x1a8] sm:$0x3] 0.0
        %s3207 = scalar_lea.vmem [#allocation3], 24
        %3208 = vst [vmem:[%s3207 + $0x1] sm:$0xff] %v3121
        %3209 = vst [vmem:[%s3207 + $0x9] sm:$0xff] %v3122
        %3210 = vst [vmem:[%s3207 + $0x19] sm:$0xff] %v3123
        %3211 = vst [vmem:[%s3207 + $0x21] sm:$0xff] %v3124
        %3212 = vst [vmem:[%s3207 + $0x31] sm:$0xff] %v3125
        %3213 = vst [vmem:[%s3207 + $0x39] sm:$0xff] %v3126
        %3214 = vst [vmem:[%s3207 + $0x49] sm:$0xff] %v3127
        %3215 = vst [vmem:[%s3207 + $0x51] sm:$0xff] %v3128
        %3216 = vst [vmem:[%s3207 + $0x61] sm:$0xff] %v3129
        %3217 = vst [vmem:[%s3207 + $0x69] sm:$0xff] %v3130
        %3218 = vst [vmem:[%s3207 + $0x79] sm:$0xff] %v3131
        %3219 = vst [vmem:[%s3207 + $0x81] sm:$0xff] %v3132
        %3220 = vst [vmem:[%s3207 + $0x91] sm:$0xff] %v3133
        %3221 = vst [vmem:[%s3207 + $0x99] sm:$0xff] %v3134
        %3222 = vst [vmem:[%s3207 + $0xa9] sm:$0xff] %v3135
        %3223 = vst [vmem:[%s3207 + $0xb1] sm:$0xff] %v3136
        %3224 = vst [vmem:[%s3207 + $0xc1] sm:$0xff] %v3137
        %3225 = vst [vmem:[%s3207 + $0xc9] sm:$0xff] %v3138
        %3226 = vst [vmem:[%s3207 + $0xd9] sm:$0xff] %v3139
        %3227 = vst [vmem:[%s3207 + $0xe1] sm:$0xff] %v3140
        %3228 = vst [vmem:[%s3207 + $0xf1] sm:$0xff] %v3141
        %3229 = vst [vmem:[%s3207 + $0xf9] sm:$0xff] %v3142
        %3230 = vst [vmem:[%s3207 + $0x109] sm:$0xff] %v3143
        %3231 = vst [vmem:[%s3207 + $0x111] sm:$0xff] %v3144
        %3232 = vst [vmem:[%s3207 + $0x121] sm:$0xff] %v3145
        %3233 = vst [vmem:[%s3207 + $0x129] sm:$0xff] %v3146
        %3234 = vst [vmem:[%s3207 + $0x139] sm:$0xff] %v3147
        %3235 = vst [vmem:[%s3207 + $0x141] sm:$0xff] %v3148
        %3236 = vst [vmem:[%s3207 + $0x151] sm:$0xff] %v3149
        %3237 = vst [vmem:[%s3207 + $0x159] sm:$0xff] %v3150
        %3238 = vst [vmem:[%s3207 + $0x169] sm:$0xff] %v3151
        %3239 = vst [vmem:[%s3207 + $0x171] sm:$0xff] %v3152
        %v3240 = vld [vmem:[#allocation3] sm:$0xff]
        %v3241 = vld [vmem:[#allocation3 + $0x8] sm:$0xff]
        %v3242 = vld [vmem:[#allocation3 + $0x18] sm:$0xff]
        %v3243 = vld [vmem:[#allocation3 + $0x20] sm:$0xff]
        %v3244 = vld [vmem:[#allocation3 + $0x30] sm:$0xff]
        %v3245 = vld [vmem:[#allocation3 + $0x38] sm:$0xff]
        %v3246 = vld [vmem:[#allocation3 + $0x48] sm:$0xff]
        %v3247 = vld [vmem:[#allocation3 + $0x50] sm:$0xff]
        %v3248 = vld [vmem:[#allocation3 + $0x60] sm:$0xff]
        %v3249 = vld [vmem:[#allocation3 + $0x68] sm:$0xff]
        %v3250 = vld [vmem:[#allocation3 + $0x78] sm:$0xff]
        %v3251 = vld [vmem:[#allocation3 + $0x80] sm:$0xff]
        %v3252 = vld [vmem:[#allocation3 + $0x90] sm:$0xff]
        %v3253 = vld [vmem:[#allocation3 + $0x98] sm:$0xff]
        %v3254 = vld [vmem:[#allocation3 + $0xa8] sm:$0xff]
        %v3255 = vld [vmem:[#allocation3 + $0xb0] sm:$0xff]
        %v3256 = vld [vmem:[#allocation3 + $0xc0] sm:$0xff]
        %v3257 = vld [vmem:[#allocation3 + $0xc8] sm:$0xff]
        %v3258 = vld [vmem:[#allocation3 + $0xd8] sm:$0xff]
        %v3259 = vld [vmem:[#allocation3 + $0xe0] sm:$0xff]
        %v3260 = vld [vmem:[#allocation3 + $0xf0] sm:$0xff]
        %v3261 = vld [vmem:[#allocation3 + $0xf8] sm:$0xff]
        %v3262 = vld [vmem:[#allocation3 + $0x108] sm:$0xff]
        %v3263 = vld [vmem:[#allocation3 + $0x110] sm:$0xff]
        %v3264 = vld [vmem:[#allocation3 + $0x120] sm:$0xff]
        %v3265 = vld [vmem:[#allocation3 + $0x128] sm:$0xff]
        %v3266 = vld [vmem:[#allocation3 + $0x138] sm:$0xff]
        %v3267 = vld [vmem:[#allocation3 + $0x140] sm:$0xff]
        %v3268 = vld [vmem:[#allocation3 + $0x150] sm:$0xff]
        %v3269 = vld [vmem:[#allocation3 + $0x158] sm:$0xff]
        %v3270 = vld [vmem:[#allocation3 + $0x168] sm:$0xff]
        %v3271 = vld [vmem:[#allocation3 + $0x170] sm:$0xff]
        %v3272 = vpack.c.bf16 %v3241, %v3240
        %v3273 = vpack.c.bf16 %v3243, %v3242
        %v3274 = vpack.c.bf16 %v3245, %v3244
        %v3275 = vpack.c.bf16 %v3247, %v3246
        %v3276 = vpack.c.bf16 %v3249, %v3248
        %v3277 = vpack.c.bf16 %v3251, %v3250
        %v3278 = vpack.c.bf16 %v3253, %v3252
        %v3279 = vpack.c.bf16 %v3255, %v3254
        %v3280 = vpack.c.bf16 %v3257, %v3256
        %v3281 = vpack.c.bf16 %v3259, %v3258
        %v3282 = vpack.c.bf16 %v3261, %v3260
        %v3283 = vpack.c.bf16 %v3263, %v3262
        %v3284 = vpack.c.bf16 %v3265, %v3264
        %v3285 = vpack.c.bf16 %v3267, %v3266
        %v3286 = vpack.c.bf16 %v3269, %v3268
        %v3287 = vpack.c.bf16 %v3271, %v3270
        %v3288 = vld [vmem:[#allocation9] sm:$0xf]
        %v3289 = vld [vmem:[#allocation9 + $0x4] sm:$0xf]
        %v3290 = vld [vmem:[#allocation9 + $0x8] sm:$0xf]
        %v3291 = vld [vmem:[#allocation9 + $0xc] sm:$0xf]
        %v3292 = vld [vmem:[#allocation9 + $0x10] sm:$0xf]
        %v3293 = vld [vmem:[#allocation9 + $0x14] sm:$0xf]
        %v3294 = vld [vmem:[#allocation9 + $0x18] sm:$0xf]
        %v3295 = vld [vmem:[#allocation9 + $0x1c] sm:$0xf]
        %v3296 = vld [vmem:[#allocation9 + $0x20] sm:$0xf]
        %v3297 = vld [vmem:[#allocation9 + $0x24] sm:$0xf]
        %v3298 = vld [vmem:[#allocation9 + $0x28] sm:$0xf]
        %v3299 = vld [vmem:[#allocation9 + $0x2c] sm:$0xf]
        %v3300 = vld [vmem:[#allocation9 + $0x30] sm:$0xf]
        %v3301 = vld [vmem:[#allocation9 + $0x34] sm:$0xf]
        %v3302 = vld [vmem:[#allocation9 + $0x38] sm:$0xf]
        %v3303 = vld [vmem:[#allocation9 + $0x3c] sm:$0xf]
        %v3304 = vld [vmem:[#allocation3 + $0x1] sm:$0xff]
        %v3305 = vld [vmem:[#allocation3 + $0x9] sm:$0xff]
        %v3306 = vld [vmem:[#allocation3 + $0x19] sm:$0xff]
        %v3307 = vld [vmem:[#allocation3 + $0x21] sm:$0xff]
        %v3308 = vld [vmem:[#allocation3 + $0x31] sm:$0xff]
        %v3309 = vld [vmem:[#allocation3 + $0x39] sm:$0xff]
        %v3310 = vld [vmem:[#allocation3 + $0x49] sm:$0xff]
        %v3311 = vld [vmem:[#allocation3 + $0x51] sm:$0xff]
        %v3312 = vld [vmem:[#allocation3 + $0x61] sm:$0xff]
        %v3313 = vld [vmem:[#allocation3 + $0x69] sm:$0xff]
        %v3314 = vld [vmem:[#allocation3 + $0x79] sm:$0xff]
        %v3315 = vld [vmem:[#allocation3 + $0x81] sm:$0xff]
        %v3316 = vld [vmem:[#allocation3 + $0x91] sm:$0xff]
        %v3317 = vld [vmem:[#allocation3 + $0x99] sm:$0xff]
        %v3318 = vld [vmem:[#allocation3 + $0xa9] sm:$0xff]
        %v3319 = vld [vmem:[#allocation3 + $0xb1] sm:$0xff]
        %v3320 = vld [vmem:[#allocation3 + $0xc1] sm:$0xff]
        %v3321 = vld [vmem:[#allocation3 + $0xc9] sm:$0xff]
        %v3322 = vld [vmem:[#allocation3 + $0xd9] sm:$0xff]
        %v3323 = vld [vmem:[#allocation3 + $0xe1] sm:$0xff]
        %v3324 = vld [vmem:[#allocation3 + $0xf1] sm:$0xff]
        %v3325 = vld [vmem:[#allocation3 + $0xf9] sm:$0xff]
        %v3326 = vld [vmem:[#allocation3 + $0x109] sm:$0xff]
        %v3327 = vld [vmem:[#allocation3 + $0x111] sm:$0xff]
        %v3328 = vld [vmem:[#allocation3 + $0x121] sm:$0xff]
        %v3329 = vld [vmem:[#allocation3 + $0x129] sm:$0xff]
        %v3330 = vld [vmem:[#allocation3 + $0x139] sm:$0xff]
        %v3331 = vld [vmem:[#allocation3 + $0x141] sm:$0xff]
        %v3332 = vld [vmem:[#allocation3 + $0x151] sm:$0xff]
        %v3333 = vld [vmem:[#allocation3 + $0x159] sm:$0xff]
        %v3334 = vld [vmem:[#allocation3 + $0x169] sm:$0xff]
        %v3335 = vld [vmem:[#allocation3 + $0x171] sm:$0xff]
        %v3336 = vpack.c.bf16 %v3305, %v3304
        %v3337 = vpack.c.bf16 %v3307, %v3306
        %v3338 = vpack.c.bf16 %v3309, %v3308
        %v3339 = vpack.c.bf16 %v3311, %v3310
        %v3340 = vpack.c.bf16 %v3313, %v3312
        %v3341 = vpack.c.bf16 %v3315, %v3314
        %v3342 = vpack.c.bf16 %v3317, %v3316
        %v3343 = vpack.c.bf16 %v3319, %v3318
        %v3344 = vpack.c.bf16 %v3321, %v3320
        %v3345 = vpack.c.bf16 %v3323, %v3322
        %v3346 = vpack.c.bf16 %v3325, %v3324
        %v3347 = vpack.c.bf16 %v3327, %v3326
        %v3348 = vpack.c.bf16 %v3329, %v3328
        %v3349 = vpack.c.bf16 %v3331, %v3330
        %v3350 = vpack.c.bf16 %v3333, %v3332
        %v3351 = vpack.c.bf16 %v3335, %v3334
        %s3352 = scalar_lea.vmem [#allocation9], 64
        %v3353 = vld [vmem:[%s3352] sm:$0xf]
        %v3354 = vld [vmem:[%s3352 + $0x4] sm:$0xf]
        %v3355 = vld [vmem:[%s3352 + $0x8] sm:$0xf]
        %v3356 = vld [vmem:[%s3352 + $0xc] sm:$0xf]
        %v3357 = vld [vmem:[%s3352 + $0x10] sm:$0xf]
        %v3358 = vld [vmem:[%s3352 + $0x14] sm:$0xf]
        %v3359 = vld [vmem:[%s3352 + $0x18] sm:$0xf]
        %v3360 = vld [vmem:[%s3352 + $0x1c] sm:$0xf]
        %v3361 = vld [vmem:[%s3352 + $0x20] sm:$0xf]
        %v3362 = vld [vmem:[%s3352 + $0x24] sm:$0xf]
        %v3363 = vld [vmem:[%s3352 + $0x28] sm:$0xf]
        %v3364 = vld [vmem:[%s3352 + $0x2c] sm:$0xf]
        %v3365 = vld [vmem:[%s3352 + $0x30] sm:$0xf]
        %v3366 = vld [vmem:[%s3352 + $0x34] sm:$0xf]
        %v3367 = vld [vmem:[%s3352 + $0x38] sm:$0xf]
        %v3368 = vld [vmem:[%s3352 + $0x3c] sm:$0xf]
        %v3385 = vunpack.c.l.b16 %v3353
        %v3386 = vunpack.c.l.b16 %v3354
        %v3387 = vunpack.c.l.b16 %v3355
        %v3388 = vunpack.c.l.b16 %v3356
        %v3389 = vunpack.c.l.b16 %v3357
        %v3390 = vunpack.c.l.b16 %v3358
        %v3391 = vunpack.c.l.b16 %v3359
        %v3392 = vunpack.c.l.b16 %v3360
        %v3393 = vunpack.c.l.b16 %v3361
        %v3394 = vunpack.c.l.b16 %v3362
        %v3395 = vunpack.c.l.b16 %v3363
        %v3396 = vunpack.c.l.b16 %v3364
        %v3397 = vunpack.c.l.b16 %v3365
        %v3398 = vunpack.c.l.b16 %v3366
        %v3399 = vunpack.c.l.b16 %v3367
        %v3400 = vunpack.c.l.b16 %v3368
        %v3401 = vpack.c.b16 %v3386, %v3385
        %v3402 = vpack.c.b16 %v3388, %v3387
        %v3403 = vpack.c.b16 %v3390, %v3389
        %v3404 = vpack.c.b16 %v3392, %v3391
        %v3405 = vpack.c.b16 %v3394, %v3393
        %v3406 = vpack.c.b16 %v3396, %v3395
        %v3407 = vpack.c.b16 %v3398, %v3397
        %v3408 = vpack.c.b16 %v3400, %v3399
        %3417 = vmatprep.subr.bf16.mxu0 0
        %3418 = vmatpush1.bf16.msra.mxu0 %v3408
        %3419 = vmatprep.subr.bf16.mxu0 0
        %3420 = vmatpush1.bf16.msra.mxu0 %v3407
        %3421 = vmatprep.subr.bf16.mxu0 0
        %3422 = vmatpush1.bf16.msra.mxu0 %v3406
        %3423 = vmatprep.subr.bf16.mxu0 0
        %3424 = vmatpush1.bf16.msra.mxu0 %v3405
        %3425 = vmatprep.subr.bf16.mxu0 0
        %3426 = vmatpush1.bf16.msra.mxu0 %v3404
        %3427 = vmatprep.subr.bf16.mxu0 0
        %3428 = vmatpush1.bf16.msra.mxu0 %v3403
        %3429 = vmatprep.subr.bf16.mxu0 0
        %3430 = vmatpush1.bf16.msra.mxu0 %v3402
        %3431 = vmatprep.subr.bf16.mxu0 0
        %3432 = vmatpush1.bf16.msra.mxu0 %v3401
        %3433 = vmatprep.subr.bf16.mxu0 0
        %3434 = vmatpush2.bf16.msra.mxu0 0
        %3435 = vmatprep.subr.bf16.mxu0 0
        %3436 = vmatpush2.bf16.msra.mxu0 0
        %3437 = vmatprep.subr.bf16.mxu0 0
        %3438 = vmatpush2.bf16.msra.mxu0 0
        %3439 = vmatprep.subr.bf16.mxu0 0
        %3440 = vmatpush2.bf16.msra.mxu0 0
        %3441 = vmatprep.subr.bf16.mxu0 0
        %3442 = vmatpush2.bf16.msra.mxu0 0
        %3443 = vmatprep.subr.bf16.mxu0 0
        %3444 = vmatpush2.bf16.msra.mxu0 0
        %3445 = vmatprep.subr.bf16.mxu0 0
        %3446 = vmatpush2.bf16.msra.mxu0 0
        %3447 = vmatprep.subr.bf16.mxu0 0
        %3448 = vmatpush2.bf16.msra.mxu0 0
        %3449 = vmatprep.mubr.bf16.mxu0 0
        %3450 = vmatmul.mubr.bf16.gmra.mxu0 %v3336
        %v3451 = vpop.f32.mrf.mxu0
        %v3452 = vadd.f32 0.0, %v3451
        %v3453 = vpop.f32.mrf.mxu0
        %v3454 = vpop.f32.mrf.mxu0
        %v3455 = vadd.f32 0.0, %v3454
        %v3456 = vpop.f32.mrf.mxu0
        %3457 = vmatprep.mubr.bf16.mxu0 0
        %3458 = vmatmul.mubr.bf16.gmra.mxu0 %v3337
        %v3459 = vpop.f32.mrf.mxu0
        %v3460 = vadd.f32 0.0, %v3459
        %v3461 = vpop.f32.mrf.mxu0
        %v3462 = vpop.f32.mrf.mxu0
        %v3463 = vadd.f32 0.0, %v3462
        %v3464 = vpop.f32.mrf.mxu0
        %3465 = vmatprep.mubr.bf16.mxu0 0
        %3466 = vmatmul.mubr.bf16.gmra.mxu0 %v3338
        %v3467 = vpop.f32.mrf.mxu0
        %v3468 = vadd.f32 0.0, %v3467
        %v3469 = vpop.f32.mrf.mxu0
        %v3470 = vpop.f32.mrf.mxu0
        %v3471 = vadd.f32 0.0, %v3470
        %v3472 = vpop.f32.mrf.mxu0
        %3473 = vmatprep.mubr.bf16.mxu0 0
        %3474 = vmatmul.mubr.bf16.gmra.mxu0 %v3339
        %v3475 = vpop.f32.mrf.mxu0
        %v3476 = vadd.f32 0.0, %v3475
        %v3477 = vpop.f32.mrf.mxu0
        %v3478 = vpop.f32.mrf.mxu0
        %v3479 = vadd.f32 0.0, %v3478
        %v3480 = vpop.f32.mrf.mxu0
        %3481 = vmatprep.mubr.bf16.mxu0 0
        %3482 = vmatmul.mubr.bf16.gmra.mxu0 %v3340
        %v3483 = vpop.f32.mrf.mxu0
        %v3484 = vadd.f32 0.0, %v3483
        %v3485 = vpop.f32.mrf.mxu0
        %v3486 = vpop.f32.mrf.mxu0
        %v3487 = vadd.f32 0.0, %v3486
        %v3488 = vpop.f32.mrf.mxu0
        %3489 = vmatprep.mubr.bf16.mxu0 0
        %3490 = vmatmul.mubr.bf16.gmra.mxu0 %v3341
        %v3491 = vpop.f32.mrf.mxu0
        %v3492 = vadd.f32 0.0, %v3491
        %v3493 = vpop.f32.mrf.mxu0
        %v3494 = vpop.f32.mrf.mxu0
        %v3495 = vadd.f32 0.0, %v3494
        %v3496 = vpop.f32.mrf.mxu0
        %3497 = vmatprep.mubr.bf16.mxu0 0
        %3498 = vmatmul.mubr.bf16.gmra.mxu0 %v3342
        %v3499 = vpop.f32.mrf.mxu0
        %v3500 = vadd.f32 0.0, %v3499
        %v3501 = vpop.f32.mrf.mxu0
        %v3502 = vpop.f32.mrf.mxu0
        %v3503 = vadd.f32 0.0, %v3502
        %v3504 = vpop.f32.mrf.mxu0
        %3505 = vmatprep.mubr.bf16.mxu0 0
        %3506 = vmatmul.mubr.bf16.gmra.mxu0 %v3343
        %v3507 = vpop.f32.mrf.mxu0
        %v3508 = vadd.f32 0.0, %v3507
        %v3509 = vpop.f32.mrf.mxu0
        %v3510 = vpop.f32.mrf.mxu0
        %v3511 = vadd.f32 0.0, %v3510
        %v3512 = vpop.f32.mrf.mxu0
        %3513 = vmatprep.mubr.bf16.mxu0 0
        %3514 = vmatmul.mubr.bf16.gmra.mxu0 %v3344
        %v3515 = vpop.f32.mrf.mxu0
        %v3516 = vadd.f32 0.0, %v3515
        %v3517 = vpop.f32.mrf.mxu0
        %v3518 = vpop.f32.mrf.mxu0
        %v3519 = vadd.f32 0.0, %v3518
        %v3520 = vpop.f32.mrf.mxu0
        %3521 = vmatprep.mubr.bf16.mxu0 0
        %3522 = vmatmul.mubr.bf16.gmra.mxu0 %v3345
        %v3523 = vpop.f32.mrf.mxu0
        %v3524 = vadd.f32 0.0, %v3523
        %v3525 = vpop.f32.mrf.mxu0
        %v3526 = vpop.f32.mrf.mxu0
        %v3527 = vadd.f32 0.0, %v3526
        %v3528 = vpop.f32.mrf.mxu0
        %3529 = vmatprep.mubr.bf16.mxu0 0
        %3530 = vmatmul.mubr.bf16.gmra.mxu0 %v3346
        %v3531 = vpop.f32.mrf.mxu0
        %v3532 = vadd.f32 0.0, %v3531
        %v3533 = vpop.f32.mrf.mxu0
        %v3534 = vpop.f32.mrf.mxu0
        %v3535 = vadd.f32 0.0, %v3534
        %v3536 = vpop.f32.mrf.mxu0
        %3537 = vmatprep.mubr.bf16.mxu0 0
        %3538 = vmatmul.mubr.bf16.gmra.mxu0 %v3347
        %v3539 = vpop.f32.mrf.mxu0
        %v3540 = vadd.f32 0.0, %v3539
        %v3541 = vpop.f32.mrf.mxu0
        %v3542 = vpop.f32.mrf.mxu0
        %v3543 = vadd.f32 0.0, %v3542
        %v3544 = vpop.f32.mrf.mxu0
        %3545 = vmatprep.mubr.bf16.mxu0 0
        %3546 = vmatmul.mubr.bf16.gmra.mxu0 %v3348
        %v3547 = vpop.f32.mrf.mxu0
        %v3548 = vadd.f32 0.0, %v3547
        %v3549 = vpop.f32.mrf.mxu0
        %v3550 = vpop.f32.mrf.mxu0
        %v3551 = vadd.f32 0.0, %v3550
        %v3552 = vpop.f32.mrf.mxu0
        %3553 = vmatprep.mubr.bf16.mxu0 0
        %3554 = vmatmul.mubr.bf16.gmra.mxu0 %v3349
        %v3555 = vpop.f32.mrf.mxu0
        %v3556 = vadd.f32 0.0, %v3555
        %v3557 = vpop.f32.mrf.mxu0
        %v3558 = vpop.f32.mrf.mxu0
        %v3559 = vadd.f32 0.0, %v3558
        %v3560 = vpop.f32.mrf.mxu0
        %3561 = vmatprep.mubr.bf16.mxu0 0
        %3562 = vmatmul.mubr.bf16.gmra.mxu0 %v3350
        %v3563 = vpop.f32.mrf.mxu0
        %v3564 = vadd.f32 0.0, %v3563
        %v3565 = vpop.f32.mrf.mxu0
        %v3566 = vpop.f32.mrf.mxu0
        %v3567 = vadd.f32 0.0, %v3566
        %v3568 = vpop.f32.mrf.mxu0
        %3569 = vmatprep.mubr.bf16.mxu0 0
        %3570 = vmatmul.mubr.bf16.gmra.mxu0 %v3351
        %v3571 = vpop.f32.mrf.mxu0
        %v3572 = vadd.f32 0.0, %v3571
        %v3573 = vpop.f32.mrf.mxu0
        %v3574 = vpop.f32.mrf.mxu0
        %v3575 = vadd.f32 0.0, %v3574
        %v3576 = vpop.f32.mrf.mxu0
        %3577 = vdwg.mxu0
        %v3594 = vunpack.c.l.b16 %v3288
        %v3595 = vunpack.c.l.b16 %v3289
        %v3596 = vunpack.c.l.b16 %v3290
        %v3597 = vunpack.c.l.b16 %v3291
        %v3598 = vunpack.c.l.b16 %v3292
        %v3599 = vunpack.c.l.b16 %v3293
        %v3600 = vunpack.c.l.b16 %v3294
        %v3601 = vunpack.c.l.b16 %v3295
        %v3602 = vunpack.c.l.b16 %v3296
        %v3603 = vunpack.c.l.b16 %v3297
        %v3604 = vunpack.c.l.b16 %v3298
        %v3605 = vunpack.c.l.b16 %v3299
        %v3606 = vunpack.c.l.b16 %v3300
        %v3607 = vunpack.c.l.b16 %v3301
        %v3608 = vunpack.c.l.b16 %v3302
        %v3609 = vunpack.c.l.b16 %v3303
        %v3610 = vpack.c.b16 %v3595, %v3594
        %v3611 = vpack.c.b16 %v3597, %v3596
        %v3612 = vpack.c.b16 %v3599, %v3598
        %v3613 = vpack.c.b16 %v3601, %v3600
        %v3614 = vpack.c.b16 %v3603, %v3602
        %v3615 = vpack.c.b16 %v3605, %v3604
        %v3616 = vpack.c.b16 %v3607, %v3606
        %v3617 = vpack.c.b16 %v3609, %v3608
        %3626 = vmatprep.subr.bf16.mxu0 0
        %3627 = vmatpush1.bf16.msra.mxu0 %v3617
        %3628 = vmatprep.subr.bf16.mxu0 0
        %3629 = vmatpush1.bf16.msra.mxu0 %v3616
        %3630 = vmatprep.subr.bf16.mxu0 0
        %3631 = vmatpush1.bf16.msra.mxu0 %v3615
        %3632 = vmatprep.subr.bf16.mxu0 0
        %3633 = vmatpush1.bf16.msra.mxu0 %v3614
        %3634 = vmatprep.subr.bf16.mxu0 0
        %3635 = vmatpush1.bf16.msra.mxu0 %v3613
        %3636 = vmatprep.subr.bf16.mxu0 0
        %3637 = vmatpush1.bf16.msra.mxu0 %v3612
        %3638 = vmatprep.subr.bf16.mxu0 0
        %3639 = vmatpush1.bf16.msra.mxu0 %v3611
        %3640 = vmatprep.subr.bf16.mxu0 0
        %3641 = vmatpush1.bf16.msra.mxu0 %v3610
        %3642 = vmatprep.subr.bf16.mxu0 0
        %3643 = vmatpush2.bf16.msra.mxu0 0
        %3644 = vmatprep.subr.bf16.mxu0 0
        %3645 = vmatpush2.bf16.msra.mxu0 0
        %3646 = vmatprep.subr.bf16.mxu0 0
        %3647 = vmatpush2.bf16.msra.mxu0 0
        %3648 = vmatprep.subr.bf16.mxu0 0
        %3649 = vmatpush2.bf16.msra.mxu0 0
        %3650 = vmatprep.subr.bf16.mxu0 0
        %3651 = vmatpush2.bf16.msra.mxu0 0
        %3652 = vmatprep.subr.bf16.mxu0 0
        %3653 = vmatpush2.bf16.msra.mxu0 0
        %3654 = vmatprep.subr.bf16.mxu0 0
        %3655 = vmatpush2.bf16.msra.mxu0 0
        %3656 = vmatprep.subr.bf16.mxu0 0
        %3657 = vmatpush2.bf16.msra.mxu0 0
        %3658 = vmatprep.mubr.bf16.mxu0 0
        %3659 = vmatmul.mubr.bf16.gmra.mxu0 %v3272
        %v3660 = vpop.f32.mrf.mxu0
        %v3661 = vadd.f32 %v3452, %v3660
        %v3662 = vpop.f32.mrf.mxu0
        %v3663 = vpop.f32.mrf.mxu0
        %v3664 = vadd.f32 %v3455, %v3663
        %v3665 = vpop.f32.mrf.mxu0
        %3666 = vmatprep.mubr.bf16.mxu0 0
        %3667 = vmatmul.mubr.bf16.gmra.mxu0 %v3273
        %v3668 = vpop.f32.mrf.mxu0
        %v3669 = vadd.f32 %v3460, %v3668
        %v3670 = vpop.f32.mrf.mxu0
        %v3671 = vpop.f32.mrf.mxu0
        %v3672 = vadd.f32 %v3463, %v3671
        %v3673 = vpop.f32.mrf.mxu0
        %3674 = vmatprep.mubr.bf16.mxu0 0
        %3675 = vmatmul.mubr.bf16.gmra.mxu0 %v3274
        %v3676 = vpop.f32.mrf.mxu0
        %v3677 = vadd.f32 %v3468, %v3676
        %v3678 = vpop.f32.mrf.mxu0
        %v3679 = vpop.f32.mrf.mxu0
        %v3680 = vadd.f32 %v3471, %v3679
        %v3681 = vpop.f32.mrf.mxu0
        %3682 = vmatprep.mubr.bf16.mxu0 0
        %3683 = vmatmul.mubr.bf16.gmra.mxu0 %v3275
        %v3684 = vpop.f32.mrf.mxu0
        %v3685 = vadd.f32 %v3476, %v3684
        %v3686 = vpop.f32.mrf.mxu0
        %v3687 = vpop.f32.mrf.mxu0
        %v3688 = vadd.f32 %v3479, %v3687
        %v3689 = vpop.f32.mrf.mxu0
        %3690 = vmatprep.mubr.bf16.mxu0 0
        %3691 = vmatmul.mubr.bf16.gmra.mxu0 %v3276
        %v3692 = vpop.f32.mrf.mxu0
        %v3693 = vadd.f32 %v3484, %v3692
        %v3694 = vpop.f32.mrf.mxu0
        %v3695 = vpop.f32.mrf.mxu0
        %v3696 = vadd.f32 %v3487, %v3695
        %v3697 = vpop.f32.mrf.mxu0
        %3698 = vmatprep.mubr.bf16.mxu0 0
        %3699 = vmatmul.mubr.bf16.gmra.mxu0 %v3277
        %v3700 = vpop.f32.mrf.mxu0
        %v3701 = vadd.f32 %v3492, %v3700
        %v3702 = vpop.f32.mrf.mxu0
        %v3703 = vpop.f32.mrf.mxu0
        %v3704 = vadd.f32 %v3495, %v3703
        %v3705 = vpop.f32.mrf.mxu0
        %3706 = vmatprep.mubr.bf16.mxu0 0
        %3707 = vmatmul.mubr.bf16.gmra.mxu0 %v3278
        %v3708 = vpop.f32.mrf.mxu0
        %v3709 = vadd.f32 %v3500, %v3708
        %v3710 = vpop.f32.mrf.mxu0
        %v3711 = vpop.f32.mrf.mxu0
        %v3712 = vadd.f32 %v3503, %v3711
        %v3713 = vpop.f32.mrf.mxu0
        %3714 = vmatprep.mubr.bf16.mxu0 0
        %3715 = vmatmul.mubr.bf16.gmra.mxu0 %v3279
        %v3716 = vpop.f32.mrf.mxu0
        %v3717 = vadd.f32 %v3508, %v3716
        %v3718 = vpop.f32.mrf.mxu0
        %v3719 = vpop.f32.mrf.mxu0
        %v3720 = vadd.f32 %v3511, %v3719
        %v3721 = vpop.f32.mrf.mxu0
        %3722 = vmatprep.mubr.bf16.mxu0 0
        %3723 = vmatmul.mubr.bf16.gmra.mxu0 %v3280
        %v3724 = vpop.f32.mrf.mxu0
        %v3725 = vadd.f32 %v3516, %v3724
        %v3726 = vpop.f32.mrf.mxu0
        %v3727 = vpop.f32.mrf.mxu0
        %v3728 = vadd.f32 %v3519, %v3727
        %v3729 = vpop.f32.mrf.mxu0
        %3730 = vmatprep.mubr.bf16.mxu0 0
        %3731 = vmatmul.mubr.bf16.gmra.mxu0 %v3281
        %v3732 = vpop.f32.mrf.mxu0
        %v3733 = vadd.f32 %v3524, %v3732
        %v3734 = vpop.f32.mrf.mxu0
        %v3735 = vpop.f32.mrf.mxu0
        %v3736 = vadd.f32 %v3527, %v3735
        %v3737 = vpop.f32.mrf.mxu0
        %3738 = vmatprep.mubr.bf16.mxu0 0
        %3739 = vmatmul.mubr.bf16.gmra.mxu0 %v3282
        %v3740 = vpop.f32.mrf.mxu0
        %v3741 = vadd.f32 %v3532, %v3740
        %v3742 = vpop.f32.mrf.mxu0
        %v3743 = vpop.f32.mrf.mxu0
        %v3744 = vadd.f32 %v3535, %v3743
        %v3745 = vpop.f32.mrf.mxu0
        %3746 = vmatprep.mubr.bf16.mxu0 0
        %3747 = vmatmul.mubr.bf16.gmra.mxu0 %v3283
        %v3748 = vpop.f32.mrf.mxu0
        %v3749 = vadd.f32 %v3540, %v3748
        %v3750 = vpop.f32.mrf.mxu0
        %v3751 = vpop.f32.mrf.mxu0
        %v3752 = vadd.f32 %v3543, %v3751
        %v3753 = vpop.f32.mrf.mxu0
        %3754 = vmatprep.mubr.bf16.mxu0 0
        %3755 = vmatmul.mubr.bf16.gmra.mxu0 %v3284
        %v3756 = vpop.f32.mrf.mxu0
        %v3757 = vadd.f32 %v3548, %v3756
        %v3758 = vpop.f32.mrf.mxu0
        %v3759 = vpop.f32.mrf.mxu0
        %v3760 = vadd.f32 %v3551, %v3759
        %v3761 = vpop.f32.mrf.mxu0
        %3762 = vmatprep.mubr.bf16.mxu0 0
        %3763 = vmatmul.mubr.bf16.gmra.mxu0 %v3285
        %v3764 = vpop.f32.mrf.mxu0
        %v3765 = vadd.f32 %v3556, %v3764
        %v3766 = vpop.f32.mrf.mxu0
        %v3767 = vpop.f32.mrf.mxu0
        %v3768 = vadd.f32 %v3559, %v3767
        %v3769 = vpop.f32.mrf.mxu0
        %3770 = vmatprep.mubr.bf16.mxu0 0
        %3771 = vmatmul.mubr.bf16.gmra.mxu0 %v3286
        %v3772 = vpop.f32.mrf.mxu0
        %v3773 = vadd.f32 %v3564, %v3772
        %v3774 = vpop.f32.mrf.mxu0
        %v3775 = vpop.f32.mrf.mxu0
        %v3776 = vadd.f32 %v3567, %v3775
        %v3777 = vpop.f32.mrf.mxu0
        %3778 = vmatprep.mubr.bf16.mxu0 0
        %3779 = vmatmul.mubr.bf16.gmra.mxu0 %v3287
        %v3780 = vpop.f32.mrf.mxu0
        %v3781 = vadd.f32 %v3572, %v3780
        %v3782 = vpop.f32.mrf.mxu0
        %v3783 = vpop.f32.mrf.mxu0
        %v3784 = vadd.f32 %v3575, %v3783
        %v3785 = vpop.f32.mrf.mxu0
        %3786 = vdwg.mxu0
        %v3787 = vld [vmem:[#allocation3 + $0x2] sm:$0xff]
        %v3788 = vld [vmem:[#allocation3 + $0xa] sm:$0xff]
        %v3789 = vld [vmem:[#allocation3 + $0x1a] sm:$0xff]
        %v3790 = vld [vmem:[#allocation3 + $0x22] sm:$0xff]
        %v3791 = vld [vmem:[#allocation3 + $0x32] sm:$0xff]
        %v3792 = vld [vmem:[#allocation3 + $0x3a] sm:$0xff]
        %v3793 = vld [vmem:[#allocation3 + $0x4a] sm:$0xff]
        %v3794 = vld [vmem:[#allocation3 + $0x52] sm:$0xff]
        %v3795 = vld [vmem:[#allocation3 + $0x62] sm:$0xff]
        %v3796 = vld [vmem:[#allocation3 + $0x6a] sm:$0xff]
        %v3797 = vld [vmem:[#allocation3 + $0x7a] sm:$0xff]
        %v3798 = vld [vmem:[#allocation3 + $0x82] sm:$0xff]
        %v3799 = vld [vmem:[#allocation3 + $0x92] sm:$0xff]
        %v3800 = vld [vmem:[#allocation3 + $0x9a] sm:$0xff]
        %v3801 = vld [vmem:[#allocation3 + $0xaa] sm:$0xff]
        %v3802 = vld [vmem:[#allocation3 + $0xb2] sm:$0xff]
        %v3803 = vld [vmem:[#allocation3 + $0xc2] sm:$0xff]
        %v3804 = vld [vmem:[#allocation3 + $0xca] sm:$0xff]
        %v3805 = vld [vmem:[#allocation3 + $0xda] sm:$0xff]
        %v3806 = vld [vmem:[#allocation3 + $0xe2] sm:$0xff]
        %v3807 = vld [vmem:[#allocation3 + $0xf2] sm:$0xff]
        %v3808 = vld [vmem:[#allocation3 + $0xfa] sm:$0xff]
        %v3809 = vld [vmem:[#allocation3 + $0x10a] sm:$0xff]
        %v3810 = vld [vmem:[#allocation3 + $0x112] sm:$0xff]
        %v3811 = vld [vmem:[#allocation3 + $0x122] sm:$0xff]
        %v3812 = vld [vmem:[#allocation3 + $0x12a] sm:$0xff]
        %v3813 = vld [vmem:[#allocation3 + $0x13a] sm:$0xff]
        %v3814 = vld [vmem:[#allocation3 + $0x142] sm:$0xff]
        %v3815 = vld [vmem:[#allocation3 + $0x152] sm:$0xff]
        %v3816 = vld [vmem:[#allocation3 + $0x15a] sm:$0xff]
        %v3817 = vld [vmem:[#allocation3 + $0x16a] sm:$0xff]
        %v3818 = vld [vmem:[#allocation3 + $0x172] sm:$0xff]
        %v3819 = vpack.c.bf16 %v3788, %v3787
        %v3820 = vpack.c.bf16 %v3790, %v3789
        %v3821 = vpack.c.bf16 %v3792, %v3791
        %v3822 = vpack.c.bf16 %v3794, %v3793
        %v3823 = vpack.c.bf16 %v3796, %v3795
        %v3824 = vpack.c.bf16 %v3798, %v3797
        %v3825 = vpack.c.bf16 %v3800, %v3799
        %v3826 = vpack.c.bf16 %v3802, %v3801
        %v3827 = vpack.c.bf16 %v3804, %v3803
        %v3828 = vpack.c.bf16 %v3806, %v3805
        %v3829 = vpack.c.bf16 %v3808, %v3807
        %v3830 = vpack.c.bf16 %v3810, %v3809
        %v3831 = vpack.c.bf16 %v3812, %v3811
        %v3832 = vpack.c.bf16 %v3814, %v3813
        %v3833 = vpack.c.bf16 %v3816, %v3815
        %v3834 = vpack.c.bf16 %v3818, %v3817
        %s3835 = scalar_lea.vmem [#allocation9], 128
        %v3836 = vld [vmem:[%s3835] sm:$0xf]
        %v3837 = vld [vmem:[%s3835 + $0x4] sm:$0xf]
        %v3838 = vld [vmem:[%s3835 + $0x8] sm:$0xf]
        %v3839 = vld [vmem:[%s3835 + $0xc] sm:$0xf]
        %v3840 = vld [vmem:[%s3835 + $0x10] sm:$0xf]
        %v3841 = vld [vmem:[%s3835 + $0x14] sm:$0xf]
        %v3842 = vld [vmem:[%s3835 + $0x18] sm:$0xf]
        %v3843 = vld [vmem:[%s3835 + $0x1c] sm:$0xf]
        %v3844 = vld [vmem:[%s3835 + $0x20] sm:$0xf]
        %v3845 = vld [vmem:[%s3835 + $0x24] sm:$0xf]
        %v3846 = vld [vmem:[%s3835 + $0x28] sm:$0xf]
        %v3847 = vld [vmem:[%s3835 + $0x2c] sm:$0xf]
        %v3848 = vld [vmem:[%s3835 + $0x30] sm:$0xf]
        %v3849 = vld [vmem:[%s3835 + $0x34] sm:$0xf]
        %v3850 = vld [vmem:[%s3835 + $0x38] sm:$0xf]
        %v3851 = vld [vmem:[%s3835 + $0x3c] sm:$0xf]
        %v3868 = vunpack.c.l.b16 %v3836
        %v3869 = vunpack.c.l.b16 %v3837
        %v3870 = vunpack.c.l.b16 %v3838
        %v3871 = vunpack.c.l.b16 %v3839
        %v3872 = vunpack.c.l.b16 %v3840
        %v3873 = vunpack.c.l.b16 %v3841
        %v3874 = vunpack.c.l.b16 %v3842
        %v3875 = vunpack.c.l.b16 %v3843
        %v3876 = vunpack.c.l.b16 %v3844
        %v3877 = vunpack.c.l.b16 %v3845
        %v3878 = vunpack.c.l.b16 %v3846
        %v3879 = vunpack.c.l.b16 %v3847
        %v3880 = vunpack.c.l.b16 %v3848
        %v3881 = vunpack.c.l.b16 %v3849
        %v3882 = vunpack.c.l.b16 %v3850
        %v3883 = vunpack.c.l.b16 %v3851
        %v3884 = vpack.c.b16 %v3869, %v3868
        %v3885 = vpack.c.b16 %v3871, %v3870
        %v3886 = vpack.c.b16 %v3873, %v3872
        %v3887 = vpack.c.b16 %v3875, %v3874
        %v3888 = vpack.c.b16 %v3877, %v3876
        %v3889 = vpack.c.b16 %v3879, %v3878
        %v3890 = vpack.c.b16 %v3881, %v3880
        %v3891 = vpack.c.b16 %v3883, %v3882
        %3900 = vmatprep.subr.bf16.mxu0 0
        %3901 = vmatpush1.bf16.msra.mxu0 %v3891
        %3902 = vmatprep.subr.bf16.mxu0 0
        %3903 = vmatpush1.bf16.msra.mxu0 %v3890
        %3904 = vmatprep.subr.bf16.mxu0 0
        %3905 = vmatpush1.bf16.msra.mxu0 %v3889
        %3906 = vmatprep.subr.bf16.mxu0 0
        %3907 = vmatpush1.bf16.msra.mxu0 %v3888
        %3908 = vmatprep.subr.bf16.mxu0 0
        %3909 = vmatpush1.bf16.msra.mxu0 %v3887
        %3910 = vmatprep.subr.bf16.mxu0 0
        %3911 = vmatpush1.bf16.msra.mxu0 %v3886
        %3912 = vmatprep.subr.bf16.mxu0 0
        %3913 = vmatpush1.bf16.msra.mxu0 %v3885
        %3914 = vmatprep.subr.bf16.mxu0 0
        %3915 = vmatpush1.bf16.msra.mxu0 %v3884
        %3916 = vmatprep.subr.bf16.mxu0 0
        %3917 = vmatpush2.bf16.msra.mxu0 0
        %3918 = vmatprep.subr.bf16.mxu0 0
        %3919 = vmatpush2.bf16.msra.mxu0 0
        %3920 = vmatprep.subr.bf16.mxu0 0
        %3921 = vmatpush2.bf16.msra.mxu0 0
        %3922 = vmatprep.subr.bf16.mxu0 0
        %3923 = vmatpush2.bf16.msra.mxu0 0
        %3924 = vmatprep.subr.bf16.mxu0 0
        %3925 = vmatpush2.bf16.msra.mxu0 0
        %3926 = vmatprep.subr.bf16.mxu0 0
        %3927 = vmatpush2.bf16.msra.mxu0 0
        %3928 = vmatprep.subr.bf16.mxu0 0
        %3929 = vmatpush2.bf16.msra.mxu0 0
        %3930 = vmatprep.subr.bf16.mxu0 0
        %3931 = vmatpush2.bf16.msra.mxu0 0
        %3932 = vmatprep.mubr.bf16.mxu0 0
        %3933 = vmatmul.mubr.bf16.gmra.mxu0 %v3819
        %v3934 = vpop.f32.mrf.mxu0
        %v3935 = vadd.f32 0.0, %v3934
        %v3936 = vpop.f32.mrf.mxu0
        %v3937 = vpop.f32.mrf.mxu0
        %v3938 = vadd.f32 0.0, %v3937
        %v3939 = vpop.f32.mrf.mxu0
        %3940 = vmatprep.mubr.bf16.mxu0 0
        %3941 = vmatmul.mubr.bf16.gmra.mxu0 %v3820
        %v3942 = vpop.f32.mrf.mxu0
        %v3943 = vadd.f32 0.0, %v3942
        %v3944 = vpop.f32.mrf.mxu0
        %v3945 = vpop.f32.mrf.mxu0
        %v3946 = vadd.f32 0.0, %v3945
        %v3947 = vpop.f32.mrf.mxu0
        %3948 = vmatprep.mubr.bf16.mxu0 0
        %3949 = vmatmul.mubr.bf16.gmra.mxu0 %v3821
        %v3950 = vpop.f32.mrf.mxu0
        %v3951 = vadd.f32 0.0, %v3950
        %v3952 = vpop.f32.mrf.mxu0
        %v3953 = vpop.f32.mrf.mxu0
        %v3954 = vadd.f32 0.0, %v3953
        %v3955 = vpop.f32.mrf.mxu0
        %3956 = vmatprep.mubr.bf16.mxu0 0
        %3957 = vmatmul.mubr.bf16.gmra.mxu0 %v3822
        %v3958 = vpop.f32.mrf.mxu0
        %v3959 = vadd.f32 0.0, %v3958
        %v3960 = vpop.f32.mrf.mxu0
        %v3961 = vpop.f32.mrf.mxu0
        %v3962 = vadd.f32 0.0, %v3961
        %v3963 = vpop.f32.mrf.mxu0
        %3964 = vmatprep.mubr.bf16.mxu0 0
        %3965 = vmatmul.mubr.bf16.gmra.mxu0 %v3823
        %v3966 = vpop.f32.mrf.mxu0
        %v3967 = vadd.f32 0.0, %v3966
        %v3968 = vpop.f32.mrf.mxu0
        %v3969 = vpop.f32.mrf.mxu0
        %v3970 = vadd.f32 0.0, %v3969
        %v3971 = vpop.f32.mrf.mxu0
        %3972 = vmatprep.mubr.bf16.mxu0 0
        %3973 = vmatmul.mubr.bf16.gmra.mxu0 %v3824
        %v3974 = vpop.f32.mrf.mxu0
        %v3975 = vadd.f32 0.0, %v3974
        %v3976 = vpop.f32.mrf.mxu0
        %v3977 = vpop.f32.mrf.mxu0
        %v3978 = vadd.f32 0.0, %v3977
        %v3979 = vpop.f32.mrf.mxu0
        %3980 = vmatprep.mubr.bf16.mxu0 0
        %3981 = vmatmul.mubr.bf16.gmra.mxu0 %v3825
        %v3982 = vpop.f32.mrf.mxu0
        %v3983 = vadd.f32 0.0, %v3982
        %v3984 = vpop.f32.mrf.mxu0
        %v3985 = vpop.f32.mrf.mxu0
        %v3986 = vadd.f32 0.0, %v3985
        %v3987 = vpop.f32.mrf.mxu0
        %3988 = vmatprep.mubr.bf16.mxu0 0
        %3989 = vmatmul.mubr.bf16.gmra.mxu0 %v3826
        %v3990 = vpop.f32.mrf.mxu0
        %v3991 = vadd.f32 0.0, %v3990
        %v3992 = vpop.f32.mrf.mxu0
        %v3993 = vpop.f32.mrf.mxu0
        %v3994 = vadd.f32 0.0, %v3993
        %v3995 = vpop.f32.mrf.mxu0
        %3996 = vmatprep.mubr.bf16.mxu0 0
        %3997 = vmatmul.mubr.bf16.gmra.mxu0 %v3827
        %v3998 = vpop.f32.mrf.mxu0
        %v3999 = vadd.f32 0.0, %v3998
        %v4000 = vpop.f32.mrf.mxu0
        %v4001 = vpop.f32.mrf.mxu0
        %v4002 = vadd.f32 0.0, %v4001
        %v4003 = vpop.f32.mrf.mxu0
        %4004 = vmatprep.mubr.bf16.mxu0 0
        %4005 = vmatmul.mubr.bf16.gmra.mxu0 %v3828
        %v4006 = vpop.f32.mrf.mxu0
        %v4007 = vadd.f32 0.0, %v4006
        %v4008 = vpop.f32.mrf.mxu0
        %v4009 = vpop.f32.mrf.mxu0
        %v4010 = vadd.f32 0.0, %v4009
        %v4011 = vpop.f32.mrf.mxu0
        %4012 = vmatprep.mubr.bf16.mxu0 0
        %4013 = vmatmul.mubr.bf16.gmra.mxu0 %v3829
        %v4014 = vpop.f32.mrf.mxu0
        %v4015 = vadd.f32 0.0, %v4014
        %v4016 = vpop.f32.mrf.mxu0
        %v4017 = vpop.f32.mrf.mxu0
        %v4018 = vadd.f32 0.0, %v4017
        %v4019 = vpop.f32.mrf.mxu0
        %4020 = vmatprep.mubr.bf16.mxu0 0
        %4021 = vmatmul.mubr.bf16.gmra.mxu0 %v3830
        %v4022 = vpop.f32.mrf.mxu0
        %v4023 = vadd.f32 0.0, %v4022
        %v4024 = vpop.f32.mrf.mxu0
        %v4025 = vpop.f32.mrf.mxu0
        %v4026 = vadd.f32 0.0, %v4025
        %v4027 = vpop.f32.mrf.mxu0
        %4028 = vmatprep.mubr.bf16.mxu0 0
        %4029 = vmatmul.mubr.bf16.gmra.mxu0 %v3831
        %v4030 = vpop.f32.mrf.mxu0
        %v4031 = vadd.f32 0.0, %v4030
        %v4032 = vpop.f32.mrf.mxu0
        %v4033 = vpop.f32.mrf.mxu0
        %v4034 = vadd.f32 0.0, %v4033
        %v4035 = vpop.f32.mrf.mxu0
        %4036 = vmatprep.mubr.bf16.mxu0 0
        %4037 = vmatmul.mubr.bf16.gmra.mxu0 %v3832
        %v4038 = vpop.f32.mrf.mxu0
        %v4039 = vadd.f32 0.0, %v4038
        %v4040 = vpop.f32.mrf.mxu0
        %v4041 = vpop.f32.mrf.mxu0
        %v4042 = vadd.f32 0.0, %v4041
        %v4043 = vpop.f32.mrf.mxu0
        %4044 = vmatprep.mubr.bf16.mxu0 0
        %4045 = vmatmul.mubr.bf16.gmra.mxu0 %v3833
        %v4046 = vpop.f32.mrf.mxu0
        %v4047 = vadd.f32 0.0, %v4046
        %v4048 = vpop.f32.mrf.mxu0
        %v4049 = vpop.f32.mrf.mxu0
        %v4050 = vadd.f32 0.0, %v4049
        %v4051 = vpop.f32.mrf.mxu0
        %4052 = vmatprep.mubr.bf16.mxu0 0
        %4053 = vmatmul.mubr.bf16.gmra.mxu0 %v3834
        %v4054 = vpop.f32.mrf.mxu0
        %v4055 = vadd.f32 0.0, %v4054
        %v4056 = vpop.f32.mrf.mxu0
        %v4057 = vpop.f32.mrf.mxu0
        %v4058 = vadd.f32 0.0, %v4057
        %v4059 = vpop.f32.mrf.mxu0
        %4060 = vdwg.mxu0
        %v4061 = vadd.f32 %v3661, %v3935
        %v4062 = vadd.f32 %v3664, %v3938
        %v4063 = vadd.f32 %v3669, %v3943
        %v4064 = vadd.f32 %v3672, %v3946
        %v4065 = vadd.f32 %v3677, %v3951
        %v4066 = vadd.f32 %v3680, %v3954
        %v4067 = vadd.f32 %v3685, %v3959
        %v4068 = vadd.f32 %v3688, %v3962
        %v4069 = vadd.f32 %v3693, %v3967
        %v4070 = vadd.f32 %v3696, %v3970
        %v4071 = vadd.f32 %v3701, %v3975
        %v4072 = vadd.f32 %v3704, %v3978
        %v4073 = vadd.f32 %v3709, %v3983
        %v4074 = vadd.f32 %v3712, %v3986
        %v4075 = vadd.f32 %v3717, %v3991
        %v4076 = vadd.f32 %v3720, %v3994
        %v4077 = vadd.f32 %v3725, %v3999
        %v4078 = vadd.f32 %v3728, %v4002
        %v4079 = vadd.f32 %v3733, %v4007
        %v4080 = vadd.f32 %v3736, %v4010
        %v4081 = vadd.f32 %v3741, %v4015
        %v4082 = vadd.f32 %v3744, %v4018
        %v4083 = vadd.f32 %v3749, %v4023
        %v4084 = vadd.f32 %v3752, %v4026
        %v4085 = vadd.f32 %v3757, %v4031
        %v4086 = vadd.f32 %v3760, %v4034
        %v4087 = vadd.f32 %v3765, %v4039
        %v4088 = vadd.f32 %v3768, %v4042
        %v4089 = vadd.f32 %v3773, %v4047
        %v4090 = vadd.f32 %v3776, %v4050
        %v4091 = vadd.f32 %v3781, %v4055
        %v4092 = vadd.f32 %v3784, %v4058
        %v4093 = vld [vmem:[%s3207] sm:$0xff]
        %v4094 = vld [vmem:[%s3207 + $0x8] sm:$0xff]
        %v4095 = vld [vmem:[%s3207 + $0x18] sm:$0xff]
        %v4096 = vld [vmem:[%s3207 + $0x20] sm:$0xff]
        %v4097 = vld [vmem:[%s3207 + $0x30] sm:$0xff]
        %v4098 = vld [vmem:[%s3207 + $0x38] sm:$0xff]
        %v4099 = vld [vmem:[%s3207 + $0x48] sm:$0xff]
        %v4100 = vld [vmem:[%s3207 + $0x50] sm:$0xff]
        %v4101 = vld [vmem:[%s3207 + $0x60] sm:$0xff]
        %v4102 = vld [vmem:[%s3207 + $0x68] sm:$0xff]
        %v4103 = vld [vmem:[%s3207 + $0x78] sm:$0xff]
        %v4104 = vld [vmem:[%s3207 + $0x80] sm:$0xff]
        %v4105 = vld [vmem:[%s3207 + $0x90] sm:$0xff]
        %v4106 = vld [vmem:[%s3207 + $0x98] sm:$0xff]
        %v4107 = vld [vmem:[%s3207 + $0xa8] sm:$0xff]
        %v4108 = vld [vmem:[%s3207 + $0xb0] sm:$0xff]
        %v4109 = vld [vmem:[%s3207 + $0xc0] sm:$0xff]
        %v4110 = vld [vmem:[%s3207 + $0xc8] sm:$0xff]
        %v4111 = vld [vmem:[%s3207 + $0xd8] sm:$0xff]
        %v4112 = vld [vmem:[%s3207 + $0xe0] sm:$0xff]
        %v4113 = vld [vmem:[%s3207 + $0xf0] sm:$0xff]
        %v4114 = vld [vmem:[%s3207 + $0xf8] sm:$0xff]
        %v4115 = vld [vmem:[%s3207 + $0x108] sm:$0xff]
        %v4116 = vld [vmem:[%s3207 + $0x110] sm:$0xff]
        %v4117 = vld [vmem:[%s3207 + $0x120] sm:$0xff]
        %v4118 = vld [vmem:[%s3207 + $0x128] sm:$0xff]
        %v4119 = vld [vmem:[%s3207 + $0x138] sm:$0xff]
        %v4120 = vld [vmem:[%s3207 + $0x140] sm:$0xff]
        %v4121 = vld [vmem:[%s3207 + $0x150] sm:$0xff]
        %v4122 = vld [vmem:[%s3207 + $0x158] sm:$0xff]
        %v4123 = vld [vmem:[%s3207 + $0x168] sm:$0xff]
        %v4124 = vld [vmem:[%s3207 + $0x170] sm:$0xff]
        %v4125 = vpack.c.bf16 %v4094, %v4093
        %v4126 = vpack.c.bf16 %v4096, %v4095
        %v4127 = vpack.c.bf16 %v4098, %v4097
        %v4128 = vpack.c.bf16 %v4100, %v4099
        %v4129 = vpack.c.bf16 %v4102, %v4101
        %v4130 = vpack.c.bf16 %v4104, %v4103
        %v4131 = vpack.c.bf16 %v4106, %v4105
        %v4132 = vpack.c.bf16 %v4108, %v4107
        %v4133 = vpack.c.bf16 %v4110, %v4109
        %v4134 = vpack.c.bf16 %v4112, %v4111
        %v4135 = vpack.c.bf16 %v4114, %v4113
        %v4136 = vpack.c.bf16 %v4116, %v4115
        %v4137 = vpack.c.bf16 %v4118, %v4117
        %v4138 = vpack.c.bf16 %v4120, %v4119
        %v4139 = vpack.c.bf16 %v4122, %v4121
        %v4140 = vpack.c.bf16 %v4124, %v4123
        %s4141 = scalar_lea.vmem [#allocation9], 192
        %v4142 = vld [vmem:[%s4141] sm:$0xf]
        %v4143 = vld [vmem:[%s4141 + $0x4] sm:$0xf]
        %v4144 = vld [vmem:[%s4141 + $0x8] sm:$0xf]
        %v4145 = vld [vmem:[%s4141 + $0xc] sm:$0xf]
        %v4146 = vld [vmem:[%s4141 + $0x10] sm:$0xf]
        %v4147 = vld [vmem:[%s4141 + $0x14] sm:$0xf]
        %v4148 = vld [vmem:[%s4141 + $0x18] sm:$0xf]
        %v4149 = vld [vmem:[%s4141 + $0x1c] sm:$0xf]
        %v4150 = vld [vmem:[%s4141 + $0x20] sm:$0xf]
        %v4151 = vld [vmem:[%s4141 + $0x24] sm:$0xf]
        %v4152 = vld [vmem:[%s4141 + $0x28] sm:$0xf]
        %v4153 = vld [vmem:[%s4141 + $0x2c] sm:$0xf]
        %v4154 = vld [vmem:[%s4141 + $0x30] sm:$0xf]
        %v4155 = vld [vmem:[%s4141 + $0x34] sm:$0xf]
        %v4156 = vld [vmem:[%s4141 + $0x38] sm:$0xf]
        %v4157 = vld [vmem:[%s4141 + $0x3c] sm:$0xf]
        %v4174 = vunpack.c.l.b16 %v4142
        %v4175 = vunpack.c.l.b16 %v4143
        %v4176 = vunpack.c.l.b16 %v4144
        %v4177 = vunpack.c.l.b16 %v4145
        %v4178 = vunpack.c.l.b16 %v4146
        %v4179 = vunpack.c.l.b16 %v4147
        %v4180 = vunpack.c.l.b16 %v4148
        %v4181 = vunpack.c.l.b16 %v4149
        %v4182 = vunpack.c.l.b16 %v4150
        %v4183 = vunpack.c.l.b16 %v4151
        %v4184 = vunpack.c.l.b16 %v4152
        %v4185 = vunpack.c.l.b16 %v4153
        %v4186 = vunpack.c.l.b16 %v4154
        %v4187 = vunpack.c.l.b16 %v4155
        %v4188 = vunpack.c.l.b16 %v4156
        %v4189 = vunpack.c.l.b16 %v4157
        %v4190 = vpack.c.b16 %v4175, %v4174
        %v4191 = vpack.c.b16 %v4177, %v4176
        %v4192 = vpack.c.b16 %v4179, %v4178
        %v4193 = vpack.c.b16 %v4181, %v4180
        %v4194 = vpack.c.b16 %v4183, %v4182
        %v4195 = vpack.c.b16 %v4185, %v4184
        %v4196 = vpack.c.b16 %v4187, %v4186
        %v4197 = vpack.c.b16 %v4189, %v4188
        %4206 = vmatprep.subr.bf16.mxu0 0
        %4207 = vmatpush1.bf16.msra.mxu0 %v4197
        %4208 = vmatprep.subr.bf16.mxu0 0
        %4209 = vmatpush1.bf16.msra.mxu0 %v4196
        %4210 = vmatprep.subr.bf16.mxu0 0
        %4211 = vmatpush1.bf16.msra.mxu0 %v4195
        %4212 = vmatprep.subr.bf16.mxu0 0
        %4213 = vmatpush1.bf16.msra.mxu0 %v4194
        %4214 = vmatprep.subr.bf16.mxu0 0
        %4215 = vmatpush1.bf16.msra.mxu0 %v4193
        %4216 = vmatprep.subr.bf16.mxu0 0
        %4217 = vmatpush1.bf16.msra.mxu0 %v4192
        %4218 = vmatprep.subr.bf16.mxu0 0
        %4219 = vmatpush1.bf16.msra.mxu0 %v4191
        %4220 = vmatprep.subr.bf16.mxu0 0
        %4221 = vmatpush1.bf16.msra.mxu0 %v4190
        %4222 = vmatprep.subr.bf16.mxu0 0
        %4223 = vmatpush2.bf16.msra.mxu0 0
        %4224 = vmatprep.subr.bf16.mxu0 0
        %4225 = vmatpush2.bf16.msra.mxu0 0
        %4226 = vmatprep.subr.bf16.mxu0 0
        %4227 = vmatpush2.bf16.msra.mxu0 0
        %4228 = vmatprep.subr.bf16.mxu0 0
        %4229 = vmatpush2.bf16.msra.mxu0 0
        %4230 = vmatprep.subr.bf16.mxu0 0
        %4231 = vmatpush2.bf16.msra.mxu0 0
        %4232 = vmatprep.subr.bf16.mxu0 0
        %4233 = vmatpush2.bf16.msra.mxu0 0
        %4234 = vmatprep.subr.bf16.mxu0 0
        %4235 = vmatpush2.bf16.msra.mxu0 0
        %4236 = vmatprep.subr.bf16.mxu0 0
        %4237 = vmatpush2.bf16.msra.mxu0 0
        %4238 = vmatprep.mubr.bf16.mxu0 0
        %4239 = vmatmul.mubr.bf16.gmra.mxu0 %v4125
        %v4240 = vpop.f32.mrf.mxu0
        %v4241 = vadd.f32 0.0, %v4240
        %v4242 = vpop.f32.mrf.mxu0
        %v4243 = vpop.f32.mrf.mxu0
        %v4244 = vadd.f32 0.0, %v4243
        %v4245 = vpop.f32.mrf.mxu0
        %4246 = vmatprep.mubr.bf16.mxu0 0
        %4247 = vmatmul.mubr.bf16.gmra.mxu0 %v4126
        %v4248 = vpop.f32.mrf.mxu0
        %v4249 = vadd.f32 0.0, %v4248
        %v4250 = vpop.f32.mrf.mxu0
        %v4251 = vpop.f32.mrf.mxu0
        %v4252 = vadd.f32 0.0, %v4251
        %v4253 = vpop.f32.mrf.mxu0
        %4254 = vmatprep.mubr.bf16.mxu0 0
        %4255 = vmatmul.mubr.bf16.gmra.mxu0 %v4127
        %v4256 = vpop.f32.mrf.mxu0
        %v4257 = vadd.f32 0.0, %v4256
        %v4258 = vpop.f32.mrf.mxu0
        %v4259 = vpop.f32.mrf.mxu0
        %v4260 = vadd.f32 0.0, %v4259
        %v4261 = vpop.f32.mrf.mxu0
        %4262 = vmatprep.mubr.bf16.mxu0 0
        %4263 = vmatmul.mubr.bf16.gmra.mxu0 %v4128
        %v4264 = vpop.f32.mrf.mxu0
        %v4265 = vadd.f32 0.0, %v4264
        %v4266 = vpop.f32.mrf.mxu0
        %v4267 = vpop.f32.mrf.mxu0
        %v4268 = vadd.f32 0.0, %v4267
        %v4269 = vpop.f32.mrf.mxu0
        %4270 = vmatprep.mubr.bf16.mxu0 0
        %4271 = vmatmul.mubr.bf16.gmra.mxu0 %v4129
        %v4272 = vpop.f32.mrf.mxu0
        %v4273 = vadd.f32 0.0, %v4272
        %v4274 = vpop.f32.mrf.mxu0
        %v4275 = vpop.f32.mrf.mxu0
        %v4276 = vadd.f32 0.0, %v4275
        %v4277 = vpop.f32.mrf.mxu0
        %4278 = vmatprep.mubr.bf16.mxu0 0
        %4279 = vmatmul.mubr.bf16.gmra.mxu0 %v4130
        %v4280 = vpop.f32.mrf.mxu0
        %v4281 = vadd.f32 0.0, %v4280
        %v4282 = vpop.f32.mrf.mxu0
        %v4283 = vpop.f32.mrf.mxu0
        %v4284 = vadd.f32 0.0, %v4283
        %v4285 = vpop.f32.mrf.mxu0
        %4286 = vmatprep.mubr.bf16.mxu0 0
        %4287 = vmatmul.mubr.bf16.gmra.mxu0 %v4131
        %v4288 = vpop.f32.mrf.mxu0
        %v4289 = vadd.f32 0.0, %v4288
        %v4290 = vpop.f32.mrf.mxu0
        %v4291 = vpop.f32.mrf.mxu0
        %v4292 = vadd.f32 0.0, %v4291
        %v4293 = vpop.f32.mrf.mxu0
        %4294 = vmatprep.mubr.bf16.mxu0 0
        %4295 = vmatmul.mubr.bf16.gmra.mxu0 %v4132
        %v4296 = vpop.f32.mrf.mxu0
        %v4297 = vadd.f32 0.0, %v4296
        %v4298 = vpop.f32.mrf.mxu0
        %v4299 = vpop.f32.mrf.mxu0
        %v4300 = vadd.f32 0.0, %v4299
        %v4301 = vpop.f32.mrf.mxu0
        %4302 = vmatprep.mubr.bf16.mxu0 0
        %4303 = vmatmul.mubr.bf16.gmra.mxu0 %v4133
        %v4304 = vpop.f32.mrf.mxu0
        %v4305 = vadd.f32 0.0, %v4304
        %v4306 = vpop.f32.mrf.mxu0
        %v4307 = vpop.f32.mrf.mxu0
        %v4308 = vadd.f32 0.0, %v4307
        %v4309 = vpop.f32.mrf.mxu0
        %4310 = vmatprep.mubr.bf16.mxu0 0
        %4311 = vmatmul.mubr.bf16.gmra.mxu0 %v4134
        %v4312 = vpop.f32.mrf.mxu0
        %v4313 = vadd.f32 0.0, %v4312
        %v4314 = vpop.f32.mrf.mxu0
        %v4315 = vpop.f32.mrf.mxu0
        %v4316 = vadd.f32 0.0, %v4315
        %v4317 = vpop.f32.mrf.mxu0
        %4318 = vmatprep.mubr.bf16.mxu0 0
        %4319 = vmatmul.mubr.bf16.gmra.mxu0 %v4135
        %v4320 = vpop.f32.mrf.mxu0
        %v4321 = vadd.f32 0.0, %v4320
        %v4322 = vpop.f32.mrf.mxu0
        %v4323 = vpop.f32.mrf.mxu0
        %v4324 = vadd.f32 0.0, %v4323
        %v4325 = vpop.f32.mrf.mxu0
        %4326 = vmatprep.mubr.bf16.mxu0 0
        %4327 = vmatmul.mubr.bf16.gmra.mxu0 %v4136
        %v4328 = vpop.f32.mrf.mxu0
        %v4329 = vadd.f32 0.0, %v4328
        %v4330 = vpop.f32.mrf.mxu0
        %v4331 = vpop.f32.mrf.mxu0
        %v4332 = vadd.f32 0.0, %v4331
        %v4333 = vpop.f32.mrf.mxu0
        %4334 = vmatprep.mubr.bf16.mxu0 0
        %4335 = vmatmul.mubr.bf16.gmra.mxu0 %v4137
        %v4336 = vpop.f32.mrf.mxu0
        %v4337 = vadd.f32 0.0, %v4336
        %v4338 = vpop.f32.mrf.mxu0
        %v4339 = vpop.f32.mrf.mxu0
        %v4340 = vadd.f32 0.0, %v4339
        %v4341 = vpop.f32.mrf.mxu0
        %4342 = vmatprep.mubr.bf16.mxu0 0
        %4343 = vmatmul.mubr.bf16.gmra.mxu0 %v4138
        %v4344 = vpop.f32.mrf.mxu0
        %v4345 = vadd.f32 0.0, %v4344
        %v4346 = vpop.f32.mrf.mxu0
        %v4347 = vpop.f32.mrf.mxu0
        %v4348 = vadd.f32 0.0, %v4347
        %v4349 = vpop.f32.mrf.mxu0
        %4350 = vmatprep.mubr.bf16.mxu0 0
        %4351 = vmatmul.mubr.bf16.gmra.mxu0 %v4139
        %v4352 = vpop.f32.mrf.mxu0
        %v4353 = vadd.f32 0.0, %v4352
        %v4354 = vpop.f32.mrf.mxu0
        %v4355 = vpop.f32.mrf.mxu0
        %v4356 = vadd.f32 0.0, %v4355
        %v4357 = vpop.f32.mrf.mxu0
        %4358 = vmatprep.mubr.bf16.mxu0 0
        %4359 = vmatmul.mubr.bf16.gmra.mxu0 %v4140
        %v4360 = vpop.f32.mrf.mxu0
        %v4361 = vadd.f32 0.0, %v4360
        %v4362 = vpop.f32.mrf.mxu0
        %v4363 = vpop.f32.mrf.mxu0
        %v4364 = vadd.f32 0.0, %v4363
        %v4365 = vpop.f32.mrf.mxu0
        %4366 = vdwg.mxu0
        %v4367 = vadd.f32 %v4061, %v4241
        %v4368 = vadd.f32 %v4062, %v4244
        %v4369 = vadd.f32 %v4063, %v4249
        %v4370 = vadd.f32 %v4064, %v4252
        %v4371 = vadd.f32 %v4065, %v4257
        %v4372 = vadd.f32 %v4066, %v4260
        %v4373 = vadd.f32 %v4067, %v4265
        %v4374 = vadd.f32 %v4068, %v4268
        %v4375 = vadd.f32 %v4069, %v4273
        %v4376 = vadd.f32 %v4070, %v4276
        %v4377 = vadd.f32 %v4071, %v4281
        %v4378 = vadd.f32 %v4072, %v4284
        %v4379 = vadd.f32 %v4073, %v4289
        %v4380 = vadd.f32 %v4074, %v4292
        %v4381 = vadd.f32 %v4075, %v4297
        %v4382 = vadd.f32 %v4076, %v4300
        %v4383 = vadd.f32 %v4077, %v4305
        %v4384 = vadd.f32 %v4078, %v4308
        %v4385 = vadd.f32 %v4079, %v4313
        %v4386 = vadd.f32 %v4080, %v4316
        %v4387 = vadd.f32 %v4081, %v4321
        %v4388 = vadd.f32 %v4082, %v4324
        %v4389 = vadd.f32 %v4083, %v4329
        %v4390 = vadd.f32 %v4084, %v4332
        %v4391 = vadd.f32 %v4085, %v4337
        %v4392 = vadd.f32 %v4086, %v4340
        %v4393 = vadd.f32 %v4087, %v4345
        %v4394 = vadd.f32 %v4088, %v4348
        %v4395 = vadd.f32 %v4089, %v4353
        %v4396 = vadd.f32 %v4090, %v4356
        %v4397 = vadd.f32 %v4091, %v4361
        %v4398 = vadd.f32 %v4092, %v4364
        %v4399 = vld [vmem:[%s3207 + $0x1] sm:$0xff]
        %v4400 = vld [vmem:[%s3207 + $0x9] sm:$0xff]
        %v4401 = vld [vmem:[%s3207 + $0x19] sm:$0xff]
        %v4402 = vld [vmem:[%s3207 + $0x21] sm:$0xff]
        %v4403 = vld [vmem:[%s3207 + $0x31] sm:$0xff]
        %v4404 = vld [vmem:[%s3207 + $0x39] sm:$0xff]
        %v4405 = vld [vmem:[%s3207 + $0x49] sm:$0xff]
        %v4406 = vld [vmem:[%s3207 + $0x51] sm:$0xff]
        %v4407 = vld [vmem:[%s3207 + $0x61] sm:$0xff]
        %v4408 = vld [vmem:[%s3207 + $0x69] sm:$0xff]
        %v4409 = vld [vmem:[%s3207 + $0x79] sm:$0xff]
        %v4410 = vld [vmem:[%s3207 + $0x81] sm:$0xff]
        %v4411 = vld [vmem:[%s3207 + $0x91] sm:$0xff]
        %v4412 = vld [vmem:[%s3207 + $0x99] sm:$0xff]
        %v4413 = vld [vmem:[%s3207 + $0xa9] sm:$0xff]
        %v4414 = vld [vmem:[%s3207 + $0xb1] sm:$0xff]
        %v4415 = vld [vmem:[%s3207 + $0xc1] sm:$0xff]
        %v4416 = vld [vmem:[%s3207 + $0xc9] sm:$0xff]
        %v4417 = vld [vmem:[%s3207 + $0xd9] sm:$0xff]
        %v4418 = vld [vmem:[%s3207 + $0xe1] sm:$0xff]
        %v4419 = vld [vmem:[%s3207 + $0xf1] sm:$0xff]
        %v4420 = vld [vmem:[%s3207 + $0xf9] sm:$0xff]
        %v4421 = vld [vmem:[%s3207 + $0x109] sm:$0xff]
        %v4422 = vld [vmem:[%s3207 + $0x111] sm:$0xff]
        %v4423 = vld [vmem:[%s3207 + $0x121] sm:$0xff]
        %v4424 = vld [vmem:[%s3207 + $0x129] sm:$0xff]
        %v4425 = vld [vmem:[%s3207 + $0x139] sm:$0xff]
        %v4426 = vld [vmem:[%s3207 + $0x141] sm:$0xff]
        %v4427 = vld [vmem:[%s3207 + $0x151] sm:$0xff]
        %v4428 = vld [vmem:[%s3207 + $0x159] sm:$0xff]
        %v4429 = vld [vmem:[%s3207 + $0x169] sm:$0xff]
        %v4430 = vld [vmem:[%s3207 + $0x171] sm:$0xff]
        %v4431 = vpack.c.bf16 %v4400, %v4399
        %v4432 = vpack.c.bf16 %v4402, %v4401
        %v4433 = vpack.c.bf16 %v4404, %v4403
        %v4434 = vpack.c.bf16 %v4406, %v4405
        %v4435 = vpack.c.bf16 %v4408, %v4407
        %v4436 = vpack.c.bf16 %v4410, %v4409
        %v4437 = vpack.c.bf16 %v4412, %v4411
        %v4438 = vpack.c.bf16 %v4414, %v4413
        %v4439 = vpack.c.bf16 %v4416, %v4415
        %v4440 = vpack.c.bf16 %v4418, %v4417
        %v4441 = vpack.c.bf16 %v4420, %v4419
        %v4442 = vpack.c.bf16 %v4422, %v4421
        %v4443 = vpack.c.bf16 %v4424, %v4423
        %v4444 = vpack.c.bf16 %v4426, %v4425
        %v4445 = vpack.c.bf16 %v4428, %v4427
        %v4446 = vpack.c.bf16 %v4430, %v4429
        %s4447 = scalar_lea.vmem [#allocation9], 256
        %v4448 = vld [vmem:[%s4447] sm:$0xf]
        %v4449 = vld [vmem:[%s4447 + $0x4] sm:$0xf]
        %v4450 = vld [vmem:[%s4447 + $0x8] sm:$0xf]
        %v4451 = vld [vmem:[%s4447 + $0xc] sm:$0xf]
        %v4452 = vld [vmem:[%s4447 + $0x10] sm:$0xf]
        %v4453 = vld [vmem:[%s4447 + $0x14] sm:$0xf]
        %v4454 = vld [vmem:[%s4447 + $0x18] sm:$0xf]
        %v4455 = vld [vmem:[%s4447 + $0x1c] sm:$0xf]
        %v4456 = vld [vmem:[%s4447 + $0x20] sm:$0xf]
        %v4457 = vld [vmem:[%s4447 + $0x24] sm:$0xf]
        %v4458 = vld [vmem:[%s4447 + $0x28] sm:$0xf]
        %v4459 = vld [vmem:[%s4447 + $0x2c] sm:$0xf]
        %v4460 = vld [vmem:[%s4447 + $0x30] sm:$0xf]
        %v4461 = vld [vmem:[%s4447 + $0x34] sm:$0xf]
        %v4462 = vld [vmem:[%s4447 + $0x38] sm:$0xf]
        %v4463 = vld [vmem:[%s4447 + $0x3c] sm:$0xf]
        %v4480 = vunpack.c.l.b16 %v4448
        %v4481 = vunpack.c.l.b16 %v4449
        %v4482 = vunpack.c.l.b16 %v4450
        %v4483 = vunpack.c.l.b16 %v4451
        %v4484 = vunpack.c.l.b16 %v4452
        %v4485 = vunpack.c.l.b16 %v4453
        %v4486 = vunpack.c.l.b16 %v4454
        %v4487 = vunpack.c.l.b16 %v4455
        %v4488 = vunpack.c.l.b16 %v4456
        %v4489 = vunpack.c.l.b16 %v4457
        %v4490 = vunpack.c.l.b16 %v4458
        %v4491 = vunpack.c.l.b16 %v4459
        %v4492 = vunpack.c.l.b16 %v4460
        %v4493 = vunpack.c.l.b16 %v4461
        %v4494 = vunpack.c.l.b16 %v4462
        %v4495 = vunpack.c.l.b16 %v4463
        %v4496 = vpack.c.b16 %v4481, %v4480
        %v4497 = vpack.c.b16 %v4483, %v4482
        %v4498 = vpack.c.b16 %v4485, %v4484
        %v4499 = vpack.c.b16 %v4487, %v4486
        %v4500 = vpack.c.b16 %v4489, %v4488
        %v4501 = vpack.c.b16 %v4491, %v4490
        %v4502 = vpack.c.b16 %v4493, %v4492
        %v4503 = vpack.c.b16 %v4495, %v4494
        %4512 = vmatprep.subr.bf16.mxu0 0
        %4513 = vmatpush1.bf16.msra.mxu0 %v4503
        %4514 = vmatprep.subr.bf16.mxu0 0
        %4515 = vmatpush1.bf16.msra.mxu0 %v4502
        %4516 = vmatprep.subr.bf16.mxu0 0
        %4517 = vmatpush1.bf16.msra.mxu0 %v4501
        %4518 = vmatprep.subr.bf16.mxu0 0
        %4519 = vmatpush1.bf16.msra.mxu0 %v4500
        %4520 = vmatprep.subr.bf16.mxu0 0
        %4521 = vmatpush1.bf16.msra.mxu0 %v4499
        %4522 = vmatprep.subr.bf16.mxu0 0
        %4523 = vmatpush1.bf16.msra.mxu0 %v4498
        %4524 = vmatprep.subr.bf16.mxu0 0
        %4525 = vmatpush1.bf16.msra.mxu0 %v4497
        %4526 = vmatprep.subr.bf16.mxu0 0
        %4527 = vmatpush1.bf16.msra.mxu0 %v4496
        %4528 = vmatprep.subr.bf16.mxu0 0
        %4529 = vmatpush2.bf16.msra.mxu0 0
        %4530 = vmatprep.subr.bf16.mxu0 0
        %4531 = vmatpush2.bf16.msra.mxu0 0
        %4532 = vmatprep.subr.bf16.mxu0 0
        %4533 = vmatpush2.bf16.msra.mxu0 0
        %4534 = vmatprep.subr.bf16.mxu0 0
        %4535 = vmatpush2.bf16.msra.mxu0 0
        %4536 = vmatprep.subr.bf16.mxu0 0
        %4537 = vmatpush2.bf16.msra.mxu0 0
        %4538 = vmatprep.subr.bf16.mxu0 0
        %4539 = vmatpush2.bf16.msra.mxu0 0
        %4540 = vmatprep.subr.bf16.mxu0 0
        %4541 = vmatpush2.bf16.msra.mxu0 0
        %4542 = vmatprep.subr.bf16.mxu0 0
        %4543 = vmatpush2.bf16.msra.mxu0 0
        %4544 = vmatprep.mubr.bf16.mxu0 0
        %4545 = vmatmul.mubr.bf16.gmra.mxu0 %v4431
        %v4546 = vpop.f32.mrf.mxu0
        %v4547 = vadd.f32 0.0, %v4546
        %v4548 = vpop.f32.mrf.mxu0
        %v4549 = vpop.f32.mrf.mxu0
        %v4550 = vadd.f32 0.0, %v4549
        %v4551 = vpop.f32.mrf.mxu0
        %4552 = vmatprep.mubr.bf16.mxu0 0
        %4553 = vmatmul.mubr.bf16.gmra.mxu0 %v4432
        %v4554 = vpop.f32.mrf.mxu0
        %v4555 = vadd.f32 0.0, %v4554
        %v4556 = vpop.f32.mrf.mxu0
        %v4557 = vpop.f32.mrf.mxu0
        %v4558 = vadd.f32 0.0, %v4557
        %v4559 = vpop.f32.mrf.mxu0
        %4560 = vmatprep.mubr.bf16.mxu0 0
        %4561 = vmatmul.mubr.bf16.gmra.mxu0 %v4433
        %v4562 = vpop.f32.mrf.mxu0
        %v4563 = vadd.f32 0.0, %v4562
        %v4564 = vpop.f32.mrf.mxu0
        %v4565 = vpop.f32.mrf.mxu0
        %v4566 = vadd.f32 0.0, %v4565
        %v4567 = vpop.f32.mrf.mxu0
        %4568 = vmatprep.mubr.bf16.mxu0 0
        %4569 = vmatmul.mubr.bf16.gmra.mxu0 %v4434
        %v4570 = vpop.f32.mrf.mxu0
        %v4571 = vadd.f32 0.0, %v4570
        %v4572 = vpop.f32.mrf.mxu0
        %v4573 = vpop.f32.mrf.mxu0
        %v4574 = vadd.f32 0.0, %v4573
        %v4575 = vpop.f32.mrf.mxu0
        %4576 = vmatprep.mubr.bf16.mxu0 0
        %4577 = vmatmul.mubr.bf16.gmra.mxu0 %v4435
        %v4578 = vpop.f32.mrf.mxu0
        %v4579 = vadd.f32 0.0, %v4578
        %v4580 = vpop.f32.mrf.mxu0
        %v4581 = vpop.f32.mrf.mxu0
        %v4582 = vadd.f32 0.0, %v4581
        %v4583 = vpop.f32.mrf.mxu0
        %4584 = vmatprep.mubr.bf16.mxu0 0
        %4585 = vmatmul.mubr.bf16.gmra.mxu0 %v4436
        %v4586 = vpop.f32.mrf.mxu0
        %v4587 = vadd.f32 0.0, %v4586
        %v4588 = vpop.f32.mrf.mxu0
        %v4589 = vpop.f32.mrf.mxu0
        %v4590 = vadd.f32 0.0, %v4589
        %v4591 = vpop.f32.mrf.mxu0
        %4592 = vmatprep.mubr.bf16.mxu0 0
        %4593 = vmatmul.mubr.bf16.gmra.mxu0 %v4437
        %v4594 = vpop.f32.mrf.mxu0
        %v4595 = vadd.f32 0.0, %v4594
        %v4596 = vpop.f32.mrf.mxu0
        %v4597 = vpop.f32.mrf.mxu0
        %v4598 = vadd.f32 0.0, %v4597
        %v4599 = vpop.f32.mrf.mxu0
        %4600 = vmatprep.mubr.bf16.mxu0 0
        %4601 = vmatmul.mubr.bf16.gmra.mxu0 %v4438
        %v4602 = vpop.f32.mrf.mxu0
        %v4603 = vadd.f32 0.0, %v4602
        %v4604 = vpop.f32.mrf.mxu0
        %v4605 = vpop.f32.mrf.mxu0
        %v4606 = vadd.f32 0.0, %v4605
        %v4607 = vpop.f32.mrf.mxu0
        %4608 = vmatprep.mubr.bf16.mxu0 0
        %4609 = vmatmul.mubr.bf16.gmra.mxu0 %v4439
        %v4610 = vpop.f32.mrf.mxu0
        %v4611 = vadd.f32 0.0, %v4610
        %v4612 = vpop.f32.mrf.mxu0
        %v4613 = vpop.f32.mrf.mxu0
        %v4614 = vadd.f32 0.0, %v4613
        %v4615 = vpop.f32.mrf.mxu0
        %4616 = vmatprep.mubr.bf16.mxu0 0
        %4617 = vmatmul.mubr.bf16.gmra.mxu0 %v4440
        %v4618 = vpop.f32.mrf.mxu0
        %v4619 = vadd.f32 0.0, %v4618
        %v4620 = vpop.f32.mrf.mxu0
        %v4621 = vpop.f32.mrf.mxu0
        %v4622 = vadd.f32 0.0, %v4621
        %v4623 = vpop.f32.mrf.mxu0
        %4624 = vmatprep.mubr.bf16.mxu0 0
        %4625 = vmatmul.mubr.bf16.gmra.mxu0 %v4441
        %v4626 = vpop.f32.mrf.mxu0
        %v4627 = vadd.f32 0.0, %v4626
        %v4628 = vpop.f32.mrf.mxu0
        %v4629 = vpop.f32.mrf.mxu0
        %v4630 = vadd.f32 0.0, %v4629
        %v4631 = vpop.f32.mrf.mxu0
        %4632 = vmatprep.mubr.bf16.mxu0 0
        %4633 = vmatmul.mubr.bf16.gmra.mxu0 %v4442
        %v4634 = vpop.f32.mrf.mxu0
        %v4635 = vadd.f32 0.0, %v4634
        %v4636 = vpop.f32.mrf.mxu0
        %v4637 = vpop.f32.mrf.mxu0
        %v4638 = vadd.f32 0.0, %v4637
        %v4639 = vpop.f32.mrf.mxu0
        %4640 = vmatprep.mubr.bf16.mxu0 0
        %4641 = vmatmul.mubr.bf16.gmra.mxu0 %v4443
        %v4642 = vpop.f32.mrf.mxu0
        %v4643 = vadd.f32 0.0, %v4642
        %v4644 = vpop.f32.mrf.mxu0
        %v4645 = vpop.f32.mrf.mxu0
        %v4646 = vadd.f32 0.0, %v4645
        %v4647 = vpop.f32.mrf.mxu0
        %4648 = vmatprep.mubr.bf16.mxu0 0
        %4649 = vmatmul.mubr.bf16.gmra.mxu0 %v4444
        %v4650 = vpop.f32.mrf.mxu0
        %v4651 = vadd.f32 0.0, %v4650
        %v4652 = vpop.f32.mrf.mxu0
        %v4653 = vpop.f32.mrf.mxu0
        %v4654 = vadd.f32 0.0, %v4653
        %v4655 = vpop.f32.mrf.mxu0
        %4656 = vmatprep.mubr.bf16.mxu0 0
        %4657 = vmatmul.mubr.bf16.gmra.mxu0 %v4445
        %v4658 = vpop.f32.mrf.mxu0
        %v4659 = vadd.f32 0.0, %v4658
        %v4660 = vpop.f32.mrf.mxu0
        %v4661 = vpop.f32.mrf.mxu0
        %v4662 = vadd.f32 0.0, %v4661
        %v4663 = vpop.f32.mrf.mxu0
        %4664 = vmatprep.mubr.bf16.mxu0 0
        %4665 = vmatmul.mubr.bf16.gmra.mxu0 %v4446
        %v4666 = vpop.f32.mrf.mxu0
        %v4667 = vadd.f32 0.0, %v4666
        %v4668 = vpop.f32.mrf.mxu0
        %v4669 = vpop.f32.mrf.mxu0
        %v4670 = vadd.f32 0.0, %v4669
        %v4671 = vpop.f32.mrf.mxu0
        %4672 = vdwg.mxu0
        %v4673 = vadd.f32 %v4367, %v4547
        %v4674 = vadd.f32 %v4368, %v4550
        %v4675 = vadd.f32 %v4369, %v4555
        %v4676 = vadd.f32 %v4370, %v4558
        %v4677 = vadd.f32 %v4371, %v4563
        %v4678 = vadd.f32 %v4372, %v4566
        %v4679 = vadd.f32 %v4373, %v4571
        %v4680 = vadd.f32 %v4374, %v4574
        %v4681 = vadd.f32 %v4375, %v4579
        %v4682 = vadd.f32 %v4376, %v4582
        %v4683 = vadd.f32 %v4377, %v4587
        %v4684 = vadd.f32 %v4378, %v4590
        %v4685 = vadd.f32 %v4379, %v4595
        %v4686 = vadd.f32 %v4380, %v4598
        %v4687 = vadd.f32 %v4381, %v4603
        %v4688 = vadd.f32 %v4382, %v4606
        %v4689 = vadd.f32 %v4383, %v4611
        %v4690 = vadd.f32 %v4384, %v4614
        %v4691 = vadd.f32 %v4385, %v4619
        %v4692 = vadd.f32 %v4386, %v4622
        %v4693 = vadd.f32 %v4387, %v4627
        %v4694 = vadd.f32 %v4388, %v4630
        %v4695 = vadd.f32 %v4389, %v4635
        %v4696 = vadd.f32 %v4390, %v4638
        %v4697 = vadd.f32 %v4391, %v4643
        %v4698 = vadd.f32 %v4392, %v4646
        %v4699 = vadd.f32 %v4393, %v4651
        %v4700 = vadd.f32 %v4394, %v4654
        %v4701 = vadd.f32 %v4395, %v4659
        %v4702 = vadd.f32 %v4396, %v4662
        %v4703 = vadd.f32 %v4397, %v4667
        %v4704 = vadd.f32 %v4398, %v4670
        %v4705 = vld [vmem:[%s3207 + $0x2] sm:$0xff]
        %v4706 = vld [vmem:[%s3207 + $0xa] sm:$0xff]
        %v4707 = vld [vmem:[%s3207 + $0x1a] sm:$0xff]
        %v4708 = vld [vmem:[%s3207 + $0x22] sm:$0xff]
        %v4709 = vld [vmem:[%s3207 + $0x32] sm:$0xff]
        %v4710 = vld [vmem:[%s3207 + $0x3a] sm:$0xff]
        %v4711 = vld [vmem:[%s3207 + $0x4a] sm:$0xff]
        %v4712 = vld [vmem:[%s3207 + $0x52] sm:$0xff]
        %v4713 = vld [vmem:[%s3207 + $0x62] sm:$0xff]
        %v4714 = vld [vmem:[%s3207 + $0x6a] sm:$0xff]
        %v4715 = vld [vmem:[%s3207 + $0x7a] sm:$0xff]
        %v4716 = vld [vmem:[%s3207 + $0x82] sm:$0xff]
        %v4717 = vld [vmem:[%s3207 + $0x92] sm:$0xff]
        %v4718 = vld [vmem:[%s3207 + $0x9a] sm:$0xff]
        %v4719 = vld [vmem:[%s3207 + $0xaa] sm:$0xff]
        %v4720 = vld [vmem:[%s3207 + $0xb2] sm:$0xff]
        %v4721 = vld [vmem:[%s3207 + $0xc2] sm:$0xff]
        %v4722 = vld [vmem:[%s3207 + $0xca] sm:$0xff]
        %v4723 = vld [vmem:[%s3207 + $0xda] sm:$0xff]
        %v4724 = vld [vmem:[%s3207 + $0xe2] sm:$0xff]
        %v4725 = vld [vmem:[%s3207 + $0xf2] sm:$0xff]
        %v4726 = vld [vmem:[%s3207 + $0xfa] sm:$0xff]
        %v4727 = vld [vmem:[%s3207 + $0x10a] sm:$0xff]
        %v4728 = vld [vmem:[%s3207 + $0x112] sm:$0xff]
        %v4729 = vld [vmem:[%s3207 + $0x122] sm:$0xff]
        %v4730 = vld [vmem:[%s3207 + $0x12a] sm:$0xff]
        %v4731 = vld [vmem:[%s3207 + $0x13a] sm:$0xff]
        %v4732 = vld [vmem:[%s3207 + $0x142] sm:$0xff]
        %v4733 = vld [vmem:[%s3207 + $0x152] sm:$0xff]
        %v4734 = vld [vmem:[%s3207 + $0x15a] sm:$0xff]
        %v4735 = vld [vmem:[%s3207 + $0x16a] sm:$0xff]
        %v4736 = vld [vmem:[%s3207 + $0x172] sm:$0xff]
        %v4737 = vpack.c.bf16 %v4706, %v4705
        %v4738 = vpack.c.bf16 %v4708, %v4707
        %v4739 = vpack.c.bf16 %v4710, %v4709
        %v4740 = vpack.c.bf16 %v4712, %v4711
        %v4741 = vpack.c.bf16 %v4714, %v4713
        %v4742 = vpack.c.bf16 %v4716, %v4715
        %v4743 = vpack.c.bf16 %v4718, %v4717
        %v4744 = vpack.c.bf16 %v4720, %v4719
        %v4745 = vpack.c.bf16 %v4722, %v4721
        %v4746 = vpack.c.bf16 %v4724, %v4723
        %v4747 = vpack.c.bf16 %v4726, %v4725
        %v4748 = vpack.c.bf16 %v4728, %v4727
        %v4749 = vpack.c.bf16 %v4730, %v4729
        %v4750 = vpack.c.bf16 %v4732, %v4731
        %v4751 = vpack.c.bf16 %v4734, %v4733
        %v4752 = vpack.c.bf16 %v4736, %v4735
        %s4753 = scalar_lea.vmem [#allocation9], 320
        %v4754 = vld [vmem:[%s4753] sm:$0xf]
        %v4755 = vld [vmem:[%s4753 + $0x4] sm:$0xf]
        %v4756 = vld [vmem:[%s4753 + $0x8] sm:$0xf]
        %v4757 = vld [vmem:[%s4753 + $0xc] sm:$0xf]
        %v4758 = vld [vmem:[%s4753 + $0x10] sm:$0xf]
        %v4759 = vld [vmem:[%s4753 + $0x14] sm:$0xf]
        %v4760 = vld [vmem:[%s4753 + $0x18] sm:$0xf]
        %v4761 = vld [vmem:[%s4753 + $0x1c] sm:$0xf]
        %v4762 = vld [vmem:[%s4753 + $0x20] sm:$0xf]
        %v4763 = vld [vmem:[%s4753 + $0x24] sm:$0xf]
        %v4764 = vld [vmem:[%s4753 + $0x28] sm:$0xf]
        %v4765 = vld [vmem:[%s4753 + $0x2c] sm:$0xf]
        %v4766 = vld [vmem:[%s4753 + $0x30] sm:$0xf]
        %v4767 = vld [vmem:[%s4753 + $0x34] sm:$0xf]
        %v4768 = vld [vmem:[%s4753 + $0x38] sm:$0xf]
        %v4769 = vld [vmem:[%s4753 + $0x3c] sm:$0xf]
        %v4786 = vunpack.c.l.b16 %v4754
        %v4787 = vunpack.c.l.b16 %v4755
        %v4788 = vunpack.c.l.b16 %v4756
        %v4789 = vunpack.c.l.b16 %v4757
        %v4790 = vunpack.c.l.b16 %v4758
        %v4791 = vunpack.c.l.b16 %v4759
        %v4792 = vunpack.c.l.b16 %v4760
        %v4793 = vunpack.c.l.b16 %v4761
        %v4794 = vunpack.c.l.b16 %v4762
        %v4795 = vunpack.c.l.b16 %v4763
        %v4796 = vunpack.c.l.b16 %v4764
        %v4797 = vunpack.c.l.b16 %v4765
        %v4798 = vunpack.c.l.b16 %v4766
        %v4799 = vunpack.c.l.b16 %v4767
        %v4800 = vunpack.c.l.b16 %v4768
        %v4801 = vunpack.c.l.b16 %v4769
        %v4802 = vpack.c.b16 %v4787, %v4786
        %v4803 = vpack.c.b16 %v4789, %v4788
        %v4804 = vpack.c.b16 %v4791, %v4790
        %v4805 = vpack.c.b16 %v4793, %v4792
        %v4806 = vpack.c.b16 %v4795, %v4794
        %v4807 = vpack.c.b16 %v4797, %v4796
        %v4808 = vpack.c.b16 %v4799, %v4798
        %v4809 = vpack.c.b16 %v4801, %v4800
        %4818 = vmatprep.subr.bf16.mxu0 0
        %4819 = vmatpush1.bf16.msra.mxu0 %v4809
        %4820 = vmatprep.subr.bf16.mxu0 0
        %4821 = vmatpush1.bf16.msra.mxu0 %v4808
        %4822 = vmatprep.subr.bf16.mxu0 0
        %4823 = vmatpush1.bf16.msra.mxu0 %v4807
        %4824 = vmatprep.subr.bf16.mxu0 0
        %4825 = vmatpush1.bf16.msra.mxu0 %v4806
        %4826 = vmatprep.subr.bf16.mxu0 0
        %4827 = vmatpush1.bf16.msra.mxu0 %v4805
        %4828 = vmatprep.subr.bf16.mxu0 0
        %4829 = vmatpush1.bf16.msra.mxu0 %v4804
        %4830 = vmatprep.subr.bf16.mxu0 0
        %4831 = vmatpush1.bf16.msra.mxu0 %v4803
        %4832 = vmatprep.subr.bf16.mxu0 0
        %4833 = vmatpush1.bf16.msra.mxu0 %v4802
        %4834 = vmatprep.subr.bf16.mxu0 0
        %4835 = vmatpush2.bf16.msra.mxu0 0
        %4836 = vmatprep.subr.bf16.mxu0 0
        %4837 = vmatpush2.bf16.msra.mxu0 0
        %4838 = vmatprep.subr.bf16.mxu0 0
        %4839 = vmatpush2.bf16.msra.mxu0 0
        %4840 = vmatprep.subr.bf16.mxu0 0
        %4841 = vmatpush2.bf16.msra.mxu0 0
        %4842 = vmatprep.subr.bf16.mxu0 0
        %4843 = vmatpush2.bf16.msra.mxu0 0
        %4844 = vmatprep.subr.bf16.mxu0 0
        %4845 = vmatpush2.bf16.msra.mxu0 0
        %4846 = vmatprep.subr.bf16.mxu0 0
        %4847 = vmatpush2.bf16.msra.mxu0 0
        %4848 = vmatprep.subr.bf16.mxu0 0
        %4849 = vmatpush2.bf16.msra.mxu0 0
        %4850 = vmatprep.mubr.bf16.mxu0 0
        %4851 = vmatmul.mubr.bf16.gmra.mxu0 %v4737
        %v4852 = vpop.f32.mrf.mxu0
        %v4853 = vadd.f32 0.0, %v4852
        %v4854 = vpop.f32.mrf.mxu0
        %v4855 = vpop.f32.mrf.mxu0
        %v4856 = vadd.f32 0.0, %v4855
        %v4857 = vpop.f32.mrf.mxu0
        %4858 = vmatprep.mubr.bf16.mxu0 0
        %4859 = vmatmul.mubr.bf16.gmra.mxu0 %v4738
        %v4860 = vpop.f32.mrf.mxu0
        %v4861 = vadd.f32 0.0, %v4860
        %v4862 = vpop.f32.mrf.mxu0
        %v4863 = vpop.f32.mrf.mxu0
        %v4864 = vadd.f32 0.0, %v4863
        %v4865 = vpop.f32.mrf.mxu0
        %4866 = vmatprep.mubr.bf16.mxu0 0
        %4867 = vmatmul.mubr.bf16.gmra.mxu0 %v4739
        %v4868 = vpop.f32.mrf.mxu0
        %v4869 = vadd.f32 0.0, %v4868
        %v4870 = vpop.f32.mrf.mxu0
        %v4871 = vpop.f32.mrf.mxu0
        %v4872 = vadd.f32 0.0, %v4871
        %v4873 = vpop.f32.mrf.mxu0
        %4874 = vmatprep.mubr.bf16.mxu0 0
        %4875 = vmatmul.mubr.bf16.gmra.mxu0 %v4740
        %v4876 = vpop.f32.mrf.mxu0
        %v4877 = vadd.f32 0.0, %v4876
        %v4878 = vpop.f32.mrf.mxu0
        %v4879 = vpop.f32.mrf.mxu0
        %v4880 = vadd.f32 0.0, %v4879
        %v4881 = vpop.f32.mrf.mxu0
        %4882 = vmatprep.mubr.bf16.mxu0 0
        %4883 = vmatmul.mubr.bf16.gmra.mxu0 %v4741
        %v4884 = vpop.f32.mrf.mxu0
        %v4885 = vadd.f32 0.0, %v4884
        %v4886 = vpop.f32.mrf.mxu0
        %v4887 = vpop.f32.mrf.mxu0
        %v4888 = vadd.f32 0.0, %v4887
        %v4889 = vpop.f32.mrf.mxu0
        %4890 = vmatprep.mubr.bf16.mxu0 0
        %4891 = vmatmul.mubr.bf16.gmra.mxu0 %v4742
        %v4892 = vpop.f32.mrf.mxu0
        %v4893 = vadd.f32 0.0, %v4892
        %v4894 = vpop.f32.mrf.mxu0
        %v4895 = vpop.f32.mrf.mxu0
        %v4896 = vadd.f32 0.0, %v4895
        %v4897 = vpop.f32.mrf.mxu0
        %4898 = vmatprep.mubr.bf16.mxu0 0
        %4899 = vmatmul.mubr.bf16.gmra.mxu0 %v4743
        %v4900 = vpop.f32.mrf.mxu0
        %v4901 = vadd.f32 0.0, %v4900
        %v4902 = vpop.f32.mrf.mxu0
        %v4903 = vpop.f32.mrf.mxu0
        %v4904 = vadd.f32 0.0, %v4903
        %v4905 = vpop.f32.mrf.mxu0
        %4906 = vmatprep.mubr.bf16.mxu0 0
        %4907 = vmatmul.mubr.bf16.gmra.mxu0 %v4744
        %v4908 = vpop.f32.mrf.mxu0
        %v4909 = vadd.f32 0.0, %v4908
        %v4910 = vpop.f32.mrf.mxu0
        %v4911 = vpop.f32.mrf.mxu0
        %v4912 = vadd.f32 0.0, %v4911
        %v4913 = vpop.f32.mrf.mxu0
        %4914 = vmatprep.mubr.bf16.mxu0 0
        %4915 = vmatmul.mubr.bf16.gmra.mxu0 %v4745
        %v4916 = vpop.f32.mrf.mxu0
        %v4917 = vadd.f32 0.0, %v4916
        %v4918 = vpop.f32.mrf.mxu0
        %v4919 = vpop.f32.mrf.mxu0
        %v4920 = vadd.f32 0.0, %v4919
        %v4921 = vpop.f32.mrf.mxu0
        %4922 = vmatprep.mubr.bf16.mxu0 0
        %4923 = vmatmul.mubr.bf16.gmra.mxu0 %v4746
        %v4924 = vpop.f32.mrf.mxu0
        %v4925 = vadd.f32 0.0, %v4924
        %v4926 = vpop.f32.mrf.mxu0
        %v4927 = vpop.f32.mrf.mxu0
        %v4928 = vadd.f32 0.0, %v4927
        %v4929 = vpop.f32.mrf.mxu0
        %4930 = vmatprep.mubr.bf16.mxu0 0
        %4931 = vmatmul.mubr.bf16.gmra.mxu0 %v4747
        %v4932 = vpop.f32.mrf.mxu0
        %v4933 = vadd.f32 0.0, %v4932
        %v4934 = vpop.f32.mrf.mxu0
        %v4935 = vpop.f32.mrf.mxu0
        %v4936 = vadd.f32 0.0, %v4935
        %v4937 = vpop.f32.mrf.mxu0
        %4938 = vmatprep.mubr.bf16.mxu0 0
        %4939 = vmatmul.mubr.bf16.gmra.mxu0 %v4748
        %v4940 = vpop.f32.mrf.mxu0
        %v4941 = vadd.f32 0.0, %v4940
        %v4942 = vpop.f32.mrf.mxu0
        %v4943 = vpop.f32.mrf.mxu0
        %v4944 = vadd.f32 0.0, %v4943
        %v4945 = vpop.f32.mrf.mxu0
        %4946 = vmatprep.mubr.bf16.mxu0 0
        %4947 = vmatmul.mubr.bf16.gmra.mxu0 %v4749
        %v4948 = vpop.f32.mrf.mxu0
        %v4949 = vadd.f32 0.0, %v4948
        %v4950 = vpop.f32.mrf.mxu0
        %v4951 = vpop.f32.mrf.mxu0
        %v4952 = vadd.f32 0.0, %v4951
        %v4953 = vpop.f32.mrf.mxu0
        %4954 = vmatprep.mubr.bf16.mxu0 0
        %4955 = vmatmul.mubr.bf16.gmra.mxu0 %v4750
        %v4956 = vpop.f32.mrf.mxu0
        %v4957 = vadd.f32 0.0, %v4956
        %v4958 = vpop.f32.mrf.mxu0
        %v4959 = vpop.f32.mrf.mxu0
        %v4960 = vadd.f32 0.0, %v4959
        %v4961 = vpop.f32.mrf.mxu0
        %4962 = vmatprep.mubr.bf16.mxu0 0
        %4963 = vmatmul.mubr.bf16.gmra.mxu0 %v4751
        %v4964 = vpop.f32.mrf.mxu0
        %v4965 = vadd.f32 0.0, %v4964
        %v4966 = vpop.f32.mrf.mxu0
        %v4967 = vpop.f32.mrf.mxu0
        %v4968 = vadd.f32 0.0, %v4967
        %v4969 = vpop.f32.mrf.mxu0
        %4970 = vmatprep.mubr.bf16.mxu0 0
        %4971 = vmatmul.mubr.bf16.gmra.mxu0 %v4752
        %v4972 = vpop.f32.mrf.mxu0
        %v4973 = vadd.f32 0.0, %v4972
        %v4974 = vpop.f32.mrf.mxu0
        %v4975 = vpop.f32.mrf.mxu0
        %v4976 = vadd.f32 0.0, %v4975
        %v4977 = vpop.f32.mrf.mxu0
        %4978 = vdwg.mxu0
        %v4979 = vadd.f32 %v4673, %v4853
        %v4980 = vadd.f32 %v4674, %v4856
        %v4981 = vadd.f32 %v4675, %v4861
        %v4982 = vadd.f32 %v4676, %v4864
        %v4983 = vadd.f32 %v4677, %v4869
        %v4984 = vadd.f32 %v4678, %v4872
        %v4985 = vadd.f32 %v4679, %v4877
        %v4986 = vadd.f32 %v4680, %v4880
        %v4987 = vadd.f32 %v4681, %v4885
        %v4988 = vadd.f32 %v4682, %v4888
        %v4989 = vadd.f32 %v4683, %v4893
        %v4990 = vadd.f32 %v4684, %v4896
        %v4991 = vadd.f32 %v4685, %v4901
        %v4992 = vadd.f32 %v4686, %v4904
        %v4993 = vadd.f32 %v4687, %v4909
        %v4994 = vadd.f32 %v4688, %v4912
        %v4995 = vadd.f32 %v4689, %v4917
        %v4996 = vadd.f32 %v4690, %v4920
        %v4997 = vadd.f32 %v4691, %v4925
        %v4998 = vadd.f32 %v4692, %v4928
        %v4999 = vadd.f32 %v4693, %v4933
        %v5000 = vadd.f32 %v4694, %v4936
        %v5001 = vadd.f32 %v4695, %v4941
        %v5002 = vadd.f32 %v4696, %v4944
        %v5003 = vadd.f32 %v4697, %v4949
        %v5004 = vadd.f32 %v4698, %v4952
        %v5005 = vadd.f32 %v4699, %v4957
        %v5006 = vadd.f32 %v4700, %v4960
        %v5007 = vadd.f32 %v4701, %v4965
        %v5008 = vadd.f32 %v4702, %v4968
        %v5009 = vadd.f32 %v4703, %v4973
        %v5010 = vadd.f32 %v4704, %v4976
        %s5011 = scalar_lea.vmem [#allocation3], 48
        %v5012 = vld [vmem:[%s5011] sm:$0xff]
        %v5013 = vld [vmem:[%s5011 + $0x8] sm:$0xff]
        %v5014 = vld [vmem:[%s5011 + $0x18] sm:$0xff]
        %v5015 = vld [vmem:[%s5011 + $0x20] sm:$0xff]
        %v5016 = vld [vmem:[%s5011 + $0x30] sm:$0xff]
        %v5017 = vld [vmem:[%s5011 + $0x38] sm:$0xff]
        %v5018 = vld [vmem:[%s5011 + $0x48] sm:$0xff]
        %v5019 = vld [vmem:[%s5011 + $0x50] sm:$0xff]
        %v5020 = vld [vmem:[%s5011 + $0x60] sm:$0xff]
        %v5021 = vld [vmem:[%s5011 + $0x68] sm:$0xff]
        %v5022 = vld [vmem:[%s5011 + $0x78] sm:$0xff]
        %v5023 = vld [vmem:[%s5011 + $0x80] sm:$0xff]
        %v5024 = vld [vmem:[%s5011 + $0x90] sm:$0xff]
        %v5025 = vld [vmem:[%s5011 + $0x98] sm:$0xff]
        %v5026 = vld [vmem:[%s5011 + $0xa8] sm:$0xff]
        %v5027 = vld [vmem:[%s5011 + $0xb0] sm:$0xff]
        %v5028 = vld [vmem:[%s5011 + $0xc0] sm:$0xff]
        %v5029 = vld [vmem:[%s5011 + $0xc8] sm:$0xff]
        %v5030 = vld [vmem:[%s5011 + $0xd8] sm:$0xff]
        %v5031 = vld [vmem:[%s5011 + $0xe0] sm:$0xff]
        %v5032 = vld [vmem:[%s5011 + $0xf0] sm:$0xff]
        %v5033 = vld [vmem:[%s5011 + $0xf8] sm:$0xff]
        %v5034 = vld [vmem:[%s5011 + $0x108] sm:$0xff]
        %v5035 = vld [vmem:[%s5011 + $0x110] sm:$0xff]
        %v5036 = vld [vmem:[%s5011 + $0x120] sm:$0xff]
        %v5037 = vld [vmem:[%s5011 + $0x128] sm:$0xff]
        %v5038 = vld [vmem:[%s5011 + $0x138] sm:$0xff]
        %v5039 = vld [vmem:[%s5011 + $0x140] sm:$0xff]
        %v5040 = vld [vmem:[%s5011 + $0x150] sm:$0xff]
        %v5041 = vld [vmem:[%s5011 + $0x158] sm:$0xff]
        %v5042 = vld [vmem:[%s5011 + $0x168] sm:$0xff]
        %v5043 = vld [vmem:[%s5011 + $0x170] sm:$0xff]
        %v5044 = vpack.c.bf16 %v5013, %v5012
        %v5045 = vpack.c.bf16 %v5015, %v5014
        %v5046 = vpack.c.bf16 %v5017, %v5016
        %v5047 = vpack.c.bf16 %v5019, %v5018
        %v5048 = vpack.c.bf16 %v5021, %v5020
        %v5049 = vpack.c.bf16 %v5023, %v5022
        %v5050 = vpack.c.bf16 %v5025, %v5024
        %v5051 = vpack.c.bf16 %v5027, %v5026
        %v5052 = vpack.c.bf16 %v5029, %v5028
        %v5053 = vpack.c.bf16 %v5031, %v5030
        %v5054 = vpack.c.bf16 %v5033, %v5032
        %v5055 = vpack.c.bf16 %v5035, %v5034
        %v5056 = vpack.c.bf16 %v5037, %v5036
        %v5057 = vpack.c.bf16 %v5039, %v5038
        %v5058 = vpack.c.bf16 %v5041, %v5040
        %v5059 = vpack.c.bf16 %v5043, %v5042
        %s5060 = scalar_lea.vmem [#allocation9], 384
        %v5061 = vld [vmem:[%s5060] sm:$0xf]
        %v5062 = vld [vmem:[%s5060 + $0x4] sm:$0xf]
        %v5063 = vld [vmem:[%s5060 + $0x8] sm:$0xf]
        %v5064 = vld [vmem:[%s5060 + $0xc] sm:$0xf]
        %v5065 = vld [vmem:[%s5060 + $0x10] sm:$0xf]
        %v5066 = vld [vmem:[%s5060 + $0x14] sm:$0xf]
        %v5067 = vld [vmem:[%s5060 + $0x18] sm:$0xf]
        %v5068 = vld [vmem:[%s5060 + $0x1c] sm:$0xf]
        %v5069 = vld [vmem:[%s5060 + $0x20] sm:$0xf]
        %v5070 = vld [vmem:[%s5060 + $0x24] sm:$0xf]
        %v5071 = vld [vmem:[%s5060 + $0x28] sm:$0xf]
        %v5072 = vld [vmem:[%s5060 + $0x2c] sm:$0xf]
        %v5073 = vld [vmem:[%s5060 + $0x30] sm:$0xf]
        %v5074 = vld [vmem:[%s5060 + $0x34] sm:$0xf]
        %v5075 = vld [vmem:[%s5060 + $0x38] sm:$0xf]
        %v5076 = vld [vmem:[%s5060 + $0x3c] sm:$0xf]
        %v5093 = vunpack.c.l.b16 %v5061
        %v5094 = vunpack.c.l.b16 %v5062
        %v5095 = vunpack.c.l.b16 %v5063
        %v5096 = vunpack.c.l.b16 %v5064
        %v5097 = vunpack.c.l.b16 %v5065
        %v5098 = vunpack.c.l.b16 %v5066
        %v5099 = vunpack.c.l.b16 %v5067
        %v5100 = vunpack.c.l.b16 %v5068
        %v5101 = vunpack.c.l.b16 %v5069
        %v5102 = vunpack.c.l.b16 %v5070
        %v5103 = vunpack.c.l.b16 %v5071
        %v5104 = vunpack.c.l.b16 %v5072
        %v5105 = vunpack.c.l.b16 %v5073
        %v5106 = vunpack.c.l.b16 %v5074
        %v5107 = vunpack.c.l.b16 %v5075
        %v5108 = vunpack.c.l.b16 %v5076
        %v5109 = vpack.c.b16 %v5094, %v5093
        %v5110 = vpack.c.b16 %v5096, %v5095
        %v5111 = vpack.c.b16 %v5098, %v5097
        %v5112 = vpack.c.b16 %v5100, %v5099
        %v5113 = vpack.c.b16 %v5102, %v5101
        %v5114 = vpack.c.b16 %v5104, %v5103
        %v5115 = vpack.c.b16 %v5106, %v5105
        %v5116 = vpack.c.b16 %v5108, %v5107
        %5125 = vmatprep.subr.bf16.mxu0 0
        %5126 = vmatpush1.bf16.msra.mxu0 %v5116
        %5127 = vmatprep.subr.bf16.mxu0 0
        %5128 = vmatpush1.bf16.msra.mxu0 %v5115
        %5129 = vmatprep.subr.bf16.mxu0 0
        %5130 = vmatpush1.bf16.msra.mxu0 %v5114
        %5131 = vmatprep.subr.bf16.mxu0 0
        %5132 = vmatpush1.bf16.msra.mxu0 %v5113
        %5133 = vmatprep.subr.bf16.mxu0 0
        %5134 = vmatpush1.bf16.msra.mxu0 %v5112
        %5135 = vmatprep.subr.bf16.mxu0 0
        %5136 = vmatpush1.bf16.msra.mxu0 %v5111
        %5137 = vmatprep.subr.bf16.mxu0 0
        %5138 = vmatpush1.bf16.msra.mxu0 %v5110
        %5139 = vmatprep.subr.bf16.mxu0 0
        %5140 = vmatpush1.bf16.msra.mxu0 %v5109
        %5141 = vmatprep.subr.bf16.mxu0 0
        %5142 = vmatpush2.bf16.msra.mxu0 0
        %5143 = vmatprep.subr.bf16.mxu0 0
        %5144 = vmatpush2.bf16.msra.mxu0 0
        %5145 = vmatprep.subr.bf16.mxu0 0
        %5146 = vmatpush2.bf16.msra.mxu0 0
        %5147 = vmatprep.subr.bf16.mxu0 0
        %5148 = vmatpush2.bf16.msra.mxu0 0
        %5149 = vmatprep.subr.bf16.mxu0 0
        %5150 = vmatpush2.bf16.msra.mxu0 0
        %5151 = vmatprep.subr.bf16.mxu0 0
        %5152 = vmatpush2.bf16.msra.mxu0 0
        %5153 = vmatprep.subr.bf16.mxu0 0
        %5154 = vmatpush2.bf16.msra.mxu0 0
        %5155 = vmatprep.subr.bf16.mxu0 0
        %5156 = vmatpush2.bf16.msra.mxu0 0
        %5157 = vmatprep.mubr.bf16.mxu0 0
        %5158 = vmatmul.mubr.bf16.gmra.mxu0 %v5044
        %v5159 = vpop.f32.mrf.mxu0
        %v5160 = vadd.f32 0.0, %v5159
        %v5161 = vpop.f32.mrf.mxu0
        %v5162 = vpop.f32.mrf.mxu0
        %v5163 = vadd.f32 0.0, %v5162
        %v5164 = vpop.f32.mrf.mxu0
        %5165 = vmatprep.mubr.bf16.mxu0 0
        %5166 = vmatmul.mubr.bf16.gmra.mxu0 %v5045
        %v5167 = vpop.f32.mrf.mxu0
        %v5168 = vadd.f32 0.0, %v5167
        %v5169 = vpop.f32.mrf.mxu0
        %v5170 = vpop.f32.mrf.mxu0
        %v5171 = vadd.f32 0.0, %v5170
        %v5172 = vpop.f32.mrf.mxu0
        %5173 = vmatprep.mubr.bf16.mxu0 0
        %5174 = vmatmul.mubr.bf16.gmra.mxu0 %v5046
        %v5175 = vpop.f32.mrf.mxu0
        %v5176 = vadd.f32 0.0, %v5175
        %v5177 = vpop.f32.mrf.mxu0
        %v5178 = vpop.f32.mrf.mxu0
        %v5179 = vadd.f32 0.0, %v5178
        %v5180 = vpop.f32.mrf.mxu0
        %5181 = vmatprep.mubr.bf16.mxu0 0
        %5182 = vmatmul.mubr.bf16.gmra.mxu0 %v5047
        %v5183 = vpop.f32.mrf.mxu0
        %v5184 = vadd.f32 0.0, %v5183
        %v5185 = vpop.f32.mrf.mxu0
        %v5186 = vpop.f32.mrf.mxu0
        %v5187 = vadd.f32 0.0, %v5186
        %v5188 = vpop.f32.mrf.mxu0
        %5189 = vmatprep.mubr.bf16.mxu0 0
        %5190 = vmatmul.mubr.bf16.gmra.mxu0 %v5048
        %v5191 = vpop.f32.mrf.mxu0
        %v5192 = vadd.f32 0.0, %v5191
        %v5193 = vpop.f32.mrf.mxu0
        %v5194 = vpop.f32.mrf.mxu0
        %v5195 = vadd.f32 0.0, %v5194
        %v5196 = vpop.f32.mrf.mxu0
        %5197 = vmatprep.mubr.bf16.mxu0 0
        %5198 = vmatmul.mubr.bf16.gmra.mxu0 %v5049
        %v5199 = vpop.f32.mrf.mxu0
        %v5200 = vadd.f32 0.0, %v5199
        %v5201 = vpop.f32.mrf.mxu0
        %v5202 = vpop.f32.mrf.mxu0
        %v5203 = vadd.f32 0.0, %v5202
        %v5204 = vpop.f32.mrf.mxu0
        %5205 = vmatprep.mubr.bf16.mxu0 0
        %5206 = vmatmul.mubr.bf16.gmra.mxu0 %v5050
        %v5207 = vpop.f32.mrf.mxu0
        %v5208 = vadd.f32 0.0, %v5207
        %v5209 = vpop.f32.mrf.mxu0
        %v5210 = vpop.f32.mrf.mxu0
        %v5211 = vadd.f32 0.0, %v5210
        %v5212 = vpop.f32.mrf.mxu0
        %5213 = vmatprep.mubr.bf16.mxu0 0
        %5214 = vmatmul.mubr.bf16.gmra.mxu0 %v5051
        %v5215 = vpop.f32.mrf.mxu0
        %v5216 = vadd.f32 0.0, %v5215
        %v5217 = vpop.f32.mrf.mxu0
        %v5218 = vpop.f32.mrf.mxu0
        %v5219 = vadd.f32 0.0, %v5218
        %v5220 = vpop.f32.mrf.mxu0
        %5221 = vmatprep.mubr.bf16.mxu0 0
        %5222 = vmatmul.mubr.bf16.gmra.mxu0 %v5052
        %v5223 = vpop.f32.mrf.mxu0
        %v5224 = vadd.f32 0.0, %v5223
        %v5225 = vpop.f32.mrf.mxu0
        %v5226 = vpop.f32.mrf.mxu0
        %v5227 = vadd.f32 0.0, %v5226
        %v5228 = vpop.f32.mrf.mxu0
        %5229 = vmatprep.mubr.bf16.mxu0 0
        %5230 = vmatmul.mubr.bf16.gmra.mxu0 %v5053
        %v5231 = vpop.f32.mrf.mxu0
        %v5232 = vadd.f32 0.0, %v5231
        %v5233 = vpop.f32.mrf.mxu0
        %v5234 = vpop.f32.mrf.mxu0
        %v5235 = vadd.f32 0.0, %v5234
        %v5236 = vpop.f32.mrf.mxu0
        %5237 = vmatprep.mubr.bf16.mxu0 0
        %5238 = vmatmul.mubr.bf16.gmra.mxu0 %v5054
        %v5239 = vpop.f32.mrf.mxu0
        %v5240 = vadd.f32 0.0, %v5239
        %v5241 = vpop.f32.mrf.mxu0
        %v5242 = vpop.f32.mrf.mxu0
        %v5243 = vadd.f32 0.0, %v5242
        %v5244 = vpop.f32.mrf.mxu0
        %5245 = vmatprep.mubr.bf16.mxu0 0
        %5246 = vmatmul.mubr.bf16.gmra.mxu0 %v5055
        %v5247 = vpop.f32.mrf.mxu0
        %v5248 = vadd.f32 0.0, %v5247
        %v5249 = vpop.f32.mrf.mxu0
        %v5250 = vpop.f32.mrf.mxu0
        %v5251 = vadd.f32 0.0, %v5250
        %v5252 = vpop.f32.mrf.mxu0
        %5253 = vmatprep.mubr.bf16.mxu0 0
        %5254 = vmatmul.mubr.bf16.gmra.mxu0 %v5056
        %v5255 = vpop.f32.mrf.mxu0
        %v5256 = vadd.f32 0.0, %v5255
        %v5257 = vpop.f32.mrf.mxu0
        %v5258 = vpop.f32.mrf.mxu0
        %v5259 = vadd.f32 0.0, %v5258
        %v5260 = vpop.f32.mrf.mxu0
        %5261 = vmatprep.mubr.bf16.mxu0 0
        %5262 = vmatmul.mubr.bf16.gmra.mxu0 %v5057
        %v5263 = vpop.f32.mrf.mxu0
        %v5264 = vadd.f32 0.0, %v5263
        %v5265 = vpop.f32.mrf.mxu0
        %v5266 = vpop.f32.mrf.mxu0
        %v5267 = vadd.f32 0.0, %v5266
        %v5268 = vpop.f32.mrf.mxu0
        %5269 = vmatprep.mubr.bf16.mxu0 0
        %5270 = vmatmul.mubr.bf16.gmra.mxu0 %v5058
        %v5271 = vpop.f32.mrf.mxu0
        %v5272 = vadd.f32 0.0, %v5271
        %v5273 = vpop.f32.mrf.mxu0
        %v5274 = vpop.f32.mrf.mxu0
        %v5275 = vadd.f32 0.0, %v5274
        %v5276 = vpop.f32.mrf.mxu0
        %5277 = vmatprep.mubr.bf16.mxu0 0
        %5278 = vmatmul.mubr.bf16.gmra.mxu0 %v5059
        %v5279 = vpop.f32.mrf.mxu0
        %v5280 = vadd.f32 0.0, %v5279
        %v5281 = vpop.f32.mrf.mxu0
        %v5282 = vpop.f32.mrf.mxu0
        %v5283 = vadd.f32 0.0, %v5282
        %v5284 = vpop.f32.mrf.mxu0
        %5285 = vdwg.mxu0
        %v5286 = vadd.f32 %v4979, %v5160
        %v5287 = vadd.f32 %v4980, %v5163
        %v5288 = vadd.f32 %v4981, %v5168
        %v5289 = vadd.f32 %v4982, %v5171
        %v5290 = vadd.f32 %v4983, %v5176
        %v5291 = vadd.f32 %v4984, %v5179
        %v5292 = vadd.f32 %v4985, %v5184
        %v5293 = vadd.f32 %v4986, %v5187
        %v5294 = vadd.f32 %v4987, %v5192
        %v5295 = vadd.f32 %v4988, %v5195
        %v5296 = vadd.f32 %v4989, %v5200
        %v5297 = vadd.f32 %v4990, %v5203
        %v5298 = vadd.f32 %v4991, %v5208
        %v5299 = vadd.f32 %v4992, %v5211
        %v5300 = vadd.f32 %v4993, %v5216
        %v5301 = vadd.f32 %v4994, %v5219
        %v5302 = vadd.f32 %v4995, %v5224
        %v5303 = vadd.f32 %v4996, %v5227
        %v5304 = vadd.f32 %v4997, %v5232
        %v5305 = vadd.f32 %v4998, %v5235
        %v5306 = vadd.f32 %v4999, %v5240
        %v5307 = vadd.f32 %v5000, %v5243
        %v5308 = vadd.f32 %v5001, %v5248
        %v5309 = vadd.f32 %v5002, %v5251
        %v5310 = vadd.f32 %v5003, %v5256
        %v5311 = vadd.f32 %v5004, %v5259
        %v5312 = vadd.f32 %v5005, %v5264
        %v5313 = vadd.f32 %v5006, %v5267
        %v5314 = vadd.f32 %v5007, %v5272
        %v5315 = vadd.f32 %v5008, %v5275
        %v5316 = vadd.f32 %v5009, %v5280
        %v5317 = vadd.f32 %v5010, %v5283
        %v5318 = vld [vmem:[%s5011 + $0x1] sm:$0xff]
        %v5319 = vld [vmem:[%s5011 + $0x9] sm:$0xff]
        %v5320 = vld [vmem:[%s5011 + $0x19] sm:$0xff]
        %v5321 = vld [vmem:[%s5011 + $0x21] sm:$0xff]
        %v5322 = vld [vmem:[%s5011 + $0x31] sm:$0xff]
        %v5323 = vld [vmem:[%s5011 + $0x39] sm:$0xff]
        %v5324 = vld [vmem:[%s5011 + $0x49] sm:$0xff]
        %v5325 = vld [vmem:[%s5011 + $0x51] sm:$0xff]
        %v5326 = vld [vmem:[%s5011 + $0x61] sm:$0xff]
        %v5327 = vld [vmem:[%s5011 + $0x69] sm:$0xff]
        %v5328 = vld [vmem:[%s5011 + $0x79] sm:$0xff]
        %v5329 = vld [vmem:[%s5011 + $0x81] sm:$0xff]
        %v5330 = vld [vmem:[%s5011 + $0x91] sm:$0xff]
        %v5331 = vld [vmem:[%s5011 + $0x99] sm:$0xff]
        %v5332 = vld [vmem:[%s5011 + $0xa9] sm:$0xff]
        %v5333 = vld [vmem:[%s5011 + $0xb1] sm:$0xff]
        %v5334 = vld [vmem:[%s5011 + $0xc1] sm:$0xff]
        %v5335 = vld [vmem:[%s5011 + $0xc9] sm:$0xff]
        %v5336 = vld [vmem:[%s5011 + $0xd9] sm:$0xff]
        %v5337 = vld [vmem:[%s5011 + $0xe1] sm:$0xff]
        %v5338 = vld [vmem:[%s5011 + $0xf1] sm:$0xff]
        %v5339 = vld [vmem:[%s5011 + $0xf9] sm:$0xff]
        %v5340 = vld [vmem:[%s5011 + $0x109] sm:$0xff]
        %v5341 = vld [vmem:[%s5011 + $0x111] sm:$0xff]
        %v5342 = vld [vmem:[%s5011 + $0x121] sm:$0xff]
        %v5343 = vld [vmem:[%s5011 + $0x129] sm:$0xff]
        %v5344 = vld [vmem:[%s5011 + $0x139] sm:$0xff]
        %v5345 = vld [vmem:[%s5011 + $0x141] sm:$0xff]
        %v5346 = vld [vmem:[%s5011 + $0x151] sm:$0xff]
        %v5347 = vld [vmem:[%s5011 + $0x159] sm:$0xff]
        %v5348 = vld [vmem:[%s5011 + $0x169] sm:$0xff]
        %v5349 = vld [vmem:[%s5011 + $0x171] sm:$0xff]
        %v5350 = vpack.c.bf16 %v5319, %v5318
        %v5351 = vpack.c.bf16 %v5321, %v5320
        %v5352 = vpack.c.bf16 %v5323, %v5322
        %v5353 = vpack.c.bf16 %v5325, %v5324
        %v5354 = vpack.c.bf16 %v5327, %v5326
        %v5355 = vpack.c.bf16 %v5329, %v5328
        %v5356 = vpack.c.bf16 %v5331, %v5330
        %v5357 = vpack.c.bf16 %v5333, %v5332
        %v5358 = vpack.c.bf16 %v5335, %v5334
        %v5359 = vpack.c.bf16 %v5337, %v5336
        %v5360 = vpack.c.bf16 %v5339, %v5338
        %v5361 = vpack.c.bf16 %v5341, %v5340
        %v5362 = vpack.c.bf16 %v5343, %v5342
        %v5363 = vpack.c.bf16 %v5345, %v5344
        %v5364 = vpack.c.bf16 %v5347, %v5346
        %v5365 = vpack.c.bf16 %v5349, %v5348
        %s5366 = scalar_lea.vmem [#allocation9], 448
        %v5367 = vld [vmem:[%s5366] sm:$0xf]
        %v5368 = vld [vmem:[%s5366 + $0x4] sm:$0xf]
        %v5369 = vld [vmem:[%s5366 + $0x8] sm:$0xf]
        %v5370 = vld [vmem:[%s5366 + $0xc] sm:$0xf]
        %v5371 = vld [vmem:[%s5366 + $0x10] sm:$0xf]
        %v5372 = vld [vmem:[%s5366 + $0x14] sm:$0xf]
        %v5373 = vld [vmem:[%s5366 + $0x18] sm:$0xf]
        %v5374 = vld [vmem:[%s5366 + $0x1c] sm:$0xf]
        %v5375 = vld [vmem:[%s5366 + $0x20] sm:$0xf]
        %v5376 = vld [vmem:[%s5366 + $0x24] sm:$0xf]
        %v5377 = vld [vmem:[%s5366 + $0x28] sm:$0xf]
        %v5378 = vld [vmem:[%s5366 + $0x2c] sm:$0xf]
        %v5379 = vld [vmem:[%s5366 + $0x30] sm:$0xf]
        %v5380 = vld [vmem:[%s5366 + $0x34] sm:$0xf]
        %v5381 = vld [vmem:[%s5366 + $0x38] sm:$0xf]
        %v5382 = vld [vmem:[%s5366 + $0x3c] sm:$0xf]
        %v5399 = vunpack.c.l.b16 %v5367
        %v5400 = vunpack.c.l.b16 %v5368
        %v5401 = vunpack.c.l.b16 %v5369
        %v5402 = vunpack.c.l.b16 %v5370
        %v5403 = vunpack.c.l.b16 %v5371
        %v5404 = vunpack.c.l.b16 %v5372
        %v5405 = vunpack.c.l.b16 %v5373
        %v5406 = vunpack.c.l.b16 %v5374
        %v5407 = vunpack.c.l.b16 %v5375
        %v5408 = vunpack.c.l.b16 %v5376
        %v5409 = vunpack.c.l.b16 %v5377
        %v5410 = vunpack.c.l.b16 %v5378
        %v5411 = vunpack.c.l.b16 %v5379
        %v5412 = vunpack.c.l.b16 %v5380
        %v5413 = vunpack.c.l.b16 %v5381
        %v5414 = vunpack.c.l.b16 %v5382
        %v5415 = vpack.c.b16 %v5400, %v5399
        %v5416 = vpack.c.b16 %v5402, %v5401
        %v5417 = vpack.c.b16 %v5404, %v5403
        %v5418 = vpack.c.b16 %v5406, %v5405
        %v5419 = vpack.c.b16 %v5408, %v5407
        %v5420 = vpack.c.b16 %v5410, %v5409
        %v5421 = vpack.c.b16 %v5412, %v5411
        %v5422 = vpack.c.b16 %v5414, %v5413
        %5431 = vmatprep.subr.bf16.mxu0 0
        %5432 = vmatpush1.bf16.msra.mxu0 %v5422
        %5433 = vmatprep.subr.bf16.mxu0 0
        %5434 = vmatpush1.bf16.msra.mxu0 %v5421
        %5435 = vmatprep.subr.bf16.mxu0 0
        %5436 = vmatpush1.bf16.msra.mxu0 %v5420
        %5437 = vmatprep.subr.bf16.mxu0 0
        %5438 = vmatpush1.bf16.msra.mxu0 %v5419
        %5439 = vmatprep.subr.bf16.mxu0 0
        %5440 = vmatpush1.bf16.msra.mxu0 %v5418
        %5441 = vmatprep.subr.bf16.mxu0 0
        %5442 = vmatpush1.bf16.msra.mxu0 %v5417
        %5443 = vmatprep.subr.bf16.mxu0 0
        %5444 = vmatpush1.bf16.msra.mxu0 %v5416
        %5445 = vmatprep.subr.bf16.mxu0 0
        %5446 = vmatpush1.bf16.msra.mxu0 %v5415
        %5447 = vmatprep.subr.bf16.mxu0 0
        %5448 = vmatpush2.bf16.msra.mxu0 0
        %5449 = vmatprep.subr.bf16.mxu0 0
        %5450 = vmatpush2.bf16.msra.mxu0 0
        %5451 = vmatprep.subr.bf16.mxu0 0
        %5452 = vmatpush2.bf16.msra.mxu0 0
        %5453 = vmatprep.subr.bf16.mxu0 0
        %5454 = vmatpush2.bf16.msra.mxu0 0
        %5455 = vmatprep.subr.bf16.mxu0 0
        %5456 = vmatpush2.bf16.msra.mxu0 0
        %5457 = vmatprep.subr.bf16.mxu0 0
        %5458 = vmatpush2.bf16.msra.mxu0 0
        %5459 = vmatprep.subr.bf16.mxu0 0
        %5460 = vmatpush2.bf16.msra.mxu0 0
        %5461 = vmatprep.subr.bf16.mxu0 0
        %5462 = vmatpush2.bf16.msra.mxu0 0
        %5463 = vmatprep.mubr.bf16.mxu0 0
        %5464 = vmatmul.mubr.bf16.gmra.mxu0 %v5350
        %v5465 = vpop.f32.mrf.mxu0
        %v5466 = vadd.f32 0.0, %v5465
        %v5467 = vpop.f32.mrf.mxu0
        %v5468 = vpop.f32.mrf.mxu0
        %v5469 = vadd.f32 0.0, %v5468
        %v5470 = vpop.f32.mrf.mxu0
        %5471 = vmatprep.mubr.bf16.mxu0 0
        %5472 = vmatmul.mubr.bf16.gmra.mxu0 %v5351
        %v5473 = vpop.f32.mrf.mxu0
        %v5474 = vadd.f32 0.0, %v5473
        %v5475 = vpop.f32.mrf.mxu0
        %v5476 = vpop.f32.mrf.mxu0
        %v5477 = vadd.f32 0.0, %v5476
        %v5478 = vpop.f32.mrf.mxu0
        %5479 = vmatprep.mubr.bf16.mxu0 0
        %5480 = vmatmul.mubr.bf16.gmra.mxu0 %v5352
        %v5481 = vpop.f32.mrf.mxu0
        %v5482 = vadd.f32 0.0, %v5481
        %v5483 = vpop.f32.mrf.mxu0
        %v5484 = vpop.f32.mrf.mxu0
        %v5485 = vadd.f32 0.0, %v5484
        %v5486 = vpop.f32.mrf.mxu0
        %5487 = vmatprep.mubr.bf16.mxu0 0
        %5488 = vmatmul.mubr.bf16.gmra.mxu0 %v5353
        %v5489 = vpop.f32.mrf.mxu0
        %v5490 = vadd.f32 0.0, %v5489
        %v5491 = vpop.f32.mrf.mxu0
        %v5492 = vpop.f32.mrf.mxu0
        %v5493 = vadd.f32 0.0, %v5492
        %v5494 = vpop.f32.mrf.mxu0
        %5495 = vmatprep.mubr.bf16.mxu0 0
        %5496 = vmatmul.mubr.bf16.gmra.mxu0 %v5354
        %v5497 = vpop.f32.mrf.mxu0
        %v5498 = vadd.f32 0.0, %v5497
        %v5499 = vpop.f32.mrf.mxu0
        %v5500 = vpop.f32.mrf.mxu0
        %v5501 = vadd.f32 0.0, %v5500
        %v5502 = vpop.f32.mrf.mxu0
        %5503 = vmatprep.mubr.bf16.mxu0 0
        %5504 = vmatmul.mubr.bf16.gmra.mxu0 %v5355
        %v5505 = vpop.f32.mrf.mxu0
        %v5506 = vadd.f32 0.0, %v5505
        %v5507 = vpop.f32.mrf.mxu0
        %v5508 = vpop.f32.mrf.mxu0
        %v5509 = vadd.f32 0.0, %v5508
        %v5510 = vpop.f32.mrf.mxu0
        %5511 = vmatprep.mubr.bf16.mxu0 0
        %5512 = vmatmul.mubr.bf16.gmra.mxu0 %v5356
        %v5513 = vpop.f32.mrf.mxu0
        %v5514 = vadd.f32 0.0, %v5513
        %v5515 = vpop.f32.mrf.mxu0
        %v5516 = vpop.f32.mrf.mxu0
        %v5517 = vadd.f32 0.0, %v5516
        %v5518 = vpop.f32.mrf.mxu0
        %5519 = vmatprep.mubr.bf16.mxu0 0
        %5520 = vmatmul.mubr.bf16.gmra.mxu0 %v5357
        %v5521 = vpop.f32.mrf.mxu0
        %v5522 = vadd.f32 0.0, %v5521
        %v5523 = vpop.f32.mrf.mxu0
        %v5524 = vpop.f32.mrf.mxu0
        %v5525 = vadd.f32 0.0, %v5524
        %v5526 = vpop.f32.mrf.mxu0
        %5527 = vmatprep.mubr.bf16.mxu0 0
        %5528 = vmatmul.mubr.bf16.gmra.mxu0 %v5358
        %v5529 = vpop.f32.mrf.mxu0
        %v5530 = vadd.f32 0.0, %v5529
        %v5531 = vpop.f32.mrf.mxu0
        %v5532 = vpop.f32.mrf.mxu0
        %v5533 = vadd.f32 0.0, %v5532
        %v5534 = vpop.f32.mrf.mxu0
        %5535 = vmatprep.mubr.bf16.mxu0 0
        %5536 = vmatmul.mubr.bf16.gmra.mxu0 %v5359
        %v5537 = vpop.f32.mrf.mxu0
        %v5538 = vadd.f32 0.0, %v5537
        %v5539 = vpop.f32.mrf.mxu0
        %v5540 = vpop.f32.mrf.mxu0
        %v5541 = vadd.f32 0.0, %v5540
        %v5542 = vpop.f32.mrf.mxu0
        %5543 = vmatprep.mubr.bf16.mxu0 0
        %5544 = vmatmul.mubr.bf16.gmra.mxu0 %v5360
        %v5545 = vpop.f32.mrf.mxu0
        %v5546 = vadd.f32 0.0, %v5545
        %v5547 = vpop.f32.mrf.mxu0
        %v5548 = vpop.f32.mrf.mxu0
        %v5549 = vadd.f32 0.0, %v5548
        %v5550 = vpop.f32.mrf.mxu0
        %5551 = vmatprep.mubr.bf16.mxu0 0
        %5552 = vmatmul.mubr.bf16.gmra.mxu0 %v5361
        %v5553 = vpop.f32.mrf.mxu0
        %v5554 = vadd.f32 0.0, %v5553
        %v5555 = vpop.f32.mrf.mxu0
        %v5556 = vpop.f32.mrf.mxu0
        %v5557 = vadd.f32 0.0, %v5556
        %v5558 = vpop.f32.mrf.mxu0
        %5559 = vmatprep.mubr.bf16.mxu0 0
        %5560 = vmatmul.mubr.bf16.gmra.mxu0 %v5362
        %v5561 = vpop.f32.mrf.mxu0
        %v5562 = vadd.f32 0.0, %v5561
        %v5563 = vpop.f32.mrf.mxu0
        %v5564 = vpop.f32.mrf.mxu0
        %v5565 = vadd.f32 0.0, %v5564
        %v5566 = vpop.f32.mrf.mxu0
        %5567 = vmatprep.mubr.bf16.mxu0 0
        %5568 = vmatmul.mubr.bf16.gmra.mxu0 %v5363
        %v5569 = vpop.f32.mrf.mxu0
        %v5570 = vadd.f32 0.0, %v5569
        %v5571 = vpop.f32.mrf.mxu0
        %v5572 = vpop.f32.mrf.mxu0
        %v5573 = vadd.f32 0.0, %v5572
        %v5574 = vpop.f32.mrf.mxu0
        %5575 = vmatprep.mubr.bf16.mxu0 0
        %5576 = vmatmul.mubr.bf16.gmra.mxu0 %v5364
        %v5577 = vpop.f32.mrf.mxu0
        %v5578 = vadd.f32 0.0, %v5577
        %v5579 = vpop.f32.mrf.mxu0
        %v5580 = vpop.f32.mrf.mxu0
        %v5581 = vadd.f32 0.0, %v5580
        %v5582 = vpop.f32.mrf.mxu0
        %5583 = vmatprep.mubr.bf16.mxu0 0
        %5584 = vmatmul.mubr.bf16.gmra.mxu0 %v5365
        %v5585 = vpop.f32.mrf.mxu0
        %v5586 = vadd.f32 0.0, %v5585
        %v5587 = vpop.f32.mrf.mxu0
        %v5588 = vpop.f32.mrf.mxu0
        %v5589 = vadd.f32 0.0, %v5588
        %v5590 = vpop.f32.mrf.mxu0
        %5591 = vdwg.mxu0
        %v5592 = vadd.f32 %v5286, %v5466
        %v5593 = vadd.f32 %v5287, %v5469
        %v5594 = vadd.f32 %v5288, %v5474
        %v5595 = vadd.f32 %v5289, %v5477
        %v5596 = vadd.f32 %v5290, %v5482
        %v5597 = vadd.f32 %v5291, %v5485
        %v5598 = vadd.f32 %v5292, %v5490
        %v5599 = vadd.f32 %v5293, %v5493
        %v5600 = vadd.f32 %v5294, %v5498
        %v5601 = vadd.f32 %v5295, %v5501
        %v5602 = vadd.f32 %v5296, %v5506
        %v5603 = vadd.f32 %v5297, %v5509
        %v5604 = vadd.f32 %v5298, %v5514
        %v5605 = vadd.f32 %v5299, %v5517
        %v5606 = vadd.f32 %v5300, %v5522
        %v5607 = vadd.f32 %v5301, %v5525
        %v5608 = vadd.f32 %v5302, %v5530
        %v5609 = vadd.f32 %v5303, %v5533
        %v5610 = vadd.f32 %v5304, %v5538
        %v5611 = vadd.f32 %v5305, %v5541
        %v5612 = vadd.f32 %v5306, %v5546
        %v5613 = vadd.f32 %v5307, %v5549
        %v5614 = vadd.f32 %v5308, %v5554
        %v5615 = vadd.f32 %v5309, %v5557
        %v5616 = vadd.f32 %v5310, %v5562
        %v5617 = vadd.f32 %v5311, %v5565
        %v5618 = vadd.f32 %v5312, %v5570
        %v5619 = vadd.f32 %v5313, %v5573
        %v5620 = vadd.f32 %v5314, %v5578
        %v5621 = vadd.f32 %v5315, %v5581
        %v5622 = vadd.f32 %v5316, %v5586
        %v5623 = vadd.f32 %v5317, %v5589
        %v5624 = vld [vmem:[%s5011 + $0x2] sm:$0xff]
        %v5625 = vld [vmem:[%s5011 + $0xa] sm:$0xff]
        %v5626 = vld [vmem:[%s5011 + $0x1a] sm:$0xff]
        %v5627 = vld [vmem:[%s5011 + $0x22] sm:$0xff]
        %v5628 = vld [vmem:[%s5011 + $0x32] sm:$0xff]
        %v5629 = vld [vmem:[%s5011 + $0x3a] sm:$0xff]
        %v5630 = vld [vmem:[%s5011 + $0x4a] sm:$0xff]
        %v5631 = vld [vmem:[%s5011 + $0x52] sm:$0xff]
        %v5632 = vld [vmem:[%s5011 + $0x62] sm:$0xff]
        %v5633 = vld [vmem:[%s5011 + $0x6a] sm:$0xff]
        %v5634 = vld [vmem:[%s5011 + $0x7a] sm:$0xff]
        %v5635 = vld [vmem:[%s5011 + $0x82] sm:$0xff]
        %v5636 = vld [vmem:[%s5011 + $0x92] sm:$0xff]
        %v5637 = vld [vmem:[%s5011 + $0x9a] sm:$0xff]
        %v5638 = vld [vmem:[%s5011 + $0xaa] sm:$0xff]
        %v5639 = vld [vmem:[%s5011 + $0xb2] sm:$0xff]
        %v5640 = vld [vmem:[%s5011 + $0xc2] sm:$0xff]
        %v5641 = vld [vmem:[%s5011 + $0xca] sm:$0xff]
        %v5642 = vld [vmem:[%s5011 + $0xda] sm:$0xff]
        %v5643 = vld [vmem:[%s5011 + $0xe2] sm:$0xff]
        %v5644 = vld [vmem:[%s5011 + $0xf2] sm:$0xff]
        %v5645 = vld [vmem:[%s5011 + $0xfa] sm:$0xff]
        %v5646 = vld [vmem:[%s5011 + $0x10a] sm:$0xff]
        %v5647 = vld [vmem:[%s5011 + $0x112] sm:$0xff]
        %v5648 = vld [vmem:[%s5011 + $0x122] sm:$0xff]
        %v5649 = vld [vmem:[%s5011 + $0x12a] sm:$0xff]
        %v5650 = vld [vmem:[%s5011 + $0x13a] sm:$0xff]
        %v5651 = vld [vmem:[%s5011 + $0x142] sm:$0xff]
        %v5652 = vld [vmem:[%s5011 + $0x152] sm:$0xff]
        %v5653 = vld [vmem:[%s5011 + $0x15a] sm:$0xff]
        %v5654 = vld [vmem:[%s5011 + $0x16a] sm:$0xff]
        %v5655 = vld [vmem:[%s5011 + $0x172] sm:$0xff]
        %v5656 = vpack.c.bf16 %v5625, %v5624
        %v5657 = vpack.c.bf16 %v5627, %v5626
        %v5658 = vpack.c.bf16 %v5629, %v5628
        %v5659 = vpack.c.bf16 %v5631, %v5630
        %v5660 = vpack.c.bf16 %v5633, %v5632
        %v5661 = vpack.c.bf16 %v5635, %v5634
        %v5662 = vpack.c.bf16 %v5637, %v5636
        %v5663 = vpack.c.bf16 %v5639, %v5638
        %v5664 = vpack.c.bf16 %v5641, %v5640
        %v5665 = vpack.c.bf16 %v5643, %v5642
        %v5666 = vpack.c.bf16 %v5645, %v5644
        %v5667 = vpack.c.bf16 %v5647, %v5646
        %v5668 = vpack.c.bf16 %v5649, %v5648
        %v5669 = vpack.c.bf16 %v5651, %v5650
        %v5670 = vpack.c.bf16 %v5653, %v5652
        %v5671 = vpack.c.bf16 %v5655, %v5654
        %s5672 = scalar_lea.vmem [#allocation9], 512
        %v5673 = vld [vmem:[%s5672] sm:$0xf]
        %v5674 = vld [vmem:[%s5672 + $0x4] sm:$0xf]
        %v5675 = vld [vmem:[%s5672 + $0x8] sm:$0xf]
        %v5676 = vld [vmem:[%s5672 + $0xc] sm:$0xf]
        %v5677 = vld [vmem:[%s5672 + $0x10] sm:$0xf]
        %v5678 = vld [vmem:[%s5672 + $0x14] sm:$0xf]
        %v5679 = vld [vmem:[%s5672 + $0x18] sm:$0xf]
        %v5680 = vld [vmem:[%s5672 + $0x1c] sm:$0xf]
        %v5681 = vld [vmem:[%s5672 + $0x20] sm:$0xf]
        %v5682 = vld [vmem:[%s5672 + $0x24] sm:$0xf]
        %v5683 = vld [vmem:[%s5672 + $0x28] sm:$0xf]
        %v5684 = vld [vmem:[%s5672 + $0x2c] sm:$0xf]
        %v5685 = vld [vmem:[%s5672 + $0x30] sm:$0xf]
        %v5686 = vld [vmem:[%s5672 + $0x34] sm:$0xf]
        %v5687 = vld [vmem:[%s5672 + $0x38] sm:$0xf]
        %v5688 = vld [vmem:[%s5672 + $0x3c] sm:$0xf]
        %v5705 = vunpack.c.l.b16 %v5673
        %v5706 = vunpack.c.l.b16 %v5674
        %v5707 = vunpack.c.l.b16 %v5675
        %v5708 = vunpack.c.l.b16 %v5676
        %v5709 = vunpack.c.l.b16 %v5677
        %v5710 = vunpack.c.l.b16 %v5678
        %v5711 = vunpack.c.l.b16 %v5679
        %v5712 = vunpack.c.l.b16 %v5680
        %v5713 = vunpack.c.l.b16 %v5681
        %v5714 = vunpack.c.l.b16 %v5682
        %v5715 = vunpack.c.l.b16 %v5683
        %v5716 = vunpack.c.l.b16 %v5684
        %v5717 = vunpack.c.l.b16 %v5685
        %v5718 = vunpack.c.l.b16 %v5686
        %v5719 = vunpack.c.l.b16 %v5687
        %v5720 = vunpack.c.l.b16 %v5688
        %v5721 = vpack.c.b16 %v5706, %v5705
        %v5722 = vpack.c.b16 %v5708, %v5707
        %v5723 = vpack.c.b16 %v5710, %v5709
        %v5724 = vpack.c.b16 %v5712, %v5711
        %v5725 = vpack.c.b16 %v5714, %v5713
        %v5726 = vpack.c.b16 %v5716, %v5715
        %v5727 = vpack.c.b16 %v5718, %v5717
        %v5728 = vpack.c.b16 %v5720, %v5719
        %5737 = vmatprep.subr.bf16.mxu0 0
        %5738 = vmatpush1.bf16.msra.mxu0 %v5728
        %5739 = vmatprep.subr.bf16.mxu0 0
        %5740 = vmatpush1.bf16.msra.mxu0 %v5727
        %5741 = vmatprep.subr.bf16.mxu0 0
        %5742 = vmatpush1.bf16.msra.mxu0 %v5726
        %5743 = vmatprep.subr.bf16.mxu0 0
        %5744 = vmatpush1.bf16.msra.mxu0 %v5725
        %5745 = vmatprep.subr.bf16.mxu0 0
        %5746 = vmatpush1.bf16.msra.mxu0 %v5724
        %5747 = vmatprep.subr.bf16.mxu0 0
        %5748 = vmatpush1.bf16.msra.mxu0 %v5723
        %5749 = vmatprep.subr.bf16.mxu0 0
        %5750 = vmatpush1.bf16.msra.mxu0 %v5722
        %5751 = vmatprep.subr.bf16.mxu0 0
        %5752 = vmatpush1.bf16.msra.mxu0 %v5721
        %5753 = vmatprep.subr.bf16.mxu0 0
        %5754 = vmatpush2.bf16.msra.mxu0 0
        %5755 = vmatprep.subr.bf16.mxu0 0
        %5756 = vmatpush2.bf16.msra.mxu0 0
        %5757 = vmatprep.subr.bf16.mxu0 0
        %5758 = vmatpush2.bf16.msra.mxu0 0
        %5759 = vmatprep.subr.bf16.mxu0 0
        %5760 = vmatpush2.bf16.msra.mxu0 0
        %5761 = vmatprep.subr.bf16.mxu0 0
        %5762 = vmatpush2.bf16.msra.mxu0 0
        %5763 = vmatprep.subr.bf16.mxu0 0
        %5764 = vmatpush2.bf16.msra.mxu0 0
        %5765 = vmatprep.subr.bf16.mxu0 0
        %5766 = vmatpush2.bf16.msra.mxu0 0
        %5767 = vmatprep.subr.bf16.mxu0 0
        %5768 = vmatpush2.bf16.msra.mxu0 0
        %5769 = vmatprep.mubr.bf16.mxu0 0
        %5770 = vmatmul.mubr.bf16.gmra.mxu0 %v5656
        %v5771 = vpop.f32.mrf.mxu0
        %v5772 = vadd.f32 0.0, %v5771
        %v5773 = vpop.f32.mrf.mxu0
        %v5774 = vpop.f32.mrf.mxu0
        %v5775 = vadd.f32 0.0, %v5774
        %v5776 = vpop.f32.mrf.mxu0
        %5777 = vmatprep.mubr.bf16.mxu0 0
        %5778 = vmatmul.mubr.bf16.gmra.mxu0 %v5657
        %v5779 = vpop.f32.mrf.mxu0
        %v5780 = vadd.f32 0.0, %v5779
        %v5781 = vpop.f32.mrf.mxu0
        %v5782 = vpop.f32.mrf.mxu0
        %v5783 = vadd.f32 0.0, %v5782
        %v5784 = vpop.f32.mrf.mxu0
        %5785 = vmatprep.mubr.bf16.mxu0 0
        %5786 = vmatmul.mubr.bf16.gmra.mxu0 %v5658
        %v5787 = vpop.f32.mrf.mxu0
        %v5788 = vadd.f32 0.0, %v5787
        %v5789 = vpop.f32.mrf.mxu0
        %v5790 = vpop.f32.mrf.mxu0
        %v5791 = vadd.f32 0.0, %v5790
        %v5792 = vpop.f32.mrf.mxu0
        %5793 = vmatprep.mubr.bf16.mxu0 0
        %5794 = vmatmul.mubr.bf16.gmra.mxu0 %v5659
        %v5795 = vpop.f32.mrf.mxu0
        %v5796 = vadd.f32 0.0, %v5795
        %v5797 = vpop.f32.mrf.mxu0
        %v5798 = vpop.f32.mrf.mxu0
        %v5799 = vadd.f32 0.0, %v5798
        %v5800 = vpop.f32.mrf.mxu0
        %5801 = vmatprep.mubr.bf16.mxu0 0
        %5802 = vmatmul.mubr.bf16.gmra.mxu0 %v5660
        %v5803 = vpop.f32.mrf.mxu0
        %v5804 = vadd.f32 0.0, %v5803
        %v5805 = vpop.f32.mrf.mxu0
        %v5806 = vpop.f32.mrf.mxu0
        %v5807 = vadd.f32 0.0, %v5806
        %v5808 = vpop.f32.mrf.mxu0
        %5809 = vmatprep.mubr.bf16.mxu0 0
        %5810 = vmatmul.mubr.bf16.gmra.mxu0 %v5661
        %v5811 = vpop.f32.mrf.mxu0
        %v5812 = vadd.f32 0.0, %v5811
        %v5813 = vpop.f32.mrf.mxu0
        %v5814 = vpop.f32.mrf.mxu0
        %v5815 = vadd.f32 0.0, %v5814
        %v5816 = vpop.f32.mrf.mxu0
        %5817 = vmatprep.mubr.bf16.mxu0 0
        %5818 = vmatmul.mubr.bf16.gmra.mxu0 %v5662
        %v5819 = vpop.f32.mrf.mxu0
        %v5820 = vadd.f32 0.0, %v5819
        %v5821 = vpop.f32.mrf.mxu0
        %v5822 = vpop.f32.mrf.mxu0
        %v5823 = vadd.f32 0.0, %v5822
        %v5824 = vpop.f32.mrf.mxu0
        %5825 = vmatprep.mubr.bf16.mxu0 0
        %5826 = vmatmul.mubr.bf16.gmra.mxu0 %v5663
        %v5827 = vpop.f32.mrf.mxu0
        %v5828 = vadd.f32 0.0, %v5827
        %v5829 = vpop.f32.mrf.mxu0
        %v5830 = vpop.f32.mrf.mxu0
        %v5831 = vadd.f32 0.0, %v5830
        %v5832 = vpop.f32.mrf.mxu0
        %5833 = vmatprep.mubr.bf16.mxu0 0
        %5834 = vmatmul.mubr.bf16.gmra.mxu0 %v5664
        %v5835 = vpop.f32.mrf.mxu0
        %v5836 = vadd.f32 0.0, %v5835
        %v5837 = vpop.f32.mrf.mxu0
        %v5838 = vpop.f32.mrf.mxu0
        %v5839 = vadd.f32 0.0, %v5838
        %v5840 = vpop.f32.mrf.mxu0
        %5841 = vmatprep.mubr.bf16.mxu0 0
        %5842 = vmatmul.mubr.bf16.gmra.mxu0 %v5665
        %v5843 = vpop.f32.mrf.mxu0
        %v5844 = vadd.f32 0.0, %v5843
        %v5845 = vpop.f32.mrf.mxu0
        %v5846 = vpop.f32.mrf.mxu0
        %v5847 = vadd.f32 0.0, %v5846
        %v5848 = vpop.f32.mrf.mxu0
        %5849 = vmatprep.mubr.bf16.mxu0 0
        %5850 = vmatmul.mubr.bf16.gmra.mxu0 %v5666
        %v5851 = vpop.f32.mrf.mxu0
        %v5852 = vadd.f32 0.0, %v5851
        %v5853 = vpop.f32.mrf.mxu0
        %v5854 = vpop.f32.mrf.mxu0
        %v5855 = vadd.f32 0.0, %v5854
        %v5856 = vpop.f32.mrf.mxu0
        %5857 = vmatprep.mubr.bf16.mxu0 0
        %5858 = vmatmul.mubr.bf16.gmra.mxu0 %v5667
        %v5859 = vpop.f32.mrf.mxu0
        %v5860 = vadd.f32 0.0, %v5859
        %v5861 = vpop.f32.mrf.mxu0
        %v5862 = vpop.f32.mrf.mxu0
        %v5863 = vadd.f32 0.0, %v5862
        %v5864 = vpop.f32.mrf.mxu0
        %5865 = vmatprep.mubr.bf16.mxu0 0
        %5866 = vmatmul.mubr.bf16.gmra.mxu0 %v5668
        %v5867 = vpop.f32.mrf.mxu0
        %v5868 = vadd.f32 0.0, %v5867
        %v5869 = vpop.f32.mrf.mxu0
        %v5870 = vpop.f32.mrf.mxu0
        %v5871 = vadd.f32 0.0, %v5870
        %v5872 = vpop.f32.mrf.mxu0
        %5873 = vmatprep.mubr.bf16.mxu0 0
        %5874 = vmatmul.mubr.bf16.gmra.mxu0 %v5669
        %v5875 = vpop.f32.mrf.mxu0
        %v5876 = vadd.f32 0.0, %v5875
        %v5877 = vpop.f32.mrf.mxu0
        %v5878 = vpop.f32.mrf.mxu0
        %v5879 = vadd.f32 0.0, %v5878
        %v5880 = vpop.f32.mrf.mxu0
        %5881 = vmatprep.mubr.bf16.mxu0 0
        %5882 = vmatmul.mubr.bf16.gmra.mxu0 %v5670
        %v5883 = vpop.f32.mrf.mxu0
        %v5884 = vadd.f32 0.0, %v5883
        %v5885 = vpop.f32.mrf.mxu0
        %v5886 = vpop.f32.mrf.mxu0
        %v5887 = vadd.f32 0.0, %v5886
        %v5888 = vpop.f32.mrf.mxu0
        %5889 = vmatprep.mubr.bf16.mxu0 0
        %5890 = vmatmul.mubr.bf16.gmra.mxu0 %v5671
        %v5891 = vpop.f32.mrf.mxu0
        %v5892 = vadd.f32 0.0, %v5891
        %v5893 = vpop.f32.mrf.mxu0
        %v5894 = vpop.f32.mrf.mxu0
        %v5895 = vadd.f32 0.0, %v5894
        %v5896 = vpop.f32.mrf.mxu0
        %5897 = vdwg.mxu0
        %v5898 = vadd.f32 %v5592, %v5772
        %v5899 = vadd.f32 %v5593, %v5775
        %v5900 = vadd.f32 %v5594, %v5780
        %v5901 = vadd.f32 %v5595, %v5783
        %v5902 = vadd.f32 %v5596, %v5788
        %v5903 = vadd.f32 %v5597, %v5791
        %v5904 = vadd.f32 %v5598, %v5796
        %v5905 = vadd.f32 %v5599, %v5799
        %v5906 = vadd.f32 %v5600, %v5804
        %v5907 = vadd.f32 %v5601, %v5807
        %v5908 = vadd.f32 %v5602, %v5812
        %v5909 = vadd.f32 %v5603, %v5815
        %v5910 = vadd.f32 %v5604, %v5820
        %v5911 = vadd.f32 %v5605, %v5823
        %v5912 = vadd.f32 %v5606, %v5828
        %v5913 = vadd.f32 %v5607, %v5831
        %v5914 = vadd.f32 %v5608, %v5836
        %v5915 = vadd.f32 %v5609, %v5839
        %v5916 = vadd.f32 %v5610, %v5844
        %v5917 = vadd.f32 %v5611, %v5847
        %v5918 = vadd.f32 %v5612, %v5852
        %v5919 = vadd.f32 %v5613, %v5855
        %v5920 = vadd.f32 %v5614, %v5860
        %v5921 = vadd.f32 %v5615, %v5863
        %v5922 = vadd.f32 %v5616, %v5868
        %v5923 = vadd.f32 %v5617, %v5871
        %v5924 = vadd.f32 %v5618, %v5876
        %v5925 = vadd.f32 %v5619, %v5879
        %v5926 = vadd.f32 %v5620, %v5884
        %v5927 = vadd.f32 %v5621, %v5887
        %v5928 = vadd.f32 %v5622, %v5892
        %v5929 = vadd.f32 %v5623, %v5895
        %v5930 = vld [vmem:[%s4] sm:$0x1]
        %v5932 = vlaneseq
        %v5933 = vshrl.u32 %v5932, 7
        %v5934 = vsub.s32 0, %v5933
        %v5935 = vrot.slane %v5930, %v5934
        %v5937 = vadd.f32 %v5898, %v5935
        %v5938 = vadd.f32 %v5899, %v5935
        %v5939 = vadd.f32 %v5900, %v5935
        %v5940 = vadd.f32 %v5901, %v5935
        %v5941 = vadd.f32 %v5902, %v5935
        %v5942 = vadd.f32 %v5903, %v5935
        %v5943 = vadd.f32 %v5904, %v5935
        %v5944 = vadd.f32 %v5905, %v5935
        %v5945 = vadd.f32 %v5906, %v5935
        %v5946 = vadd.f32 %v5907, %v5935
        %v5947 = vadd.f32 %v5908, %v5935
        %v5948 = vadd.f32 %v5909, %v5935
        %v5949 = vadd.f32 %v5910, %v5935
        %v5950 = vadd.f32 %v5911, %v5935
        %v5951 = vadd.f32 %v5912, %v5935
        %v5952 = vadd.f32 %v5913, %v5935
        %v5953 = vadd.f32 %v5914, %v5935
        %v5954 = vadd.f32 %v5915, %v5935
        %v5955 = vadd.f32 %v5916, %v5935
        %v5956 = vadd.f32 %v5917, %v5935
        %v5957 = vadd.f32 %v5918, %v5935
        %v5958 = vadd.f32 %v5919, %v5935
        %v5959 = vadd.f32 %v5920, %v5935
        %v5960 = vadd.f32 %v5921, %v5935
        %v5961 = vadd.f32 %v5922, %v5935
        %v5962 = vadd.f32 %v5923, %v5935
        %v5963 = vadd.f32 %v5924, %v5935
        %v5964 = vadd.f32 %v5925, %v5935
        %v5965 = vadd.f32 %v5926, %v5935
        %v5966 = vadd.f32 %v5927, %v5935
        %v5967 = vadd.f32 %v5928, %v5935
        %v5968 = vadd.f32 %v5929, %v5935
        %v5969 = vadd.f32 %v5937, %v273
        %v5970 = vadd.f32 %v5938, %v274
        %v5971 = vadd.f32 %v5939, %v275
        %v5972 = vadd.f32 %v5940, %v276
        %v5973 = vadd.f32 %v5941, %v277
        %v5974 = vadd.f32 %v5942, %v278
        %v5975 = vadd.f32 %v5943, %v279
        %v5976 = vadd.f32 %v5944, %v280
        %v5977 = vadd.f32 %v5945, %v281
        %v5978 = vadd.f32 %v5946, %v282
        %v5979 = vadd.f32 %v5947, %v283
        %v5980 = vadd.f32 %v5948, %v284
        %v5981 = vadd.f32 %v5949, %v285
        %v5982 = vadd.f32 %v5950, %v286
        %v5983 = vadd.f32 %v5951, %v287
        %v5984 = vadd.f32 %v5952, %v288
        %v5985 = vadd.f32 %v5953, %v289
        %v5986 = vadd.f32 %v5954, %v290
        %v5987 = vadd.f32 %v5955, %v291
        %v5988 = vadd.f32 %v5956, %v292
        %v5989 = vadd.f32 %v5957, %v293
        %v5990 = vadd.f32 %v5958, %v294
        %v5991 = vadd.f32 %v5959, %v295
        %v5992 = vadd.f32 %v5960, %v296
        %v5993 = vadd.f32 %v5961, %v297
        %v5994 = vadd.f32 %v5962, %v298
        %v5995 = vadd.f32 %v5963, %v299
        %v5996 = vadd.f32 %v5964, %v300
        %v5997 = vadd.f32 %v5965, %v301
        %v5998 = vadd.f32 %v5966, %v302
        %v5999 = vadd.f32 %v5967, %v303
        %v6000 = vadd.f32 %v5968, %v304
        %v6001 = vmax.f32 %v5969, 0.0
        %v6002 = vmax.f32 %v5970, 0.0
        %v6003 = vmax.f32 %v5971, 0.0
        %v6004 = vmax.f32 %v5972, 0.0
        %v6005 = vmax.f32 %v5973, 0.0
        %v6006 = vmax.f32 %v5974, 0.0
        %v6007 = vmax.f32 %v5975, 0.0
        %v6008 = vmax.f32 %v5976, 0.0
        %v6009 = vmax.f32 %v5977, 0.0
        %v6010 = vmax.f32 %v5978, 0.0
        %v6011 = vmax.f32 %v5979, 0.0
        %v6012 = vmax.f32 %v5980, 0.0
        %v6013 = vmax.f32 %v5981, 0.0
        %v6014 = vmax.f32 %v5982, 0.0
        %v6015 = vmax.f32 %v5983, 0.0
        %v6016 = vmax.f32 %v5984, 0.0
        %v6017 = vmax.f32 %v5985, 0.0
        %v6018 = vmax.f32 %v5986, 0.0
        %v6019 = vmax.f32 %v5987, 0.0
        %v6020 = vmax.f32 %v5988, 0.0
        %v6021 = vmax.f32 %v5989, 0.0
        %v6022 = vmax.f32 %v5990, 0.0
        %v6023 = vmax.f32 %v5991, 0.0
        %v6024 = vmax.f32 %v5992, 0.0
        %v6025 = vmax.f32 %v5993, 0.0
        %v6026 = vmax.f32 %v5994, 0.0
        %v6027 = vmax.f32 %v5995, 0.0
        %v6028 = vmax.f32 %v5996, 0.0
        %v6029 = vmax.f32 %v5997, 0.0
        %v6030 = vmax.f32 %v5998, 0.0
        %v6031 = vmax.f32 %v5999, 0.0
        %v6032 = vmax.f32 %v6000, 0.0
        %6033 = vst [vmem:[%s271] sm:$0xff] %v6001
        %6034 = vst [vmem:[%s271 + $0x8] sm:$0xff] %v6002
        %6035 = vst [vmem:[%s271 + $0x10] sm:$0xff] %v6003
        %6036 = vst [vmem:[%s271 + $0x18] sm:$0xff] %v6004
        %6037 = vst [vmem:[%s271 + $0x20] sm:$0xff] %v6005
        %6038 = vst [vmem:[%s271 + $0x28] sm:$0xff] %v6006
        %6039 = vst [vmem:[%s271 + $0x30] sm:$0xff] %v6007
        %6040 = vst [vmem:[%s271 + $0x38] sm:$0xff] %v6008
        %6041 = vst [vmem:[%s271 + $0x40] sm:$0xff] %v6009
        %6042 = vst [vmem:[%s271 + $0x48] sm:$0xff] %v6010
        %6043 = vst [vmem:[%s271 + $0x50] sm:$0xff] %v6011
        %6044 = vst [vmem:[%s271 + $0x58] sm:$0xff] %v6012
        %6045 = vst [vmem:[%s271 + $0x60] sm:$0xff] %v6013
        %6046 = vst [vmem:[%s271 + $0x68] sm:$0xff] %v6014
        %6047 = vst [vmem:[%s271 + $0x70] sm:$0xff] %v6015
        %6048 = vst [vmem:[%s271 + $0x78] sm:$0xff] %v6016
        %6049 = vst [vmem:[%s271 + $0x80] sm:$0xff] %v6017
        %6050 = vst [vmem:[%s271 + $0x88] sm:$0xff] %v6018
        %6051 = vst [vmem:[%s271 + $0x90] sm:$0xff] %v6019
        %6052 = vst [vmem:[%s271 + $0x98] sm:$0xff] %v6020
        %6053 = vst [vmem:[%s271 + $0xa0] sm:$0xff] %v6021
        %6054 = vst [vmem:[%s271 + $0xa8] sm:$0xff] %v6022
        %6055 = vst [vmem:[%s271 + $0xb0] sm:$0xff] %v6023
        %6056 = vst [vmem:[%s271 + $0xb8] sm:$0xff] %v6024
        %6057 = vst [vmem:[%s271 + $0xc0] sm:$0xff] %v6025
        %6058 = vst [vmem:[%s271 + $0xc8] sm:$0xff] %v6026
        %6059 = vst [vmem:[%s271 + $0xd0] sm:$0xff] %v6027
        %6060 = vst [vmem:[%s271 + $0xd8] sm:$0xff] %v6028
        %6061 = vst [vmem:[%s271 + $0xe0] sm:$0xff] %v6029
        %6062 = vst [vmem:[%s271 + $0xe8] sm:$0xff] %v6030
        %6063 = vst [vmem:[%s271 + $0xf0] sm:$0xff] %v6031
        %6064 = vst [vmem:[%s271 + $0xf8] sm:$0xff] %v6032
        %s6065 = sand.u32 %s141, 1
        %s6066 = scalar_lea.sflag [#allocation6], %s6065
        %s6067 = sand.u32 %s141, 1
        %s6068 = smul.addr %s6067, 256
        %s6069 = scalar_lea.vmem [#allocation10], %s6068
        // Predicated region
        $region53: #{basic_block_forward.1} parent=39 // pred_check
          %p6070 = pneg %p151
        $region54: #{basic_block_forward.1} parent=39 // pred_check_branch
          %6072 = sbr.rel (%p6070) target = $region56
        $region55: #{basic_block_forward.1} parent=39 // pred_region
          %s6074 = ssub.s32 4096, 4096
          %6075 = vsyncadd %s6066, %s6074
          %s6076 = smul.addr %s23, 32
          %s6077 = smul.addr %s6076, 128
          %s6078 = scalar_lea.hbm %s5, %s6077
          %s6079 = sshll.u32 %s6069, 4
          %s6080 = int_to_ptr.vmem [resolvable:$true] %s6079
          %6085 = dma.vmem_to_hbm [thread:$0]  %s6080, 4096, %s6078, %s6066, 128, 128, 8
        $region56: #{basic_block_forward.1} parent=39 // pred_fallthru
          _
      $region40: #{basic_block_forward.1} parent=5 // pred_fallthru
        _
      %p6086 = scmp.le.s32.totalorder 2, %s18
      // Predicated region
      $region57: #{basic_block_forward.1} parent=5 // pred_check
        %p6087 = pneg %p6086
      $region58: #{basic_block_forward.1} parent=5 // pred_check_branch
        %6089 = sbr.rel (%p6087) target = $region60
      $region59: #{basic_block_forward.1} parent=5 // pred_region
        %s6090 = ssub.s32 %s18, 2
        // Predicated region
        $region61: #{basic_block_forward.1} parent=59 // pred_check
          %p6091 = pneg %p157
        $region62: #{basic_block_forward.1} parent=59 // pred_check_branch
          %6093 = sbr.rel (%p6091) target = $region64
        $region63: #{basic_block_forward.1} parent=59 // pred_region
          %s6094 = sand.u32 %s142, 1
          %s6095 = scalar_lea.sflag [#allocation6], %s6094
          %s6096 = sand.u32 %s142, 1
          %s6097 = smul.addr %s6096, 256
          %s6098 = scalar_lea.vmem [#allocation10], %s6097
          %6099 = dma.done %s6095, 4096
        $region64: #{basic_block_forward.1} parent=59 // pred_fallthru
          _
      $region60: #{basic_block_forward.1} parent=5 // pred_fallthru
        _
    $region6: #{basic_block_forward.1} parent=1 // loop_footer
      %s22 = sadd.s32 1, %s18
    $region7: #{basic_block_forward.1} parent=1 // loop_footer_branch
      %17 = sbr.rel target = $region3
    $region8: #{basic_block_forward.1} parent=1 // loop_exit
      _
    %6100 = vsyncpa [#allocation5], 1
    %s6101 = scalar_lea.sflag [#allocation5], 1
    %6102 = vsyncpa %s6101, 1
    %6103 = vsyncpa [#allocation8], 1
    %6104 = vsyncpa [#allocation6], 1
    %s6105 = scalar_lea.sflag [#allocation6], 1
    %6106 = vsyncpa %s6105, 1

</llo_original>
